<compile_context>
chip_gen: v5e
topology: v5e:2x2
jax: 0.10.0
libtpu: 0.0.40
codegen_flags: <defaults>
</compile_context>

<pallas_src>
import functools

import jax
import jax.numpy as jnp
import numpy as np
from jax.experimental import pallas as pl
from jax.experimental.pallas import tpu as pltpu


# ------------------------------ small helpers ----------------------------- #
def _round_up(x, m):
    return ((x + m - 1) // m) * m


def _pick_tm(M, cap):
    """Row-tile size: large tiles to amortize per-step overhead, but prefer
    >=2 grid steps when there is enough work (v7x has 2 TensorCores)."""
    Mp = _round_up(M, 128)
    if Mp <= 128:
        tm = Mp
    else:
        tm = min(cap, _round_up(Mp // 2, 128))
    return tm, _round_up(M, tm)


# ----------------------------- Pallas kernels ------------------------------ #
def matmul_bias_act_kernel(a_ref, w_ref, b_ref, o_ref, *, relu):
    """o = maybe_relu(a @ w + b) for one (tm, N) output tile, bf16 MXU."""
    a = a_ref[...]
    if a.dtype == jnp.uint8:
        a = a.astype(jnp.float32)          # two-step u8 -> f32 -> bf16 cast
    a = a.astype(jnp.bfloat16)
    acc = jnp.dot(a, w_ref[...], preferred_element_type=jnp.float32)
    acc = acc + b_ref[...]
    if relu:
        acc = jnp.maximum(acc, 0.0)
    o_ref[...] = acc.astype(o_ref.dtype)


def mlp_head_kernel(a_ref, w4_ref, b4_ref, wh_ref, bh_ref, o_ref):
    """Fused fc4(+ReLU) and head: the (tm, 512) hidden never leaves VMEM."""
    a = a_ref[...].astype(jnp.bfloat16)                       # (tm, 3136)
    h = jnp.dot(a, w4_ref[...], preferred_element_type=jnp.float32)
    h = jnp.maximum(h + b4_ref[...], 0.0).astype(jnp.bfloat16)  # (tm, 512)
    o = jnp.dot(h, wh_ref[...], preferred_element_type=jnp.float32)
    o_ref[...] = o + bh_ref[...]                              # (tm, 128) f32


# ----------------------------- kernel wrappers ----------------------------- #
def matmul_bias_act(a, w_bf16, b_f32, *, relu=True, out_dtype=jnp.bfloat16,
                    tm_cap=512):
    """Tiled (over rows of `a`) fused matmul + bias + optional ReLU."""
    M, K = a.shape
    Kw, N = w_bf16.shape
    assert K == Kw, (K, Kw)
    tm, Mp = _pick_tm(M, tm_cap)
    if Mp != M:
        a = jnp.pad(a, ((0, Mp - M), (0, 0)))
    b2 = b_f32.reshape(1, N).astype(jnp.float32)
    out = pl.pallas_call(
        functools.partial(matmul_bias_act_kernel, relu=relu),
        out_shape=jax.ShapeDtypeStruct((Mp, N), out_dtype),
        grid=(Mp // tm,),
        in_specs=[
            pl.BlockSpec((tm, K), lambda i: (i, 0)),   # patches / activations
            pl.BlockSpec((K, N), lambda i: (0, 0)),    # weights (resident)
            pl.BlockSpec((1, N), lambda i: (0, 0)),    # bias (resident)
        ],
        out_specs=pl.BlockSpec((tm, N), lambda i: (i, 0)),
        compiler_params=pltpu.CompilerParams(
            dimension_semantics=("parallel",),
            vmem_limit_bytes=32 * 1024 * 1024),
    )(a, w_bf16, b2)
    return out[:M]


def mlp_head(a, w4, b4, wh, bh, *, tm_cap=256):
    """Fused fc4 + head over (M, 3136) rows; head output padded to 128 lanes."""
    M, K = a.shape
    K4, H = w4.shape
    H2, Np = wh.shape
    assert K == K4 and H == H2, (K, K4, H, H2)
    tm, Mp = _pick_tm(M, tm_cap)
    if Mp != M:
        a = jnp.pad(a, ((0, Mp - M), (0, 0)))
    b4r = b4.reshape(1, H).astype(jnp.float32)
    bhr = bh.reshape(1, Np).astype(jnp.float32)
    out = pl.pallas_call(
        mlp_head_kernel,
        out_shape=jax.ShapeDtypeStruct((Mp, Np), jnp.float32),
        grid=(Mp // tm,),
        in_specs=[
            pl.BlockSpec((tm, K), lambda i: (i, 0)),   # flattened conv features
            pl.BlockSpec((K, H), lambda i: (0, 0)),    # fc4 weight (resident)
            pl.BlockSpec((1, H), lambda i: (0, 0)),    # fc4 bias
            pl.BlockSpec((H, Np), lambda i: (0, 0)),   # head weight (padded)
            pl.BlockSpec((1, Np), lambda i: (0, 0)),   # head bias (padded)
        ],
        out_specs=pl.BlockSpec((tm, Np), lambda i: (i, 0)),
        compiler_params=pltpu.CompilerParams(
            dimension_semantics=("parallel",),
            vmem_limit_bytes=32 * 1024 * 1024),
    )(a, w4, b4r, wh, bhr)
    return out[:M]


# ------------------------------- JAX glue --------------------------------- #
def im2col(x_nhwc, kh, kw, stride):
    """Extract conv patches -> [B*OH*OW, KH*KW*C] (K order = (kh, kw, c)).
    Runs on the host in the input's dtype (uint8 for conv1, bf16 afterwards)."""
    B, H, W, C = x_nhwc.shape
    oh = (H - kh) // stride + 1
    ow = (W - kw) // stride + 1
    cols = []
    for i in range(kh):
        for j in range(kw):
            cols.append(
                x_nhwc[:, i:i + stride * oh:stride, j:j + stride * ow:stride, :]
            )
    p = jnp.stack(cols, axis=3)                      # (B, oh, ow, kh*kw, C)
    return p.reshape(B * oh * ow, kh * kw * C), oh, ow


def conv_weight_to_matrix(w_oihw):
    """(O, I, KH, KW) torch layout -> (KH*KW*I, O) matching im2col K order."""
    O = w_oihw.shape[0]
    return jnp.transpose(w_oihw, (2, 3, 1, 0)).reshape(-1, O)


def init_params(key, in_channels=4, n_actions=14):
    ks = jax.random.split(key, 10)

    def u(k, shape, fan_in):
        bound = 1.0 / np.sqrt(fan_in)
        return jax.random.uniform(k, shape, jnp.float32, -bound, bound)

    return {
        "conv1_w": u(ks[0], (32, in_channels, 8, 8), in_channels * 8 * 8),
        "conv1_b": u(ks[1], (32,), in_channels * 8 * 8),
        "conv2_w": u(ks[2], (64, 32, 4, 4), 32 * 4 * 4),
        "conv2_b": u(ks[3], (64,), 32 * 4 * 4),
        "conv3_w": u(ks[4], (64, 64, 3, 3), 64 * 3 * 3),
        "conv3_b": u(ks[5], (64,), 64 * 3 * 3),
        "fc4_w": u(ks[6], (7 * 7 * 64, 512), 7 * 7 * 64),
        "fc4_b": u(ks[7], (512,), 7 * 7 * 64),
        "head_w": u(ks[8], (512, n_actions), 512),
        "head_b": u(ks[9], (n_actions,), 512),
    }


def prepare_params(params, n_actions=14, head_pad=128):
    """One-time host-side weight prep: matmul layout, fold 1/255 into conv1,
    permute fc4 rows from NCHW to NHWC order, pad head to 128 lanes, bf16."""
    # fc4 rows are indexed c*49 + oh*7 + ow (PyTorch NCHW flatten); permute to
    # oh*7*64 + ow*64 + c so the NHWC conv3 output flattens directly.
    w4 = params["fc4_w"].reshape(64, 7, 7, 512)
    w4 = jnp.transpose(w4, (1, 2, 0, 3)).reshape(7 * 7 * 64, 512)
    wh = jnp.zeros((512, head_pad), jnp.float32).at[:, :n_actions].set(
        params["head_w"])
    bh = jnp.zeros((head_pad,), jnp.float32).at[:n_actions].set(
        params["head_b"])
    return {
        "w1": (conv_weight_to_matrix(params["conv1_w"]) / 255.0).astype(jnp.bfloat16),
        "b1": params["conv1_b"].astype(jnp.float32),
        "w2": conv_weight_to_matrix(params["conv2_w"]).astype(jnp.bfloat16),
        "b2": params["conv2_b"].astype(jnp.float32),
        "w3": conv_weight_to_matrix(params["conv3_w"]).astype(jnp.bfloat16),
        "b3": params["conv3_b"].astype(jnp.float32),
        "w4": w4.astype(jnp.bfloat16),
        "b4": params["fc4_b"].astype(jnp.float32),
        "wh": wh.astype(jnp.bfloat16),
        "bh": bh,
    }


@functools.partial(jax.jit, static_argnames=("n_actions",))
def dqn_forward(prep, x_nchw, n_actions=14):
    """Pallas implementation of DQN.forward (input NCHW uint8, like Atari)."""
    B = x_nchw.shape[0]
    x = jnp.transpose(x_nchw, (0, 2, 3, 1))              # NHWC, still uint8

    # conv1 (8x8, stride 4) + ReLU ; x/255 folded into w1 host-side
    p, oh, ow = im2col(x, 8, 8, 4)                       # (B*400, 256) u8
    y = matmul_bias_act(p, prep["w1"], prep["b1"])       # (B*400, 32) bf16
    x = y.reshape(B, oh, ow, 32)

    # conv2 (4x4, stride 2) + ReLU
    p, oh, ow = im2col(x, 4, 4, 2)                       # (B*81, 512) bf16
    y = matmul_bias_act(p, prep["w2"], prep["b2"])
    x = y.reshape(B, oh, ow, 64)

    # conv3 (3x3, stride 1) + ReLU
    p, oh, ow = im2col(x, 3, 3, 1)                       # (B*49, 576) bf16
    y = matmul_bias_act(p, prep["w3"], prep["b3"])       # (B*49, 64) bf16

    # NHWC flatten (fc4 weight rows were permuted host-side to match), then
    # fused fc4 + ReLU + head in a single kernel; slice off head padding.
    x = y.reshape(B, oh * ow * 64)                       # (B, 3136) bf16
    q = mlp_head(x, prep["w4"], prep["b4"], prep["wh"], prep["bh"])
    return q[:, :n_actions]


# Pure-JAX reference (mirrors the PyTorch forward exactly) for validation.
def dqn_reference(params, x_nchw):
    dn = ("NCHW", "OIHW", "NCHW")
    x = x_nchw.astype(jnp.float32) / 255.0
    for wname, bname, s in (("conv1_w", "conv1_b", 4),
                            ("conv2_w", "conv2_b", 2),
                            ("conv3_w", "conv3_b", 1)):
        x = jax.lax.conv_general_dilated(x, params[wname], (s, s), "VALID",
                                         dimension_numbers=dn)
        x = jax.nn.relu(x + params[bname][None, :, None, None])
    x = x.reshape(x.shape[0], -1)
    x = jax.nn.relu(x @ params["fc4_w"] + params["fc4_b"])
    return x @ params["head_w"] + params["head_b"]


if __name__ == "__main__":
    key = jax.random.PRNGKey(0)
    kp, kx = jax.random.split(key)
    params = init_params(kp, in_channels=4, n_actions=14)
    prep = prepare_params(params, n_actions=14)

    # 84x84 spatial is implied by fc4's hard-coded 7*7*64 input features.
    x = jax.random.randint(kx, (2, 4, 84, 84), 0, 256,
                           dtype=jnp.int32).astype(jnp.uint8)

    out = jax.block_until_ready(dqn_forward(prep, x))
    assert out.shape == (2, 14), out.shape

    ref = jax.block_until_ready(dqn_reference(params, x))
    np.testing.assert_allclose(np.asarray(out), np.asarray(ref),
                               rtol=2e-2, atol=2e-2)
    print("KERNEL_OK")
</pallas_src>

<mosaic_0001>
module attributes {stable_mosaic.version = 11 : i64} {
  func.func @matmul_bias_act_kernel(%arg0: i32, %arg1: memref<512x256xi8, #tpu.memory_space<vmem>>, %arg2: memref<256x32xbf16, #tpu.memory_space<vmem>>, %arg3: memref<1x32xf32, #tpu.memory_space<vmem>>, %arg4: memref<512x32xbf16, #tpu.memory_space<vmem>>) attributes {dimension_semantics = [#tpu.dimension_semantics<parallel>], iteration_bounds = array<i64: 2>, scalar_prefetch = 0 : i64, scratch_operands = 0 : i64, tpu.core_type = #tpu.core_type<tc>, window_params = [{transform_indices = @transform_0, window_bounds = array<i64: 512, 256>}, {pipeline_mode = #tpu.pipeline_mode<synchronous>, transform_indices = @transform_1, window_bounds = array<i64: 256, 32>}, {pipeline_mode = #tpu.pipeline_mode<synchronous>, transform_indices = @transform_2, window_bounds = array<i64: 1, 32>}, {transform_indices = @transform_3, window_bounds = array<i64: 512, 32>}]} {
    %c0 = arith.constant 0 : index
    %c0_0 = arith.constant 0 : index
    %0 = vector.load %arg1[%c0, %c0_0] : memref<512x256xi8, #tpu.memory_space<vmem>>, vector<512x256xi8>
    %1 = arith.uitofp %0 : vector<512x256xi8> to vector<512x256xf32>
    %2 = arith.truncf %1 : vector<512x256xf32> to vector<512x256xbf16>
    %c0_1 = arith.constant 0 : index
    %c0_2 = arith.constant 0 : index
    %3 = vector.load %arg2[%c0_1, %c0_2] : memref<256x32xbf16, #tpu.memory_space<vmem>>, vector<256x32xbf16>
    %cst = arith.constant dense<0.000000e+00> : vector<512x32xf32>
    %4 = tpu.matmul %2, %3, %cst {dimension_numbers = #tpu.dot_dimension_numbers<[1], [0], [0], [1], [0, 0, 1, 1], [], []>} : vector<512x256xbf16>, vector<256x32xbf16>, vector<512x32xf32> -> vector<512x32xf32>
    %c0_3 = arith.constant 0 : index
    %c0_4 = arith.constant 0 : index
    %5 = vector.load %arg3[%c0_3, %c0_4] : memref<1x32xf32, #tpu.memory_space<vmem>>, vector<1x32xf32>
    %6 = vector.broadcast %5 : vector<1x32xf32> to vector<512x32xf32>
    %7 = arith.addf %4, %6 : vector<512x32xf32>
    %cst_5 = arith.constant 0.000000e+00 : f32
    %8 = vector.broadcast %cst_5 : f32 to vector<512x32xf32>
    %9 = arith.maximumf %7, %8 : vector<512x32xf32>
    %10 = arith.truncf %9 : vector<512x32xf32> to vector<512x32xbf16>
    %c0_6 = arith.constant 0 : index
    %c0_7 = arith.constant 0 : index
    %11 = vector.load %arg4[%c0_6, %c0_7] : memref<512x32xbf16, #tpu.memory_space<vmem>>, vector<512x32xbf16>
    tpu.vector_store %arg4[%c0_6, %c0_7], %10 {strides = array<i32>} : memref<512x32xbf16, #tpu.memory_space<vmem>>, vector<512x32xbf16>,
    return
  }
  func.func @transform_0(%arg0: i32) -> (i32, i32) {
    %c0_i32 = arith.constant 0 : i32
    %c0_i32_0 = arith.constant 0 : i32
    return %arg0, %c0_i32 : i32, i32
  }
  func.func @transform_1(%arg0: i32) -> (i32, i32) {
    %c0_i32 = arith.constant 0 : i32
    %c0_i32_0 = arith.constant 0 : i32
    %c0_i32_1 = arith.constant 0 : i32
    return %c0_i32, %c0_i32_0 : i32, i32
  }
  func.func @transform_2(%arg0: i32) -> (i32, i32) {
    %c0_i32 = arith.constant 0 : i32
    %c0_i32_0 = arith.constant 0 : i32
    %c0_i32_1 = arith.constant 0 : i32
    return %c0_i32, %c0_i32_0 : i32, i32
  }
  func.func @transform_3(%arg0: i32) -> (i32, i32) {
    %c0_i32 = arith.constant 0 : i32
    %c0_i32_0 = arith.constant 0 : i32
    return %arg0, %c0_i32 : i32, i32
  }
}

module attributes {stable_mosaic.version = 11 : i64} {
  func.func @matmul_bias_act_kernel(%arg0: i32, %arg1: memref<128x512xbf16, #tpu.memory_space<vmem>>, %arg2: memref<512x64xbf16, #tpu.memory_space<vmem>>, %arg3: memref<1x64xf32, #tpu.memory_space<vmem>>, %arg4: memref<128x64xbf16, #tpu.memory_space<vmem>>) attributes {dimension_semantics = [#tpu.dimension_semantics<parallel>], iteration_bounds = array<i64: 2>, scalar_prefetch = 0 : i64, scratch_operands = 0 : i64, tpu.core_type = #tpu.core_type<tc>, window_params = [{transform_indices = @transform_0, window_bounds = array<i64: 128, 512>}, {pipeline_mode = #tpu.pipeline_mode<synchronous>, transform_indices = @transform_1, window_bounds = array<i64: 512, 64>}, {pipeline_mode = #tpu.pipeline_mode<synchronous>, transform_indices = @transform_2, window_bounds = array<i64: 1, 64>}, {transform_indices = @transform_3, window_bounds = array<i64: 128, 64>}]} {
    %c0 = arith.constant 0 : index
    %c0_0 = arith.constant 0 : index
    %0 = vector.load %arg1[%c0, %c0_0] : memref<128x512xbf16, #tpu.memory_space<vmem>>, vector<128x512xbf16>
    %c0_1 = arith.constant 0 : index
    %c0_2 = arith.constant 0 : index
    %1 = vector.load %arg2[%c0_1, %c0_2] : memref<512x64xbf16, #tpu.memory_space<vmem>>, vector<512x64xbf16>
    %cst = arith.constant dense<0.000000e+00> : vector<128x64xf32>
    %2 = tpu.matmul %0, %1, %cst {dimension_numbers = #tpu.dot_dimension_numbers<[1], [0], [0], [1], [0, 0, 1, 1], [], []>} : vector<128x512xbf16>, vector<512x64xbf16>, vector<128x64xf32> -> vector<128x64xf32>
    %c0_3 = arith.constant 0 : index
    %c0_4 = arith.constant 0 : index
    %3 = vector.load %arg3[%c0_3, %c0_4] : memref<1x64xf32, #tpu.memory_space<vmem>>, vector<1x64xf32>
    %4 = vector.broadcast %3 : vector<1x64xf32> to vector<128x64xf32>
    %5 = arith.addf %2, %4 : vector<128x64xf32>
    %cst_5 = arith.constant 0.000000e+00 : f32
    %6 = vector.broadcast %cst_5 : f32 to vector<128x64xf32>
    %7 = arith.maximumf %5, %6 : vector<128x64xf32>
    %8 = arith.truncf %7 : vector<128x64xf32> to vector<128x64xbf16>
    %c0_6 = arith.constant 0 : index
    %c0_7 = arith.constant 0 : index
    %9 = vector.load %arg4[%c0_6, %c0_7] : memref<128x64xbf16, #tpu.memory_space<vmem>>, vector<128x64xbf16>
    tpu.vector_store %arg4[%c0_6, %c0_7], %8 {strides = array<i32>} : memref<128x64xbf16, #tpu.memory_space<vmem>>, vector<128x64xbf16>,
    return
  }
  func.func @transform_0(%arg0: i32) -> (i32, i32) {
    %c0_i32 = arith.constant 0 : i32
    %c0_i32_0 = arith.constant 0 : i32
    return %arg0, %c0_i32 : i32, i32
  }
  func.func @transform_1(%arg0: i32) -> (i32, i32) {
    %c0_i32 = arith.constant 0 : i32
    %c0_i32_0 = arith.constant 0 : i32
    %c0_i32_1 = arith.constant 0 : i32
    return %c0_i32, %c0_i32_0 : i32, i32
  }
  func.func @transform_2(%arg0: i32) -> (i32, i32) {
    %c0_i32 = arith.constant 0 : i32
    %c0_i32_0 = arith.constant 0 : i32
    %c0_i32_1 = arith.constant 0 : i32
    return %c0_i32, %c0_i32_0 : i32, i32
  }
  func.func @transform_3(%arg0: i32) -> (i32, i32) {
    %c0_i32 = arith.constant 0 : i32
    %c0_i32_0 = arith.constant 0 : i32
    return %arg0, %c0_i32 : i32, i32
  }
}

module attributes {stable_mosaic.version = 11 : i64} {
  func.func @matmul_bias_act_kernel(%arg0: i32, %arg1: memref<128x576xbf16, #tpu.memory_space<vmem>>, %arg2: memref<576x64xbf16, #tpu.memory_space<vmem>>, %arg3: memref<1x64xf32, #tpu.memory_space<vmem>>, %arg4: memref<128x64xbf16, #tpu.memory_space<vmem>>) attributes {dimension_semantics = [#tpu.dimension_semantics<parallel>], iteration_bounds = array<i64: 1>, scalar_prefetch = 0 : i64, scratch_operands = 0 : i64, tpu.core_type = #tpu.core_type<tc>, window_params = [{transform_indices = @transform_0, window_bounds = array<i64: 128, 576>}, {pipeline_mode = #tpu.pipeline_mode<synchronous>, transform_indices = @transform_1, window_bounds = array<i64: 576, 64>}, {pipeline_mode = #tpu.pipeline_mode<synchronous>, transform_indices = @transform_2, window_bounds = array<i64: 1, 64>}, {transform_indices = @transform_3, window_bounds = array<i64: 128, 64>}]} {
    %c0 = arith.constant 0 : index
    %c0_0 = arith.constant 0 : index
    %0 = vector.load %arg1[%c0, %c0_0] : memref<128x576xbf16, #tpu.memory_space<vmem>>, vector<128x576xbf16>
    %c0_1 = arith.constant 0 : index
    %c0_2 = arith.constant 0 : index
    %1 = vector.load %arg2[%c0_1, %c0_2] : memref<576x64xbf16, #tpu.memory_space<vmem>>, vector<576x64xbf16>
    %cst = arith.constant dense<0.000000e+00> : vector<128x64xf32>
    %2 = tpu.matmul %0, %1, %cst {dimension_numbers = #tpu.dot_dimension_numbers<[1], [0], [0], [1], [0, 0, 1, 1], [], []>} : vector<128x576xbf16>, vector<576x64xbf16>, vector<128x64xf32> -> vector<128x64xf32>
    %c0_3 = arith.constant 0 : index
    %c0_4 = arith.constant 0 : index
    %3 = vector.load %arg3[%c0_3, %c0_4] : memref<1x64xf32, #tpu.memory_space<vmem>>, vector<1x64xf32>
    %4 = vector.broadcast %3 : vector<1x64xf32> to vector<128x64xf32>
    %5 = arith.addf %2, %4 : vector<128x64xf32>
    %cst_5 = arith.constant 0.000000e+00 : f32
    %6 = vector.broadcast %cst_5 : f32 to vector<128x64xf32>
    %7 = arith.maximumf %5, %6 : vector<128x64xf32>
    %8 = arith.truncf %7 : vector<128x64xf32> to vector<128x64xbf16>
    %c0_6 = arith.constant 0 : index
    %c0_7 = arith.constant 0 : index
    %9 = vector.load %arg4[%c0_6, %c0_7] : memref<128x64xbf16, #tpu.memory_space<vmem>>, vector<128x64xbf16>
    tpu.vector_store %arg4[%c0_6, %c0_7], %8 {strides = array<i32>} : memref<128x64xbf16, #tpu.memory_space<vmem>>, vector<128x64xbf16>,
    return
  }
  func.func @transform_0(%arg0: i32) -> (i32, i32) {
    %c0_i32 = arith.constant 0 : i32
    %c0_i32_0 = arith.constant 0 : i32
    return %arg0, %c0_i32 : i32, i32
  }
  func.func @transform_1(%arg0: i32) -> (i32, i32) {
    %c0_i32 = arith.constant 0 : i32
    %c0_i32_0 = arith.constant 0 : i32
    %c0_i32_1 = arith.constant 0 : i32
    return %c0_i32, %c0_i32_0 : i32, i32
  }
  func.func @transform_2(%arg0: i32) -> (i32, i32) {
    %c0_i32 = arith.constant 0 : i32
    %c0_i32_0 = arith.constant 0 : i32
    %c0_i32_1 = arith.constant 0 : i32
    return %c0_i32, %c0_i32_0 : i32, i32
  }
  func.func @transform_3(%arg0: i32) -> (i32, i32) {
    %c0_i32 = arith.constant 0 : i32
    %c0_i32_0 = arith.constant 0 : i32
    return %arg0, %c0_i32 : i32, i32
  }
}

module attributes {stable_mosaic.version = 11 : i64} {
  func.func @mlp_head_kernel(%arg0: i32, %arg1: memref<128x3136xbf16, #tpu.memory_space<vmem>>, %arg2: memref<3136x512xbf16, #tpu.memory_space<vmem>>, %arg3: memref<1x512xf32, #tpu.memory_space<vmem>>, %arg4: memref<512x128xbf16, #tpu.memory_space<vmem>>, %arg5: memref<1x128xf32, #tpu.memory_space<vmem>>, %arg6: memref<128x128xf32, #tpu.memory_space<vmem>>) attributes {dimension_semantics = [#tpu.dimension_semantics<parallel>], iteration_bounds = array<i64: 1>, scalar_prefetch = 0 : i64, scratch_operands = 0 : i64, tpu.core_type = #tpu.core_type<tc>, window_params = [{transform_indices = @transform_0, window_bounds = array<i64: 128, 3136>}, {pipeline_mode = #tpu.pipeline_mode<synchronous>, transform_indices = @transform_1, window_bounds = array<i64: 3136, 512>}, {pipeline_mode = #tpu.pipeline_mode<synchronous>, transform_indices = @transform_2, window_bounds = array<i64: 1, 512>}, {pipeline_mode = #tpu.pipeline_mode<synchronous>, transform_indices = @transform_3, window_bounds = array<i64: 512, 128>}, {pipeline_mode = #tpu.pipeline_mode<synchronous>, transform_indices = @transform_4, window_bounds = array<i64: 1, 128>}, {transform_indices = @transform_5, window_bounds = array<i64: 128, 128>}]} {
    %c0 = arith.constant 0 : index
    %c0_0 = arith.constant 0 : index
    %0 = vector.load %arg1[%c0, %c0_0] : memref<128x3136xbf16, #tpu.memory_space<vmem>>, vector<128x3136xbf16>
    %c0_1 = arith.constant 0 : index
    %c0_2 = arith.constant 0 : index
    %1 = vector.load %arg2[%c0_1, %c0_2] : memref<3136x512xbf16, #tpu.memory_space<vmem>>, vector<3136x512xbf16>
    %cst = arith.constant dense<0.000000e+00> : vector<128x512xf32>
    %2 = tpu.matmul %0, %1, %cst {dimension_numbers = #tpu.dot_dimension_numbers<[1], [0], [0], [1], [0, 0, 1, 1], [], []>} : vector<128x3136xbf16>, vector<3136x512xbf16>, vector<128x512xf32> -> vector<128x512xf32>
    %c0_3 = arith.constant 0 : index
    %c0_4 = arith.constant 0 : index
    %3 = vector.load %arg3[%c0_3, %c0_4] : memref<1x512xf32, #tpu.memory_space<vmem>>, vector<1x512xf32>
    %4 = vector.broadcast %3 : vector<1x512xf32> to vector<128x512xf32>
    %5 = arith.addf %2, %4 : vector<128x512xf32>
    %cst_5 = arith.constant 0.000000e+00 : f32
    %6 = vector.broadcast %cst_5 : f32 to vector<128x512xf32>
    %7 = arith.maximumf %5, %6 : vector<128x512xf32>
    %8 = arith.truncf %7 : vector<128x512xf32> to vector<128x512xbf16>
    %c0_6 = arith.constant 0 : index
    %c0_7 = arith.constant 0 : index
    %9 = vector.load %arg4[%c0_6, %c0_7] : memref<512x128xbf16, #tpu.memory_space<vmem>>, vector<512x128xbf16>
    %cst_8 = arith.constant dense<0.000000e+00> : vector<128x128xf32>
    %10 = tpu.matmul %8, %9, %cst_8 {dimension_numbers = #tpu.dot_dimension_numbers<[1], [0], [0], [1], [0, 0, 1, 1], [], []>} : vector<128x512xbf16>, vector<512x128xbf16>, vector<128x128xf32> -> vector<128x128xf32>
    %c0_9 = arith.constant 0 : index
    %c0_10 = arith.constant 0 : index
    %11 = vector.load %arg5[%c0_9, %c0_10] : memref<1x128xf32, #tpu.memory_space<vmem>>, vector<1x128xf32>
    %12 = vector.broadcast %11 : vector<1x128xf32> to vector<128x128xf32>
    %13 = arith.addf %10, %12 : vector<128x128xf32>
    %c0_11 = arith.constant 0 : index
    %c0_12 = arith.constant 0 : index
    %14 = vector.load %arg6[%c0_11, %c0_12] : memref<128x128xf32, #tpu.memory_space<vmem>>, vector<128x128xf32>
    tpu.vector_store %arg6[%c0_11, %c0_12], %13 {strides = array<i32>} : memref<128x128xf32, #tpu.memory_space<vmem>>, vector<128x128xf32>,
    return
  }
  func.func @transform_0(%arg0: i32) -> (i32, i32) {
    %c0_i32 = arith.constant 0 : i32
    %c0_i32_0 = arith.constant 0 : i32
    return %arg0, %c0_i32 : i32, i32
  }
  func.func @transform_1(%arg0: i32) -> (i32, i32) {
    %c0_i32 = arith.constant 0 : i32
    %c0_i32_0 = arith.constant 0 : i32
    %c0_i32_1 = arith.constant 0 : i32
    return %c0_i32, %c0_i32_0 : i32, i32
  }
  func.func @transform_2(%arg0: i32) -> (i32, i32) {
    %c0_i32 = arith.constant 0 : i32
    %c0_i32_0 = arith.constant 0 : i32
    %c0_i32_1 = arith.constant 0 : i32
    return %c0_i32, %c0_i32_0 : i32, i32
  }
  func.func @transform_3(%arg0: i32) -> (i32, i32) {
    %c0_i32 = arith.constant 0 : i32
    %c0_i32_0 = arith.constant 0 : i32
    %c0_i32_1 = arith.constant 0 : i32
    return %c0_i32, %c0_i32_0 : i32, i32
  }
  func.func @transform_4(%arg0: i32) -> (i32, i32) {
    %c0_i32 = arith.constant 0 : i32
    %c0_i32_0 = arith.constant 0 : i32
    %c0_i32_1 = arith.constant 0 : i32
    return %c0_i32, %c0_i32_0 : i32, i32
  }
  func.func @transform_5(%arg0: i32) -> (i32, i32) {
    %c0_i32 = arith.constant 0 : i32
    %c0_i32_0 = arith.constant 0 : i32
    return %arg0, %c0_i32 : i32, i32
  }
}

</mosaic_0001>

<llo_original>
// kernel: dqn_forward.4
$region0: #{dqn_forward.4}
  #allocation0 [shape = 'u32[]', space=smem, size = 0x4, offset = 0x4, fixed_abs, tag = 'smem constant byte address 0x4 - core index']
  #allocation1 [shape = 'u32[72,128]{1,0:T(1,128)}', space=vmem, size = 0x9000, scoped, tag = 'internal scratch']
  %s0 = inlined_call_operand.vmem [shape: u8[1024,256], index: 0, kind: input, shape index: {}]
  %s1 = inlined_call_operand.vmem [shape: bf16[256,32], index: 1, kind: input, shape index: {}]
  %s2 = inlined_call_operand.vmem [shape: f32[1,32], index: 2, kind: input, shape index: {}]
  %s3 = inlined_call_operand.vmem [shape: bf16[1024,32], index: 3, kind: output, shape index: {}]
  %s4 = sld [smem:[#allocation0]]
  $region45: #{dqn_forward.4} parent=0
    _
  %s6 = ssub.s32 1, %s4
  %s7 = scalar_select 0, %s6, %s4
  loop: start=0, step=1, limit=4
  $region2: #{dqn_forward.4} parent=0 // loop_pre_header
    _
  $region3: #{dqn_forward.4} parent=0 // loop_header
    %s9 = sphi 0, %s13
    %p10 = scmp.ge.s32.totalorder %s9, 4
    %s19 = sphi 0, %s21
    %s22 = sphi 0, %s19
    %s23 = sphi 0, %s22
    %s39 = sphi 0, %s23
    %s43 = sphi 0, %s43
    %s45 = sphi 0, %s43
    %s46 = sphi 0, %s45
    %s60 = sphi 0, %s46
    %s64 = sphi 0, %s64
    %s66 = sphi 0, %s64
    %s67 = sphi 0, %s66
    %s81 = sphi 0, %s67
    %s87 = sphi 0, %s89
    %s90 = sphi 0, %s87
    %s91 = sphi 0, %s90
    %s107 = sphi 0, %s91
  $region4: #{dqn_forward.4} parent=0 // loop_header_branch
    %12 = sbr.rel (%p10) target = $region8
  $region5: #{dqn_forward.4} parent=0 // loop_body
    %s14 = ssub.s32 %s9, 1
    %s15 = ssub.s32 %s9, 2
    %s16 = sadd.s32 %s9, 1
    %s17 = ssub.s32 %s9, %s16
    %p18 = scmp.eq.s32.totalorder %s17, 0
    %s20 = sadd.s32 %s19, 1
    %s21 = scalar_select %p18, %s19, %s20
    %p24 = pneg %p18
    %p25 = scmp.eq.s32.totalorder %s9, 1
    %p26 = por %p24, %p25
    %p27 = scmp.ne.s32.totalorder %s19, %s22
    %p28 = scmp.eq.s32.totalorder %s9, 0
    %p29 = por %p27, %p28
    %p30 = scmp.ne.s32.totalorder %s19, %s22
    %p31 = scmp.eq.s32.totalorder %s14, 1
    %p32 = por %p30, %p31
    %p33 = scmp.ne.s32.totalorder %s22, %s23
    %p34 = scmp.eq.s32.totalorder %s14, 0
    %p35 = por %p33, %p34
    %p36 = scmp.ne.s32.totalorder %s22, %s23
    %p37 = scmp.eq.s32.totalorder %s15, 1
    %p38 = por %p36, %p37
    %p40 = scmp.ne.s32.totalorder %s23, %s39
    %p41 = scmp.eq.s32.totalorder %s15, 0
    %p42 = por %p40, %p41
    %s44 = sadd.s32 %s43, 1
    %p47 = scmp.eq.s32.totalorder %s9, 1
    %p48 = scmp.ne.s32.totalorder %s43, %s45
    %p49 = scmp.eq.s32.totalorder %s9, 0
    %p50 = por %p48, %p49
    %p51 = scmp.ne.s32.totalorder %s43, %s45
    %p52 = scmp.eq.s32.totalorder %s14, 1
    %p53 = por %p51, %p52
    %p54 = scmp.ne.s32.totalorder %s45, %s46
    %p55 = scmp.eq.s32.totalorder %s14, 0
    %p56 = por %p54, %p55
    %p57 = scmp.ne.s32.totalorder %s45, %s46
    %p58 = scmp.eq.s32.totalorder %s15, 1
    %p59 = por %p57, %p58
    %p61 = scmp.ne.s32.totalorder %s46, %s60
    %p62 = scmp.eq.s32.totalorder %s15, 0
    %p63 = por %p61, %p62
    %s65 = sadd.s32 %s64, 1
    %p68 = scmp.eq.s32.totalorder %s9, 1
    %p69 = scmp.ne.s32.totalorder %s64, %s66
    %p70 = scmp.eq.s32.totalorder %s9, 0
    %p71 = por %p69, %p70
    %p72 = scmp.ne.s32.totalorder %s64, %s66
    %p73 = scmp.eq.s32.totalorder %s14, 1
    %p74 = por %p72, %p73
    %p75 = scmp.ne.s32.totalorder %s66, %s67
    %p76 = scmp.eq.s32.totalorder %s14, 0
    %p77 = por %p75, %p76
    %p78 = scmp.ne.s32.totalorder %s66, %s67
    %p79 = scmp.eq.s32.totalorder %s15, 1
    %p80 = por %p78, %p79
    %p82 = scmp.ne.s32.totalorder %s67, %s81
    %p83 = scmp.eq.s32.totalorder %s15, 0
    %p84 = por %p82, %p83
    %s85 = ssub.s32 %s9, %s16
    %p86 = scmp.eq.s32.totalorder %s85, 0
    %s88 = sadd.s32 %s87, 1
    %s89 = scalar_select %p86, %s87, %s88
    %p92 = pneg %p86
    %p93 = scmp.eq.s32.totalorder %s9, 1
    %p94 = por %p92, %p93
    %p95 = scmp.ne.s32.totalorder %s87, %s90
    %p96 = scmp.eq.s32.totalorder %s9, 0
    %p97 = por %p95, %p96
    %p98 = scmp.ne.s32.totalorder %s87, %s90
    %p99 = scmp.eq.s32.totalorder %s14, 1
    %p100 = por %p98, %p99
    %p101 = scmp.ne.s32.totalorder %s90, %s91
    %p102 = scmp.eq.s32.totalorder %s14, 0
    %p103 = por %p101, %p102
    %p104 = scmp.ne.s32.totalorder %s90, %s91
    %p105 = scmp.eq.s32.totalorder %s15, 1
    %p106 = por %p104, %p105
    %p108 = scmp.ne.s32.totalorder %s91, %s107
    %p109 = scmp.eq.s32.totalorder %s15, 0
    %p110 = por %p108, %p109
    %p111 = scmp.le.s32.totalorder 1, %s9
    %p112 = scmp.lt.s32.totalorder %s9, 3
    %p113 = pnand %p111, %p112
    %p114 = pneg %p113
    // Predicated region
    $region9: #{dqn_forward.4} parent=5 // pred_check
      _
    $region10: #{dqn_forward.4} parent=5 // pred_check_branch
      %116 = sbr.rel (%p113) target = $region12
    $region11: #{dqn_forward.4} parent=5 // pred_region
      %s117 = ssub.s32 %s9, 1
      // Predicated region
      $region13: #{dqn_forward.4} parent=11 // pred_check
        %p118 = pneg %p56
      $region14: #{dqn_forward.4} parent=11 // pred_check_branch
        %120 = sbr.rel (%p118) target = $region16
      $region15: #{dqn_forward.4} parent=11 // pred_region
        _
      $region16: #{dqn_forward.4} parent=11 // pred_fallthru
        _
      // Predicated region
      $region17: #{dqn_forward.4} parent=11 // pred_check
        %p121 = pneg %p77
      $region18: #{dqn_forward.4} parent=11 // pred_check_branch
        %123 = sbr.rel (%p121) target = $region20
      $region19: #{dqn_forward.4} parent=11 // pred_region
        _
      $region20: #{dqn_forward.4} parent=11 // pred_fallthru
        _
    $region12: #{dqn_forward.4} parent=5 // pred_fallthru
      _
    %p124 = scmp.lt.s32.totalorder %s9, 2
    // Predicated region
    $region21: #{dqn_forward.4} parent=5 // pred_check
      %p125 = pneg %p124
    $region22: #{dqn_forward.4} parent=5 // pred_check_branch
      %127 = sbr.rel (%p125) target = $region24
    $region23: #{dqn_forward.4} parent=5 // pred_region
      // Predicated region
      $region25: #{dqn_forward.4} parent=23 // pred_check
        %p128 = pneg %p29
      $region26: #{dqn_forward.4} parent=23 // pred_check_branch
        %130 = sbr.rel (%p128) target = $region28
      $region27: #{dqn_forward.4} parent=23 // pred_region
        %s131 = smul.u32 16, %s9
        %p132 = scmp.lt.s32.totalorder %s131, 31
        %s133 = scalar_select %p132, %s131, 31
        %s134 = smul.addr %s133, 2
        %s135 = smul.addr %s134, 8
        %s136 = scalar_lea.vmem %s0, %s135
        %s137 = smul.u32 16, %s9
      $region28: #{dqn_forward.4} parent=23 // pred_fallthru
        _
    $region24: #{dqn_forward.4} parent=5 // pred_fallthru
      _
    %p138 = scmp.le.s32.totalorder 1, %s9
    %p139 = scmp.lt.s32.totalorder %s9, 3
    %p140 = pnand %p138, %p139
    %p141 = pneg %p140
    // Predicated region
    $region29: #{dqn_forward.4} parent=5 // pred_check
      _
    $region30: #{dqn_forward.4} parent=5 // pred_check_branch
      %143 = sbr.rel (%p140) target = $region32
    $region31: #{dqn_forward.4} parent=5 // pred_region
      %s144 = ssub.s32 %s9, 1
      %s145 = smul.u32 16, %s14
      %p146 = scmp.lt.s32.totalorder %s145, 31
      %s147 = scalar_select %p146, %s145, 31
      %s148 = smul.addr %s147, 2
      %s149 = smul.addr %s148, 8
      %s150 = scalar_lea.vmem %s0, %s149
      %p151 = pneg %p35
      %p152 = pneg %p32
      %p153 = pneg %p56
      %p154 = pneg %p53
      %p155 = pneg %p77
      %p156 = pneg %p74
      %p157 = pneg %p103
      %p158 = pneg %p100
      %s159 = smul.u32 64, %s14
      %p160 = scmp.lt.s32.totalorder %s159, 127
      %s161 = scalar_select %p160, %s159, 127
      %s162 = smul.addr %s161, 4
      %s163 = scalar_lea.vmem %s3, %s162
      %s164 = smul.u32 16, %s14
      %p165 = scmp.lt.s32.totalorder %s164, 31
      %s166 = scalar_select %p165, %s164, 31
      %s167 = smul.addr %s166, 2
      %s168 = smul.addr %s167, 8
      %s169 = scalar_lea.vmem %s0, %s168
      %s170 = smul.u32 16, %s14
      %s171 = smul.u32 64, %s14
      %p172 = scmp.lt.s32.totalorder %s171, 127
      %s173 = scalar_select %p172, %s171, 127
      %s174 = smul.addr %s173, 4
      %s175 = scalar_lea.vmem %s3, %s174
      %s176 = smul.u32 64, %s14
      %v177 = vld [vmem:[%s169] sm:$0xff]
      %v178 = vld [vmem:[%s169 + $0x8] sm:$0xff]
      %v179 = vld [vmem:[%s169 + $0x10] sm:$0xff]
      %v180 = vld [vmem:[%s169 + $0x18] sm:$0xff]
      %v181 = vld [vmem:[%s169 + $0x20] sm:$0xff]
      %v182 = vld [vmem:[%s169 + $0x28] sm:$0xff]
      %v183 = vld [vmem:[%s169 + $0x30] sm:$0xff]
      %v184 = vld [vmem:[%s169 + $0x38] sm:$0xff]
      %v185 = vld [vmem:[%s169 + $0x40] sm:$0xff]
      %v186 = vld [vmem:[%s169 + $0x48] sm:$0xff]
      %v187 = vld [vmem:[%s169 + $0x50] sm:$0xff]
      %v188 = vld [vmem:[%s169 + $0x58] sm:$0xff]
      %v189 = vld [vmem:[%s169 + $0x60] sm:$0xff]
      %v190 = vld [vmem:[%s169 + $0x68] sm:$0xff]
      %v191 = vld [vmem:[%s169 + $0x70] sm:$0xff]
      %v192 = vld [vmem:[%s169 + $0x78] sm:$0xff]
      %v193 = vld [vmem:[%s169 + $0x80] sm:$0xff]
      %v194 = vld [vmem:[%s169 + $0x88] sm:$0xff]
      %v195 = vld [vmem:[%s169 + $0x90] sm:$0xff]
      %v196 = vld [vmem:[%s169 + $0x98] sm:$0xff]
      %v197 = vld [vmem:[%s169 + $0xa0] sm:$0xff]
      %v198 = vld [vmem:[%s169 + $0xa8] sm:$0xff]
      %v199 = vld [vmem:[%s169 + $0xb0] sm:$0xff]
      %v200 = vld [vmem:[%s169 + $0xb8] sm:$0xff]
      %v201 = vld [vmem:[%s169 + $0xc0] sm:$0xff]
      %v202 = vld [vmem:[%s169 + $0xc8] sm:$0xff]
      %v203 = vld [vmem:[%s169 + $0xd0] sm:$0xff]
      %v204 = vld [vmem:[%s169 + $0xd8] sm:$0xff]
      %v205 = vld [vmem:[%s169 + $0xe0] sm:$0xff]
      %v206 = vld [vmem:[%s169 + $0xe8] sm:$0xff]
      %v207 = vld [vmem:[%s169 + $0xf0] sm:$0xff]
      %v208 = vld [vmem:[%s169 + $0xf8] sm:$0xff]
      %v209 = vunpack.c.0.s8 %v177
      %v210 = vunpack.c.0.s8 %v178
      %v211 = vunpack.c.1.s8 %v177
      %v212 = vunpack.c.1.s8 %v178
      %v213 = vunpack.c.2.s8 %v177
      %v214 = vunpack.c.2.s8 %v178
      %v215 = vunpack.c.3.s8 %v177
      %v216 = vunpack.c.3.s8 %v178
      %v217 = vunpack.c.0.s8 %v179
      %v218 = vunpack.c.0.s8 %v180
      %v219 = vunpack.c.1.s8 %v179
      %v220 = vunpack.c.1.s8 %v180
      %v221 = vunpack.c.2.s8 %v179
      %v222 = vunpack.c.2.s8 %v180
      %v223 = vunpack.c.3.s8 %v179
      %v224 = vunpack.c.3.s8 %v180
      %v225 = vunpack.c.0.s8 %v181
      %v226 = vunpack.c.0.s8 %v182
      %v227 = vunpack.c.1.s8 %v181
      %v228 = vunpack.c.1.s8 %v182
      %v229 = vunpack.c.2.s8 %v181
      %v230 = vunpack.c.2.s8 %v182
      %v231 = vunpack.c.3.s8 %v181
      %v232 = vunpack.c.3.s8 %v182
      %v233 = vunpack.c.0.s8 %v183
      %v234 = vunpack.c.0.s8 %v184
      %v235 = vunpack.c.1.s8 %v183
      %v236 = vunpack.c.1.s8 %v184
      %v237 = vunpack.c.2.s8 %v183
      %v238 = vunpack.c.2.s8 %v184
      %v239 = vunpack.c.3.s8 %v183
      %v240 = vunpack.c.3.s8 %v184
      %v241 = vunpack.c.0.s8 %v185
      %v242 = vunpack.c.0.s8 %v186
      %v243 = vunpack.c.1.s8 %v185
      %v244 = vunpack.c.1.s8 %v186
      %v245 = vunpack.c.2.s8 %v185
      %v246 = vunpack.c.2.s8 %v186
      %v247 = vunpack.c.3.s8 %v185
      %v248 = vunpack.c.3.s8 %v186
      %v249 = vunpack.c.0.s8 %v187
      %v250 = vunpack.c.0.s8 %v188
      %v251 = vunpack.c.1.s8 %v187
      %v252 = vunpack.c.1.s8 %v188
      %v253 = vunpack.c.2.s8 %v187
      %v254 = vunpack.c.2.s8 %v188
      %v255 = vunpack.c.3.s8 %v187
      %v256 = vunpack.c.3.s8 %v188
      %v257 = vunpack.c.0.s8 %v189
      %v258 = vunpack.c.0.s8 %v190
      %v259 = vunpack.c.1.s8 %v189
      %v260 = vunpack.c.1.s8 %v190
      %v261 = vunpack.c.2.s8 %v189
      %v262 = vunpack.c.2.s8 %v190
      %v263 = vunpack.c.3.s8 %v189
      %v264 = vunpack.c.3.s8 %v190
      %v265 = vunpack.c.0.s8 %v191
      %v266 = vunpack.c.0.s8 %v192
      %v267 = vunpack.c.1.s8 %v191
      %v268 = vunpack.c.1.s8 %v192
      %v269 = vunpack.c.2.s8 %v191
      %v270 = vunpack.c.2.s8 %v192
      %v271 = vunpack.c.3.s8 %v191
      %v272 = vunpack.c.3.s8 %v192
      %v273 = vunpack.c.0.s8 %v193
      %v274 = vunpack.c.0.s8 %v194
      %v275 = vunpack.c.1.s8 %v193
      %v276 = vunpack.c.1.s8 %v194
      %v277 = vunpack.c.2.s8 %v193
      %v278 = vunpack.c.2.s8 %v194
      %v279 = vunpack.c.3.s8 %v193
      %v280 = vunpack.c.3.s8 %v194
      %v281 = vunpack.c.0.s8 %v195
      %v282 = vunpack.c.0.s8 %v196
      %v283 = vunpack.c.1.s8 %v195
      %v284 = vunpack.c.1.s8 %v196
      %v285 = vunpack.c.2.s8 %v195
      %v286 = vunpack.c.2.s8 %v196
      %v287 = vunpack.c.3.s8 %v195
      %v288 = vunpack.c.3.s8 %v196
      %v289 = vunpack.c.0.s8 %v197
      %v290 = vunpack.c.0.s8 %v198
      %v291 = vunpack.c.1.s8 %v197
      %v292 = vunpack.c.1.s8 %v198
      %v293 = vunpack.c.2.s8 %v197
      %v294 = vunpack.c.2.s8 %v198
      %v295 = vunpack.c.3.s8 %v197
      %v296 = vunpack.c.3.s8 %v198
      %v297 = vunpack.c.0.s8 %v199
      %v298 = vunpack.c.0.s8 %v200
      %v299 = vunpack.c.1.s8 %v199
      %v300 = vunpack.c.1.s8 %v200
      %v301 = vunpack.c.2.s8 %v199
      %v302 = vunpack.c.2.s8 %v200
      %v303 = vunpack.c.3.s8 %v199
      %v304 = vunpack.c.3.s8 %v200
      %v305 = vunpack.c.0.s8 %v201
      %v306 = vunpack.c.0.s8 %v202
      %v307 = vunpack.c.1.s8 %v201
      %v308 = vunpack.c.1.s8 %v202
      %v309 = vunpack.c.2.s8 %v201
      %v310 = vunpack.c.2.s8 %v202
      %v311 = vunpack.c.3.s8 %v201
      %v312 = vunpack.c.3.s8 %v202
      %v313 = vunpack.c.0.s8 %v203
      %v314 = vunpack.c.0.s8 %v204
      %v315 = vunpack.c.1.s8 %v203
      %v316 = vunpack.c.1.s8 %v204
      %v317 = vunpack.c.2.s8 %v203
      %v318 = vunpack.c.2.s8 %v204
      %v319 = vunpack.c.3.s8 %v203
      %v320 = vunpack.c.3.s8 %v204
      %v321 = vunpack.c.0.s8 %v205
      %v322 = vunpack.c.0.s8 %v206
      %v323 = vunpack.c.1.s8 %v205
      %v324 = vunpack.c.1.s8 %v206
      %v325 = vunpack.c.2.s8 %v205
      %v326 = vunpack.c.2.s8 %v206
      %v327 = vunpack.c.3.s8 %v205
      %v328 = vunpack.c.3.s8 %v206
      %v329 = vunpack.c.0.s8 %v207
      %v330 = vunpack.c.0.s8 %v208
      %v331 = vunpack.c.1.s8 %v207
      %v332 = vunpack.c.1.s8 %v208
      %v333 = vunpack.c.2.s8 %v207
      %v334 = vunpack.c.2.s8 %v208
      %v335 = vunpack.c.3.s8 %v207
      %v336 = vunpack.c.3.s8 %v208
      %v337 = vand.u32 %v209, 255
      %v338 = vand.u32 %v210, 255
      %v339 = vand.u32 %v211, 255
      %v340 = vand.u32 %v212, 255
      %v341 = vand.u32 %v213, 255
      %v342 = vand.u32 %v214, 255
      %v343 = vand.u32 %v215, 255
      %v344 = vand.u32 %v216, 255
      %v345 = vand.u32 %v217, 255
      %v346 = vand.u32 %v218, 255
      %v347 = vand.u32 %v219, 255
      %v348 = vand.u32 %v220, 255
      %v349 = vand.u32 %v221, 255
      %v350 = vand.u32 %v222, 255
      %v351 = vand.u32 %v223, 255
      %v352 = vand.u32 %v224, 255
      %v353 = vand.u32 %v225, 255
      %v354 = vand.u32 %v226, 255
      %v355 = vand.u32 %v227, 255
      %v356 = vand.u32 %v228, 255
      %v357 = vand.u32 %v229, 255
      %v358 = vand.u32 %v230, 255
      %v359 = vand.u32 %v231, 255
      %v360 = vand.u32 %v232, 255
      %v361 = vand.u32 %v233, 255
      %v362 = vand.u32 %v234, 255
      %v363 = vand.u32 %v235, 255
      %v364 = vand.u32 %v236, 255
      %v365 = vand.u32 %v237, 255
      %v366 = vand.u32 %v238, 255
      %v367 = vand.u32 %v239, 255
      %v368 = vand.u32 %v240, 255
      %v369 = vand.u32 %v241, 255
      %v370 = vand.u32 %v242, 255
      %v371 = vand.u32 %v243, 255
      %v372 = vand.u32 %v244, 255
      %v373 = vand.u32 %v245, 255
      %v374 = vand.u32 %v246, 255
      %v375 = vand.u32 %v247, 255
      %v376 = vand.u32 %v248, 255
      %v377 = vand.u32 %v249, 255
      %v378 = vand.u32 %v250, 255
      %v379 = vand.u32 %v251, 255
      %v380 = vand.u32 %v252, 255
      %v381 = vand.u32 %v253, 255
      %v382 = vand.u32 %v254, 255
      %v383 = vand.u32 %v255, 255
      %v384 = vand.u32 %v256, 255
      %v385 = vand.u32 %v257, 255
      %v386 = vand.u32 %v258, 255
      %v387 = vand.u32 %v259, 255
      %v388 = vand.u32 %v260, 255
      %v389 = vand.u32 %v261, 255
      %v390 = vand.u32 %v262, 255
      %v391 = vand.u32 %v263, 255
      %v392 = vand.u32 %v264, 255
      %v393 = vand.u32 %v265, 255
      %v394 = vand.u32 %v266, 255
      %v395 = vand.u32 %v267, 255
      %v396 = vand.u32 %v268, 255
      %v397 = vand.u32 %v269, 255
      %v398 = vand.u32 %v270, 255
      %v399 = vand.u32 %v271, 255
      %v400 = vand.u32 %v272, 255
      %v401 = vand.u32 %v273, 255
      %v402 = vand.u32 %v274, 255
      %v403 = vand.u32 %v275, 255
      %v404 = vand.u32 %v276, 255
      %v405 = vand.u32 %v277, 255
      %v406 = vand.u32 %v278, 255
      %v407 = vand.u32 %v279, 255
      %v408 = vand.u32 %v280, 255
      %v409 = vand.u32 %v281, 255
      %v410 = vand.u32 %v282, 255
      %v411 = vand.u32 %v283, 255
      %v412 = vand.u32 %v284, 255
      %v413 = vand.u32 %v285, 255
      %v414 = vand.u32 %v286, 255
      %v415 = vand.u32 %v287, 255
      %v416 = vand.u32 %v288, 255
      %v417 = vand.u32 %v289, 255
      %v418 = vand.u32 %v290, 255
      %v419 = vand.u32 %v291, 255
      %v420 = vand.u32 %v292, 255
      %v421 = vand.u32 %v293, 255
      %v422 = vand.u32 %v294, 255
      %v423 = vand.u32 %v295, 255
      %v424 = vand.u32 %v296, 255
      %v425 = vand.u32 %v297, 255
      %v426 = vand.u32 %v298, 255
      %v427 = vand.u32 %v299, 255
      %v428 = vand.u32 %v300, 255
      %v429 = vand.u32 %v301, 255
      %v430 = vand.u32 %v302, 255
      %v431 = vand.u32 %v303, 255
      %v432 = vand.u32 %v304, 255
      %v433 = vand.u32 %v305, 255
      %v434 = vand.u32 %v306, 255
      %v435 = vand.u32 %v307, 255
      %v436 = vand.u32 %v308, 255
      %v437 = vand.u32 %v309, 255
      %v438 = vand.u32 %v310, 255
      %v439 = vand.u32 %v311, 255
      %v440 = vand.u32 %v312, 255
      %v441 = vand.u32 %v313, 255
      %v442 = vand.u32 %v314, 255
      %v443 = vand.u32 %v315, 255
      %v444 = vand.u32 %v316, 255
      %v445 = vand.u32 %v317, 255
      %v446 = vand.u32 %v318, 255
      %v447 = vand.u32 %v319, 255
      %v448 = vand.u32 %v320, 255
      %v449 = vand.u32 %v321, 255
      %v450 = vand.u32 %v322, 255
      %v451 = vand.u32 %v323, 255
      %v452 = vand.u32 %v324, 255
      %v453 = vand.u32 %v325, 255
      %v454 = vand.u32 %v326, 255
      %v455 = vand.u32 %v327, 255
      %v456 = vand.u32 %v328, 255
      %v457 = vand.u32 %v329, 255
      %v458 = vand.u32 %v330, 255
      %v459 = vand.u32 %v331, 255
      %v460 = vand.u32 %v332, 255
      %v461 = vand.u32 %v333, 255
      %v462 = vand.u32 %v334, 255
      %v463 = vand.u32 %v335, 255
      %v464 = vand.u32 %v336, 255
      %v465 = vcvt.s32.f32 %v337
      %v466 = vcvt.s32.f32 %v338
      %v467 = vcvt.s32.f32 %v339
      %v468 = vcvt.s32.f32 %v340
      %v469 = vcvt.s32.f32 %v341
      %v470 = vcvt.s32.f32 %v342
      %v471 = vcvt.s32.f32 %v343
      %v472 = vcvt.s32.f32 %v344
      %v473 = vcvt.s32.f32 %v345
      %v474 = vcvt.s32.f32 %v346
      %v475 = vcvt.s32.f32 %v347
      %v476 = vcvt.s32.f32 %v348
      %v477 = vcvt.s32.f32 %v349
      %v478 = vcvt.s32.f32 %v350
      %v479 = vcvt.s32.f32 %v351
      %v480 = vcvt.s32.f32 %v352
      %v481 = vcvt.s32.f32 %v353
      %v482 = vcvt.s32.f32 %v354
      %v483 = vcvt.s32.f32 %v355
      %v484 = vcvt.s32.f32 %v356
      %v485 = vcvt.s32.f32 %v357
      %v486 = vcvt.s32.f32 %v358
      %v487 = vcvt.s32.f32 %v359
      %v488 = vcvt.s32.f32 %v360
      %v489 = vcvt.s32.f32 %v361
      %v490 = vcvt.s32.f32 %v362
      %v491 = vcvt.s32.f32 %v363
      %v492 = vcvt.s32.f32 %v364
      %v493 = vcvt.s32.f32 %v365
      %v494 = vcvt.s32.f32 %v366
      %v495 = vcvt.s32.f32 %v367
      %v496 = vcvt.s32.f32 %v368
      %v497 = vcvt.s32.f32 %v369
      %v498 = vcvt.s32.f32 %v370
      %v499 = vcvt.s32.f32 %v371
      %v500 = vcvt.s32.f32 %v372
      %v501 = vcvt.s32.f32 %v373
      %v502 = vcvt.s32.f32 %v374
      %v503 = vcvt.s32.f32 %v375
      %v504 = vcvt.s32.f32 %v376
      %v505 = vcvt.s32.f32 %v377
      %v506 = vcvt.s32.f32 %v378
      %v507 = vcvt.s32.f32 %v379
      %v508 = vcvt.s32.f32 %v380
      %v509 = vcvt.s32.f32 %v381
      %v510 = vcvt.s32.f32 %v382
      %v511 = vcvt.s32.f32 %v383
      %v512 = vcvt.s32.f32 %v384
      %v513 = vcvt.s32.f32 %v385
      %v514 = vcvt.s32.f32 %v386
      %v515 = vcvt.s32.f32 %v387
      %v516 = vcvt.s32.f32 %v388
      %v517 = vcvt.s32.f32 %v389
      %v518 = vcvt.s32.f32 %v390
      %v519 = vcvt.s32.f32 %v391
      %v520 = vcvt.s32.f32 %v392
      %v521 = vcvt.s32.f32 %v393
      %v522 = vcvt.s32.f32 %v394
      %v523 = vcvt.s32.f32 %v395
      %v524 = vcvt.s32.f32 %v396
      %v525 = vcvt.s32.f32 %v397
      %v526 = vcvt.s32.f32 %v398
      %v527 = vcvt.s32.f32 %v399
      %v528 = vcvt.s32.f32 %v400
      %v529 = vcvt.s32.f32 %v401
      %v530 = vcvt.s32.f32 %v402
      %v531 = vcvt.s32.f32 %v403
      %v532 = vcvt.s32.f32 %v404
      %v533 = vcvt.s32.f32 %v405
      %v534 = vcvt.s32.f32 %v406
      %v535 = vcvt.s32.f32 %v407
      %v536 = vcvt.s32.f32 %v408
      %v537 = vcvt.s32.f32 %v409
      %v538 = vcvt.s32.f32 %v410
      %v539 = vcvt.s32.f32 %v411
      %v540 = vcvt.s32.f32 %v412
      %v541 = vcvt.s32.f32 %v413
      %v542 = vcvt.s32.f32 %v414
      %v543 = vcvt.s32.f32 %v415
      %v544 = vcvt.s32.f32 %v416
      %v545 = vcvt.s32.f32 %v417
      %v546 = vcvt.s32.f32 %v418
      %v547 = vcvt.s32.f32 %v419
      %v548 = vcvt.s32.f32 %v420
      %v549 = vcvt.s32.f32 %v421
      %v550 = vcvt.s32.f32 %v422
      %v551 = vcvt.s32.f32 %v423
      %v552 = vcvt.s32.f32 %v424
      %v553 = vcvt.s32.f32 %v425
      %v554 = vcvt.s32.f32 %v426
      %v555 = vcvt.s32.f32 %v427
      %v556 = vcvt.s32.f32 %v428
      %v557 = vcvt.s32.f32 %v429
      %v558 = vcvt.s32.f32 %v430
      %v559 = vcvt.s32.f32 %v431
      %v560 = vcvt.s32.f32 %v432
      %v561 = vcvt.s32.f32 %v433
      %v562 = vcvt.s32.f32 %v434
      %v563 = vcvt.s32.f32 %v435
      %v564 = vcvt.s32.f32 %v436
      %v565 = vcvt.s32.f32 %v437
      %v566 = vcvt.s32.f32 %v438
      %v567 = vcvt.s32.f32 %v439
      %v568 = vcvt.s32.f32 %v440
      %v569 = vcvt.s32.f32 %v441
      %v570 = vcvt.s32.f32 %v442
      %v571 = vcvt.s32.f32 %v443
      %v572 = vcvt.s32.f32 %v444
      %v573 = vcvt.s32.f32 %v445
      %v574 = vcvt.s32.f32 %v446
      %v575 = vcvt.s32.f32 %v447
      %v576 = vcvt.s32.f32 %v448
      %v577 = vcvt.s32.f32 %v449
      %v578 = vcvt.s32.f32 %v450
      %v579 = vcvt.s32.f32 %v451
      %v580 = vcvt.s32.f32 %v452
      %v581 = vcvt.s32.f32 %v453
      %v582 = vcvt.s32.f32 %v454
      %v583 = vcvt.s32.f32 %v455
      %v584 = vcvt.s32.f32 %v456
      %v585 = vcvt.s32.f32 %v457
      %v586 = vcvt.s32.f32 %v458
      %v587 = vcvt.s32.f32 %v459
      %v588 = vcvt.s32.f32 %v460
      %v589 = vcvt.s32.f32 %v461
      %v590 = vcvt.s32.f32 %v462
      %v591 = vcvt.s32.f32 %v463
      %v592 = vcvt.s32.f32 %v464
      %v593 = vpack.c.bf16 %v467, %v465
      %v594 = vpack.c.bf16 %v468, %v466
      %v595 = vpack.c.bf16 %v471, %v469
      %v596 = vpack.c.bf16 %v472, %v470
      %v597 = vpack.c.bf16 %v475, %v473
      %v598 = vpack.c.bf16 %v476, %v474
      %v599 = vpack.c.bf16 %v479, %v477
      %v600 = vpack.c.bf16 %v480, %v478
      %v601 = vpack.c.bf16 %v483, %v481
      %v602 = vpack.c.bf16 %v484, %v482
      %v603 = vpack.c.bf16 %v487, %v485
      %v604 = vpack.c.bf16 %v488, %v486
      %v605 = vpack.c.bf16 %v491, %v489
      %v606 = vpack.c.bf16 %v492, %v490
      %v607 = vpack.c.bf16 %v495, %v493
      %v608 = vpack.c.bf16 %v496, %v494
      %v609 = vpack.c.bf16 %v499, %v497
      %v610 = vpack.c.bf16 %v500, %v498
      %v611 = vpack.c.bf16 %v503, %v501
      %v612 = vpack.c.bf16 %v504, %v502
      %v613 = vpack.c.bf16 %v507, %v505
      %v614 = vpack.c.bf16 %v508, %v506
      %v615 = vpack.c.bf16 %v511, %v509
      %v616 = vpack.c.bf16 %v512, %v510
      %v617 = vpack.c.bf16 %v515, %v513
      %v618 = vpack.c.bf16 %v516, %v514
      %v619 = vpack.c.bf16 %v519, %v517
      %v620 = vpack.c.bf16 %v520, %v518
      %v621 = vpack.c.bf16 %v523, %v521
      %v622 = vpack.c.bf16 %v524, %v522
      %v623 = vpack.c.bf16 %v527, %v525
      %v624 = vpack.c.bf16 %v528, %v526
      %v625 = vpack.c.bf16 %v531, %v529
      %v626 = vpack.c.bf16 %v532, %v530
      %v627 = vpack.c.bf16 %v535, %v533
      %v628 = vpack.c.bf16 %v536, %v534
      %v629 = vpack.c.bf16 %v539, %v537
      %v630 = vpack.c.bf16 %v540, %v538
      %v631 = vpack.c.bf16 %v543, %v541
      %v632 = vpack.c.bf16 %v544, %v542
      %v633 = vpack.c.bf16 %v547, %v545
      %v634 = vpack.c.bf16 %v548, %v546
      %v635 = vpack.c.bf16 %v551, %v549
      %v636 = vpack.c.bf16 %v552, %v550
      %v637 = vpack.c.bf16 %v555, %v553
      %v638 = vpack.c.bf16 %v556, %v554
      %v639 = vpack.c.bf16 %v559, %v557
      %v640 = vpack.c.bf16 %v560, %v558
      %v641 = vpack.c.bf16 %v563, %v561
      %v642 = vpack.c.bf16 %v564, %v562
      %v643 = vpack.c.bf16 %v567, %v565
      %v644 = vpack.c.bf16 %v568, %v566
      %v645 = vpack.c.bf16 %v571, %v569
      %v646 = vpack.c.bf16 %v572, %v570
      %v647 = vpack.c.bf16 %v575, %v573
      %v648 = vpack.c.bf16 %v576, %v574
      %v649 = vpack.c.bf16 %v579, %v577
      %v650 = vpack.c.bf16 %v580, %v578
      %v651 = vpack.c.bf16 %v583, %v581
      %v652 = vpack.c.bf16 %v584, %v582
      %v653 = vpack.c.bf16 %v587, %v585
      %v654 = vpack.c.bf16 %v588, %v586
      %v655 = vpack.c.bf16 %v591, %v589
      %v656 = vpack.c.bf16 %v592, %v590
      %v657 = vld [vmem:[%s1] sm:$0xf]
      %v658 = vld [vmem:[%s1 + $0x4] sm:$0xf]
      %v659 = vld [vmem:[%s1 + $0x8] sm:$0xf]
      %v660 = vld [vmem:[%s1 + $0xc] sm:$0xf]
      %v661 = vld [vmem:[%s1 + $0x10] sm:$0xf]
      %v662 = vld [vmem:[%s1 + $0x14] sm:$0xf]
      %v663 = vld [vmem:[%s1 + $0x18] sm:$0xf]
      %v664 = vld [vmem:[%s1 + $0x1c] sm:$0xf]
      %v665 = vld [vmem:[%s1 + $0x20] sm:$0xf]
      %v666 = vld [vmem:[%s1 + $0x24] sm:$0xf]
      %v667 = vld [vmem:[%s1 + $0x28] sm:$0xf]
      %v668 = vld [vmem:[%s1 + $0x2c] sm:$0xf]
      %v669 = vld [vmem:[%s1 + $0x30] sm:$0xf]
      %v670 = vld [vmem:[%s1 + $0x34] sm:$0xf]
      %v671 = vld [vmem:[%s1 + $0x38] sm:$0xf]
      %v672 = vld [vmem:[%s1 + $0x3c] sm:$0xf]
      %v673 = vld [vmem:[%s1 + $0x40] sm:$0xf]
      %v674 = vld [vmem:[%s1 + $0x44] sm:$0xf]
      %v675 = vld [vmem:[%s1 + $0x48] sm:$0xf]
      %v676 = vld [vmem:[%s1 + $0x4c] sm:$0xf]
      %v677 = vld [vmem:[%s1 + $0x50] sm:$0xf]
      %v678 = vld [vmem:[%s1 + $0x54] sm:$0xf]
      %v679 = vld [vmem:[%s1 + $0x58] sm:$0xf]
      %v680 = vld [vmem:[%s1 + $0x5c] sm:$0xf]
      %v681 = vld [vmem:[%s1 + $0x60] sm:$0xf]
      %v682 = vld [vmem:[%s1 + $0x64] sm:$0xf]
      %v683 = vld [vmem:[%s1 + $0x68] sm:$0xf]
      %v684 = vld [vmem:[%s1 + $0x6c] sm:$0xf]
      %v685 = vld [vmem:[%s1 + $0x70] sm:$0xf]
      %v686 = vld [vmem:[%s1 + $0x74] sm:$0xf]
      %v687 = vld [vmem:[%s1 + $0x78] sm:$0xf]
      %v688 = vld [vmem:[%s1 + $0x7c] sm:$0xf]
      %v689 = vld [vmem:[%s2] sm:$0x1]
      %v691 = vperm.slane %v689, 0
      %v725 = vunpack.c.l.b16 %v657
      %v726 = vunpack.c.l.b16 %v658
      %v727 = vunpack.c.l.b16 %v659
      %v728 = vunpack.c.l.b16 %v660
      %v729 = vunpack.c.l.b16 %v661
      %v730 = vunpack.c.l.b16 %v662
      %v731 = vunpack.c.l.b16 %v663
      %v732 = vunpack.c.l.b16 %v664
      %v733 = vunpack.c.l.b16 %v665
      %v734 = vunpack.c.l.b16 %v666
      %v735 = vunpack.c.l.b16 %v667
      %v736 = vunpack.c.l.b16 %v668
      %v737 = vunpack.c.l.b16 %v669
      %v738 = vunpack.c.l.b16 %v670
      %v739 = vunpack.c.l.b16 %v671
      %v740 = vunpack.c.l.b16 %v672
      %v741 = vunpack.c.l.b16 %v673
      %v742 = vunpack.c.l.b16 %v674
      %v743 = vunpack.c.l.b16 %v675
      %v744 = vunpack.c.l.b16 %v676
      %v745 = vunpack.c.l.b16 %v677
      %v746 = vunpack.c.l.b16 %v678
      %v747 = vunpack.c.l.b16 %v679
      %v748 = vunpack.c.l.b16 %v680
      %v749 = vunpack.c.l.b16 %v681
      %v750 = vunpack.c.l.b16 %v682
      %v751 = vunpack.c.l.b16 %v683
      %v752 = vunpack.c.l.b16 %v684
      %v753 = vunpack.c.l.b16 %v685
      %v754 = vunpack.c.l.b16 %v686
      %v755 = vunpack.c.l.b16 %v687
      %v756 = vunpack.c.l.b16 %v688
      %v757 = vpack.c.b16 %v726, %v725
      %v758 = vpack.c.b16 %v728, %v727
      %v759 = vpack.c.b16 %v730, %v729
      %v760 = vpack.c.b16 %v732, %v731
      %v761 = vpack.c.b16 %v734, %v733
      %v762 = vpack.c.b16 %v736, %v735
      %v763 = vpack.c.b16 %v738, %v737
      %v764 = vpack.c.b16 %v740, %v739
      %v765 = vpack.c.b16 %v742, %v741
      %v766 = vpack.c.b16 %v744, %v743
      %v767 = vpack.c.b16 %v746, %v745
      %v768 = vpack.c.b16 %v748, %v747
      %v769 = vpack.c.b16 %v750, %v749
      %v770 = vpack.c.b16 %v752, %v751
      %v771 = vpack.c.b16 %v754, %v753
      %v772 = vpack.c.b16 %v756, %v755
      %789 = vmatpush.bf16.msra.mxu0 %v764
      %790 = vmatpush.bf16.msra.mxu0 %v763
      %791 = vmatpush.bf16.msra.mxu0 %v762
      %792 = vmatpush.bf16.msra.mxu0 %v761
      %793 = vmatpush.bf16.msra.mxu0 %v760
      %794 = vmatpush.bf16.msra.mxu0 %v759
      %795 = vmatpush.bf16.msra.mxu0 %v758
      %796 = vmatpush.bf16.msra.mxu0 %v757
      %797 = vmatmul.bf16.gmra.mxu0 %v593
      %v798 = vpop.f32.mrf.mxu0
      %v799 = vadd.f32 %v691, %v798
      %v800 = vpop.f32.mrf.mxu0
      %v801 = vadd.f32 %v691, %v800
      %802 = vmatmul.bf16.gmra.mxu0 %v595
      %v803 = vpop.f32.mrf.mxu0
      %v804 = vadd.f32 %v691, %v803
      %v805 = vpop.f32.mrf.mxu0
      %v806 = vadd.f32 %v691, %v805
      %807 = vmatmul.bf16.gmra.mxu0 %v597
      %v808 = vpop.f32.mrf.mxu0
      %v809 = vadd.f32 %v691, %v808
      %v810 = vpop.f32.mrf.mxu0
      %v811 = vadd.f32 %v691, %v810
      %812 = vmatmul.bf16.gmra.mxu0 %v599
      %v813 = vpop.f32.mrf.mxu0
      %v814 = vadd.f32 %v691, %v813
      %v815 = vpop.f32.mrf.mxu0
      %v816 = vadd.f32 %v691, %v815
      %817 = vmatmul.bf16.gmra.mxu0 %v601
      %v818 = vpop.f32.mrf.mxu0
      %v819 = vadd.f32 %v691, %v818
      %v820 = vpop.f32.mrf.mxu0
      %v821 = vadd.f32 %v691, %v820
      %822 = vmatmul.bf16.gmra.mxu0 %v603
      %v823 = vpop.f32.mrf.mxu0
      %v824 = vadd.f32 %v691, %v823
      %v825 = vpop.f32.mrf.mxu0
      %v826 = vadd.f32 %v691, %v825
      %827 = vmatmul.bf16.gmra.mxu0 %v605
      %v828 = vpop.f32.mrf.mxu0
      %v829 = vadd.f32 %v691, %v828
      %v830 = vpop.f32.mrf.mxu0
      %v831 = vadd.f32 %v691, %v830
      %832 = vmatmul.bf16.gmra.mxu0 %v607
      %v833 = vpop.f32.mrf.mxu0
      %v834 = vadd.f32 %v691, %v833
      %v835 = vpop.f32.mrf.mxu0
      %v836 = vadd.f32 %v691, %v835
      %837 = vmatmul.bf16.gmra.mxu0 %v609
      %v838 = vpop.f32.mrf.mxu0
      %v839 = vadd.f32 %v691, %v838
      %v840 = vpop.f32.mrf.mxu0
      %v841 = vadd.f32 %v691, %v840
      %842 = vmatmul.bf16.gmra.mxu0 %v611
      %v843 = vpop.f32.mrf.mxu0
      %v844 = vadd.f32 %v691, %v843
      %v845 = vpop.f32.mrf.mxu0
      %v846 = vadd.f32 %v691, %v845
      %847 = vmatmul.bf16.gmra.mxu0 %v613
      %v848 = vpop.f32.mrf.mxu0
      %v849 = vadd.f32 %v691, %v848
      %v850 = vpop.f32.mrf.mxu0
      %v851 = vadd.f32 %v691, %v850
      %852 = vmatmul.bf16.gmra.mxu0 %v615
      %v853 = vpop.f32.mrf.mxu0
      %v854 = vadd.f32 %v691, %v853
      %v855 = vpop.f32.mrf.mxu0
      %v856 = vadd.f32 %v691, %v855
      %857 = vmatmul.bf16.gmra.mxu0 %v617
      %v858 = vpop.f32.mrf.mxu0
      %v859 = vadd.f32 %v691, %v858
      %v860 = vpop.f32.mrf.mxu0
      %v861 = vadd.f32 %v691, %v860
      %862 = vmatmul.bf16.gmra.mxu0 %v619
      %v863 = vpop.f32.mrf.mxu0
      %v864 = vadd.f32 %v691, %v863
      %v865 = vpop.f32.mrf.mxu0
      %v866 = vadd.f32 %v691, %v865
      %867 = vmatmul.bf16.gmra.mxu0 %v621
      %v868 = vpop.f32.mrf.mxu0
      %v869 = vadd.f32 %v691, %v868
      %v870 = vpop.f32.mrf.mxu0
      %v871 = vadd.f32 %v691, %v870
      %872 = vmatmul.bf16.gmra.mxu0 %v623
      %v873 = vpop.f32.mrf.mxu0
      %v874 = vadd.f32 %v691, %v873
      %v875 = vpop.f32.mrf.mxu0
      %v876 = vadd.f32 %v691, %v875
      %877 = vmatmul.bf16.gmra.mxu0 %v625
      %v878 = vpop.f32.mrf.mxu0
      %v879 = vadd.f32 %v691, %v878
      %v880 = vpop.f32.mrf.mxu0
      %v881 = vadd.f32 %v691, %v880
      %882 = vmatmul.bf16.gmra.mxu0 %v627
      %v883 = vpop.f32.mrf.mxu0
      %v884 = vadd.f32 %v691, %v883
      %v885 = vpop.f32.mrf.mxu0
      %v886 = vadd.f32 %v691, %v885
      %887 = vmatmul.bf16.gmra.mxu0 %v629
      %v888 = vpop.f32.mrf.mxu0
      %v889 = vadd.f32 %v691, %v888
      %v890 = vpop.f32.mrf.mxu0
      %v891 = vadd.f32 %v691, %v890
      %892 = vmatmul.bf16.gmra.mxu0 %v631
      %v893 = vpop.f32.mrf.mxu0
      %v894 = vadd.f32 %v691, %v893
      %v895 = vpop.f32.mrf.mxu0
      %v896 = vadd.f32 %v691, %v895
      %897 = vmatmul.bf16.gmra.mxu0 %v633
      %v898 = vpop.f32.mrf.mxu0
      %v899 = vadd.f32 %v691, %v898
      %v900 = vpop.f32.mrf.mxu0
      %v901 = vadd.f32 %v691, %v900
      %902 = vmatmul.bf16.gmra.mxu0 %v635
      %v903 = vpop.f32.mrf.mxu0
      %v904 = vadd.f32 %v691, %v903
      %v905 = vpop.f32.mrf.mxu0
      %v906 = vadd.f32 %v691, %v905
      %907 = vmatmul.bf16.gmra.mxu0 %v637
      %v908 = vpop.f32.mrf.mxu0
      %v909 = vadd.f32 %v691, %v908
      %v910 = vpop.f32.mrf.mxu0
      %v911 = vadd.f32 %v691, %v910
      %912 = vmatmul.bf16.gmra.mxu0 %v639
      %v913 = vpop.f32.mrf.mxu0
      %v914 = vadd.f32 %v691, %v913
      %v915 = vpop.f32.mrf.mxu0
      %v916 = vadd.f32 %v691, %v915
      %917 = vmatmul.bf16.gmra.mxu0 %v641
      %v918 = vpop.f32.mrf.mxu0
      %v919 = vadd.f32 %v691, %v918
      %v920 = vpop.f32.mrf.mxu0
      %v921 = vadd.f32 %v691, %v920
      %922 = vmatmul.bf16.gmra.mxu0 %v643
      %v923 = vpop.f32.mrf.mxu0
      %v924 = vadd.f32 %v691, %v923
      %v925 = vpop.f32.mrf.mxu0
      %v926 = vadd.f32 %v691, %v925
      %927 = vmatmul.bf16.gmra.mxu0 %v645
      %v928 = vpop.f32.mrf.mxu0
      %v929 = vadd.f32 %v691, %v928
      %v930 = vpop.f32.mrf.mxu0
      %v931 = vadd.f32 %v691, %v930
      %932 = vmatmul.bf16.gmra.mxu0 %v647
      %v933 = vpop.f32.mrf.mxu0
      %v934 = vadd.f32 %v691, %v933
      %v935 = vpop.f32.mrf.mxu0
      %v936 = vadd.f32 %v691, %v935
      %937 = vmatmul.bf16.gmra.mxu0 %v649
      %v938 = vpop.f32.mrf.mxu0
      %v939 = vadd.f32 %v691, %v938
      %v940 = vpop.f32.mrf.mxu0
      %v941 = vadd.f32 %v691, %v940
      %942 = vmatmul.bf16.gmra.mxu0 %v651
      %v943 = vpop.f32.mrf.mxu0
      %v944 = vadd.f32 %v691, %v943
      %v945 = vpop.f32.mrf.mxu0
      %v946 = vadd.f32 %v691, %v945
      %947 = vmatmul.bf16.gmra.mxu0 %v653
      %v948 = vpop.f32.mrf.mxu0
      %v949 = vadd.f32 %v691, %v948
      %v950 = vpop.f32.mrf.mxu0
      %v951 = vadd.f32 %v691, %v950
      %952 = vmatmul.bf16.gmra.mxu0 %v655
      %v953 = vpop.f32.mrf.mxu0
      %v954 = vadd.f32 %v691, %v953
      %v955 = vpop.f32.mrf.mxu0
      %v956 = vadd.f32 %v691, %v955
      %957 = vdwg.mxu0
      %958 = vmatpush.bf16.msra.mxu0 %v772
      %959 = vmatpush.bf16.msra.mxu0 %v771
      %960 = vmatpush.bf16.msra.mxu0 %v770
      %961 = vmatpush.bf16.msra.mxu0 %v769
      %962 = vmatpush.bf16.msra.mxu0 %v768
      %963 = vmatpush.bf16.msra.mxu0 %v767
      %964 = vmatpush.bf16.msra.mxu0 %v766
      %965 = vmatpush.bf16.msra.mxu0 %v765
      %966 = vmatmul.bf16.gmra.mxu0 %v594
      %v967 = vpop.f32.mrf.mxu0
      %v968 = vadd.f32 %v799, %v967
      %v969 = vpop.f32.mrf.mxu0
      %v970 = vadd.f32 %v801, %v969
      %971 = vmatmul.bf16.gmra.mxu0 %v596
      %v972 = vpop.f32.mrf.mxu0
      %v973 = vadd.f32 %v804, %v972
      %v974 = vpop.f32.mrf.mxu0
      %v975 = vadd.f32 %v806, %v974
      %976 = vmatmul.bf16.gmra.mxu0 %v598
      %v977 = vpop.f32.mrf.mxu0
      %v978 = vadd.f32 %v809, %v977
      %v979 = vpop.f32.mrf.mxu0
      %v980 = vadd.f32 %v811, %v979
      %981 = vmatmul.bf16.gmra.mxu0 %v600
      %v982 = vpop.f32.mrf.mxu0
      %v983 = vadd.f32 %v814, %v982
      %v984 = vpop.f32.mrf.mxu0
      %v985 = vadd.f32 %v816, %v984
      %986 = vmatmul.bf16.gmra.mxu0 %v602
      %v987 = vpop.f32.mrf.mxu0
      %v988 = vadd.f32 %v819, %v987
      %v989 = vpop.f32.mrf.mxu0
      %v990 = vadd.f32 %v821, %v989
      %991 = vmatmul.bf16.gmra.mxu0 %v604
      %v992 = vpop.f32.mrf.mxu0
      %v993 = vadd.f32 %v824, %v992
      %v994 = vpop.f32.mrf.mxu0
      %v995 = vadd.f32 %v826, %v994
      %996 = vmatmul.bf16.gmra.mxu0 %v606
      %v997 = vpop.f32.mrf.mxu0
      %v998 = vadd.f32 %v829, %v997
      %v999 = vpop.f32.mrf.mxu0
      %v1000 = vadd.f32 %v831, %v999
      %1001 = vmatmul.bf16.gmra.mxu0 %v608
      %v1002 = vpop.f32.mrf.mxu0
      %v1003 = vadd.f32 %v834, %v1002
      %v1004 = vpop.f32.mrf.mxu0
      %v1005 = vadd.f32 %v836, %v1004
      %1006 = vmatmul.bf16.gmra.mxu0 %v610
      %v1007 = vpop.f32.mrf.mxu0
      %v1008 = vadd.f32 %v839, %v1007
      %v1009 = vpop.f32.mrf.mxu0
      %v1010 = vadd.f32 %v841, %v1009
      %1011 = vmatmul.bf16.gmra.mxu0 %v612
      %v1012 = vpop.f32.mrf.mxu0
      %v1013 = vadd.f32 %v844, %v1012
      %v1014 = vpop.f32.mrf.mxu0
      %v1015 = vadd.f32 %v846, %v1014
      %1016 = vmatmul.bf16.gmra.mxu0 %v614
      %v1017 = vpop.f32.mrf.mxu0
      %v1018 = vadd.f32 %v849, %v1017
      %v1019 = vpop.f32.mrf.mxu0
      %v1020 = vadd.f32 %v851, %v1019
      %1021 = vmatmul.bf16.gmra.mxu0 %v616
      %v1022 = vpop.f32.mrf.mxu0
      %v1023 = vadd.f32 %v854, %v1022
      %v1024 = vpop.f32.mrf.mxu0
      %v1025 = vadd.f32 %v856, %v1024
      %1026 = vmatmul.bf16.gmra.mxu0 %v618
      %v1027 = vpop.f32.mrf.mxu0
      %v1028 = vadd.f32 %v859, %v1027
      %v1029 = vpop.f32.mrf.mxu0
      %v1030 = vadd.f32 %v861, %v1029
      %1031 = vmatmul.bf16.gmra.mxu0 %v620
      %v1032 = vpop.f32.mrf.mxu0
      %v1033 = vadd.f32 %v864, %v1032
      %v1034 = vpop.f32.mrf.mxu0
      %v1035 = vadd.f32 %v866, %v1034
      %1036 = vmatmul.bf16.gmra.mxu0 %v622
      %v1037 = vpop.f32.mrf.mxu0
      %v1038 = vadd.f32 %v869, %v1037
      %v1039 = vpop.f32.mrf.mxu0
      %v1040 = vadd.f32 %v871, %v1039
      %1041 = vmatmul.bf16.gmra.mxu0 %v624
      %v1042 = vpop.f32.mrf.mxu0
      %v1043 = vadd.f32 %v874, %v1042
      %v1044 = vpop.f32.mrf.mxu0
      %v1045 = vadd.f32 %v876, %v1044
      %1046 = vmatmul.bf16.gmra.mxu0 %v626
      %v1047 = vpop.f32.mrf.mxu0
      %v1048 = vadd.f32 %v879, %v1047
      %v1049 = vpop.f32.mrf.mxu0
      %v1050 = vadd.f32 %v881, %v1049
      %1051 = vmatmul.bf16.gmra.mxu0 %v628
      %v1052 = vpop.f32.mrf.mxu0
      %v1053 = vadd.f32 %v884, %v1052
      %v1054 = vpop.f32.mrf.mxu0
      %v1055 = vadd.f32 %v886, %v1054
      %1056 = vmatmul.bf16.gmra.mxu0 %v630
      %v1057 = vpop.f32.mrf.mxu0
      %v1058 = vadd.f32 %v889, %v1057
      %v1059 = vpop.f32.mrf.mxu0
      %v1060 = vadd.f32 %v891, %v1059
      %1061 = vmatmul.bf16.gmra.mxu0 %v632
      %v1062 = vpop.f32.mrf.mxu0
      %v1063 = vadd.f32 %v894, %v1062
      %v1064 = vpop.f32.mrf.mxu0
      %v1065 = vadd.f32 %v896, %v1064
      %1066 = vmatmul.bf16.gmra.mxu0 %v634
      %v1067 = vpop.f32.mrf.mxu0
      %v1068 = vadd.f32 %v899, %v1067
      %v1069 = vpop.f32.mrf.mxu0
      %v1070 = vadd.f32 %v901, %v1069
      %1071 = vmatmul.bf16.gmra.mxu0 %v636
      %v1072 = vpop.f32.mrf.mxu0
      %v1073 = vadd.f32 %v904, %v1072
      %v1074 = vpop.f32.mrf.mxu0
      %v1075 = vadd.f32 %v906, %v1074
      %1076 = vmatmul.bf16.gmra.mxu0 %v638
      %v1077 = vpop.f32.mrf.mxu0
      %v1078 = vadd.f32 %v909, %v1077
      %v1079 = vpop.f32.mrf.mxu0
      %v1080 = vadd.f32 %v911, %v1079
      %1081 = vmatmul.bf16.gmra.mxu0 %v640
      %v1082 = vpop.f32.mrf.mxu0
      %v1083 = vadd.f32 %v914, %v1082
      %v1084 = vpop.f32.mrf.mxu0
      %v1085 = vadd.f32 %v916, %v1084
      %1086 = vmatmul.bf16.gmra.mxu0 %v642
      %v1087 = vpop.f32.mrf.mxu0
      %v1088 = vadd.f32 %v919, %v1087
      %v1089 = vpop.f32.mrf.mxu0
      %v1090 = vadd.f32 %v921, %v1089
      %1091 = vmatmul.bf16.gmra.mxu0 %v644
      %v1092 = vpop.f32.mrf.mxu0
      %v1093 = vadd.f32 %v924, %v1092
      %v1094 = vpop.f32.mrf.mxu0
      %v1095 = vadd.f32 %v926, %v1094
      %1096 = vmatmul.bf16.gmra.mxu0 %v646
      %v1097 = vpop.f32.mrf.mxu0
      %v1098 = vadd.f32 %v929, %v1097
      %v1099 = vpop.f32.mrf.mxu0
      %v1100 = vadd.f32 %v931, %v1099
      %1101 = vmatmul.bf16.gmra.mxu0 %v648
      %v1102 = vpop.f32.mrf.mxu0
      %v1103 = vadd.f32 %v934, %v1102
      %v1104 = vpop.f32.mrf.mxu0
      %v1105 = vadd.f32 %v936, %v1104
      %1106 = vmatmul.bf16.gmra.mxu0 %v650
      %v1107 = vpop.f32.mrf.mxu0
      %v1108 = vadd.f32 %v939, %v1107
      %v1109 = vpop.f32.mrf.mxu0
      %v1110 = vadd.f32 %v941, %v1109
      %1111 = vmatmul.bf16.gmra.mxu0 %v652
      %v1112 = vpop.f32.mrf.mxu0
      %v1113 = vadd.f32 %v944, %v1112
      %v1114 = vpop.f32.mrf.mxu0
      %v1115 = vadd.f32 %v946, %v1114
      %1116 = vmatmul.bf16.gmra.mxu0 %v654
      %v1117 = vpop.f32.mrf.mxu0
      %v1118 = vadd.f32 %v949, %v1117
      %v1119 = vpop.f32.mrf.mxu0
      %v1120 = vadd.f32 %v951, %v1119
      %1121 = vmatmul.bf16.gmra.mxu0 %v656
      %v1122 = vpop.f32.mrf.mxu0
      %v1123 = vadd.f32 %v954, %v1122
      %v1124 = vpop.f32.mrf.mxu0
      %v1125 = vadd.f32 %v956, %v1124
      %1126 = vdwg.mxu0
      %v1127 = vmax.f32 %v968, 0.0
      %v1128 = vmax.f32 %v970, 0.0
      %v1129 = vmax.f32 %v973, 0.0
      %v1130 = vmax.f32 %v975, 0.0
      %v1131 = vmax.f32 %v978, 0.0
      %v1132 = vmax.f32 %v980, 0.0
      %v1133 = vmax.f32 %v983, 0.0
      %v1134 = vmax.f32 %v985, 0.0
      %v1135 = vmax.f32 %v988, 0.0
      %v1136 = vmax.f32 %v990, 0.0
      %v1137 = vmax.f32 %v993, 0.0
      %v1138 = vmax.f32 %v995, 0.0
      %v1139 = vmax.f32 %v998, 0.0
      %v1140 = vmax.f32 %v1000, 0.0
      %v1141 = vmax.f32 %v1003, 0.0
      %v1142 = vmax.f32 %v1005, 0.0
      %v1143 = vmax.f32 %v1008, 0.0
      %v1144 = vmax.f32 %v1010, 0.0
      %v1145 = vmax.f32 %v1013, 0.0
      %v1146 = vmax.f32 %v1015, 0.0
      %v1147 = vmax.f32 %v1018, 0.0
      %v1148 = vmax.f32 %v1020, 0.0
      %v1149 = vmax.f32 %v1023, 0.0
      %v1150 = vmax.f32 %v1025, 0.0
      %v1151 = vmax.f32 %v1028, 0.0
      %v1152 = vmax.f32 %v1030, 0.0
      %v1153 = vmax.f32 %v1033, 0.0
      %v1154 = vmax.f32 %v1035, 0.0
      %v1155 = vmax.f32 %v1038, 0.0
      %v1156 = vmax.f32 %v1040, 0.0
      %v1157 = vmax.f32 %v1043, 0.0
      %v1158 = vmax.f32 %v1045, 0.0
      %v1159 = vmax.f32 %v1048, 0.0
      %v1160 = vmax.f32 %v1050, 0.0
      %v1161 = vmax.f32 %v1053, 0.0
      %v1162 = vmax.f32 %v1055, 0.0
      %v1163 = vmax.f32 %v1058, 0.0
      %v1164 = vmax.f32 %v1060, 0.0
      %v1165 = vmax.f32 %v1063, 0.0
      %v1166 = vmax.f32 %v1065, 0.0
      %v1167 = vmax.f32 %v1068, 0.0
      %v1168 = vmax.f32 %v1070, 0.0
      %v1169 = vmax.f32 %v1073, 0.0
      %v1170 = vmax.f32 %v1075, 0.0
      %v1171 = vmax.f32 %v1078, 0.0
      %v1172 = vmax.f32 %v1080, 0.0
      %v1173 = vmax.f32 %v1083, 0.0
      %v1174 = vmax.f32 %v1085, 0.0
      %v1175 = vmax.f32 %v1088, 0.0
      %v1176 = vmax.f32 %v1090, 0.0
      %v1177 = vmax.f32 %v1093, 0.0
      %v1178 = vmax.f32 %v1095, 0.0
      %v1179 = vmax.f32 %v1098, 0.0
      %v1180 = vmax.f32 %v1100, 0.0
      %v1181 = vmax.f32 %v1103, 0.0
      %v1182 = vmax.f32 %v1105, 0.0
      %v1183 = vmax.f32 %v1108, 0.0
      %v1184 = vmax.f32 %v1110, 0.0
      %v1185 = vmax.f32 %v1113, 0.0
      %v1186 = vmax.f32 %v1115, 0.0
      %v1187 = vmax.f32 %v1118, 0.0
      %v1188 = vmax.f32 %v1120, 0.0
      %v1189 = vmax.f32 %v1123, 0.0
      %v1190 = vmax.f32 %v1125, 0.0
      %v1191 = vpack.c.bf16 %v1127, %v1127
      %v1192 = vpack.c.bf16 %v1128, %v1128
      %v1193 = vpack.c.bf16 %v1129, %v1129
      %v1194 = vpack.c.bf16 %v1130, %v1130
      %v1195 = vpack.c.bf16 %v1131, %v1131
      %v1196 = vpack.c.bf16 %v1132, %v1132
      %v1197 = vpack.c.bf16 %v1133, %v1133
      %v1198 = vpack.c.bf16 %v1134, %v1134
      %v1199 = vpack.c.bf16 %v1135, %v1135
      %v1200 = vpack.c.bf16 %v1136, %v1136
      %v1201 = vpack.c.bf16 %v1137, %v1137
      %v1202 = vpack.c.bf16 %v1138, %v1138
      %v1203 = vpack.c.bf16 %v1139, %v1139
      %v1204 = vpack.c.bf16 %v1140, %v1140
      %v1205 = vpack.c.bf16 %v1141, %v1141
      %v1206 = vpack.c.bf16 %v1142, %v1142
      %v1207 = vpack.c.bf16 %v1143, %v1143
      %v1208 = vpack.c.bf16 %v1144, %v1144
      %v1209 = vpack.c.bf16 %v1145, %v1145
      %v1210 = vpack.c.bf16 %v1146, %v1146
      %v1211 = vpack.c.bf16 %v1147, %v1147
      %v1212 = vpack.c.bf16 %v1148, %v1148
      %v1213 = vpack.c.bf16 %v1149, %v1149
      %v1214 = vpack.c.bf16 %v1150, %v1150
      %v1215 = vpack.c.bf16 %v1151, %v1151
      %v1216 = vpack.c.bf16 %v1152, %v1152
      %v1217 = vpack.c.bf16 %v1153, %v1153
      %v1218 = vpack.c.bf16 %v1154, %v1154
      %v1219 = vpack.c.bf16 %v1155, %v1155
      %v1220 = vpack.c.bf16 %v1156, %v1156
      %v1221 = vpack.c.bf16 %v1157, %v1157
      %v1222 = vpack.c.bf16 %v1158, %v1158
      %v1223 = vpack.c.bf16 %v1159, %v1159
      %v1224 = vpack.c.bf16 %v1160, %v1160
      %v1225 = vpack.c.bf16 %v1161, %v1161
      %v1226 = vpack.c.bf16 %v1162, %v1162
      %v1227 = vpack.c.bf16 %v1163, %v1163
      %v1228 = vpack.c.bf16 %v1164, %v1164
      %v1229 = vpack.c.bf16 %v1165, %v1165
      %v1230 = vpack.c.bf16 %v1166, %v1166
      %v1231 = vpack.c.bf16 %v1167, %v1167
      %v1232 = vpack.c.bf16 %v1168, %v1168
      %v1233 = vpack.c.bf16 %v1169, %v1169
      %v1234 = vpack.c.bf16 %v1170, %v1170
      %v1235 = vpack.c.bf16 %v1171, %v1171
      %v1236 = vpack.c.bf16 %v1172, %v1172
      %v1237 = vpack.c.bf16 %v1173, %v1173
      %v1238 = vpack.c.bf16 %v1174, %v1174
      %v1239 = vpack.c.bf16 %v1175, %v1175
      %v1240 = vpack.c.bf16 %v1176, %v1176
      %v1241 = vpack.c.bf16 %v1177, %v1177
      %v1242 = vpack.c.bf16 %v1178, %v1178
      %v1243 = vpack.c.bf16 %v1179, %v1179
      %v1244 = vpack.c.bf16 %v1180, %v1180
      %v1245 = vpack.c.bf16 %v1181, %v1181
      %v1246 = vpack.c.bf16 %v1182, %v1182
      %v1247 = vpack.c.bf16 %v1183, %v1183
      %v1248 = vpack.c.bf16 %v1184, %v1184
      %v1249 = vpack.c.bf16 %v1185, %v1185
      %v1250 = vpack.c.bf16 %v1186, %v1186
      %v1251 = vpack.c.bf16 %v1187, %v1187
      %v1252 = vpack.c.bf16 %v1188, %v1188
      %v1253 = vpack.c.bf16 %v1189, %v1189
      %v1254 = vpack.c.bf16 %v1190, %v1190
      %vm1255 = vcmask 257024
      %1256 = vst.msk [vmem:[%s175] sm:$0xf] %vm1255, %v1191
      %1257 = vst.msk [vmem:[%s175 + $0x4] sm:$0xf] %vm1255, %v1192
      %1258 = vst.msk [vmem:[%s175 + $0x8] sm:$0xf] %vm1255, %v1193
      %1259 = vst.msk [vmem:[%s175 + $0xc] sm:$0xf] %vm1255, %v1194
      %1260 = vst.msk [vmem:[%s175 + $0x10] sm:$0xf] %vm1255, %v1195
      %1261 = vst.msk [vmem:[%s175 + $0x14] sm:$0xf] %vm1255, %v1196
      %1262 = vst.msk [vmem:[%s175 + $0x18] sm:$0xf] %vm1255, %v1197
      %1263 = vst.msk [vmem:[%s175 + $0x1c] sm:$0xf] %vm1255, %v1198
      %1264 = vst.msk [vmem:[%s175 + $0x20] sm:$0xf] %vm1255, %v1199
      %1265 = vst.msk [vmem:[%s175 + $0x24] sm:$0xf] %vm1255, %v1200
      %1266 = vst.msk [vmem:[%s175 + $0x28] sm:$0xf] %vm1255, %v1201
      %1267 = vst.msk [vmem:[%s175 + $0x2c] sm:$0xf] %vm1255, %v1202
      %1268 = vst.msk [vmem:[%s175 + $0x30] sm:$0xf] %vm1255, %v1203
      %1269 = vst.msk [vmem:[%s175 + $0x34] sm:$0xf] %vm1255, %v1204
      %1270 = vst.msk [vmem:[%s175 + $0x38] sm:$0xf] %vm1255, %v1205
      %1271 = vst.msk [vmem:[%s175 + $0x3c] sm:$0xf] %vm1255, %v1206
      %1272 = vst.msk [vmem:[%s175 + $0x40] sm:$0xf] %vm1255, %v1207
      %1273 = vst.msk [vmem:[%s175 + $0x44] sm:$0xf] %vm1255, %v1208
      %1274 = vst.msk [vmem:[%s175 + $0x48] sm:$0xf] %vm1255, %v1209
      %1275 = vst.msk [vmem:[%s175 + $0x4c] sm:$0xf] %vm1255, %v1210
      %1276 = vst.msk [vmem:[%s175 + $0x50] sm:$0xf] %vm1255, %v1211
      %1277 = vst.msk [vmem:[%s175 + $0x54] sm:$0xf] %vm1255, %v1212
      %1278 = vst.msk [vmem:[%s175 + $0x58] sm:$0xf] %vm1255, %v1213
      %1279 = vst.msk [vmem:[%s175 + $0x5c] sm:$0xf] %vm1255, %v1214
      %1280 = vst.msk [vmem:[%s175 + $0x60] sm:$0xf] %vm1255, %v1215
      %1281 = vst.msk [vmem:[%s175 + $0x64] sm:$0xf] %vm1255, %v1216
      %1282 = vst.msk [vmem:[%s175 + $0x68] sm:$0xf] %vm1255, %v1217
      %1283 = vst.msk [vmem:[%s175 + $0x6c] sm:$0xf] %vm1255, %v1218
      %1284 = vst.msk [vmem:[%s175 + $0x70] sm:$0xf] %vm1255, %v1219
      %1285 = vst.msk [vmem:[%s175 + $0x74] sm:$0xf] %vm1255, %v1220
      %1286 = vst.msk [vmem:[%s175 + $0x78] sm:$0xf] %vm1255, %v1221
      %1287 = vst.msk [vmem:[%s175 + $0x7c] sm:$0xf] %vm1255, %v1222
      %1288 = vst.msk [vmem:[%s175 + $0x80] sm:$0xf] %vm1255, %v1223
      %1289 = vst.msk [vmem:[%s175 + $0x84] sm:$0xf] %vm1255, %v1224
      %1290 = vst.msk [vmem:[%s175 + $0x88] sm:$0xf] %vm1255, %v1225
      %1291 = vst.msk [vmem:[%s175 + $0x8c] sm:$0xf] %vm1255, %v1226
      %1292 = vst.msk [vmem:[%s175 + $0x90] sm:$0xf] %vm1255, %v1227
      %1293 = vst.msk [vmem:[%s175 + $0x94] sm:$0xf] %vm1255, %v1228
      %1294 = vst.msk [vmem:[%s175 + $0x98] sm:$0xf] %vm1255, %v1229
      %1295 = vst.msk [vmem:[%s175 + $0x9c] sm:$0xf] %vm1255, %v1230
      %1296 = vst.msk [vmem:[%s175 + $0xa0] sm:$0xf] %vm1255, %v1231
      %1297 = vst.msk [vmem:[%s175 + $0xa4] sm:$0xf] %vm1255, %v1232
      %1298 = vst.msk [vmem:[%s175 + $0xa8] sm:$0xf] %vm1255, %v1233
      %1299 = vst.msk [vmem:[%s175 + $0xac] sm:$0xf] %vm1255, %v1234
      %1300 = vst.msk [vmem:[%s175 + $0xb0] sm:$0xf] %vm1255, %v1235
      %1301 = vst.msk [vmem:[%s175 + $0xb4] sm:$0xf] %vm1255, %v1236
      %1302 = vst.msk [vmem:[%s175 + $0xb8] sm:$0xf] %vm1255, %v1237
      %1303 = vst.msk [vmem:[%s175 + $0xbc] sm:$0xf] %vm1255, %v1238
      %1304 = vst.msk [vmem:[%s175 + $0xc0] sm:$0xf] %vm1255, %v1239
      %1305 = vst.msk [vmem:[%s175 + $0xc4] sm:$0xf] %vm1255, %v1240
      %1306 = vst.msk [vmem:[%s175 + $0xc8] sm:$0xf] %vm1255, %v1241
      %1307 = vst.msk [vmem:[%s175 + $0xcc] sm:$0xf] %vm1255, %v1242
      %1308 = vst.msk [vmem:[%s175 + $0xd0] sm:$0xf] %vm1255, %v1243
      %1309 = vst.msk [vmem:[%s175 + $0xd4] sm:$0xf] %vm1255, %v1244
      %1310 = vst.msk [vmem:[%s175 + $0xd8] sm:$0xf] %vm1255, %v1245
      %1311 = vst.msk [vmem:[%s175 + $0xdc] sm:$0xf] %vm1255, %v1246
      %1312 = vst.msk [vmem:[%s175 + $0xe0] sm:$0xf] %vm1255, %v1247
      %1313 = vst.msk [vmem:[%s175 + $0xe4] sm:$0xf] %vm1255, %v1248
      %1314 = vst.msk [vmem:[%s175 + $0xe8] sm:$0xf] %vm1255, %v1249
      %1315 = vst.msk [vmem:[%s175 + $0xec] sm:$0xf] %vm1255, %v1250
      %1316 = vst.msk [vmem:[%s175 + $0xf0] sm:$0xf] %vm1255, %v1251
      %1317 = vst.msk [vmem:[%s175 + $0xf4] sm:$0xf] %vm1255, %v1252
      %1318 = vst.msk [vmem:[%s175 + $0xf8] sm:$0xf] %vm1255, %v1253
      %1319 = vst.msk [vmem:[%s175 + $0xfc] sm:$0xf] %vm1255, %v1254
      %s1320 = smul.u32 64, %s14
      %p1321 = scmp.lt.s32.totalorder %s1320, 127
      %s1322 = scalar_select %p1321, %s1320, 127
      %s1323 = smul.addr %s1322, 4
      %s1324 = scalar_lea.vmem %s3, %s1323
      // Predicated region
      $region33: #{dqn_forward.4} parent=31 // pred_check
        %p1325 = pneg %p100
      $region34: #{dqn_forward.4} parent=31 // pred_check_branch
        %1327 = sbr.rel (%p1325) target = $region36
      $region35: #{dqn_forward.4} parent=31 // pred_region
        %s1328 = smul.u32 64, %s14
      $region36: #{dqn_forward.4} parent=31 // pred_fallthru
        _
    $region32: #{dqn_forward.4} parent=5 // pred_fallthru
      _
    %p1329 = scmp.le.s32.totalorder 2, %s9
    // Predicated region
    $region37: #{dqn_forward.4} parent=5 // pred_check
      %p1330 = pneg %p1329
    $region38: #{dqn_forward.4} parent=5 // pred_check_branch
      %1332 = sbr.rel (%p1330) target = $region40
    $region39: #{dqn_forward.4} parent=5 // pred_region
      %s1333 = ssub.s32 %s9, 2
      // Predicated region
      $region41: #{dqn_forward.4} parent=39 // pred_check
        %p1334 = pneg %p106
      $region42: #{dqn_forward.4} parent=39 // pred_check_branch
        %1336 = sbr.rel (%p1334) target = $region44
      $region43: #{dqn_forward.4} parent=39 // pred_region
        %s1337 = smul.u32 64, %s15
        %p1338 = scmp.lt.s32.totalorder %s1337, 127
        %s1339 = scalar_select %p1338, %s1337, 127
        %s1340 = smul.addr %s1339, 4
        %s1341 = scalar_lea.vmem %s3, %s1340
      $region44: #{dqn_forward.4} parent=39 // pred_fallthru
        _
    $region40: #{dqn_forward.4} parent=5 // pred_fallthru
      _
  $region6: #{dqn_forward.4} parent=0 // loop_footer
    %s13 = sadd.s32 1, %s9
  $region7: #{dqn_forward.4} parent=0 // loop_footer_branch
    %8 = sbr.rel target = $region3
  $region8: #{dqn_forward.4} parent=0 // loop_exit
    _

// kernel: dqn_forward.5
$region0: #{dqn_forward.5}
  #allocation0 [shape = 'u32[]', space=smem, size = 0x4, offset = 0x4, fixed_abs, tag = 'smem constant byte address 0x4 - core index']
  #allocation1 [shape = 'u32[72,128]{1,0:T(1,128)}', space=vmem, size = 0x9000, scoped, tag = 'internal scratch']
  %s0 = inlined_call_operand.vmem [shape: bf16[256,512], index: 0, kind: input, shape index: {}]
  %s1 = inlined_call_operand.vmem [shape: bf16[512,64], index: 1, kind: input, shape index: {}]
  %s2 = inlined_call_operand.vmem [shape: f32[1,64], index: 2, kind: input, shape index: {}]
  %s3 = inlined_call_operand.vmem [shape: bf16[256,64], index: 3, kind: output, shape index: {}]
  %s4 = sld [smem:[#allocation0]]
  $region45: #{dqn_forward.5} parent=0
    _
  %s6 = ssub.s32 1, %s4
  %s7 = scalar_select 0, %s6, %s4
  loop: start=0, step=1, limit=4
  $region2: #{dqn_forward.5} parent=0 // loop_pre_header
    _
  $region3: #{dqn_forward.5} parent=0 // loop_header
    %s9 = sphi 0, %s13
    %p10 = scmp.ge.s32.totalorder %s9, 4
    %s19 = sphi 0, %s21
    %s22 = sphi 0, %s19
    %s23 = sphi 0, %s22
    %s39 = sphi 0, %s23
    %s43 = sphi 0, %s43
    %s45 = sphi 0, %s43
    %s46 = sphi 0, %s45
    %s60 = sphi 0, %s46
    %s64 = sphi 0, %s64
    %s66 = sphi 0, %s64
    %s67 = sphi 0, %s66
    %s81 = sphi 0, %s67
    %s87 = sphi 0, %s89
    %s90 = sphi 0, %s87
    %s91 = sphi 0, %s90
    %s107 = sphi 0, %s91
  $region4: #{dqn_forward.5} parent=0 // loop_header_branch
    %12 = sbr.rel (%p10) target = $region8
  $region5: #{dqn_forward.5} parent=0 // loop_body
    %s14 = ssub.s32 %s9, 1
    %s15 = ssub.s32 %s9, 2
    %s16 = sadd.s32 %s9, 1
    %s17 = ssub.s32 %s9, %s16
    %p18 = scmp.eq.s32.totalorder %s17, 0
    %s20 = sadd.s32 %s19, 1
    %s21 = scalar_select %p18, %s19, %s20
    %p24 = pneg %p18
    %p25 = scmp.eq.s32.totalorder %s9, 1
    %p26 = por %p24, %p25
    %p27 = scmp.ne.s32.totalorder %s19, %s22
    %p28 = scmp.eq.s32.totalorder %s9, 0
    %p29 = por %p27, %p28
    %p30 = scmp.ne.s32.totalorder %s19, %s22
    %p31 = scmp.eq.s32.totalorder %s14, 1
    %p32 = por %p30, %p31
    %p33 = scmp.ne.s32.totalorder %s22, %s23
    %p34 = scmp.eq.s32.totalorder %s14, 0
    %p35 = por %p33, %p34
    %p36 = scmp.ne.s32.totalorder %s22, %s23
    %p37 = scmp.eq.s32.totalorder %s15, 1
    %p38 = por %p36, %p37
    %p40 = scmp.ne.s32.totalorder %s23, %s39
    %p41 = scmp.eq.s32.totalorder %s15, 0
    %p42 = por %p40, %p41
    %s44 = sadd.s32 %s43, 1
    %p47 = scmp.eq.s32.totalorder %s9, 1
    %p48 = scmp.ne.s32.totalorder %s43, %s45
    %p49 = scmp.eq.s32.totalorder %s9, 0
    %p50 = por %p48, %p49
    %p51 = scmp.ne.s32.totalorder %s43, %s45
    %p52 = scmp.eq.s32.totalorder %s14, 1
    %p53 = por %p51, %p52
    %p54 = scmp.ne.s32.totalorder %s45, %s46
    %p55 = scmp.eq.s32.totalorder %s14, 0
    %p56 = por %p54, %p55
    %p57 = scmp.ne.s32.totalorder %s45, %s46
    %p58 = scmp.eq.s32.totalorder %s15, 1
    %p59 = por %p57, %p58
    %p61 = scmp.ne.s32.totalorder %s46, %s60
    %p62 = scmp.eq.s32.totalorder %s15, 0
    %p63 = por %p61, %p62
    %s65 = sadd.s32 %s64, 1
    %p68 = scmp.eq.s32.totalorder %s9, 1
    %p69 = scmp.ne.s32.totalorder %s64, %s66
    %p70 = scmp.eq.s32.totalorder %s9, 0
    %p71 = por %p69, %p70
    %p72 = scmp.ne.s32.totalorder %s64, %s66
    %p73 = scmp.eq.s32.totalorder %s14, 1
    %p74 = por %p72, %p73
    %p75 = scmp.ne.s32.totalorder %s66, %s67
    %p76 = scmp.eq.s32.totalorder %s14, 0
    %p77 = por %p75, %p76
    %p78 = scmp.ne.s32.totalorder %s66, %s67
    %p79 = scmp.eq.s32.totalorder %s15, 1
    %p80 = por %p78, %p79
    %p82 = scmp.ne.s32.totalorder %s67, %s81
    %p83 = scmp.eq.s32.totalorder %s15, 0
    %p84 = por %p82, %p83
    %s85 = ssub.s32 %s9, %s16
    %p86 = scmp.eq.s32.totalorder %s85, 0
    %s88 = sadd.s32 %s87, 1
    %s89 = scalar_select %p86, %s87, %s88
    %p92 = pneg %p86
    %p93 = scmp.eq.s32.totalorder %s9, 1
    %p94 = por %p92, %p93
    %p95 = scmp.ne.s32.totalorder %s87, %s90
    %p96 = scmp.eq.s32.totalorder %s9, 0
    %p97 = por %p95, %p96
    %p98 = scmp.ne.s32.totalorder %s87, %s90
    %p99 = scmp.eq.s32.totalorder %s14, 1
    %p100 = por %p98, %p99
    %p101 = scmp.ne.s32.totalorder %s90, %s91
    %p102 = scmp.eq.s32.totalorder %s14, 0
    %p103 = por %p101, %p102
    %p104 = scmp.ne.s32.totalorder %s90, %s91
    %p105 = scmp.eq.s32.totalorder %s15, 1
    %p106 = por %p104, %p105
    %p108 = scmp.ne.s32.totalorder %s91, %s107
    %p109 = scmp.eq.s32.totalorder %s15, 0
    %p110 = por %p108, %p109
    %p111 = scmp.le.s32.totalorder 1, %s9
    %p112 = scmp.lt.s32.totalorder %s9, 3
    %p113 = pnand %p111, %p112
    %p114 = pneg %p113
    // Predicated region
    $region9: #{dqn_forward.5} parent=5 // pred_check
      _
    $region10: #{dqn_forward.5} parent=5 // pred_check_branch
      %116 = sbr.rel (%p113) target = $region12
    $region11: #{dqn_forward.5} parent=5 // pred_region
      %s117 = ssub.s32 %s9, 1
      // Predicated region
      $region13: #{dqn_forward.5} parent=11 // pred_check
        %p118 = pneg %p56
      $region14: #{dqn_forward.5} parent=11 // pred_check_branch
        %120 = sbr.rel (%p118) target = $region16
      $region15: #{dqn_forward.5} parent=11 // pred_region
        _
      $region16: #{dqn_forward.5} parent=11 // pred_fallthru
        _
      // Predicated region
      $region17: #{dqn_forward.5} parent=11 // pred_check
        %p121 = pneg %p77
      $region18: #{dqn_forward.5} parent=11 // pred_check_branch
        %123 = sbr.rel (%p121) target = $region20
      $region19: #{dqn_forward.5} parent=11 // pred_region
        _
      $region20: #{dqn_forward.5} parent=11 // pred_fallthru
        _
    $region12: #{dqn_forward.5} parent=5 // pred_fallthru
      _
    %p124 = scmp.lt.s32.totalorder %s9, 2
    // Predicated region
    $region21: #{dqn_forward.5} parent=5 // pred_check
      %p125 = pneg %p124
    $region22: #{dqn_forward.5} parent=5 // pred_check_branch
      %127 = sbr.rel (%p125) target = $region24
    $region23: #{dqn_forward.5} parent=5 // pred_region
      // Predicated region
      $region25: #{dqn_forward.5} parent=23 // pred_check
        %p128 = pneg %p29
      $region26: #{dqn_forward.5} parent=23 // pred_check_branch
        %130 = sbr.rel (%p128) target = $region28
      $region27: #{dqn_forward.5} parent=23 // pred_region
        %s131 = smul.u32 16, %s9
        %p132 = scmp.lt.s32.totalorder %s131, 31
        %s133 = scalar_select %p132, %s131, 31
        %s134 = smul.addr %s133, 4
        %s135 = smul.addr %s134, 4
        %s136 = scalar_lea.vmem %s0, %s135
        %s137 = smul.u32 16, %s9
      $region28: #{dqn_forward.5} parent=23 // pred_fallthru
        _
    $region24: #{dqn_forward.5} parent=5 // pred_fallthru
      _
    %p138 = scmp.le.s32.totalorder 1, %s9
    %p139 = scmp.lt.s32.totalorder %s9, 3
    %p140 = pnand %p138, %p139
    %p141 = pneg %p140
    // Predicated region
    $region29: #{dqn_forward.5} parent=5 // pred_check
      _
    $region30: #{dqn_forward.5} parent=5 // pred_check_branch
      %143 = sbr.rel (%p140) target = $region32
    $region31: #{dqn_forward.5} parent=5 // pred_region
      %s144 = ssub.s32 %s9, 1
      %s145 = smul.u32 16, %s14
      %p146 = scmp.lt.s32.totalorder %s145, 31
      %s147 = scalar_select %p146, %s145, 31
      %s148 = smul.addr %s147, 4
      %s149 = smul.addr %s148, 4
      %s150 = scalar_lea.vmem %s0, %s149
      %p151 = pneg %p35
      %p152 = pneg %p32
      %p153 = pneg %p56
      %p154 = pneg %p53
      %p155 = pneg %p77
      %p156 = pneg %p74
      %p157 = pneg %p103
      %p158 = pneg %p100
      %s159 = smul.u32 16, %s14
      %p160 = scmp.lt.s32.totalorder %s159, 31
      %s161 = scalar_select %p160, %s159, 31
      %s162 = smul.addr %s161, 4
      %s163 = scalar_lea.vmem %s3, %s162
      %s164 = smul.u32 16, %s14
      %p165 = scmp.lt.s32.totalorder %s164, 31
      %s166 = scalar_select %p165, %s164, 31
      %s167 = smul.addr %s166, 4
      %s168 = smul.addr %s167, 4
      %s169 = scalar_lea.vmem %s0, %s168
      %s170 = smul.u32 16, %s14
      %s171 = smul.u32 16, %s14
      %p172 = scmp.lt.s32.totalorder %s171, 31
      %s173 = scalar_select %p172, %s171, 31
      %s174 = smul.addr %s173, 4
      %s175 = scalar_lea.vmem %s3, %s174
      %s176 = smul.u32 16, %s14
      %v177 = vld [vmem:[%s169] sm:$0xff]
      %v178 = vld [vmem:[%s169 + $0x8] sm:$0xff]
      %v179 = vld [vmem:[%s169 + $0x10] sm:$0xff]
      %v180 = vld [vmem:[%s169 + $0x18] sm:$0xff]
      %v181 = vld [vmem:[%s169 + $0x20] sm:$0xff]
      %v182 = vld [vmem:[%s169 + $0x28] sm:$0xff]
      %v183 = vld [vmem:[%s169 + $0x30] sm:$0xff]
      %v184 = vld [vmem:[%s169 + $0x38] sm:$0xff]
      %v185 = vld [vmem:[%s169 + $0x40] sm:$0xff]
      %v186 = vld [vmem:[%s169 + $0x48] sm:$0xff]
      %v187 = vld [vmem:[%s169 + $0x50] sm:$0xff]
      %v188 = vld [vmem:[%s169 + $0x58] sm:$0xff]
      %v189 = vld [vmem:[%s169 + $0x60] sm:$0xff]
      %v190 = vld [vmem:[%s169 + $0x68] sm:$0xff]
      %v191 = vld [vmem:[%s169 + $0x70] sm:$0xff]
      %v192 = vld [vmem:[%s169 + $0x78] sm:$0xff]
      %v193 = vld [vmem:[%s169 + $0x80] sm:$0xff]
      %v194 = vld [vmem:[%s169 + $0x88] sm:$0xff]
      %v195 = vld [vmem:[%s169 + $0x90] sm:$0xff]
      %v196 = vld [vmem:[%s169 + $0x98] sm:$0xff]
      %v197 = vld [vmem:[%s169 + $0xa0] sm:$0xff]
      %v198 = vld [vmem:[%s169 + $0xa8] sm:$0xff]
      %v199 = vld [vmem:[%s169 + $0xb0] sm:$0xff]
      %v200 = vld [vmem:[%s169 + $0xb8] sm:$0xff]
      %v201 = vld [vmem:[%s169 + $0xc0] sm:$0xff]
      %v202 = vld [vmem:[%s169 + $0xc8] sm:$0xff]
      %v203 = vld [vmem:[%s169 + $0xd0] sm:$0xff]
      %v204 = vld [vmem:[%s169 + $0xd8] sm:$0xff]
      %v205 = vld [vmem:[%s169 + $0xe0] sm:$0xff]
      %v206 = vld [vmem:[%s169 + $0xe8] sm:$0xff]
      %v207 = vld [vmem:[%s169 + $0xf0] sm:$0xff]
      %v208 = vld [vmem:[%s169 + $0xf8] sm:$0xff]
      %v209 = vld [vmem:[%s1] sm:$0xf]
      %v210 = vld [vmem:[%s1 + $0x4] sm:$0xf]
      %v211 = vld [vmem:[%s1 + $0x8] sm:$0xf]
      %v212 = vld [vmem:[%s1 + $0xc] sm:$0xf]
      %v213 = vld [vmem:[%s1 + $0x10] sm:$0xf]
      %v214 = vld [vmem:[%s1 + $0x14] sm:$0xf]
      %v215 = vld [vmem:[%s1 + $0x18] sm:$0xf]
      %v216 = vld [vmem:[%s1 + $0x1c] sm:$0xf]
      %v217 = vld [vmem:[%s1 + $0x20] sm:$0xf]
      %v218 = vld [vmem:[%s1 + $0x24] sm:$0xf]
      %v219 = vld [vmem:[%s1 + $0x28] sm:$0xf]
      %v220 = vld [vmem:[%s1 + $0x2c] sm:$0xf]
      %v221 = vld [vmem:[%s1 + $0x30] sm:$0xf]
      %v222 = vld [vmem:[%s1 + $0x34] sm:$0xf]
      %v223 = vld [vmem:[%s1 + $0x38] sm:$0xf]
      %v224 = vld [vmem:[%s1 + $0x3c] sm:$0xf]
      %v225 = vld [vmem:[%s1 + $0x40] sm:$0xf]
      %v226 = vld [vmem:[%s1 + $0x44] sm:$0xf]
      %v227 = vld [vmem:[%s1 + $0x48] sm:$0xf]
      %v228 = vld [vmem:[%s1 + $0x4c] sm:$0xf]
      %v229 = vld [vmem:[%s1 + $0x50] sm:$0xf]
      %v230 = vld [vmem:[%s1 + $0x54] sm:$0xf]
      %v231 = vld [vmem:[%s1 + $0x58] sm:$0xf]
      %v232 = vld [vmem:[%s1 + $0x5c] sm:$0xf]
      %v233 = vld [vmem:[%s1 + $0x60] sm:$0xf]
      %v234 = vld [vmem:[%s1 + $0x64] sm:$0xf]
      %v235 = vld [vmem:[%s1 + $0x68] sm:$0xf]
      %v236 = vld [vmem:[%s1 + $0x6c] sm:$0xf]
      %v237 = vld [vmem:[%s1 + $0x70] sm:$0xf]
      %v238 = vld [vmem:[%s1 + $0x74] sm:$0xf]
      %v239 = vld [vmem:[%s1 + $0x78] sm:$0xf]
      %v240 = vld [vmem:[%s1 + $0x7c] sm:$0xf]
      %v241 = vld [vmem:[%s1 + $0x80] sm:$0xf]
      %v242 = vld [vmem:[%s1 + $0x84] sm:$0xf]
      %v243 = vld [vmem:[%s1 + $0x88] sm:$0xf]
      %v244 = vld [vmem:[%s1 + $0x8c] sm:$0xf]
      %v245 = vld [vmem:[%s1 + $0x90] sm:$0xf]
      %v246 = vld [vmem:[%s1 + $0x94] sm:$0xf]
      %v247 = vld [vmem:[%s1 + $0x98] sm:$0xf]
      %v248 = vld [vmem:[%s1 + $0x9c] sm:$0xf]
      %v249 = vld [vmem:[%s1 + $0xa0] sm:$0xf]
      %v250 = vld [vmem:[%s1 + $0xa4] sm:$0xf]
      %v251 = vld [vmem:[%s1 + $0xa8] sm:$0xf]
      %v252 = vld [vmem:[%s1 + $0xac] sm:$0xf]
      %v253 = vld [vmem:[%s1 + $0xb0] sm:$0xf]
      %v254 = vld [vmem:[%s1 + $0xb4] sm:$0xf]
      %v255 = vld [vmem:[%s1 + $0xb8] sm:$0xf]
      %v256 = vld [vmem:[%s1 + $0xbc] sm:$0xf]
      %v257 = vld [vmem:[%s1 + $0xc0] sm:$0xf]
      %v258 = vld [vmem:[%s1 + $0xc4] sm:$0xf]
      %v259 = vld [vmem:[%s1 + $0xc8] sm:$0xf]
      %v260 = vld [vmem:[%s1 + $0xcc] sm:$0xf]
      %v261 = vld [vmem:[%s1 + $0xd0] sm:$0xf]
      %v262 = vld [vmem:[%s1 + $0xd4] sm:$0xf]
      %v263 = vld [vmem:[%s1 + $0xd8] sm:$0xf]
      %v264 = vld [vmem:[%s1 + $0xdc] sm:$0xf]
      %v265 = vld [vmem:[%s1 + $0xe0] sm:$0xf]
      %v266 = vld [vmem:[%s1 + $0xe4] sm:$0xf]
      %v267 = vld [vmem:[%s1 + $0xe8] sm:$0xf]
      %v268 = vld [vmem:[%s1 + $0xec] sm:$0xf]
      %v269 = vld [vmem:[%s1 + $0xf0] sm:$0xf]
      %v270 = vld [vmem:[%s1 + $0xf4] sm:$0xf]
      %v271 = vld [vmem:[%s1 + $0xf8] sm:$0xf]
      %v272 = vld [vmem:[%s1 + $0xfc] sm:$0xf]
      %v273 = vld [vmem:[%s2] sm:$0x1]
      %v275 = vperm.slane %v273, 0
      %v309 = vunpack.c.l.b16 %v177
      %v310 = vunpack.c.h.b16 %v177
      %v311 = vunpack.c.l.b16 %v178
      %v312 = vunpack.c.h.b16 %v178
      %v313 = vunpack.c.l.b16 %v179
      %v314 = vunpack.c.h.b16 %v179
      %v315 = vunpack.c.l.b16 %v180
      %v316 = vunpack.c.h.b16 %v180
      %v317 = vunpack.c.l.b16 %v181
      %v318 = vunpack.c.h.b16 %v181
      %v319 = vunpack.c.l.b16 %v182
      %v320 = vunpack.c.h.b16 %v182
      %v321 = vunpack.c.l.b16 %v183
      %v322 = vunpack.c.h.b16 %v183
      %v323 = vunpack.c.l.b16 %v184
      %v324 = vunpack.c.h.b16 %v184
      %v325 = vunpack.c.l.b16 %v185
      %v326 = vunpack.c.h.b16 %v185
      %v327 = vunpack.c.l.b16 %v186
      %v328 = vunpack.c.h.b16 %v186
      %v329 = vunpack.c.l.b16 %v187
      %v330 = vunpack.c.h.b16 %v187
      %v331 = vunpack.c.l.b16 %v188
      %v332 = vunpack.c.h.b16 %v188
      %v333 = vunpack.c.l.b16 %v189
      %v334 = vunpack.c.h.b16 %v189
      %v335 = vunpack.c.l.b16 %v190
      %v336 = vunpack.c.h.b16 %v190
      %v337 = vunpack.c.l.b16 %v191
      %v338 = vunpack.c.h.b16 %v191
      %v339 = vunpack.c.l.b16 %v192
      %v340 = vunpack.c.h.b16 %v192
      %v341 = vunpack.c.l.b16 %v193
      %v342 = vunpack.c.h.b16 %v193
      %v343 = vunpack.c.l.b16 %v194
      %v344 = vunpack.c.h.b16 %v194
      %v345 = vunpack.c.l.b16 %v195
      %v346 = vunpack.c.h.b16 %v195
      %v347 = vunpack.c.l.b16 %v196
      %v348 = vunpack.c.h.b16 %v196
      %v349 = vunpack.c.l.b16 %v197
      %v350 = vunpack.c.h.b16 %v197
      %v351 = vunpack.c.l.b16 %v198
      %v352 = vunpack.c.h.b16 %v198
      %v353 = vunpack.c.l.b16 %v199
      %v354 = vunpack.c.h.b16 %v199
      %v355 = vunpack.c.l.b16 %v200
      %v356 = vunpack.c.h.b16 %v200
      %v357 = vunpack.c.l.b16 %v201
      %v358 = vunpack.c.h.b16 %v201
      %v359 = vunpack.c.l.b16 %v202
      %v360 = vunpack.c.h.b16 %v202
      %v361 = vunpack.c.l.b16 %v203
      %v362 = vunpack.c.h.b16 %v203
      %v363 = vunpack.c.l.b16 %v204
      %v364 = vunpack.c.h.b16 %v204
      %v365 = vunpack.c.l.b16 %v205
      %v366 = vunpack.c.h.b16 %v205
      %v367 = vunpack.c.l.b16 %v206
      %v368 = vunpack.c.h.b16 %v206
      %v369 = vunpack.c.l.b16 %v207
      %v370 = vunpack.c.h.b16 %v207
      %v371 = vunpack.c.l.b16 %v208
      %v372 = vunpack.c.h.b16 %v208
      %v373 = vpack.c.b16 %v313, %v309
      %v374 = vpack.c.b16 %v314, %v310
      %v375 = vpack.c.b16 %v315, %v311
      %v376 = vpack.c.b16 %v316, %v312
      %v377 = vpack.c.b16 %v321, %v317
      %v378 = vpack.c.b16 %v322, %v318
      %v379 = vpack.c.b16 %v323, %v319
      %v380 = vpack.c.b16 %v324, %v320
      %v381 = vpack.c.b16 %v329, %v325
      %v382 = vpack.c.b16 %v330, %v326
      %v383 = vpack.c.b16 %v331, %v327
      %v384 = vpack.c.b16 %v332, %v328
      %v385 = vpack.c.b16 %v337, %v333
      %v386 = vpack.c.b16 %v338, %v334
      %v387 = vpack.c.b16 %v339, %v335
      %v388 = vpack.c.b16 %v340, %v336
      %v389 = vpack.c.b16 %v345, %v341
      %v390 = vpack.c.b16 %v346, %v342
      %v391 = vpack.c.b16 %v347, %v343
      %v392 = vpack.c.b16 %v348, %v344
      %v393 = vpack.c.b16 %v353, %v349
      %v394 = vpack.c.b16 %v354, %v350
      %v395 = vpack.c.b16 %v355, %v351
      %v396 = vpack.c.b16 %v356, %v352
      %v397 = vpack.c.b16 %v361, %v357
      %v398 = vpack.c.b16 %v362, %v358
      %v399 = vpack.c.b16 %v363, %v359
      %v400 = vpack.c.b16 %v364, %v360
      %v401 = vpack.c.b16 %v369, %v365
      %v402 = vpack.c.b16 %v370, %v366
      %v403 = vpack.c.b16 %v371, %v367
      %v404 = vpack.c.b16 %v372, %v368
      %v501 = vunpack.c.l.b16 %v209
      %v502 = vunpack.c.l.b16 %v210
      %v503 = vunpack.c.l.b16 %v211
      %v504 = vunpack.c.l.b16 %v212
      %v505 = vunpack.c.l.b16 %v213
      %v506 = vunpack.c.l.b16 %v214
      %v507 = vunpack.c.l.b16 %v215
      %v508 = vunpack.c.l.b16 %v216
      %v509 = vunpack.c.l.b16 %v217
      %v510 = vunpack.c.l.b16 %v218
      %v511 = vunpack.c.l.b16 %v219
      %v512 = vunpack.c.l.b16 %v220
      %v513 = vunpack.c.l.b16 %v221
      %v514 = vunpack.c.l.b16 %v222
      %v515 = vunpack.c.l.b16 %v223
      %v516 = vunpack.c.l.b16 %v224
      %v517 = vunpack.c.l.b16 %v225
      %v518 = vunpack.c.l.b16 %v226
      %v519 = vunpack.c.l.b16 %v227
      %v520 = vunpack.c.l.b16 %v228
      %v521 = vunpack.c.l.b16 %v229
      %v522 = vunpack.c.l.b16 %v230
      %v523 = vunpack.c.l.b16 %v231
      %v524 = vunpack.c.l.b16 %v232
      %v525 = vunpack.c.l.b16 %v233
      %v526 = vunpack.c.l.b16 %v234
      %v527 = vunpack.c.l.b16 %v235
      %v528 = vunpack.c.l.b16 %v236
      %v529 = vunpack.c.l.b16 %v237
      %v530 = vunpack.c.l.b16 %v238
      %v531 = vunpack.c.l.b16 %v239
      %v532 = vunpack.c.l.b16 %v240
      %v533 = vunpack.c.l.b16 %v241
      %v534 = vunpack.c.l.b16 %v242
      %v535 = vunpack.c.l.b16 %v243
      %v536 = vunpack.c.l.b16 %v244
      %v537 = vunpack.c.l.b16 %v245
      %v538 = vunpack.c.l.b16 %v246
      %v539 = vunpack.c.l.b16 %v247
      %v540 = vunpack.c.l.b16 %v248
      %v541 = vunpack.c.l.b16 %v249
      %v542 = vunpack.c.l.b16 %v250
      %v543 = vunpack.c.l.b16 %v251
      %v544 = vunpack.c.l.b16 %v252
      %v545 = vunpack.c.l.b16 %v253
      %v546 = vunpack.c.l.b16 %v254
      %v547 = vunpack.c.l.b16 %v255
      %v548 = vunpack.c.l.b16 %v256
      %v549 = vunpack.c.l.b16 %v257
      %v550 = vunpack.c.l.b16 %v258
      %v551 = vunpack.c.l.b16 %v259
      %v552 = vunpack.c.l.b16 %v260
      %v553 = vunpack.c.l.b16 %v261
      %v554 = vunpack.c.l.b16 %v262
      %v555 = vunpack.c.l.b16 %v263
      %v556 = vunpack.c.l.b16 %v264
      %v557 = vunpack.c.l.b16 %v265
      %v558 = vunpack.c.l.b16 %v266
      %v559 = vunpack.c.l.b16 %v267
      %v560 = vunpack.c.l.b16 %v268
      %v561 = vunpack.c.l.b16 %v269
      %v562 = vunpack.c.l.b16 %v270
      %v563 = vunpack.c.l.b16 %v271
      %v564 = vunpack.c.l.b16 %v272
      %v565 = vpack.c.b16 %v502, %v501
      %v566 = vpack.c.b16 %v504, %v503
      %v567 = vpack.c.b16 %v506, %v505
      %v568 = vpack.c.b16 %v508, %v507
      %v569 = vpack.c.b16 %v510, %v509
      %v570 = vpack.c.b16 %v512, %v511
      %v571 = vpack.c.b16 %v514, %v513
      %v572 = vpack.c.b16 %v516, %v515
      %v573 = vpack.c.b16 %v518, %v517
      %v574 = vpack.c.b16 %v520, %v519
      %v575 = vpack.c.b16 %v522, %v521
      %v576 = vpack.c.b16 %v524, %v523
      %v577 = vpack.c.b16 %v526, %v525
      %v578 = vpack.c.b16 %v528, %v527
      %v579 = vpack.c.b16 %v530, %v529
      %v580 = vpack.c.b16 %v532, %v531
      %v581 = vpack.c.b16 %v534, %v533
      %v582 = vpack.c.b16 %v536, %v535
      %v583 = vpack.c.b16 %v538, %v537
      %v584 = vpack.c.b16 %v540, %v539
      %v585 = vpack.c.b16 %v542, %v541
      %v586 = vpack.c.b16 %v544, %v543
      %v587 = vpack.c.b16 %v546, %v545
      %v588 = vpack.c.b16 %v548, %v547
      %v589 = vpack.c.b16 %v550, %v549
      %v590 = vpack.c.b16 %v552, %v551
      %v591 = vpack.c.b16 %v554, %v553
      %v592 = vpack.c.b16 %v556, %v555
      %v593 = vpack.c.b16 %v558, %v557
      %v594 = vpack.c.b16 %v560, %v559
      %v595 = vpack.c.b16 %v562, %v561
      %v596 = vpack.c.b16 %v564, %v563
      %629 = vmatpush.bf16.msra.mxu0 %v572
      %630 = vmatpush.bf16.msra.mxu0 %v571
      %631 = vmatpush.bf16.msra.mxu0 %v570
      %632 = vmatpush.bf16.msra.mxu0 %v569
      %633 = vmatpush.bf16.msra.mxu0 %v568
      %634 = vmatpush.bf16.msra.mxu0 %v567
      %635 = vmatpush.bf16.msra.mxu0 %v566
      %636 = vmatpush.bf16.msra.mxu0 %v565
      %637 = vmatmul.bf16.gmra.mxu0 %v373
      %v638 = vpop.f32.mrf.mxu0
      %v639 = vadd.f32 %v275, %v638
      %v640 = vpop.f32.mrf.mxu0
      %v641 = vadd.f32 %v275, %v640
      %642 = vmatmul.bf16.gmra.mxu0 %v377
      %v643 = vpop.f32.mrf.mxu0
      %v644 = vadd.f32 %v275, %v643
      %v645 = vpop.f32.mrf.mxu0
      %v646 = vadd.f32 %v275, %v645
      %647 = vmatmul.bf16.gmra.mxu0 %v381
      %v648 = vpop.f32.mrf.mxu0
      %v649 = vadd.f32 %v275, %v648
      %v650 = vpop.f32.mrf.mxu0
      %v651 = vadd.f32 %v275, %v650
      %652 = vmatmul.bf16.gmra.mxu0 %v385
      %v653 = vpop.f32.mrf.mxu0
      %v654 = vadd.f32 %v275, %v653
      %v655 = vpop.f32.mrf.mxu0
      %v656 = vadd.f32 %v275, %v655
      %657 = vmatmul.bf16.gmra.mxu0 %v389
      %v658 = vpop.f32.mrf.mxu0
      %v659 = vadd.f32 %v275, %v658
      %v660 = vpop.f32.mrf.mxu0
      %v661 = vadd.f32 %v275, %v660
      %662 = vmatmul.bf16.gmra.mxu0 %v393
      %v663 = vpop.f32.mrf.mxu0
      %v664 = vadd.f32 %v275, %v663
      %v665 = vpop.f32.mrf.mxu0
      %v666 = vadd.f32 %v275, %v665
      %667 = vmatmul.bf16.gmra.mxu0 %v397
      %v668 = vpop.f32.mrf.mxu0
      %v669 = vadd.f32 %v275, %v668
      %v670 = vpop.f32.mrf.mxu0
      %v671 = vadd.f32 %v275, %v670
      %672 = vmatmul.bf16.gmra.mxu0 %v401
      %v673 = vpop.f32.mrf.mxu0
      %v674 = vadd.f32 %v275, %v673
      %v675 = vpop.f32.mrf.mxu0
      %v676 = vadd.f32 %v275, %v675
      %677 = vdwg.mxu0
      %678 = vmatpush.bf16.msra.mxu0 %v580
      %679 = vmatpush.bf16.msra.mxu0 %v579
      %680 = vmatpush.bf16.msra.mxu0 %v578
      %681 = vmatpush.bf16.msra.mxu0 %v577
      %682 = vmatpush.bf16.msra.mxu0 %v576
      %683 = vmatpush.bf16.msra.mxu0 %v575
      %684 = vmatpush.bf16.msra.mxu0 %v574
      %685 = vmatpush.bf16.msra.mxu0 %v573
      %686 = vmatmul.bf16.gmra.mxu0 %v374
      %v687 = vpop.f32.mrf.mxu0
      %v688 = vadd.f32 %v639, %v687
      %v689 = vpop.f32.mrf.mxu0
      %v690 = vadd.f32 %v641, %v689
      %691 = vmatmul.bf16.gmra.mxu0 %v378
      %v692 = vpop.f32.mrf.mxu0
      %v693 = vadd.f32 %v644, %v692
      %v694 = vpop.f32.mrf.mxu0
      %v695 = vadd.f32 %v646, %v694
      %696 = vmatmul.bf16.gmra.mxu0 %v382
      %v697 = vpop.f32.mrf.mxu0
      %v698 = vadd.f32 %v649, %v697
      %v699 = vpop.f32.mrf.mxu0
      %v700 = vadd.f32 %v651, %v699
      %701 = vmatmul.bf16.gmra.mxu0 %v386
      %v702 = vpop.f32.mrf.mxu0
      %v703 = vadd.f32 %v654, %v702
      %v704 = vpop.f32.mrf.mxu0
      %v705 = vadd.f32 %v656, %v704
      %706 = vmatmul.bf16.gmra.mxu0 %v390
      %v707 = vpop.f32.mrf.mxu0
      %v708 = vadd.f32 %v659, %v707
      %v709 = vpop.f32.mrf.mxu0
      %v710 = vadd.f32 %v661, %v709
      %711 = vmatmul.bf16.gmra.mxu0 %v394
      %v712 = vpop.f32.mrf.mxu0
      %v713 = vadd.f32 %v664, %v712
      %v714 = vpop.f32.mrf.mxu0
      %v715 = vadd.f32 %v666, %v714
      %716 = vmatmul.bf16.gmra.mxu0 %v398
      %v717 = vpop.f32.mrf.mxu0
      %v718 = vadd.f32 %v669, %v717
      %v719 = vpop.f32.mrf.mxu0
      %v720 = vadd.f32 %v671, %v719
      %721 = vmatmul.bf16.gmra.mxu0 %v402
      %v722 = vpop.f32.mrf.mxu0
      %v723 = vadd.f32 %v674, %v722
      %v724 = vpop.f32.mrf.mxu0
      %v725 = vadd.f32 %v676, %v724
      %726 = vdwg.mxu0
      %727 = vmatpush.bf16.msra.mxu0 %v588
      %728 = vmatpush.bf16.msra.mxu0 %v587
      %729 = vmatpush.bf16.msra.mxu0 %v586
      %730 = vmatpush.bf16.msra.mxu0 %v585
      %731 = vmatpush.bf16.msra.mxu0 %v584
      %732 = vmatpush.bf16.msra.mxu0 %v583
      %733 = vmatpush.bf16.msra.mxu0 %v582
      %734 = vmatpush.bf16.msra.mxu0 %v581
      %735 = vmatmul.bf16.gmra.mxu0 %v375
      %v736 = vpop.f32.mrf.mxu0
      %v737 = vadd.f32 %v688, %v736
      %v738 = vpop.f32.mrf.mxu0
      %v739 = vadd.f32 %v690, %v738
      %740 = vmatmul.bf16.gmra.mxu0 %v379
      %v741 = vpop.f32.mrf.mxu0
      %v742 = vadd.f32 %v693, %v741
      %v743 = vpop.f32.mrf.mxu0
      %v744 = vadd.f32 %v695, %v743
      %745 = vmatmul.bf16.gmra.mxu0 %v383
      %v746 = vpop.f32.mrf.mxu0
      %v747 = vadd.f32 %v698, %v746
      %v748 = vpop.f32.mrf.mxu0
      %v749 = vadd.f32 %v700, %v748
      %750 = vmatmul.bf16.gmra.mxu0 %v387
      %v751 = vpop.f32.mrf.mxu0
      %v752 = vadd.f32 %v703, %v751
      %v753 = vpop.f32.mrf.mxu0
      %v754 = vadd.f32 %v705, %v753
      %755 = vmatmul.bf16.gmra.mxu0 %v391
      %v756 = vpop.f32.mrf.mxu0
      %v757 = vadd.f32 %v708, %v756
      %v758 = vpop.f32.mrf.mxu0
      %v759 = vadd.f32 %v710, %v758
      %760 = vmatmul.bf16.gmra.mxu0 %v395
      %v761 = vpop.f32.mrf.mxu0
      %v762 = vadd.f32 %v713, %v761
      %v763 = vpop.f32.mrf.mxu0
      %v764 = vadd.f32 %v715, %v763
      %765 = vmatmul.bf16.gmra.mxu0 %v399
      %v766 = vpop.f32.mrf.mxu0
      %v767 = vadd.f32 %v718, %v766
      %v768 = vpop.f32.mrf.mxu0
      %v769 = vadd.f32 %v720, %v768
      %770 = vmatmul.bf16.gmra.mxu0 %v403
      %v771 = vpop.f32.mrf.mxu0
      %v772 = vadd.f32 %v723, %v771
      %v773 = vpop.f32.mrf.mxu0
      %v774 = vadd.f32 %v725, %v773
      %775 = vdwg.mxu0
      %776 = vmatpush.bf16.msra.mxu0 %v596
      %777 = vmatpush.bf16.msra.mxu0 %v595
      %778 = vmatpush.bf16.msra.mxu0 %v594
      %779 = vmatpush.bf16.msra.mxu0 %v593
      %780 = vmatpush.bf16.msra.mxu0 %v592
      %781 = vmatpush.bf16.msra.mxu0 %v591
      %782 = vmatpush.bf16.msra.mxu0 %v590
      %783 = vmatpush.bf16.msra.mxu0 %v589
      %784 = vmatmul.bf16.gmra.mxu0 %v376
      %v785 = vpop.f32.mrf.mxu0
      %v786 = vadd.f32 %v737, %v785
      %v787 = vpop.f32.mrf.mxu0
      %v788 = vadd.f32 %v739, %v787
      %789 = vmatmul.bf16.gmra.mxu0 %v380
      %v790 = vpop.f32.mrf.mxu0
      %v791 = vadd.f32 %v742, %v790
      %v792 = vpop.f32.mrf.mxu0
      %v793 = vadd.f32 %v744, %v792
      %794 = vmatmul.bf16.gmra.mxu0 %v384
      %v795 = vpop.f32.mrf.mxu0
      %v796 = vadd.f32 %v747, %v795
      %v797 = vpop.f32.mrf.mxu0
      %v798 = vadd.f32 %v749, %v797
      %799 = vmatmul.bf16.gmra.mxu0 %v388
      %v800 = vpop.f32.mrf.mxu0
      %v801 = vadd.f32 %v752, %v800
      %v802 = vpop.f32.mrf.mxu0
      %v803 = vadd.f32 %v754, %v802
      %804 = vmatmul.bf16.gmra.mxu0 %v392
      %v805 = vpop.f32.mrf.mxu0
      %v806 = vadd.f32 %v757, %v805
      %v807 = vpop.f32.mrf.mxu0
      %v808 = vadd.f32 %v759, %v807
      %809 = vmatmul.bf16.gmra.mxu0 %v396
      %v810 = vpop.f32.mrf.mxu0
      %v811 = vadd.f32 %v762, %v810
      %v812 = vpop.f32.mrf.mxu0
      %v813 = vadd.f32 %v764, %v812
      %814 = vmatmul.bf16.gmra.mxu0 %v400
      %v815 = vpop.f32.mrf.mxu0
      %v816 = vadd.f32 %v767, %v815
      %v817 = vpop.f32.mrf.mxu0
      %v818 = vadd.f32 %v769, %v817
      %819 = vmatmul.bf16.gmra.mxu0 %v404
      %v820 = vpop.f32.mrf.mxu0
      %v821 = vadd.f32 %v772, %v820
      %v822 = vpop.f32.mrf.mxu0
      %v823 = vadd.f32 %v774, %v822
      %824 = vdwg.mxu0
      %v825 = vmax.f32 %v786, 0.0
      %v826 = vmax.f32 %v788, 0.0
      %v827 = vmax.f32 %v791, 0.0
      %v828 = vmax.f32 %v793, 0.0
      %v829 = vmax.f32 %v796, 0.0
      %v830 = vmax.f32 %v798, 0.0
      %v831 = vmax.f32 %v801, 0.0
      %v832 = vmax.f32 %v803, 0.0
      %v833 = vmax.f32 %v806, 0.0
      %v834 = vmax.f32 %v808, 0.0
      %v835 = vmax.f32 %v811, 0.0
      %v836 = vmax.f32 %v813, 0.0
      %v837 = vmax.f32 %v816, 0.0
      %v838 = vmax.f32 %v818, 0.0
      %v839 = vmax.f32 %v821, 0.0
      %v840 = vmax.f32 %v823, 0.0
      %v841 = vpack.c.bf16 %v825, %v825
      %v842 = vpack.c.bf16 %v826, %v826
      %v843 = vpack.c.bf16 %v827, %v827
      %v844 = vpack.c.bf16 %v828, %v828
      %v845 = vpack.c.bf16 %v829, %v829
      %v846 = vpack.c.bf16 %v830, %v830
      %v847 = vpack.c.bf16 %v831, %v831
      %v848 = vpack.c.bf16 %v832, %v832
      %v849 = vpack.c.bf16 %v833, %v833
      %v850 = vpack.c.bf16 %v834, %v834
      %v851 = vpack.c.bf16 %v835, %v835
      %v852 = vpack.c.bf16 %v836, %v836
      %v853 = vpack.c.bf16 %v837, %v837
      %v854 = vpack.c.bf16 %v838, %v838
      %v855 = vpack.c.bf16 %v839, %v839
      %v856 = vpack.c.bf16 %v840, %v840
      %vm857 = vcmask 519168
      %858 = vst.msk [vmem:[%s175] sm:$0xf] %vm857, %v841
      %859 = vst.msk [vmem:[%s175 + $0x4] sm:$0xf] %vm857, %v842
      %860 = vst.msk [vmem:[%s175 + $0x8] sm:$0xf] %vm857, %v843
      %861 = vst.msk [vmem:[%s175 + $0xc] sm:$0xf] %vm857, %v844
      %862 = vst.msk [vmem:[%s175 + $0x10] sm:$0xf] %vm857, %v845
      %863 = vst.msk [vmem:[%s175 + $0x14] sm:$0xf] %vm857, %v846
      %864 = vst.msk [vmem:[%s175 + $0x18] sm:$0xf] %vm857, %v847
      %865 = vst.msk [vmem:[%s175 + $0x1c] sm:$0xf] %vm857, %v848
      %866 = vst.msk [vmem:[%s175 + $0x20] sm:$0xf] %vm857, %v849
      %867 = vst.msk [vmem:[%s175 + $0x24] sm:$0xf] %vm857, %v850
      %868 = vst.msk [vmem:[%s175 + $0x28] sm:$0xf] %vm857, %v851
      %869 = vst.msk [vmem:[%s175 + $0x2c] sm:$0xf] %vm857, %v852
      %870 = vst.msk [vmem:[%s175 + $0x30] sm:$0xf] %vm857, %v853
      %871 = vst.msk [vmem:[%s175 + $0x34] sm:$0xf] %vm857, %v854
      %872 = vst.msk [vmem:[%s175 + $0x38] sm:$0xf] %vm857, %v855
      %873 = vst.msk [vmem:[%s175 + $0x3c] sm:$0xf] %vm857, %v856
      %s874 = smul.u32 16, %s14
      %p875 = scmp.lt.s32.totalorder %s874, 31
      %s876 = scalar_select %p875, %s874, 31
      %s877 = smul.addr %s876, 4
      %s878 = scalar_lea.vmem %s3, %s877
      // Predicated region
      $region33: #{dqn_forward.5} parent=31 // pred_check
        %p879 = pneg %p100
      $region34: #{dqn_forward.5} parent=31 // pred_check_branch
        %881 = sbr.rel (%p879) target = $region36
      $region35: #{dqn_forward.5} parent=31 // pred_region
        %s882 = smul.u32 16, %s14
      $region36: #{dqn_forward.5} parent=31 // pred_fallthru
        _
    $region32: #{dqn_forward.5} parent=5 // pred_fallthru
      _
    %p883 = scmp.le.s32.totalorder 2, %s9
    // Predicated region
    $region37: #{dqn_forward.5} parent=5 // pred_check
      %p884 = pneg %p883
    $region38: #{dqn_forward.5} parent=5 // pred_check_branch
      %886 = sbr.rel (%p884) target = $region40
    $region39: #{dqn_forward.5} parent=5 // pred_region
      %s887 = ssub.s32 %s9, 2
      // Predicated region
      $region41: #{dqn_forward.5} parent=39 // pred_check
        %p888 = pneg %p106
      $region42: #{dqn_forward.5} parent=39 // pred_check_branch
        %890 = sbr.rel (%p888) target = $region44
      $region43: #{dqn_forward.5} parent=39 // pred_region
        %s891 = smul.u32 16, %s15
        %p892 = scmp.lt.s32.totalorder %s891, 31
        %s893 = scalar_select %p892, %s891, 31
        %s894 = smul.addr %s893, 4
        %s895 = scalar_lea.vmem %s3, %s894
      $region44: #{dqn_forward.5} parent=39 // pred_fallthru
        _
    $region40: #{dqn_forward.5} parent=5 // pred_fallthru
      _
  $region6: #{dqn_forward.5} parent=0 // loop_footer
    %s13 = sadd.s32 1, %s9
  $region7: #{dqn_forward.5} parent=0 // loop_footer_branch
    %8 = sbr.rel target = $region3
  $region8: #{dqn_forward.5} parent=0 // loop_exit
    _

// kernel: dqn_forward.6
$region0: #{dqn_forward.6}
  #allocation0 [shape = 'u32[]', space=smem, size = 0x4, offset = 0x4, fixed_abs, tag = 'smem constant byte address 0x4 - core index']
  #allocation1 [shape = 'u32[72,128]{1,0:T(1,128)}', space=vmem, size = 0x9000, scoped, tag = 'internal scratch']
  %s0 = inlined_call_operand.vmem [shape: bf16[128,576], index: 0, kind: input, shape index: {}]
  %s1 = inlined_call_operand.vmem [shape: bf16[576,64], index: 1, kind: input, shape index: {}]
  %s2 = inlined_call_operand.vmem [shape: f32[1,64], index: 2, kind: input, shape index: {}]
  %s3 = inlined_call_operand.vmem [shape: bf16[128,64], index: 3, kind: output, shape index: {}]
  %s4 = sld [smem:[#allocation0]]
  $region22: #{dqn_forward.6} parent=0
    _
  %s6 = ssub.s32 1, %s4
  %s7 = scalar_select 0, %s6, %s4
  // Predicated region
  $region2: #{dqn_forward.6} parent=0 // pred_check
    _
  $region3: #{dqn_forward.6} parent=0 // pred_check_branch
    %9 = sbr.rel (0) target = $region5
  $region4: #{dqn_forward.6} parent=0 // pred_region
    _
  $region5: #{dqn_forward.6} parent=0 // pred_fallthru
    _
  // Predicated region
  $region6: #{dqn_forward.6} parent=0 // pred_check
    _
  $region7: #{dqn_forward.6} parent=0 // pred_check_branch
    %11 = sbr.rel (0) target = $region9
  $region8: #{dqn_forward.6} parent=0 // pred_region
    _
  $region9: #{dqn_forward.6} parent=0 // pred_fallthru
    _
  // Predicated region
  $region10: #{dqn_forward.6} parent=0 // pred_check
    _
  $region11: #{dqn_forward.6} parent=0 // pred_check_branch
    %13 = sbr.rel (0) target = $region13
  $region12: #{dqn_forward.6} parent=0 // pred_region
    _
  $region13: #{dqn_forward.6} parent=0 // pred_fallthru
    _
  %v15 = vld [vmem:[%s0] sm:$0xff]
  %v16 = vld [vmem:[%s0 + $0x8] sm:$0xff]
  %v17 = vld [vmem:[%s0 + $0x10] sm:$0xf]
  %v18 = vld [vmem:[%s0 + $0x14] sm:$0xff]
  %v19 = vld [vmem:[%s0 + $0x1c] sm:$0xff]
  %v20 = vld [vmem:[%s0 + $0x24] sm:$0xf]
  %v21 = vld [vmem:[%s0 + $0x28] sm:$0xff]
  %v22 = vld [vmem:[%s0 + $0x30] sm:$0xff]
  %v23 = vld [vmem:[%s0 + $0x38] sm:$0xf]
  %v24 = vld [vmem:[%s0 + $0x3c] sm:$0xff]
  %v25 = vld [vmem:[%s0 + $0x44] sm:$0xff]
  %v26 = vld [vmem:[%s0 + $0x4c] sm:$0xf]
  %v27 = vld [vmem:[%s0 + $0x50] sm:$0xff]
  %v28 = vld [vmem:[%s0 + $0x58] sm:$0xff]
  %v29 = vld [vmem:[%s0 + $0x60] sm:$0xf]
  %v30 = vld [vmem:[%s0 + $0x64] sm:$0xff]
  %v31 = vld [vmem:[%s0 + $0x6c] sm:$0xff]
  %v32 = vld [vmem:[%s0 + $0x74] sm:$0xf]
  %v33 = vld [vmem:[%s0 + $0x78] sm:$0xff]
  %v34 = vld [vmem:[%s0 + $0x80] sm:$0xff]
  %v35 = vld [vmem:[%s0 + $0x88] sm:$0xf]
  %v36 = vld [vmem:[%s0 + $0x8c] sm:$0xff]
  %v37 = vld [vmem:[%s0 + $0x94] sm:$0xff]
  %v38 = vld [vmem:[%s0 + $0x9c] sm:$0xf]
  %v39 = vld [vmem:[%s0 + $0xa0] sm:$0xff]
  %v40 = vld [vmem:[%s0 + $0xa8] sm:$0xff]
  %v41 = vld [vmem:[%s0 + $0xb0] sm:$0xf]
  %v42 = vld [vmem:[%s0 + $0xb4] sm:$0xff]
  %v43 = vld [vmem:[%s0 + $0xbc] sm:$0xff]
  %v44 = vld [vmem:[%s0 + $0xc4] sm:$0xf]
  %v45 = vld [vmem:[%s0 + $0xc8] sm:$0xff]
  %v46 = vld [vmem:[%s0 + $0xd0] sm:$0xff]
  %v47 = vld [vmem:[%s0 + $0xd8] sm:$0xf]
  %v48 = vld [vmem:[%s0 + $0xdc] sm:$0xff]
  %v49 = vld [vmem:[%s0 + $0xe4] sm:$0xff]
  %v50 = vld [vmem:[%s0 + $0xec] sm:$0xf]
  %v51 = vld [vmem:[%s0 + $0xf0] sm:$0xff]
  %v52 = vld [vmem:[%s0 + $0xf8] sm:$0xff]
  %v53 = vld [vmem:[%s0 + $0x100] sm:$0xf]
  %v54 = vld [vmem:[%s0 + $0x104] sm:$0xff]
  %v55 = vld [vmem:[%s0 + $0x10c] sm:$0xff]
  %v56 = vld [vmem:[%s0 + $0x114] sm:$0xf]
  %v57 = vld [vmem:[%s0 + $0x118] sm:$0xff]
  %v58 = vld [vmem:[%s0 + $0x120] sm:$0xff]
  %v59 = vld [vmem:[%s0 + $0x128] sm:$0xf]
  %v60 = vld [vmem:[%s0 + $0x12c] sm:$0xff]
  %v61 = vld [vmem:[%s0 + $0x134] sm:$0xff]
  %v62 = vld [vmem:[%s0 + $0x13c] sm:$0xf]
  %v63 = vld [vmem:[%s1] sm:$0xf]
  %v64 = vld [vmem:[%s1 + $0x4] sm:$0xf]
  %v65 = vld [vmem:[%s1 + $0x8] sm:$0xf]
  %v66 = vld [vmem:[%s1 + $0xc] sm:$0xf]
  %v67 = vld [vmem:[%s1 + $0x10] sm:$0xf]
  %v68 = vld [vmem:[%s1 + $0x14] sm:$0xf]
  %v69 = vld [vmem:[%s1 + $0x18] sm:$0xf]
  %v70 = vld [vmem:[%s1 + $0x1c] sm:$0xf]
  %v71 = vld [vmem:[%s1 + $0x20] sm:$0xf]
  %v72 = vld [vmem:[%s1 + $0x24] sm:$0xf]
  %v73 = vld [vmem:[%s1 + $0x28] sm:$0xf]
  %v74 = vld [vmem:[%s1 + $0x2c] sm:$0xf]
  %v75 = vld [vmem:[%s1 + $0x30] sm:$0xf]
  %v76 = vld [vmem:[%s1 + $0x34] sm:$0xf]
  %v77 = vld [vmem:[%s1 + $0x38] sm:$0xf]
  %v78 = vld [vmem:[%s1 + $0x3c] sm:$0xf]
  %v79 = vld [vmem:[%s1 + $0x40] sm:$0xf]
  %v80 = vld [vmem:[%s1 + $0x44] sm:$0xf]
  %v81 = vld [vmem:[%s1 + $0x48] sm:$0xf]
  %v82 = vld [vmem:[%s1 + $0x4c] sm:$0xf]
  %v83 = vld [vmem:[%s1 + $0x50] sm:$0xf]
  %v84 = vld [vmem:[%s1 + $0x54] sm:$0xf]
  %v85 = vld [vmem:[%s1 + $0x58] sm:$0xf]
  %v86 = vld [vmem:[%s1 + $0x5c] sm:$0xf]
  %v87 = vld [vmem:[%s1 + $0x60] sm:$0xf]
  %v88 = vld [vmem:[%s1 + $0x64] sm:$0xf]
  %v89 = vld [vmem:[%s1 + $0x68] sm:$0xf]
  %v90 = vld [vmem:[%s1 + $0x6c] sm:$0xf]
  %v91 = vld [vmem:[%s1 + $0x70] sm:$0xf]
  %v92 = vld [vmem:[%s1 + $0x74] sm:$0xf]
  %v93 = vld [vmem:[%s1 + $0x78] sm:$0xf]
  %v94 = vld [vmem:[%s1 + $0x7c] sm:$0xf]
  %v95 = vld [vmem:[%s1 + $0x80] sm:$0xf]
  %v96 = vld [vmem:[%s1 + $0x84] sm:$0xf]
  %v97 = vld [vmem:[%s1 + $0x88] sm:$0xf]
  %v98 = vld [vmem:[%s1 + $0x8c] sm:$0xf]
  %v99 = vld [vmem:[%s1 + $0x90] sm:$0xf]
  %v100 = vld [vmem:[%s1 + $0x94] sm:$0xf]
  %v101 = vld [vmem:[%s1 + $0x98] sm:$0xf]
  %v102 = vld [vmem:[%s1 + $0x9c] sm:$0xf]
  %v103 = vld [vmem:[%s1 + $0xa0] sm:$0xf]
  %v104 = vld [vmem:[%s1 + $0xa4] sm:$0xf]
  %v105 = vld [vmem:[%s1 + $0xa8] sm:$0xf]
  %v106 = vld [vmem:[%s1 + $0xac] sm:$0xf]
  %v107 = vld [vmem:[%s1 + $0xb0] sm:$0xf]
  %v108 = vld [vmem:[%s1 + $0xb4] sm:$0xf]
  %v109 = vld [vmem:[%s1 + $0xb8] sm:$0xf]
  %v110 = vld [vmem:[%s1 + $0xbc] sm:$0xf]
  %v111 = vld [vmem:[%s1 + $0xc0] sm:$0xf]
  %v112 = vld [vmem:[%s1 + $0xc4] sm:$0xf]
  %v113 = vld [vmem:[%s1 + $0xc8] sm:$0xf]
  %v114 = vld [vmem:[%s1 + $0xcc] sm:$0xf]
  %v115 = vld [vmem:[%s1 + $0xd0] sm:$0xf]
  %v116 = vld [vmem:[%s1 + $0xd4] sm:$0xf]
  %v117 = vld [vmem:[%s1 + $0xd8] sm:$0xf]
  %v118 = vld [vmem:[%s1 + $0xdc] sm:$0xf]
  %v119 = vld [vmem:[%s1 + $0xe0] sm:$0xf]
  %v120 = vld [vmem:[%s1 + $0xe4] sm:$0xf]
  %v121 = vld [vmem:[%s1 + $0xe8] sm:$0xf]
  %v122 = vld [vmem:[%s1 + $0xec] sm:$0xf]
  %v123 = vld [vmem:[%s1 + $0xf0] sm:$0xf]
  %v124 = vld [vmem:[%s1 + $0xf4] sm:$0xf]
  %v125 = vld [vmem:[%s1 + $0xf8] sm:$0xf]
  %v126 = vld [vmem:[%s1 + $0xfc] sm:$0xf]
  %v127 = vld [vmem:[%s1 + $0x100] sm:$0xf]
  %v128 = vld [vmem:[%s1 + $0x104] sm:$0xf]
  %v129 = vld [vmem:[%s1 + $0x108] sm:$0xf]
  %v130 = vld [vmem:[%s1 + $0x10c] sm:$0xf]
  %v131 = vld [vmem:[%s1 + $0x110] sm:$0xf]
  %v132 = vld [vmem:[%s1 + $0x114] sm:$0xf]
  %v133 = vld [vmem:[%s1 + $0x118] sm:$0xf]
  %v134 = vld [vmem:[%s1 + $0x11c] sm:$0xf]
  %v135 = vld [vmem:[%s2] sm:$0x1]
  %v137 = vperm.slane %v135, 0
  %v187 = vunpack.c.l.b16 %v15
  %v188 = vunpack.c.h.b16 %v15
  %v189 = vunpack.c.l.b16 %v16
  %v190 = vunpack.c.h.b16 %v16
  %v191 = vunpack.c.l.b16 %v17
  %v192 = vunpack.c.l.b16 %v18
  %v193 = vunpack.c.h.b16 %v18
  %v194 = vunpack.c.l.b16 %v19
  %v195 = vunpack.c.h.b16 %v19
  %v196 = vunpack.c.l.b16 %v20
  %v197 = vunpack.c.l.b16 %v21
  %v198 = vunpack.c.h.b16 %v21
  %v199 = vunpack.c.l.b16 %v22
  %v200 = vunpack.c.h.b16 %v22
  %v201 = vunpack.c.l.b16 %v23
  %v202 = vunpack.c.l.b16 %v24
  %v203 = vunpack.c.h.b16 %v24
  %v204 = vunpack.c.l.b16 %v25
  %v205 = vunpack.c.h.b16 %v25
  %v206 = vunpack.c.l.b16 %v26
  %v207 = vunpack.c.l.b16 %v27
  %v208 = vunpack.c.h.b16 %v27
  %v209 = vunpack.c.l.b16 %v28
  %v210 = vunpack.c.h.b16 %v28
  %v211 = vunpack.c.l.b16 %v29
  %v212 = vunpack.c.l.b16 %v30
  %v213 = vunpack.c.h.b16 %v30
  %v214 = vunpack.c.l.b16 %v31
  %v215 = vunpack.c.h.b16 %v31
  %v216 = vunpack.c.l.b16 %v32
  %v217 = vunpack.c.l.b16 %v33
  %v218 = vunpack.c.h.b16 %v33
  %v219 = vunpack.c.l.b16 %v34
  %v220 = vunpack.c.h.b16 %v34
  %v221 = vunpack.c.l.b16 %v35
  %v222 = vunpack.c.l.b16 %v36
  %v223 = vunpack.c.h.b16 %v36
  %v224 = vunpack.c.l.b16 %v37
  %v225 = vunpack.c.h.b16 %v37
  %v226 = vunpack.c.l.b16 %v38
  %v227 = vunpack.c.l.b16 %v39
  %v228 = vunpack.c.h.b16 %v39
  %v229 = vunpack.c.l.b16 %v40
  %v230 = vunpack.c.h.b16 %v40
  %v231 = vunpack.c.l.b16 %v41
  %v232 = vunpack.c.l.b16 %v42
  %v233 = vunpack.c.h.b16 %v42
  %v234 = vunpack.c.l.b16 %v43
  %v235 = vunpack.c.h.b16 %v43
  %v236 = vunpack.c.l.b16 %v44
  %v237 = vunpack.c.l.b16 %v45
  %v238 = vunpack.c.h.b16 %v45
  %v239 = vunpack.c.l.b16 %v46
  %v240 = vunpack.c.h.b16 %v46
  %v241 = vunpack.c.l.b16 %v47
  %v242 = vunpack.c.l.b16 %v48
  %v243 = vunpack.c.h.b16 %v48
  %v244 = vunpack.c.l.b16 %v49
  %v245 = vunpack.c.h.b16 %v49
  %v246 = vunpack.c.l.b16 %v50
  %v247 = vunpack.c.l.b16 %v51
  %v248 = vunpack.c.h.b16 %v51
  %v249 = vunpack.c.l.b16 %v52
  %v250 = vunpack.c.h.b16 %v52
  %v251 = vunpack.c.l.b16 %v53
  %v252 = vunpack.c.l.b16 %v54
  %v253 = vunpack.c.h.b16 %v54
  %v254 = vunpack.c.l.b16 %v55
  %v255 = vunpack.c.h.b16 %v55
  %v256 = vunpack.c.l.b16 %v56
  %v257 = vunpack.c.l.b16 %v57
  %v258 = vunpack.c.h.b16 %v57
  %v259 = vunpack.c.l.b16 %v58
  %v260 = vunpack.c.h.b16 %v58
  %v261 = vunpack.c.l.b16 %v59
  %v262 = vunpack.c.l.b16 %v60
  %v263 = vunpack.c.h.b16 %v60
  %v264 = vunpack.c.l.b16 %v61
  %v265 = vunpack.c.h.b16 %v61
  %v266 = vunpack.c.l.b16 %v62
  %v267 = vpack.c.b16 %v192, %v187
  %v268 = vpack.c.b16 %v193, %v188
  %v269 = vpack.c.b16 %v194, %v189
  %v270 = vpack.c.b16 %v195, %v190
  %v271 = vpack.c.b16 %v196, %v191
  %v272 = vpack.c.b16 %v202, %v197
  %v273 = vpack.c.b16 %v203, %v198
  %v274 = vpack.c.b16 %v204, %v199
  %v275 = vpack.c.b16 %v205, %v200
  %v276 = vpack.c.b16 %v206, %v201
  %v277 = vpack.c.b16 %v212, %v207
  %v278 = vpack.c.b16 %v213, %v208
  %v279 = vpack.c.b16 %v214, %v209
  %v280 = vpack.c.b16 %v215, %v210
  %v281 = vpack.c.b16 %v216, %v211
  %v282 = vpack.c.b16 %v222, %v217
  %v283 = vpack.c.b16 %v223, %v218
  %v284 = vpack.c.b16 %v224, %v219
  %v285 = vpack.c.b16 %v225, %v220
  %v286 = vpack.c.b16 %v226, %v221
  %v287 = vpack.c.b16 %v232, %v227
  %v288 = vpack.c.b16 %v233, %v228
  %v289 = vpack.c.b16 %v234, %v229
  %v290 = vpack.c.b16 %v235, %v230
  %v291 = vpack.c.b16 %v236, %v231
  %v292 = vpack.c.b16 %v242, %v237
  %v293 = vpack.c.b16 %v243, %v238
  %v294 = vpack.c.b16 %v244, %v239
  %v295 = vpack.c.b16 %v245, %v240
  %v296 = vpack.c.b16 %v246, %v241
  %v297 = vpack.c.b16 %v252, %v247
  %v298 = vpack.c.b16 %v253, %v248
  %v299 = vpack.c.b16 %v254, %v249
  %v300 = vpack.c.b16 %v255, %v250
  %v301 = vpack.c.b16 %v256, %v251
  %v302 = vpack.c.b16 %v262, %v257
  %v303 = vpack.c.b16 %v263, %v258
  %v304 = vpack.c.b16 %v264, %v259
  %v305 = vpack.c.b16 %v265, %v260
  %v306 = vpack.c.b16 %v266, %v261
  %v411 = vunpack.c.l.b16 %v63
  %v412 = vunpack.c.l.b16 %v64
  %v413 = vunpack.c.l.b16 %v65
  %v414 = vunpack.c.l.b16 %v66
  %v415 = vunpack.c.l.b16 %v67
  %v416 = vunpack.c.l.b16 %v68
  %v417 = vunpack.c.l.b16 %v69
  %v418 = vunpack.c.l.b16 %v70
  %v419 = vunpack.c.l.b16 %v71
  %v420 = vunpack.c.l.b16 %v72
  %v421 = vunpack.c.l.b16 %v73
  %v422 = vunpack.c.l.b16 %v74
  %v423 = vunpack.c.l.b16 %v75
  %v424 = vunpack.c.l.b16 %v76
  %v425 = vunpack.c.l.b16 %v77
  %v426 = vunpack.c.l.b16 %v78
  %v427 = vunpack.c.l.b16 %v79
  %v428 = vunpack.c.l.b16 %v80
  %v429 = vunpack.c.l.b16 %v81
  %v430 = vunpack.c.l.b16 %v82
  %v431 = vunpack.c.l.b16 %v83
  %v432 = vunpack.c.l.b16 %v84
  %v433 = vunpack.c.l.b16 %v85
  %v434 = vunpack.c.l.b16 %v86
  %v435 = vunpack.c.l.b16 %v87
  %v436 = vunpack.c.l.b16 %v88
  %v437 = vunpack.c.l.b16 %v89
  %v438 = vunpack.c.l.b16 %v90
  %v439 = vunpack.c.l.b16 %v91
  %v440 = vunpack.c.l.b16 %v92
  %v441 = vunpack.c.l.b16 %v93
  %v442 = vunpack.c.l.b16 %v94
  %v443 = vunpack.c.l.b16 %v95
  %v444 = vunpack.c.l.b16 %v96
  %v445 = vunpack.c.l.b16 %v97
  %v446 = vunpack.c.l.b16 %v98
  %v447 = vunpack.c.l.b16 %v99
  %v448 = vunpack.c.l.b16 %v100
  %v449 = vunpack.c.l.b16 %v101
  %v450 = vunpack.c.l.b16 %v102
  %v451 = vunpack.c.l.b16 %v103
  %v452 = vunpack.c.l.b16 %v104
  %v453 = vunpack.c.l.b16 %v105
  %v454 = vunpack.c.l.b16 %v106
  %v455 = vunpack.c.l.b16 %v107
  %v456 = vunpack.c.l.b16 %v108
  %v457 = vunpack.c.l.b16 %v109
  %v458 = vunpack.c.l.b16 %v110
  %v459 = vunpack.c.l.b16 %v111
  %v460 = vunpack.c.l.b16 %v112
  %v461 = vunpack.c.l.b16 %v113
  %v462 = vunpack.c.l.b16 %v114
  %v463 = vunpack.c.l.b16 %v115
  %v464 = vunpack.c.l.b16 %v116
  %v465 = vunpack.c.l.b16 %v117
  %v466 = vunpack.c.l.b16 %v118
  %v467 = vunpack.c.l.b16 %v119
  %v468 = vunpack.c.l.b16 %v120
  %v469 = vunpack.c.l.b16 %v121
  %v470 = vunpack.c.l.b16 %v122
  %v471 = vunpack.c.l.b16 %v123
  %v472 = vunpack.c.l.b16 %v124
  %v473 = vunpack.c.l.b16 %v125
  %v474 = vunpack.c.l.b16 %v126
  %v475 = vunpack.c.l.b16 %v127
  %v476 = vunpack.c.l.b16 %v128
  %v477 = vunpack.c.l.b16 %v129
  %v478 = vunpack.c.l.b16 %v130
  %v479 = vunpack.c.l.b16 %v131
  %v480 = vunpack.c.l.b16 %v132
  %v481 = vunpack.c.l.b16 %v133
  %v482 = vunpack.c.l.b16 %v134
  %v483 = vpack.c.b16 %v412, %v411
  %v484 = vpack.c.b16 %v414, %v413
  %v485 = vpack.c.b16 %v416, %v415
  %v486 = vpack.c.b16 %v418, %v417
  %v487 = vpack.c.b16 %v420, %v419
  %v488 = vpack.c.b16 %v422, %v421
  %v489 = vpack.c.b16 %v424, %v423
  %v490 = vpack.c.b16 %v426, %v425
  %v491 = vpack.c.b16 %v428, %v427
  %v492 = vpack.c.b16 %v430, %v429
  %v493 = vpack.c.b16 %v432, %v431
  %v494 = vpack.c.b16 %v434, %v433
  %v495 = vpack.c.b16 %v436, %v435
  %v496 = vpack.c.b16 %v438, %v437
  %v497 = vpack.c.b16 %v440, %v439
  %v498 = vpack.c.b16 %v442, %v441
  %v499 = vpack.c.b16 %v444, %v443
  %v500 = vpack.c.b16 %v446, %v445
  %v501 = vpack.c.b16 %v448, %v447
  %v502 = vpack.c.b16 %v450, %v449
  %v503 = vpack.c.b16 %v452, %v451
  %v504 = vpack.c.b16 %v454, %v453
  %v505 = vpack.c.b16 %v456, %v455
  %v506 = vpack.c.b16 %v458, %v457
  %v507 = vpack.c.b16 %v460, %v459
  %v508 = vpack.c.b16 %v462, %v461
  %v509 = vpack.c.b16 %v464, %v463
  %v510 = vpack.c.b16 %v466, %v465
  %v511 = vpack.c.b16 %v468, %v467
  %v512 = vpack.c.b16 %v470, %v469
  %v513 = vpack.c.b16 %v472, %v471
  %v514 = vpack.c.b16 %v474, %v473
  %v515 = vpack.c.b16 %v476, %v475
  %v516 = vpack.c.b16 %v478, %v477
  %v517 = vpack.c.b16 %v480, %v479
  %v518 = vpack.c.b16 %v482, %v481
  %vm555 = vcmask 523264
  %v557 = vsel %vm555, %v271, 0
  %v560 = vsel %vm555, %v276, 0
  %v563 = vsel %vm555, %v281, 0
  %v566 = vsel %vm555, %v286, 0
  %v569 = vsel %vm555, %v291, 0
  %v572 = vsel %vm555, %v296, 0
  %v575 = vsel %vm555, %v301, 0
  %v578 = vsel %vm555, %v306, 0
  %580 = vmatpush.bf16.msra.mxu0 %v490
  %581 = vmatpush.bf16.msra.mxu0 %v489
  %582 = vmatpush.bf16.msra.mxu0 %v488
  %583 = vmatpush.bf16.msra.mxu0 %v487
  %584 = vmatpush.bf16.msra.mxu0 %v486
  %585 = vmatpush.bf16.msra.mxu0 %v485
  %586 = vmatpush.bf16.msra.mxu0 %v484
  %587 = vmatpush.bf16.msra.mxu0 %v483
  %588 = vmatmul.bf16.gmra.mxu0 %v267
  %v589 = vpop.f32.mrf.mxu0
  %v590 = vadd.f32 %v137, %v589
  %v591 = vpop.f32.mrf.mxu0
  %v592 = vadd.f32 %v137, %v591
  %593 = vmatmul.bf16.gmra.mxu0 %v272
  %v594 = vpop.f32.mrf.mxu0
  %v595 = vadd.f32 %v137, %v594
  %v596 = vpop.f32.mrf.mxu0
  %v597 = vadd.f32 %v137, %v596
  %598 = vmatmul.bf16.gmra.mxu0 %v277
  %v599 = vpop.f32.mrf.mxu0
  %v600 = vadd.f32 %v137, %v599
  %v601 = vpop.f32.mrf.mxu0
  %v602 = vadd.f32 %v137, %v601
  %603 = vmatmul.bf16.gmra.mxu0 %v282
  %v604 = vpop.f32.mrf.mxu0
  %v605 = vadd.f32 %v137, %v604
  %v606 = vpop.f32.mrf.mxu0
  %v607 = vadd.f32 %v137, %v606
  %608 = vmatmul.bf16.gmra.mxu0 %v287
  %v609 = vpop.f32.mrf.mxu0
  %v610 = vadd.f32 %v137, %v609
  %v611 = vpop.f32.mrf.mxu0
  %v612 = vadd.f32 %v137, %v611
  %613 = vmatmul.bf16.gmra.mxu0 %v292
  %v614 = vpop.f32.mrf.mxu0
  %v615 = vadd.f32 %v137, %v614
  %v616 = vpop.f32.mrf.mxu0
  %v617 = vadd.f32 %v137, %v616
  %618 = vmatmul.bf16.gmra.mxu0 %v297
  %v619 = vpop.f32.mrf.mxu0
  %v620 = vadd.f32 %v137, %v619
  %v621 = vpop.f32.mrf.mxu0
  %v622 = vadd.f32 %v137, %v621
  %623 = vmatmul.bf16.gmra.mxu0 %v302
  %v624 = vpop.f32.mrf.mxu0
  %v625 = vadd.f32 %v137, %v624
  %v626 = vpop.f32.mrf.mxu0
  %v627 = vadd.f32 %v137, %v626
  %628 = vdwg.mxu0
  %629 = vmatpush.bf16.msra.mxu0 %v498
  %630 = vmatpush.bf16.msra.mxu0 %v497
  %631 = vmatpush.bf16.msra.mxu0 %v496
  %632 = vmatpush.bf16.msra.mxu0 %v495
  %633 = vmatpush.bf16.msra.mxu0 %v494
  %634 = vmatpush.bf16.msra.mxu0 %v493
  %635 = vmatpush.bf16.msra.mxu0 %v492
  %636 = vmatpush.bf16.msra.mxu0 %v491
  %637 = vmatmul.bf16.gmra.mxu0 %v268
  %v638 = vpop.f32.mrf.mxu0
  %v639 = vadd.f32 %v590, %v638
  %v640 = vpop.f32.mrf.mxu0
  %v641 = vadd.f32 %v592, %v640
  %642 = vmatmul.bf16.gmra.mxu0 %v273
  %v643 = vpop.f32.mrf.mxu0
  %v644 = vadd.f32 %v595, %v643
  %v645 = vpop.f32.mrf.mxu0
  %v646 = vadd.f32 %v597, %v645
  %647 = vmatmul.bf16.gmra.mxu0 %v278
  %v648 = vpop.f32.mrf.mxu0
  %v649 = vadd.f32 %v600, %v648
  %v650 = vpop.f32.mrf.mxu0
  %v651 = vadd.f32 %v602, %v650
  %652 = vmatmul.bf16.gmra.mxu0 %v283
  %v653 = vpop.f32.mrf.mxu0
  %v654 = vadd.f32 %v605, %v653
  %v655 = vpop.f32.mrf.mxu0
  %v656 = vadd.f32 %v607, %v655
  %657 = vmatmul.bf16.gmra.mxu0 %v288
  %v658 = vpop.f32.mrf.mxu0
  %v659 = vadd.f32 %v610, %v658
  %v660 = vpop.f32.mrf.mxu0
  %v661 = vadd.f32 %v612, %v660
  %662 = vmatmul.bf16.gmra.mxu0 %v293
  %v663 = vpop.f32.mrf.mxu0
  %v664 = vadd.f32 %v615, %v663
  %v665 = vpop.f32.mrf.mxu0
  %v666 = vadd.f32 %v617, %v665
  %667 = vmatmul.bf16.gmra.mxu0 %v298
  %v668 = vpop.f32.mrf.mxu0
  %v669 = vadd.f32 %v620, %v668
  %v670 = vpop.f32.mrf.mxu0
  %v671 = vadd.f32 %v622, %v670
  %672 = vmatmul.bf16.gmra.mxu0 %v303
  %v673 = vpop.f32.mrf.mxu0
  %v674 = vadd.f32 %v625, %v673
  %v675 = vpop.f32.mrf.mxu0
  %v676 = vadd.f32 %v627, %v675
  %677 = vdwg.mxu0
  %678 = vmatpush.bf16.msra.mxu0 %v506
  %679 = vmatpush.bf16.msra.mxu0 %v505
  %680 = vmatpush.bf16.msra.mxu0 %v504
  %681 = vmatpush.bf16.msra.mxu0 %v503
  %682 = vmatpush.bf16.msra.mxu0 %v502
  %683 = vmatpush.bf16.msra.mxu0 %v501
  %684 = vmatpush.bf16.msra.mxu0 %v500
  %685 = vmatpush.bf16.msra.mxu0 %v499
  %686 = vmatmul.bf16.gmra.mxu0 %v269
  %v687 = vpop.f32.mrf.mxu0
  %v688 = vadd.f32 %v639, %v687
  %v689 = vpop.f32.mrf.mxu0
  %v690 = vadd.f32 %v641, %v689
  %691 = vmatmul.bf16.gmra.mxu0 %v274
  %v692 = vpop.f32.mrf.mxu0
  %v693 = vadd.f32 %v644, %v692
  %v694 = vpop.f32.mrf.mxu0
  %v695 = vadd.f32 %v646, %v694
  %696 = vmatmul.bf16.gmra.mxu0 %v279
  %v697 = vpop.f32.mrf.mxu0
  %v698 = vadd.f32 %v649, %v697
  %v699 = vpop.f32.mrf.mxu0
  %v700 = vadd.f32 %v651, %v699
  %701 = vmatmul.bf16.gmra.mxu0 %v284
  %v702 = vpop.f32.mrf.mxu0
  %v703 = vadd.f32 %v654, %v702
  %v704 = vpop.f32.mrf.mxu0
  %v705 = vadd.f32 %v656, %v704
  %706 = vmatmul.bf16.gmra.mxu0 %v289
  %v707 = vpop.f32.mrf.mxu0
  %v708 = vadd.f32 %v659, %v707
  %v709 = vpop.f32.mrf.mxu0
  %v710 = vadd.f32 %v661, %v709
  %711 = vmatmul.bf16.gmra.mxu0 %v294
  %v712 = vpop.f32.mrf.mxu0
  %v713 = vadd.f32 %v664, %v712
  %v714 = vpop.f32.mrf.mxu0
  %v715 = vadd.f32 %v666, %v714
  %716 = vmatmul.bf16.gmra.mxu0 %v299
  %v717 = vpop.f32.mrf.mxu0
  %v718 = vadd.f32 %v669, %v717
  %v719 = vpop.f32.mrf.mxu0
  %v720 = vadd.f32 %v671, %v719
  %721 = vmatmul.bf16.gmra.mxu0 %v304
  %v722 = vpop.f32.mrf.mxu0
  %v723 = vadd.f32 %v674, %v722
  %v724 = vpop.f32.mrf.mxu0
  %v725 = vadd.f32 %v676, %v724
  %726 = vdwg.mxu0
  %727 = vmatpush.bf16.msra.mxu0 %v514
  %728 = vmatpush.bf16.msra.mxu0 %v513
  %729 = vmatpush.bf16.msra.mxu0 %v512
  %730 = vmatpush.bf16.msra.mxu0 %v511
  %731 = vmatpush.bf16.msra.mxu0 %v510
  %732 = vmatpush.bf16.msra.mxu0 %v509
  %733 = vmatpush.bf16.msra.mxu0 %v508
  %734 = vmatpush.bf16.msra.mxu0 %v507
  %735 = vmatmul.bf16.gmra.mxu0 %v270
  %v736 = vpop.f32.mrf.mxu0
  %v737 = vadd.f32 %v688, %v736
  %v738 = vpop.f32.mrf.mxu0
  %v739 = vadd.f32 %v690, %v738
  %740 = vmatmul.bf16.gmra.mxu0 %v275
  %v741 = vpop.f32.mrf.mxu0
  %v742 = vadd.f32 %v693, %v741
  %v743 = vpop.f32.mrf.mxu0
  %v744 = vadd.f32 %v695, %v743
  %745 = vmatmul.bf16.gmra.mxu0 %v280
  %v746 = vpop.f32.mrf.mxu0
  %v747 = vadd.f32 %v698, %v746
  %v748 = vpop.f32.mrf.mxu0
  %v749 = vadd.f32 %v700, %v748
  %750 = vmatmul.bf16.gmra.mxu0 %v285
  %v751 = vpop.f32.mrf.mxu0
  %v752 = vadd.f32 %v703, %v751
  %v753 = vpop.f32.mrf.mxu0
  %v754 = vadd.f32 %v705, %v753
  %755 = vmatmul.bf16.gmra.mxu0 %v290
  %v756 = vpop.f32.mrf.mxu0
  %v757 = vadd.f32 %v708, %v756
  %v758 = vpop.f32.mrf.mxu0
  %v759 = vadd.f32 %v710, %v758
  %760 = vmatmul.bf16.gmra.mxu0 %v295
  %v761 = vpop.f32.mrf.mxu0
  %v762 = vadd.f32 %v713, %v761
  %v763 = vpop.f32.mrf.mxu0
  %v764 = vadd.f32 %v715, %v763
  %765 = vmatmul.bf16.gmra.mxu0 %v300
  %v766 = vpop.f32.mrf.mxu0
  %v767 = vadd.f32 %v718, %v766
  %v768 = vpop.f32.mrf.mxu0
  %v769 = vadd.f32 %v720, %v768
  %770 = vmatmul.bf16.gmra.mxu0 %v305
  %v771 = vpop.f32.mrf.mxu0
  %v772 = vadd.f32 %v723, %v771
  %v773 = vpop.f32.mrf.mxu0
  %v774 = vadd.f32 %v725, %v773
  %775 = vdwg.mxu0
  %776 = vmatpush.bf16.msra.mxu0 0
  %777 = vmatpush.bf16.msra.mxu0 0
  %778 = vmatpush.bf16.msra.mxu0 0
  %779 = vmatpush.bf16.msra.mxu0 0
  %780 = vmatpush.bf16.msra.mxu0 %v518
  %781 = vmatpush.bf16.msra.mxu0 %v517
  %782 = vmatpush.bf16.msra.mxu0 %v516
  %783 = vmatpush.bf16.msra.mxu0 %v515
  %784 = vmatmul.bf16.gmra.mxu0 %v557
  %v785 = vpop.f32.mrf.mxu0
  %v786 = vadd.f32 %v737, %v785
  %v787 = vpop.f32.mrf.mxu0
  %v788 = vadd.f32 %v739, %v787
  %789 = vmatmul.bf16.gmra.mxu0 %v560
  %v790 = vpop.f32.mrf.mxu0
  %v791 = vadd.f32 %v742, %v790
  %v792 = vpop.f32.mrf.mxu0
  %v793 = vadd.f32 %v744, %v792
  %794 = vmatmul.bf16.gmra.mxu0 %v563
  %v795 = vpop.f32.mrf.mxu0
  %v796 = vadd.f32 %v747, %v795
  %v797 = vpop.f32.mrf.mxu0
  %v798 = vadd.f32 %v749, %v797
  %799 = vmatmul.bf16.gmra.mxu0 %v566
  %v800 = vpop.f32.mrf.mxu0
  %v801 = vadd.f32 %v752, %v800
  %v802 = vpop.f32.mrf.mxu0
  %v803 = vadd.f32 %v754, %v802
  %804 = vmatmul.bf16.gmra.mxu0 %v569
  %v805 = vpop.f32.mrf.mxu0
  %v806 = vadd.f32 %v757, %v805
  %v807 = vpop.f32.mrf.mxu0
  %v808 = vadd.f32 %v759, %v807
  %809 = vmatmul.bf16.gmra.mxu0 %v572
  %v810 = vpop.f32.mrf.mxu0
  %v811 = vadd.f32 %v762, %v810
  %v812 = vpop.f32.mrf.mxu0
  %v813 = vadd.f32 %v764, %v812
  %814 = vmatmul.bf16.gmra.mxu0 %v575
  %v815 = vpop.f32.mrf.mxu0
  %v816 = vadd.f32 %v767, %v815
  %v817 = vpop.f32.mrf.mxu0
  %v818 = vadd.f32 %v769, %v817
  %819 = vmatmul.bf16.gmra.mxu0 %v578
  %v820 = vpop.f32.mrf.mxu0
  %v821 = vadd.f32 %v772, %v820
  %v822 = vpop.f32.mrf.mxu0
  %v823 = vadd.f32 %v774, %v822
  %824 = vdwg.mxu0
  %v825 = vmax.f32 %v786, 0.0
  %v826 = vmax.f32 %v788, 0.0
  %v827 = vmax.f32 %v791, 0.0
  %v828 = vmax.f32 %v793, 0.0
  %v829 = vmax.f32 %v796, 0.0
  %v830 = vmax.f32 %v798, 0.0
  %v831 = vmax.f32 %v801, 0.0
  %v832 = vmax.f32 %v803, 0.0
  %v833 = vmax.f32 %v806, 0.0
  %v834 = vmax.f32 %v808, 0.0
  %v835 = vmax.f32 %v811, 0.0
  %v836 = vmax.f32 %v813, 0.0
  %v837 = vmax.f32 %v816, 0.0
  %v838 = vmax.f32 %v818, 0.0
  %v839 = vmax.f32 %v821, 0.0
  %v840 = vmax.f32 %v823, 0.0
  %v841 = vpack.c.bf16 %v825, %v825
  %v842 = vpack.c.bf16 %v826, %v826
  %v843 = vpack.c.bf16 %v827, %v827
  %v844 = vpack.c.bf16 %v828, %v828
  %v845 = vpack.c.bf16 %v829, %v829
  %v846 = vpack.c.bf16 %v830, %v830
  %v847 = vpack.c.bf16 %v831, %v831
  %v848 = vpack.c.bf16 %v832, %v832
  %v849 = vpack.c.bf16 %v833, %v833
  %v850 = vpack.c.bf16 %v834, %v834
  %v851 = vpack.c.bf16 %v835, %v835
  %v852 = vpack.c.bf16 %v836, %v836
  %v853 = vpack.c.bf16 %v837, %v837
  %v854 = vpack.c.bf16 %v838, %v838
  %v855 = vpack.c.bf16 %v839, %v839
  %v856 = vpack.c.bf16 %v840, %v840
  %vm857 = vcmask 519168
  %858 = vst.msk [vmem:[%s3] sm:$0xf] %vm857, %v841
  %859 = vst.msk [vmem:[%s3 + $0x4] sm:$0xf] %vm857, %v842
  %860 = vst.msk [vmem:[%s3 + $0x8] sm:$0xf] %vm857, %v843
  %861 = vst.msk [vmem:[%s3 + $0xc] sm:$0xf] %vm857, %v844
  %862 = vst.msk [vmem:[%s3 + $0x10] sm:$0xf] %vm857, %v845
  %863 = vst.msk [vmem:[%s3 + $0x14] sm:$0xf] %vm857, %v846
  %864 = vst.msk [vmem:[%s3 + $0x18] sm:$0xf] %vm857, %v847
  %865 = vst.msk [vmem:[%s3 + $0x1c] sm:$0xf] %vm857, %v848
  %866 = vst.msk [vmem:[%s3 + $0x20] sm:$0xf] %vm857, %v849
  %867 = vst.msk [vmem:[%s3 + $0x24] sm:$0xf] %vm857, %v850
  %868 = vst.msk [vmem:[%s3 + $0x28] sm:$0xf] %vm857, %v851
  %869 = vst.msk [vmem:[%s3 + $0x2c] sm:$0xf] %vm857, %v852
  %870 = vst.msk [vmem:[%s3 + $0x30] sm:$0xf] %vm857, %v853
  %871 = vst.msk [vmem:[%s3 + $0x34] sm:$0xf] %vm857, %v854
  %872 = vst.msk [vmem:[%s3 + $0x38] sm:$0xf] %vm857, %v855
  %873 = vst.msk [vmem:[%s3 + $0x3c] sm:$0xf] %vm857, %v856
  // Predicated region
  $region14: #{dqn_forward.6} parent=0 // pred_check
    _
  $region15: #{dqn_forward.6} parent=0 // pred_check_branch
    %875 = sbr.rel (0) target = $region17
  $region16: #{dqn_forward.6} parent=0 // pred_region
    _
  $region17: #{dqn_forward.6} parent=0 // pred_fallthru
    _
  // Predicated region
  $region18: #{dqn_forward.6} parent=0 // pred_check
    _
  $region19: #{dqn_forward.6} parent=0 // pred_check_branch
    %877 = sbr.rel (0) target = $region21
  $region20: #{dqn_forward.6} parent=0 // pred_region
    _
  $region21: #{dqn_forward.6} parent=0 // pred_fallthru
    _

// kernel: dqn_forward.7
$region0: #{dqn_forward.7}
  #allocation0 [shape = 'u32[]', space=smem, size = 0x4, offset = 0x4, fixed_abs, tag = 'smem constant byte address 0x4 - core index']
  #allocation1 [shape = 'u32[72,128]{1,0:T(1,128)}', space=vmem, size = 0x9000, scoped, tag = 'internal scratch']
  %s0 = inlined_call_operand.vmem [shape: bf16[128,3136], index: 0, kind: input, shape index: {}]
  %s1 = inlined_call_operand.vmem [shape: bf16[3136,512], index: 1, kind: input, shape index: {}]
  %s2 = inlined_call_operand.vmem [shape: f32[1,512], index: 2, kind: input, shape index: {}]
  %s3 = inlined_call_operand.vmem [shape: bf16[512,128], index: 3, kind: input, shape index: {}]
  %s4 = inlined_call_operand.vmem [shape: f32[1,128], index: 4, kind: input, shape index: {}]
  %s5 = inlined_call_operand.vmem [shape: f32[128,128], index: 5, kind: output, shape index: {}]
  %s6 = sld [smem:[#allocation0]]
  $region30: #{dqn_forward.7} parent=0
    _
  %s8 = ssub.s32 1, %s6
  %s9 = scalar_select 0, %s8, %s6
  // Predicated region
  $region2: #{dqn_forward.7} parent=0 // pred_check
    _
  $region3: #{dqn_forward.7} parent=0 // pred_check_branch
    %11 = sbr.rel (0) target = $region5
  $region4: #{dqn_forward.7} parent=0 // pred_region
    _
  $region5: #{dqn_forward.7} parent=0 // pred_fallthru
    _
  // Predicated region
  $region6: #{dqn_forward.7} parent=0 // pred_check
    _
  $region7: #{dqn_forward.7} parent=0 // pred_check_branch
    %13 = sbr.rel (0) target = $region9
  $region8: #{dqn_forward.7} parent=0 // pred_region
    _
  $region9: #{dqn_forward.7} parent=0 // pred_fallthru
    _
  // Predicated region
  $region10: #{dqn_forward.7} parent=0 // pred_check
    _
  $region11: #{dqn_forward.7} parent=0 // pred_check_branch
    %15 = sbr.rel (0) target = $region13
  $region12: #{dqn_forward.7} parent=0 // pred_region
    _
  $region13: #{dqn_forward.7} parent=0 // pred_fallthru
    _
  // Predicated region
  $region14: #{dqn_forward.7} parent=0 // pred_check
    _
  $region15: #{dqn_forward.7} parent=0 // pred_check_branch
    %17 = sbr.rel (0) target = $region17
  $region16: #{dqn_forward.7} parent=0 // pred_region
    _
  $region17: #{dqn_forward.7} parent=0 // pred_fallthru
    _
  // Predicated region
  $region18: #{dqn_forward.7} parent=0 // pred_check
    _
  $region19: #{dqn_forward.7} parent=0 // pred_check_branch
    %19 = sbr.rel (0) target = $region21
  $region20: #{dqn_forward.7} parent=0 // pred_region
    _
  $region21: #{dqn_forward.7} parent=0 // pred_fallthru
    _
  %v21 = vld [vmem:[%s0] sm:$0xff]
  %v22 = vld [vmem:[%s0 + $0x8] sm:$0xff]
  %v23 = vld [vmem:[%s0 + $0x10] sm:$0xff]
  %v24 = vld [vmem:[%s0 + $0x18] sm:$0xff]
  %v25 = vld [vmem:[%s0 + $0x20] sm:$0xff]
  %v26 = vld [vmem:[%s0 + $0x28] sm:$0xff]
  %v27 = vld [vmem:[%s0 + $0x30] sm:$0xff]
  %v28 = vld [vmem:[%s0 + $0x38] sm:$0xff]
  %v29 = vld [vmem:[%s0 + $0x40] sm:$0xff]
  %v30 = vld [vmem:[%s0 + $0x48] sm:$0xff]
  %v31 = vld [vmem:[%s0 + $0x50] sm:$0xff]
  %v32 = vld [vmem:[%s0 + $0x58] sm:$0xff]
  %v33 = vld [vmem:[%s0 + $0x60] sm:$0xf]
  %v34 = vld [vmem:[%s0 + $0x64] sm:$0xff]
  %v35 = vld [vmem:[%s0 + $0x6c] sm:$0xff]
  %v36 = vld [vmem:[%s0 + $0x74] sm:$0xff]
  %v37 = vld [vmem:[%s0 + $0x7c] sm:$0xff]
  %v38 = vld [vmem:[%s0 + $0x84] sm:$0xff]
  %v39 = vld [vmem:[%s0 + $0x8c] sm:$0xff]
  %v40 = vld [vmem:[%s0 + $0x94] sm:$0xff]
  %v41 = vld [vmem:[%s0 + $0x9c] sm:$0xff]
  %v42 = vld [vmem:[%s0 + $0xa4] sm:$0xff]
  %v43 = vld [vmem:[%s0 + $0xac] sm:$0xff]
  %v44 = vld [vmem:[%s0 + $0xb4] sm:$0xff]
  %v45 = vld [vmem:[%s0 + $0xbc] sm:$0xff]
  %v46 = vld [vmem:[%s0 + $0xc4] sm:$0xf]
  %v47 = vld [vmem:[%s0 + $0xc8] sm:$0xff]
  %v48 = vld [vmem:[%s0 + $0xd0] sm:$0xff]
  %v49 = vld [vmem:[%s0 + $0xd8] sm:$0xff]
  %v50 = vld [vmem:[%s0 + $0xe0] sm:$0xff]
  %v51 = vld [vmem:[%s0 + $0xe8] sm:$0xff]
  %v52 = vld [vmem:[%s0 + $0xf0] sm:$0xff]
  %v53 = vld [vmem:[%s0 + $0xf8] sm:$0xff]
  %v54 = vld [vmem:[%s0 + $0x100] sm:$0xff]
  %v55 = vld [vmem:[%s0 + $0x108] sm:$0xff]
  %v56 = vld [vmem:[%s0 + $0x110] sm:$0xff]
  %v57 = vld [vmem:[%s0 + $0x118] sm:$0xff]
  %v58 = vld [vmem:[%s0 + $0x120] sm:$0xff]
  %v59 = vld [vmem:[%s0 + $0x128] sm:$0xf]
  %v60 = vld [vmem:[%s0 + $0x12c] sm:$0xff]
  %v61 = vld [vmem:[%s0 + $0x134] sm:$0xff]
  %v62 = vld [vmem:[%s0 + $0x13c] sm:$0xff]
  %v63 = vld [vmem:[%s0 + $0x144] sm:$0xff]
  %v64 = vld [vmem:[%s0 + $0x14c] sm:$0xff]
  %v65 = vld [vmem:[%s0 + $0x154] sm:$0xff]
  %v66 = vld [vmem:[%s0 + $0x15c] sm:$0xff]
  %v67 = vld [vmem:[%s0 + $0x164] sm:$0xff]
  %v68 = vld [vmem:[%s0 + $0x16c] sm:$0xff]
  %v69 = vld [vmem:[%s0 + $0x174] sm:$0xff]
  %v70 = vld [vmem:[%s0 + $0x17c] sm:$0xff]
  %v71 = vld [vmem:[%s0 + $0x184] sm:$0xff]
  %v72 = vld [vmem:[%s0 + $0x18c] sm:$0xf]
  %v73 = vld [vmem:[%s0 + $0x190] sm:$0xff]
  %v74 = vld [vmem:[%s0 + $0x198] sm:$0xff]
  %v75 = vld [vmem:[%s0 + $0x1a0] sm:$0xff]
  %v76 = vld [vmem:[%s0 + $0x1a8] sm:$0xff]
  %v77 = vld [vmem:[%s0 + $0x1b0] sm:$0xff]
  %v78 = vld [vmem:[%s0 + $0x1b8] sm:$0xff]
  %v79 = vld [vmem:[%s0 + $0x1c0] sm:$0xff]
  %v80 = vld [vmem:[%s0 + $0x1c8] sm:$0xff]
  %v81 = vld [vmem:[%s0 + $0x1d0] sm:$0xff]
  %v82 = vld [vmem:[%s0 + $0x1d8] sm:$0xff]
  %v83 = vld [vmem:[%s0 + $0x1e0] sm:$0xff]
  %v84 = vld [vmem:[%s0 + $0x1e8] sm:$0xff]
  %v85 = vld [vmem:[%s0 + $0x1f0] sm:$0xf]
  %v86 = vld [vmem:[%s0 + $0x1f4] sm:$0xff]
  %v87 = vld [vmem:[%s0 + $0x1fc] sm:$0xff]
  %v88 = vld [vmem:[%s0 + $0x204] sm:$0xff]
  %v89 = vld [vmem:[%s0 + $0x20c] sm:$0xff]
  %v90 = vld [vmem:[%s0 + $0x214] sm:$0xff]
  %v91 = vld [vmem:[%s0 + $0x21c] sm:$0xff]
  %v92 = vld [vmem:[%s0 + $0x224] sm:$0xff]
  %v93 = vld [vmem:[%s0 + $0x22c] sm:$0xff]
  %v94 = vld [vmem:[%s0 + $0x234] sm:$0xff]
  %v95 = vld [vmem:[%s0 + $0x23c] sm:$0xff]
  %v96 = vld [vmem:[%s0 + $0x244] sm:$0xff]
  %v97 = vld [vmem:[%s0 + $0x24c] sm:$0xff]
  %v98 = vld [vmem:[%s0 + $0x254] sm:$0xf]
  %v99 = vld [vmem:[%s0 + $0x258] sm:$0xff]
  %v100 = vld [vmem:[%s0 + $0x260] sm:$0xff]
  %v101 = vld [vmem:[%s0 + $0x268] sm:$0xff]
  %v102 = vld [vmem:[%s0 + $0x270] sm:$0xff]
  %v103 = vld [vmem:[%s0 + $0x278] sm:$0xff]
  %v104 = vld [vmem:[%s0 + $0x280] sm:$0xff]
  %v105 = vld [vmem:[%s0 + $0x288] sm:$0xff]
  %v106 = vld [vmem:[%s0 + $0x290] sm:$0xff]
  %v107 = vld [vmem:[%s0 + $0x298] sm:$0xff]
  %v108 = vld [vmem:[%s0 + $0x2a0] sm:$0xff]
  %v109 = vld [vmem:[%s0 + $0x2a8] sm:$0xff]
  %v110 = vld [vmem:[%s0 + $0x2b0] sm:$0xff]
  %v111 = vld [vmem:[%s0 + $0x2b8] sm:$0xf]
  %v112 = vld [vmem:[%s0 + $0x2bc] sm:$0xff]
  %v113 = vld [vmem:[%s0 + $0x2c4] sm:$0xff]
  %v114 = vld [vmem:[%s0 + $0x2cc] sm:$0xff]
  %v115 = vld [vmem:[%s0 + $0x2d4] sm:$0xff]
  %v116 = vld [vmem:[%s0 + $0x2dc] sm:$0xff]
  %v117 = vld [vmem:[%s0 + $0x2e4] sm:$0xff]
  %v118 = vld [vmem:[%s0 + $0x2ec] sm:$0xff]
  %v119 = vld [vmem:[%s0 + $0x2f4] sm:$0xff]
  %v120 = vld [vmem:[%s0 + $0x2fc] sm:$0xff]
  %v121 = vld [vmem:[%s0 + $0x304] sm:$0xff]
  %v122 = vld [vmem:[%s0 + $0x30c] sm:$0xff]
  %v123 = vld [vmem:[%s0 + $0x314] sm:$0xff]
  %v124 = vld [vmem:[%s0 + $0x31c] sm:$0xf]
  %v125 = vld [vmem:[%s0 + $0x320] sm:$0xff]
  %v126 = vld [vmem:[%s0 + $0x328] sm:$0xff]
  %v127 = vld [vmem:[%s0 + $0x330] sm:$0xff]
  %v128 = vld [vmem:[%s0 + $0x338] sm:$0xff]
  %v129 = vld [vmem:[%s0 + $0x340] sm:$0xff]
  %v130 = vld [vmem:[%s0 + $0x348] sm:$0xff]
  %v131 = vld [vmem:[%s0 + $0x350] sm:$0xff]
  %v132 = vld [vmem:[%s0 + $0x358] sm:$0xff]
  %v133 = vld [vmem:[%s0 + $0x360] sm:$0xff]
  %v134 = vld [vmem:[%s0 + $0x368] sm:$0xff]
  %v135 = vld [vmem:[%s0 + $0x370] sm:$0xff]
  %v136 = vld [vmem:[%s0 + $0x378] sm:$0xff]
  %v137 = vld [vmem:[%s0 + $0x380] sm:$0xf]
  %v138 = vld [vmem:[%s0 + $0x384] sm:$0xff]
  %v139 = vld [vmem:[%s0 + $0x38c] sm:$0xff]
  %v140 = vld [vmem:[%s0 + $0x394] sm:$0xff]
  %v141 = vld [vmem:[%s0 + $0x39c] sm:$0xff]
  %v142 = vld [vmem:[%s0 + $0x3a4] sm:$0xff]
  %v143 = vld [vmem:[%s0 + $0x3ac] sm:$0xff]
  %v144 = vld [vmem:[%s0 + $0x3b4] sm:$0xff]
  %v145 = vld [vmem:[%s0 + $0x3bc] sm:$0xff]
  %v146 = vld [vmem:[%s0 + $0x3c4] sm:$0xff]
  %v147 = vld [vmem:[%s0 + $0x3cc] sm:$0xff]
  %v148 = vld [vmem:[%s0 + $0x3d4] sm:$0xff]
  %v149 = vld [vmem:[%s0 + $0x3dc] sm:$0xff]
  %v150 = vld [vmem:[%s0 + $0x3e4] sm:$0xf]
  %v151 = vld [vmem:[%s0 + $0x3e8] sm:$0xff]
  %v152 = vld [vmem:[%s0 + $0x3f0] sm:$0xff]
  %v153 = vld [vmem:[%s0 + $0x3f8] sm:$0xff]
  %v154 = vld [vmem:[%s0 + $0x400] sm:$0xff]
  %v155 = vld [vmem:[%s0 + $0x408] sm:$0xff]
  %v156 = vld [vmem:[%s0 + $0x410] sm:$0xff]
  %v157 = vld [vmem:[%s0 + $0x418] sm:$0xff]
  %v158 = vld [vmem:[%s0 + $0x420] sm:$0xff]
  %v159 = vld [vmem:[%s0 + $0x428] sm:$0xff]
  %v160 = vld [vmem:[%s0 + $0x430] sm:$0xff]
  %v161 = vld [vmem:[%s0 + $0x438] sm:$0xff]
  %v162 = vld [vmem:[%s0 + $0x440] sm:$0xff]
  %v163 = vld [vmem:[%s0 + $0x448] sm:$0xf]
  %v164 = vld [vmem:[%s0 + $0x44c] sm:$0xff]
  %v165 = vld [vmem:[%s0 + $0x454] sm:$0xff]
  %v166 = vld [vmem:[%s0 + $0x45c] sm:$0xff]
  %v167 = vld [vmem:[%s0 + $0x464] sm:$0xff]
  %v168 = vld [vmem:[%s0 + $0x46c] sm:$0xff]
  %v169 = vld [vmem:[%s0 + $0x474] sm:$0xff]
  %v170 = vld [vmem:[%s0 + $0x47c] sm:$0xff]
  %v171 = vld [vmem:[%s0 + $0x484] sm:$0xff]
  %v172 = vld [vmem:[%s0 + $0x48c] sm:$0xff]
  %v173 = vld [vmem:[%s0 + $0x494] sm:$0xff]
  %v174 = vld [vmem:[%s0 + $0x49c] sm:$0xff]
  %v175 = vld [vmem:[%s0 + $0x4a4] sm:$0xff]
  %v176 = vld [vmem:[%s0 + $0x4ac] sm:$0xf]
  %v177 = vld [vmem:[%s0 + $0x4b0] sm:$0xff]
  %v178 = vld [vmem:[%s0 + $0x4b8] sm:$0xff]
  %v179 = vld [vmem:[%s0 + $0x4c0] sm:$0xff]
  %v180 = vld [vmem:[%s0 + $0x4c8] sm:$0xff]
  %v181 = vld [vmem:[%s0 + $0x4d0] sm:$0xff]
  %v182 = vld [vmem:[%s0 + $0x4d8] sm:$0xff]
  %v183 = vld [vmem:[%s0 + $0x4e0] sm:$0xff]
  %v184 = vld [vmem:[%s0 + $0x4e8] sm:$0xff]
  %v185 = vld [vmem:[%s0 + $0x4f0] sm:$0xff]
  %v186 = vld [vmem:[%s0 + $0x4f8] sm:$0xff]
  %v187 = vld [vmem:[%s0 + $0x500] sm:$0xff]
  %v188 = vld [vmem:[%s0 + $0x508] sm:$0xff]
  %v189 = vld [vmem:[%s0 + $0x510] sm:$0xf]
  %v190 = vld [vmem:[%s0 + $0x514] sm:$0xff]
  %v191 = vld [vmem:[%s0 + $0x51c] sm:$0xff]
  %v192 = vld [vmem:[%s0 + $0x524] sm:$0xff]
  %v193 = vld [vmem:[%s0 + $0x52c] sm:$0xff]
  %v194 = vld [vmem:[%s0 + $0x534] sm:$0xff]
  %v195 = vld [vmem:[%s0 + $0x53c] sm:$0xff]
  %v196 = vld [vmem:[%s0 + $0x544] sm:$0xff]
  %v197 = vld [vmem:[%s0 + $0x54c] sm:$0xff]
  %v198 = vld [vmem:[%s0 + $0x554] sm:$0xff]
  %v199 = vld [vmem:[%s0 + $0x55c] sm:$0xff]
  %v200 = vld [vmem:[%s0 + $0x564] sm:$0xff]
  %v201 = vld [vmem:[%s0 + $0x56c] sm:$0xff]
  %v202 = vld [vmem:[%s0 + $0x574] sm:$0xf]
  %v203 = vld [vmem:[%s0 + $0x578] sm:$0xff]
  %v204 = vld [vmem:[%s0 + $0x580] sm:$0xff]
  %v205 = vld [vmem:[%s0 + $0x588] sm:$0xff]
  %v206 = vld [vmem:[%s0 + $0x590] sm:$0xff]
  %v207 = vld [vmem:[%s0 + $0x598] sm:$0xff]
  %v208 = vld [vmem:[%s0 + $0x5a0] sm:$0xff]
  %v209 = vld [vmem:[%s0 + $0x5a8] sm:$0xff]
  %v210 = vld [vmem:[%s0 + $0x5b0] sm:$0xff]
  %v211 = vld [vmem:[%s0 + $0x5b8] sm:$0xff]
  %v212 = vld [vmem:[%s0 + $0x5c0] sm:$0xff]
  %v213 = vld [vmem:[%s0 + $0x5c8] sm:$0xff]
  %v214 = vld [vmem:[%s0 + $0x5d0] sm:$0xff]
  %v215 = vld [vmem:[%s0 + $0x5d8] sm:$0xf]
  %v216 = vld [vmem:[%s0 + $0x5dc] sm:$0xff]
  %v217 = vld [vmem:[%s0 + $0x5e4] sm:$0xff]
  %v218 = vld [vmem:[%s0 + $0x5ec] sm:$0xff]
  %v219 = vld [vmem:[%s0 + $0x5f4] sm:$0xff]
  %v220 = vld [vmem:[%s0 + $0x5fc] sm:$0xff]
  %v221 = vld [vmem:[%s0 + $0x604] sm:$0xff]
  %v222 = vld [vmem:[%s0 + $0x60c] sm:$0xff]
  %v223 = vld [vmem:[%s0 + $0x614] sm:$0xff]
  %v224 = vld [vmem:[%s0 + $0x61c] sm:$0xff]
  %v225 = vld [vmem:[%s0 + $0x624] sm:$0xff]
  %v226 = vld [vmem:[%s0 + $0x62c] sm:$0xff]
  %v227 = vld [vmem:[%s0 + $0x634] sm:$0xff]
  %v228 = vld [vmem:[%s0 + $0x63c] sm:$0xf]
  %v229 = vld [vmem:[%s1] sm:$0xff]
  %v230 = vld [vmem:[%s1 + $0x8] sm:$0xff]
  %v231 = vld [vmem:[%s1 + $0x10] sm:$0xff]
  %v232 = vld [vmem:[%s1 + $0x18] sm:$0xff]
  %v233 = vld [vmem:[%s1 + $0x20] sm:$0xff]
  %v234 = vld [vmem:[%s1 + $0x28] sm:$0xff]
  %v235 = vld [vmem:[%s1 + $0x30] sm:$0xff]
  %v236 = vld [vmem:[%s1 + $0x38] sm:$0xff]
  %v237 = vld [vmem:[%s1 + $0x40] sm:$0xff]
  %v238 = vld [vmem:[%s1 + $0x48] sm:$0xff]
  %v239 = vld [vmem:[%s1 + $0x50] sm:$0xff]
  %v240 = vld [vmem:[%s1 + $0x58] sm:$0xff]
  %v241 = vld [vmem:[%s1 + $0x60] sm:$0xff]
  %v242 = vld [vmem:[%s1 + $0x68] sm:$0xff]
  %v243 = vld [vmem:[%s1 + $0x70] sm:$0xff]
  %v244 = vld [vmem:[%s1 + $0x78] sm:$0xff]
  %v245 = vld [vmem:[%s1 + $0x80] sm:$0xff]
  %v246 = vld [vmem:[%s1 + $0x88] sm:$0xff]
  %v247 = vld [vmem:[%s1 + $0x90] sm:$0xff]
  %v248 = vld [vmem:[%s1 + $0x98] sm:$0xff]
  %v249 = vld [vmem:[%s1 + $0xa0] sm:$0xff]
  %v250 = vld [vmem:[%s1 + $0xa8] sm:$0xff]
  %v251 = vld [vmem:[%s1 + $0xb0] sm:$0xff]
  %v252 = vld [vmem:[%s1 + $0xb8] sm:$0xff]
  %v253 = vld [vmem:[%s1 + $0xc0] sm:$0xff]
  %v254 = vld [vmem:[%s1 + $0xc8] sm:$0xff]
  %v255 = vld [vmem:[%s1 + $0xd0] sm:$0xff]
  %v256 = vld [vmem:[%s1 + $0xd8] sm:$0xff]
  %v257 = vld [vmem:[%s1 + $0xe0] sm:$0xff]
  %v258 = vld [vmem:[%s1 + $0xe8] sm:$0xff]
  %v259 = vld [vmem:[%s1 + $0xf0] sm:$0xff]
  %v260 = vld [vmem:[%s1 + $0xf8] sm:$0xff]
  %v261 = vld [vmem:[%s1 + $0x100] sm:$0xff]
  %v262 = vld [vmem:[%s1 + $0x108] sm:$0xff]
  %v263 = vld [vmem:[%s1 + $0x110] sm:$0xff]
  %v264 = vld [vmem:[%s1 + $0x118] sm:$0xff]
  %v265 = vld [vmem:[%s1 + $0x120] sm:$0xff]
  %v266 = vld [vmem:[%s1 + $0x128] sm:$0xff]
  %v267 = vld [vmem:[%s1 + $0x130] sm:$0xff]
  %v268 = vld [vmem:[%s1 + $0x138] sm:$0xff]
  %v269 = vld [vmem:[%s1 + $0x140] sm:$0xff]
  %v270 = vld [vmem:[%s1 + $0x148] sm:$0xff]
  %v271 = vld [vmem:[%s1 + $0x150] sm:$0xff]
  %v272 = vld [vmem:[%s1 + $0x158] sm:$0xff]
  %v273 = vld [vmem:[%s1 + $0x160] sm:$0xff]
  %v274 = vld [vmem:[%s1 + $0x168] sm:$0xff]
  %v275 = vld [vmem:[%s1 + $0x170] sm:$0xff]
  %v276 = vld [vmem:[%s1 + $0x178] sm:$0xff]
  %v277 = vld [vmem:[%s1 + $0x180] sm:$0xff]
  %v278 = vld [vmem:[%s1 + $0x188] sm:$0xff]
  %v279 = vld [vmem:[%s1 + $0x190] sm:$0xff]
  %v280 = vld [vmem:[%s1 + $0x198] sm:$0xff]
  %v281 = vld [vmem:[%s1 + $0x1a0] sm:$0xff]
  %v282 = vld [vmem:[%s1 + $0x1a8] sm:$0xff]
  %v283 = vld [vmem:[%s1 + $0x1b0] sm:$0xff]
  %v284 = vld [vmem:[%s1 + $0x1b8] sm:$0xff]
  %v285 = vld [vmem:[%s1 + $0x1c0] sm:$0xff]
  %v286 = vld [vmem:[%s1 + $0x1c8] sm:$0xff]
  %v287 = vld [vmem:[%s1 + $0x1d0] sm:$0xff]
  %v288 = vld [vmem:[%s1 + $0x1d8] sm:$0xff]
  %v289 = vld [vmem:[%s1 + $0x1e0] sm:$0xff]
  %v290 = vld [vmem:[%s1 + $0x1e8] sm:$0xff]
  %v291 = vld [vmem:[%s1 + $0x1f0] sm:$0xff]
  %v292 = vld [vmem:[%s1 + $0x1f8] sm:$0xff]
  %v293 = vld [vmem:[%s1 + $0x200] sm:$0xff]
  %v294 = vld [vmem:[%s1 + $0x208] sm:$0xff]
  %v295 = vld [vmem:[%s1 + $0x210] sm:$0xff]
  %v296 = vld [vmem:[%s1 + $0x218] sm:$0xff]
  %v297 = vld [vmem:[%s1 + $0x220] sm:$0xff]
  %v298 = vld [vmem:[%s1 + $0x228] sm:$0xff]
  %v299 = vld [vmem:[%s1 + $0x230] sm:$0xff]
  %v300 = vld [vmem:[%s1 + $0x238] sm:$0xff]
  %v301 = vld [vmem:[%s1 + $0x240] sm:$0xff]
  %v302 = vld [vmem:[%s1 + $0x248] sm:$0xff]
  %v303 = vld [vmem:[%s1 + $0x250] sm:$0xff]
  %v304 = vld [vmem:[%s1 + $0x258] sm:$0xff]
  %v305 = vld [vmem:[%s1 + $0x260] sm:$0xff]
  %v306 = vld [vmem:[%s1 + $0x268] sm:$0xff]
  %v307 = vld [vmem:[%s1 + $0x270] sm:$0xff]
  %v308 = vld [vmem:[%s1 + $0x278] sm:$0xff]
  %v309 = vld [vmem:[%s1 + $0x280] sm:$0xff]
  %v310 = vld [vmem:[%s1 + $0x288] sm:$0xff]
  %v311 = vld [vmem:[%s1 + $0x290] sm:$0xff]
  %v312 = vld [vmem:[%s1 + $0x298] sm:$0xff]
  %v313 = vld [vmem:[%s1 + $0x2a0] sm:$0xff]
  %v314 = vld [vmem:[%s1 + $0x2a8] sm:$0xff]
  %v315 = vld [vmem:[%s1 + $0x2b0] sm:$0xff]
  %v316 = vld [vmem:[%s1 + $0x2b8] sm:$0xff]
  %v317 = vld [vmem:[%s1 + $0x2c0] sm:$0xff]
  %v318 = vld [vmem:[%s1 + $0x2c8] sm:$0xff]
  %v319 = vld [vmem:[%s1 + $0x2d0] sm:$0xff]
  %v320 = vld [vmem:[%s1 + $0x2d8] sm:$0xff]
  %v321 = vld [vmem:[%s1 + $0x2e0] sm:$0xff]
  %v322 = vld [vmem:[%s1 + $0x2e8] sm:$0xff]
  %v323 = vld [vmem:[%s1 + $0x2f0] sm:$0xff]
  %v324 = vld [vmem:[%s1 + $0x2f8] sm:$0xff]
  %v325 = vld [vmem:[%s1 + $0x300] sm:$0xff]
  %v326 = vld [vmem:[%s1 + $0x308] sm:$0xff]
  %v327 = vld [vmem:[%s1 + $0x310] sm:$0xff]
  %v328 = vld [vmem:[%s1 + $0x318] sm:$0xff]
  %v329 = vld [vmem:[%s1 + $0x320] sm:$0xff]
  %v330 = vld [vmem:[%s1 + $0x328] sm:$0xff]
  %v331 = vld [vmem:[%s1 + $0x330] sm:$0xff]
  %v332 = vld [vmem:[%s1 + $0x338] sm:$0xff]
  %v333 = vld [vmem:[%s1 + $0x340] sm:$0xff]
  %v334 = vld [vmem:[%s1 + $0x348] sm:$0xff]
  %v335 = vld [vmem:[%s1 + $0x350] sm:$0xff]
  %v336 = vld [vmem:[%s1 + $0x358] sm:$0xff]
  %v337 = vld [vmem:[%s1 + $0x360] sm:$0xff]
  %v338 = vld [vmem:[%s1 + $0x368] sm:$0xff]
  %v339 = vld [vmem:[%s1 + $0x370] sm:$0xff]
  %v340 = vld [vmem:[%s1 + $0x378] sm:$0xff]
  %v341 = vld [vmem:[%s1 + $0x380] sm:$0xff]
  %v342 = vld [vmem:[%s1 + $0x388] sm:$0xff]
  %v343 = vld [vmem:[%s1 + $0x390] sm:$0xff]
  %v344 = vld [vmem:[%s1 + $0x398] sm:$0xff]
  %v345 = vld [vmem:[%s1 + $0x3a0] sm:$0xff]
  %v346 = vld [vmem:[%s1 + $0x3a8] sm:$0xff]
  %v347 = vld [vmem:[%s1 + $0x3b0] sm:$0xff]
  %v348 = vld [vmem:[%s1 + $0x3b8] sm:$0xff]
  %v349 = vld [vmem:[%s1 + $0x3c0] sm:$0xff]
  %v350 = vld [vmem:[%s1 + $0x3c8] sm:$0xff]
  %v351 = vld [vmem:[%s1 + $0x3d0] sm:$0xff]
  %v352 = vld [vmem:[%s1 + $0x3d8] sm:$0xff]
  %v353 = vld [vmem:[%s1 + $0x3e0] sm:$0xff]
  %v354 = vld [vmem:[%s1 + $0x3e8] sm:$0xff]
  %v355 = vld [vmem:[%s1 + $0x3f0] sm:$0xff]
  %v356 = vld [vmem:[%s1 + $0x3f8] sm:$0xff]
  %v357 = vld [vmem:[%s1 + $0x400] sm:$0xff]
  %v358 = vld [vmem:[%s1 + $0x408] sm:$0xff]
  %v359 = vld [vmem:[%s1 + $0x410] sm:$0xff]
  %v360 = vld [vmem:[%s1 + $0x418] sm:$0xff]
  %v361 = vld [vmem:[%s1 + $0x420] sm:$0xff]
  %v362 = vld [vmem:[%s1 + $0x428] sm:$0xff]
  %v363 = vld [vmem:[%s1 + $0x430] sm:$0xff]
  %v364 = vld [vmem:[%s1 + $0x438] sm:$0xff]
  %v365 = vld [vmem:[%s1 + $0x440] sm:$0xff]
  %v366 = vld [vmem:[%s1 + $0x448] sm:$0xff]
  %v367 = vld [vmem:[%s1 + $0x450] sm:$0xff]
  %v368 = vld [vmem:[%s1 + $0x458] sm:$0xff]
  %v369 = vld [vmem:[%s1 + $0x460] sm:$0xff]
  %v370 = vld [vmem:[%s1 + $0x468] sm:$0xff]
  %v371 = vld [vmem:[%s1 + $0x470] sm:$0xff]
  %v372 = vld [vmem:[%s1 + $0x478] sm:$0xff]
  %v373 = vld [vmem:[%s1 + $0x480] sm:$0xff]
  %v374 = vld [vmem:[%s1 + $0x488] sm:$0xff]
  %v375 = vld [vmem:[%s1 + $0x490] sm:$0xff]
  %v376 = vld [vmem:[%s1 + $0x498] sm:$0xff]
  %v377 = vld [vmem:[%s1 + $0x4a0] sm:$0xff]
  %v378 = vld [vmem:[%s1 + $0x4a8] sm:$0xff]
  %v379 = vld [vmem:[%s1 + $0x4b0] sm:$0xff]
  %v380 = vld [vmem:[%s1 + $0x4b8] sm:$0xff]
  %v381 = vld [vmem:[%s1 + $0x4c0] sm:$0xff]
  %v382 = vld [vmem:[%s1 + $0x4c8] sm:$0xff]
  %v383 = vld [vmem:[%s1 + $0x4d0] sm:$0xff]
  %v384 = vld [vmem:[%s1 + $0x4d8] sm:$0xff]
  %v385 = vld [vmem:[%s1 + $0x4e0] sm:$0xff]
  %v386 = vld [vmem:[%s1 + $0x4e8] sm:$0xff]
  %v387 = vld [vmem:[%s1 + $0x4f0] sm:$0xff]
  %v388 = vld [vmem:[%s1 + $0x4f8] sm:$0xff]
  %v389 = vld [vmem:[%s1 + $0x500] sm:$0xff]
  %v390 = vld [vmem:[%s1 + $0x508] sm:$0xff]
  %v391 = vld [vmem:[%s1 + $0x510] sm:$0xff]
  %v392 = vld [vmem:[%s1 + $0x518] sm:$0xff]
  %v393 = vld [vmem:[%s1 + $0x520] sm:$0xff]
  %v394 = vld [vmem:[%s1 + $0x528] sm:$0xff]
  %v395 = vld [vmem:[%s1 + $0x530] sm:$0xff]
  %v396 = vld [vmem:[%s1 + $0x538] sm:$0xff]
  %v397 = vld [vmem:[%s1 + $0x540] sm:$0xff]
  %v398 = vld [vmem:[%s1 + $0x548] sm:$0xff]
  %v399 = vld [vmem:[%s1 + $0x550] sm:$0xff]
  %v400 = vld [vmem:[%s1 + $0x558] sm:$0xff]
  %v401 = vld [vmem:[%s1 + $0x560] sm:$0xff]
  %v402 = vld [vmem:[%s1 + $0x568] sm:$0xff]
  %v403 = vld [vmem:[%s1 + $0x570] sm:$0xff]
  %v404 = vld [vmem:[%s1 + $0x578] sm:$0xff]
  %v405 = vld [vmem:[%s1 + $0x580] sm:$0xff]
  %v406 = vld [vmem:[%s1 + $0x588] sm:$0xff]
  %v407 = vld [vmem:[%s1 + $0x590] sm:$0xff]
  %v408 = vld [vmem:[%s1 + $0x598] sm:$0xff]
  %v409 = vld [vmem:[%s1 + $0x5a0] sm:$0xff]
  %v410 = vld [vmem:[%s1 + $0x5a8] sm:$0xff]
  %v411 = vld [vmem:[%s1 + $0x5b0] sm:$0xff]
  %v412 = vld [vmem:[%s1 + $0x5b8] sm:$0xff]
  %v413 = vld [vmem:[%s1 + $0x5c0] sm:$0xff]
  %v414 = vld [vmem:[%s1 + $0x5c8] sm:$0xff]
  %v415 = vld [vmem:[%s1 + $0x5d0] sm:$0xff]
  %v416 = vld [vmem:[%s1 + $0x5d8] sm:$0xff]
  %v417 = vld [vmem:[%s1 + $0x5e0] sm:$0xff]
  %v418 = vld [vmem:[%s1 + $0x5e8] sm:$0xff]
  %v419 = vld [vmem:[%s1 + $0x5f0] sm:$0xff]
  %v420 = vld [vmem:[%s1 + $0x5f8] sm:$0xff]
  %v421 = vld [vmem:[%s1 + $0x600] sm:$0xff]
  %v422 = vld [vmem:[%s1 + $0x608] sm:$0xff]
  %v423 = vld [vmem:[%s1 + $0x610] sm:$0xff]
  %v424 = vld [vmem:[%s1 + $0x618] sm:$0xff]
  %v425 = vld [vmem:[%s1 + $0x620] sm:$0xff]
  %v426 = vld [vmem:[%s1 + $0x628] sm:$0xff]
  %v427 = vld [vmem:[%s1 + $0x630] sm:$0xff]
  %v428 = vld [vmem:[%s1 + $0x638] sm:$0xff]
  %v429 = vld [vmem:[%s1 + $0x640] sm:$0xff]
  %v430 = vld [vmem:[%s1 + $0x648] sm:$0xff]
  %v431 = vld [vmem:[%s1 + $0x650] sm:$0xff]
  %v432 = vld [vmem:[%s1 + $0x658] sm:$0xff]
  %v433 = vld [vmem:[%s1 + $0x660] sm:$0xff]
  %v434 = vld [vmem:[%s1 + $0x668] sm:$0xff]
  %v435 = vld [vmem:[%s1 + $0x670] sm:$0xff]
  %v436 = vld [vmem:[%s1 + $0x678] sm:$0xff]
  %v437 = vld [vmem:[%s1 + $0x680] sm:$0xff]
  %v438 = vld [vmem:[%s1 + $0x688] sm:$0xff]
  %v439 = vld [vmem:[%s1 + $0x690] sm:$0xff]
  %v440 = vld [vmem:[%s1 + $0x698] sm:$0xff]
  %v441 = vld [vmem:[%s1 + $0x6a0] sm:$0xff]
  %v442 = vld [vmem:[%s1 + $0x6a8] sm:$0xff]
  %v443 = vld [vmem:[%s1 + $0x6b0] sm:$0xff]
  %v444 = vld [vmem:[%s1 + $0x6b8] sm:$0xff]
  %v445 = vld [vmem:[%s1 + $0x6c0] sm:$0xff]
  %v446 = vld [vmem:[%s1 + $0x6c8] sm:$0xff]
  %v447 = vld [vmem:[%s1 + $0x6d0] sm:$0xff]
  %v448 = vld [vmem:[%s1 + $0x6d8] sm:$0xff]
  %v449 = vld [vmem:[%s1 + $0x6e0] sm:$0xff]
  %v450 = vld [vmem:[%s1 + $0x6e8] sm:$0xff]
  %v451 = vld [vmem:[%s1 + $0x6f0] sm:$0xff]
  %v452 = vld [vmem:[%s1 + $0x6f8] sm:$0xff]
  %v453 = vld [vmem:[%s1 + $0x700] sm:$0xff]
  %v454 = vld [vmem:[%s1 + $0x708] sm:$0xff]
  %v455 = vld [vmem:[%s1 + $0x710] sm:$0xff]
  %v456 = vld [vmem:[%s1 + $0x718] sm:$0xff]
  %v457 = vld [vmem:[%s1 + $0x720] sm:$0xff]
  %v458 = vld [vmem:[%s1 + $0x728] sm:$0xff]
  %v459 = vld [vmem:[%s1 + $0x730] sm:$0xff]
  %v460 = vld [vmem:[%s1 + $0x738] sm:$0xff]
  %v461 = vld [vmem:[%s1 + $0x740] sm:$0xff]
  %v462 = vld [vmem:[%s1 + $0x748] sm:$0xff]
  %v463 = vld [vmem:[%s1 + $0x750] sm:$0xff]
  %v464 = vld [vmem:[%s1 + $0x758] sm:$0xff]
  %v465 = vld [vmem:[%s1 + $0x760] sm:$0xff]
  %v466 = vld [vmem:[%s1 + $0x768] sm:$0xff]
  %v467 = vld [vmem:[%s1 + $0x770] sm:$0xff]
  %v468 = vld [vmem:[%s1 + $0x778] sm:$0xff]
  %v469 = vld [vmem:[%s1 + $0x780] sm:$0xff]
  %v470 = vld [vmem:[%s1 + $0x788] sm:$0xff]
  %v471 = vld [vmem:[%s1 + $0x790] sm:$0xff]
  %v472 = vld [vmem:[%s1 + $0x798] sm:$0xff]
  %v473 = vld [vmem:[%s1 + $0x7a0] sm:$0xff]
  %v474 = vld [vmem:[%s1 + $0x7a8] sm:$0xff]
  %v475 = vld [vmem:[%s1 + $0x7b0] sm:$0xff]
  %v476 = vld [vmem:[%s1 + $0x7b8] sm:$0xff]
  %v477 = vld [vmem:[%s1 + $0x7c0] sm:$0xff]
  %v478 = vld [vmem:[%s1 + $0x7c8] sm:$0xff]
  %v479 = vld [vmem:[%s1 + $0x7d0] sm:$0xff]
  %v480 = vld [vmem:[%s1 + $0x7d8] sm:$0xff]
  %v481 = vld [vmem:[%s1 + $0x7e0] sm:$0xff]
  %v482 = vld [vmem:[%s1 + $0x7e8] sm:$0xff]
  %v483 = vld [vmem:[%s1 + $0x7f0] sm:$0xff]
  %v484 = vld [vmem:[%s1 + $0x7f8] sm:$0xff]
  %v485 = vld [vmem:[%s1 + $0x800] sm:$0xff]
  %v486 = vld [vmem:[%s1 + $0x808] sm:$0xff]
  %v487 = vld [vmem:[%s1 + $0x810] sm:$0xff]
  %v488 = vld [vmem:[%s1 + $0x818] sm:$0xff]
  %v489 = vld [vmem:[%s1 + $0x820] sm:$0xff]
  %v490 = vld [vmem:[%s1 + $0x828] sm:$0xff]
  %v491 = vld [vmem:[%s1 + $0x830] sm:$0xff]
  %v492 = vld [vmem:[%s1 + $0x838] sm:$0xff]
  %v493 = vld [vmem:[%s1 + $0x840] sm:$0xff]
  %v494 = vld [vmem:[%s1 + $0x848] sm:$0xff]
  %v495 = vld [vmem:[%s1 + $0x850] sm:$0xff]
  %v496 = vld [vmem:[%s1 + $0x858] sm:$0xff]
  %v497 = vld [vmem:[%s1 + $0x860] sm:$0xff]
  %v498 = vld [vmem:[%s1 + $0x868] sm:$0xff]
  %v499 = vld [vmem:[%s1 + $0x870] sm:$0xff]
  %v500 = vld [vmem:[%s1 + $0x878] sm:$0xff]
  %v501 = vld [vmem:[%s1 + $0x880] sm:$0xff]
  %v502 = vld [vmem:[%s1 + $0x888] sm:$0xff]
  %v503 = vld [vmem:[%s1 + $0x890] sm:$0xff]
  %v504 = vld [vmem:[%s1 + $0x898] sm:$0xff]
  %v505 = vld [vmem:[%s1 + $0x8a0] sm:$0xff]
  %v506 = vld [vmem:[%s1 + $0x8a8] sm:$0xff]
  %v507 = vld [vmem:[%s1 + $0x8b0] sm:$0xff]
  %v508 = vld [vmem:[%s1 + $0x8b8] sm:$0xff]
  %v509 = vld [vmem:[%s1 + $0x8c0] sm:$0xff]
  %v510 = vld [vmem:[%s1 + $0x8c8] sm:$0xff]
  %v511 = vld [vmem:[%s1 + $0x8d0] sm:$0xff]
  %v512 = vld [vmem:[%s1 + $0x8d8] sm:$0xff]
  %v513 = vld [vmem:[%s1 + $0x8e0] sm:$0xff]
  %v514 = vld [vmem:[%s1 + $0x8e8] sm:$0xff]
  %v515 = vld [vmem:[%s1 + $0x8f0] sm:$0xff]
  %v516 = vld [vmem:[%s1 + $0x8f8] sm:$0xff]
  %v517 = vld [vmem:[%s1 + $0x900] sm:$0xff]
  %v518 = vld [vmem:[%s1 + $0x908] sm:$0xff]
  %v519 = vld [vmem:[%s1 + $0x910] sm:$0xff]
  %v520 = vld [vmem:[%s1 + $0x918] sm:$0xff]
  %v521 = vld [vmem:[%s1 + $0x920] sm:$0xff]
  %v522 = vld [vmem:[%s1 + $0x928] sm:$0xff]
  %v523 = vld [vmem:[%s1 + $0x930] sm:$0xff]
  %v524 = vld [vmem:[%s1 + $0x938] sm:$0xff]
  %v525 = vld [vmem:[%s1 + $0x940] sm:$0xff]
  %v526 = vld [vmem:[%s1 + $0x948] sm:$0xff]
  %v527 = vld [vmem:[%s1 + $0x950] sm:$0xff]
  %v528 = vld [vmem:[%s1 + $0x958] sm:$0xff]
  %v529 = vld [vmem:[%s1 + $0x960] sm:$0xff]
  %v530 = vld [vmem:[%s1 + $0x968] sm:$0xff]
  %v531 = vld [vmem:[%s1 + $0x970] sm:$0xff]
  %v532 = vld [vmem:[%s1 + $0x978] sm:$0xff]
  %v533 = vld [vmem:[%s1 + $0x980] sm:$0xff]
  %v534 = vld [vmem:[%s1 + $0x988] sm:$0xff]
  %v535 = vld [vmem:[%s1 + $0x990] sm:$0xff]
  %v536 = vld [vmem:[%s1 + $0x998] sm:$0xff]
  %v537 = vld [vmem:[%s1 + $0x9a0] sm:$0xff]
  %v538 = vld [vmem:[%s1 + $0x9a8] sm:$0xff]
  %v539 = vld [vmem:[%s1 + $0x9b0] sm:$0xff]
  %v540 = vld [vmem:[%s1 + $0x9b8] sm:$0xff]
  %v541 = vld [vmem:[%s1 + $0x9c0] sm:$0xff]
  %v542 = vld [vmem:[%s1 + $0x9c8] sm:$0xff]
  %v543 = vld [vmem:[%s1 + $0x9d0] sm:$0xff]
  %v544 = vld [vmem:[%s1 + $0x9d8] sm:$0xff]
  %v545 = vld [vmem:[%s1 + $0x9e0] sm:$0xff]
  %v546 = vld [vmem:[%s1 + $0x9e8] sm:$0xff]
  %v547 = vld [vmem:[%s1 + $0x9f0] sm:$0xff]
  %v548 = vld [vmem:[%s1 + $0x9f8] sm:$0xff]
  %v549 = vld [vmem:[%s1 + $0xa00] sm:$0xff]
  %v550 = vld [vmem:[%s1 + $0xa08] sm:$0xff]
  %v551 = vld [vmem:[%s1 + $0xa10] sm:$0xff]
  %v552 = vld [vmem:[%s1 + $0xa18] sm:$0xff]
  %v553 = vld [vmem:[%s1 + $0xa20] sm:$0xff]
  %v554 = vld [vmem:[%s1 + $0xa28] sm:$0xff]
  %v555 = vld [vmem:[%s1 + $0xa30] sm:$0xff]
  %v556 = vld [vmem:[%s1 + $0xa38] sm:$0xff]
  %v557 = vld [vmem:[%s1 + $0xa40] sm:$0xff]
  %v558 = vld [vmem:[%s1 + $0xa48] sm:$0xff]
  %v559 = vld [vmem:[%s1 + $0xa50] sm:$0xff]
  %v560 = vld [vmem:[%s1 + $0xa58] sm:$0xff]
  %v561 = vld [vmem:[%s1 + $0xa60] sm:$0xff]
  %v562 = vld [vmem:[%s1 + $0xa68] sm:$0xff]
  %v563 = vld [vmem:[%s1 + $0xa70] sm:$0xff]
  %v564 = vld [vmem:[%s1 + $0xa78] sm:$0xff]
  %v565 = vld [vmem:[%s1 + $0xa80] sm:$0xff]
  %v566 = vld [vmem:[%s1 + $0xa88] sm:$0xff]
  %v567 = vld [vmem:[%s1 + $0xa90] sm:$0xff]
  %v568 = vld [vmem:[%s1 + $0xa98] sm:$0xff]
  %v569 = vld [vmem:[%s1 + $0xaa0] sm:$0xff]
  %v570 = vld [vmem:[%s1 + $0xaa8] sm:$0xff]
  %v571 = vld [vmem:[%s1 + $0xab0] sm:$0xff]
  %v572 = vld [vmem:[%s1 + $0xab8] sm:$0xff]
  %v573 = vld [vmem:[%s1 + $0xac0] sm:$0xff]
  %v574 = vld [vmem:[%s1 + $0xac8] sm:$0xff]
  %v575 = vld [vmem:[%s1 + $0xad0] sm:$0xff]
  %v576 = vld [vmem:[%s1 + $0xad8] sm:$0xff]
  %v577 = vld [vmem:[%s1 + $0xae0] sm:$0xff]
  %v578 = vld [vmem:[%s1 + $0xae8] sm:$0xff]
  %v579 = vld [vmem:[%s1 + $0xaf0] sm:$0xff]
  %v580 = vld [vmem:[%s1 + $0xaf8] sm:$0xff]
  %v581 = vld [vmem:[%s1 + $0xb00] sm:$0xff]
  %v582 = vld [vmem:[%s1 + $0xb08] sm:$0xff]
  %v583 = vld [vmem:[%s1 + $0xb10] sm:$0xff]
  %v584 = vld [vmem:[%s1 + $0xb18] sm:$0xff]
  %v585 = vld [vmem:[%s1 + $0xb20] sm:$0xff]
  %v586 = vld [vmem:[%s1 + $0xb28] sm:$0xff]
  %v587 = vld [vmem:[%s1 + $0xb30] sm:$0xff]
  %v588 = vld [vmem:[%s1 + $0xb38] sm:$0xff]
  %v589 = vld [vmem:[%s1 + $0xb40] sm:$0xff]
  %v590 = vld [vmem:[%s1 + $0xb48] sm:$0xff]
  %v591 = vld [vmem:[%s1 + $0xb50] sm:$0xff]
  %v592 = vld [vmem:[%s1 + $0xb58] sm:$0xff]
  %v593 = vld [vmem:[%s1 + $0xb60] sm:$0xff]
  %v594 = vld [vmem:[%s1 + $0xb68] sm:$0xff]
  %v595 = vld [vmem:[%s1 + $0xb70] sm:$0xff]
  %v596 = vld [vmem:[%s1 + $0xb78] sm:$0xff]
  %v597 = vld [vmem:[%s1 + $0xb80] sm:$0xff]
  %v598 = vld [vmem:[%s1 + $0xb88] sm:$0xff]
  %v599 = vld [vmem:[%s1 + $0xb90] sm:$0xff]
  %v600 = vld [vmem:[%s1 + $0xb98] sm:$0xff]
  %v601 = vld [vmem:[%s1 + $0xba0] sm:$0xff]
  %v602 = vld [vmem:[%s1 + $0xba8] sm:$0xff]
  %v603 = vld [vmem:[%s1 + $0xbb0] sm:$0xff]
  %v604 = vld [vmem:[%s1 + $0xbb8] sm:$0xff]
  %v605 = vld [vmem:[%s1 + $0xbc0] sm:$0xff]
  %v606 = vld [vmem:[%s1 + $0xbc8] sm:$0xff]
  %v607 = vld [vmem:[%s1 + $0xbd0] sm:$0xff]
  %v608 = vld [vmem:[%s1 + $0xbd8] sm:$0xff]
  %v609 = vld [vmem:[%s1 + $0xbe0] sm:$0xff]
  %v610 = vld [vmem:[%s1 + $0xbe8] sm:$0xff]
  %v611 = vld [vmem:[%s1 + $0xbf0] sm:$0xff]
  %v612 = vld [vmem:[%s1 + $0xbf8] sm:$0xff]
  %v613 = vld [vmem:[%s1 + $0xc00] sm:$0xff]
  %v614 = vld [vmem:[%s1 + $0xc08] sm:$0xff]
  %v615 = vld [vmem:[%s1 + $0xc10] sm:$0xff]
  %v616 = vld [vmem:[%s1 + $0xc18] sm:$0xff]
  %v617 = vld [vmem:[%s1 + $0xc20] sm:$0xff]
  %v618 = vld [vmem:[%s1 + $0xc28] sm:$0xff]
  %v619 = vld [vmem:[%s1 + $0xc30] sm:$0xff]
  %v620 = vld [vmem:[%s1 + $0xc38] sm:$0xff]
  %v621 = vld [vmem:[%s1 + $0xc40] sm:$0xff]
  %v622 = vld [vmem:[%s1 + $0xc48] sm:$0xff]
  %v623 = vld [vmem:[%s1 + $0xc50] sm:$0xff]
  %v624 = vld [vmem:[%s1 + $0xc58] sm:$0xff]
  %v625 = vld [vmem:[%s1 + $0xc60] sm:$0xff]
  %v626 = vld [vmem:[%s1 + $0xc68] sm:$0xff]
  %v627 = vld [vmem:[%s1 + $0xc70] sm:$0xff]
  %v628 = vld [vmem:[%s1 + $0xc78] sm:$0xff]
  %v629 = vld [vmem:[%s1 + $0xc80] sm:$0xff]
  %v630 = vld [vmem:[%s1 + $0xc88] sm:$0xff]
  %v631 = vld [vmem:[%s1 + $0xc90] sm:$0xff]
  %v632 = vld [vmem:[%s1 + $0xc98] sm:$0xff]
  %v633 = vld [vmem:[%s1 + $0xca0] sm:$0xff]
  %v634 = vld [vmem:[%s1 + $0xca8] sm:$0xff]
  %v635 = vld [vmem:[%s1 + $0xcb0] sm:$0xff]
  %v636 = vld [vmem:[%s1 + $0xcb8] sm:$0xff]
  %v637 = vld [vmem:[%s1 + $0xcc0] sm:$0xff]
  %v638 = vld [vmem:[%s1 + $0xcc8] sm:$0xff]
  %v639 = vld [vmem:[%s1 + $0xcd0] sm:$0xff]
  %v640 = vld [vmem:[%s1 + $0xcd8] sm:$0xff]
  %v641 = vld [vmem:[%s1 + $0xce0] sm:$0xff]
  %v642 = vld [vmem:[%s1 + $0xce8] sm:$0xff]
  %v643 = vld [vmem:[%s1 + $0xcf0] sm:$0xff]
  %v644 = vld [vmem:[%s1 + $0xcf8] sm:$0xff]
  %v645 = vld [vmem:[%s1 + $0xd00] sm:$0xff]
  %v646 = vld [vmem:[%s1 + $0xd08] sm:$0xff]
  %v647 = vld [vmem:[%s1 + $0xd10] sm:$0xff]
  %v648 = vld [vmem:[%s1 + $0xd18] sm:$0xff]
  %v649 = vld [vmem:[%s1 + $0xd20] sm:$0xff]
  %v650 = vld [vmem:[%s1 + $0xd28] sm:$0xff]
  %v651 = vld [vmem:[%s1 + $0xd30] sm:$0xff]
  %v652 = vld [vmem:[%s1 + $0xd38] sm:$0xff]
  %v653 = vld [vmem:[%s1 + $0xd40] sm:$0xff]
  %v654 = vld [vmem:[%s1 + $0xd48] sm:$0xff]
  %v655 = vld [vmem:[%s1 + $0xd50] sm:$0xff]
  %v656 = vld [vmem:[%s1 + $0xd58] sm:$0xff]
  %v657 = vld [vmem:[%s1 + $0xd60] sm:$0xff]
  %v658 = vld [vmem:[%s1 + $0xd68] sm:$0xff]
  %v659 = vld [vmem:[%s1 + $0xd70] sm:$0xff]
  %v660 = vld [vmem:[%s1 + $0xd78] sm:$0xff]
  %v661 = vld [vmem:[%s1 + $0xd80] sm:$0xff]
  %v662 = vld [vmem:[%s1 + $0xd88] sm:$0xff]
  %v663 = vld [vmem:[%s1 + $0xd90] sm:$0xff]
  %v664 = vld [vmem:[%s1 + $0xd98] sm:$0xff]
  %v665 = vld [vmem:[%s1 + $0xda0] sm:$0xff]
  %v666 = vld [vmem:[%s1 + $0xda8] sm:$0xff]
  %v667 = vld [vmem:[%s1 + $0xdb0] sm:$0xff]
  %v668 = vld [vmem:[%s1 + $0xdb8] sm:$0xff]
  %v669 = vld [vmem:[%s1 + $0xdc0] sm:$0xff]
  %v670 = vld [vmem:[%s1 + $0xdc8] sm:$0xff]
  %v671 = vld [vmem:[%s1 + $0xdd0] sm:$0xff]
  %v672 = vld [vmem:[%s1 + $0xdd8] sm:$0xff]
  %v673 = vld [vmem:[%s1 + $0xde0] sm:$0xff]
  %v674 = vld [vmem:[%s1 + $0xde8] sm:$0xff]
  %v675 = vld [vmem:[%s1 + $0xdf0] sm:$0xff]
  %v676 = vld [vmem:[%s1 + $0xdf8] sm:$0xff]
  %v677 = vld [vmem:[%s1 + $0xe00] sm:$0xff]
  %v678 = vld [vmem:[%s1 + $0xe08] sm:$0xff]
  %v679 = vld [vmem:[%s1 + $0xe10] sm:$0xff]
  %v680 = vld [vmem:[%s1 + $0xe18] sm:$0xff]
  %v681 = vld [vmem:[%s1 + $0xe20] sm:$0xff]
  %v682 = vld [vmem:[%s1 + $0xe28] sm:$0xff]
  %v683 = vld [vmem:[%s1 + $0xe30] sm:$0xff]
  %v684 = vld [vmem:[%s1 + $0xe38] sm:$0xff]
  %v685 = vld [vmem:[%s1 + $0xe40] sm:$0xff]
  %v686 = vld [vmem:[%s1 + $0xe48] sm:$0xff]
  %v687 = vld [vmem:[%s1 + $0xe50] sm:$0xff]
  %v688 = vld [vmem:[%s1 + $0xe58] sm:$0xff]
  %v689 = vld [vmem:[%s1 + $0xe60] sm:$0xff]
  %v690 = vld [vmem:[%s1 + $0xe68] sm:$0xff]
  %v691 = vld [vmem:[%s1 + $0xe70] sm:$0xff]
  %v692 = vld [vmem:[%s1 + $0xe78] sm:$0xff]
  %v693 = vld [vmem:[%s1 + $0xe80] sm:$0xff]
  %v694 = vld [vmem:[%s1 + $0xe88] sm:$0xff]
  %v695 = vld [vmem:[%s1 + $0xe90] sm:$0xff]
  %v696 = vld [vmem:[%s1 + $0xe98] sm:$0xff]
  %v697 = vld [vmem:[%s1 + $0xea0] sm:$0xff]
  %v698 = vld [vmem:[%s1 + $0xea8] sm:$0xff]
  %v699 = vld [vmem:[%s1 + $0xeb0] sm:$0xff]
  %v700 = vld [vmem:[%s1 + $0xeb8] sm:$0xff]
  %v701 = vld [vmem:[%s1 + $0xec0] sm:$0xff]
  %v702 = vld [vmem:[%s1 + $0xec8] sm:$0xff]
  %v703 = vld [vmem:[%s1 + $0xed0] sm:$0xff]
  %v704 = vld [vmem:[%s1 + $0xed8] sm:$0xff]
  %v705 = vld [vmem:[%s1 + $0xee0] sm:$0xff]
  %v706 = vld [vmem:[%s1 + $0xee8] sm:$0xff]
  %v707 = vld [vmem:[%s1 + $0xef0] sm:$0xff]
  %v708 = vld [vmem:[%s1 + $0xef8] sm:$0xff]
  %v709 = vld [vmem:[%s1 + $0xf00] sm:$0xff]
  %v710 = vld [vmem:[%s1 + $0xf08] sm:$0xff]
  %v711 = vld [vmem:[%s1 + $0xf10] sm:$0xff]
  %v712 = vld [vmem:[%s1 + $0xf18] sm:$0xff]
  %v713 = vld [vmem:[%s1 + $0xf20] sm:$0xff]
  %v714 = vld [vmem:[%s1 + $0xf28] sm:$0xff]
  %v715 = vld [vmem:[%s1 + $0xf30] sm:$0xff]
  %v716 = vld [vmem:[%s1 + $0xf38] sm:$0xff]
  %v717 = vld [vmem:[%s1 + $0xf40] sm:$0xff]
  %v718 = vld [vmem:[%s1 + $0xf48] sm:$0xff]
  %v719 = vld [vmem:[%s1 + $0xf50] sm:$0xff]
  %v720 = vld [vmem:[%s1 + $0xf58] sm:$0xff]
  %v721 = vld [vmem:[%s1 + $0xf60] sm:$0xff]
  %v722 = vld [vmem:[%s1 + $0xf68] sm:$0xff]
  %v723 = vld [vmem:[%s1 + $0xf70] sm:$0xff]
  %v724 = vld [vmem:[%s1 + $0xf78] sm:$0xff]
  %v725 = vld [vmem:[%s1 + $0xf80] sm:$0xff]
  %v726 = vld [vmem:[%s1 + $0xf88] sm:$0xff]
  %v727 = vld [vmem:[%s1 + $0xf90] sm:$0xff]
  %v728 = vld [vmem:[%s1 + $0xf98] sm:$0xff]
  %v729 = vld [vmem:[%s1 + $0xfa0] sm:$0xff]
  %v730 = vld [vmem:[%s1 + $0xfa8] sm:$0xff]
  %v731 = vld [vmem:[%s1 + $0xfb0] sm:$0xff]
  %v732 = vld [vmem:[%s1 + $0xfb8] sm:$0xff]
  %v733 = vld [vmem:[%s1 + $0xfc0] sm:$0xff]
  %v734 = vld [vmem:[%s1 + $0xfc8] sm:$0xff]
  %v735 = vld [vmem:[%s1 + $0xfd0] sm:$0xff]
  %v736 = vld [vmem:[%s1 + $0xfd8] sm:$0xff]
  %v737 = vld [vmem:[%s1 + $0xfe0] sm:$0xff]
  %v738 = vld [vmem:[%s1 + $0xfe8] sm:$0xff]
  %v739 = vld [vmem:[%s1 + $0xff0] sm:$0xff]
  %v740 = vld [vmem:[%s1 + $0xff8] sm:$0xff]
  %v741 = vld [vmem:[%s1 + $0x1000] sm:$0xff]
  %v742 = vld [vmem:[%s1 + $0x1008] sm:$0xff]
  %v743 = vld [vmem:[%s1 + $0x1010] sm:$0xff]
  %v744 = vld [vmem:[%s1 + $0x1018] sm:$0xff]
  %v745 = vld [vmem:[%s1 + $0x1020] sm:$0xff]
  %v746 = vld [vmem:[%s1 + $0x1028] sm:$0xff]
  %v747 = vld [vmem:[%s1 + $0x1030] sm:$0xff]
  %v748 = vld [vmem:[%s1 + $0x1038] sm:$0xff]
  %v749 = vld [vmem:[%s1 + $0x1040] sm:$0xff]
  %v750 = vld [vmem:[%s1 + $0x1048] sm:$0xff]
  %v751 = vld [vmem:[%s1 + $0x1050] sm:$0xff]
  %v752 = vld [vmem:[%s1 + $0x1058] sm:$0xff]
  %v753 = vld [vmem:[%s1 + $0x1060] sm:$0xff]
  %v754 = vld [vmem:[%s1 + $0x1068] sm:$0xff]
  %v755 = vld [vmem:[%s1 + $0x1070] sm:$0xff]
  %v756 = vld [vmem:[%s1 + $0x1078] sm:$0xff]
  %v757 = vld [vmem:[%s1 + $0x1080] sm:$0xff]
  %v758 = vld [vmem:[%s1 + $0x1088] sm:$0xff]
  %v759 = vld [vmem:[%s1 + $0x1090] sm:$0xff]
  %v760 = vld [vmem:[%s1 + $0x1098] sm:$0xff]
  %v761 = vld [vmem:[%s1 + $0x10a0] sm:$0xff]
  %v762 = vld [vmem:[%s1 + $0x10a8] sm:$0xff]
  %v763 = vld [vmem:[%s1 + $0x10b0] sm:$0xff]
  %v764 = vld [vmem:[%s1 + $0x10b8] sm:$0xff]
  %v765 = vld [vmem:[%s1 + $0x10c0] sm:$0xff]
  %v766 = vld [vmem:[%s1 + $0x10c8] sm:$0xff]
  %v767 = vld [vmem:[%s1 + $0x10d0] sm:$0xff]
  %v768 = vld [vmem:[%s1 + $0x10d8] sm:$0xff]
  %v769 = vld [vmem:[%s1 + $0x10e0] sm:$0xff]
  %v770 = vld [vmem:[%s1 + $0x10e8] sm:$0xff]
  %v771 = vld [vmem:[%s1 + $0x10f0] sm:$0xff]
  %v772 = vld [vmem:[%s1 + $0x10f8] sm:$0xff]
  %v773 = vld [vmem:[%s1 + $0x1100] sm:$0xff]
  %v774 = vld [vmem:[%s1 + $0x1108] sm:$0xff]
  %v775 = vld [vmem:[%s1 + $0x1110] sm:$0xff]
  %v776 = vld [vmem:[%s1 + $0x1118] sm:$0xff]
  %v777 = vld [vmem:[%s1 + $0x1120] sm:$0xff]
  %v778 = vld [vmem:[%s1 + $0x1128] sm:$0xff]
  %v779 = vld [vmem:[%s1 + $0x1130] sm:$0xff]
  %v780 = vld [vmem:[%s1 + $0x1138] sm:$0xff]
  %v781 = vld [vmem:[%s1 + $0x1140] sm:$0xff]
  %v782 = vld [vmem:[%s1 + $0x1148] sm:$0xff]
  %v783 = vld [vmem:[%s1 + $0x1150] sm:$0xff]
  %v784 = vld [vmem:[%s1 + $0x1158] sm:$0xff]
  %v785 = vld [vmem:[%s1 + $0x1160] sm:$0xff]
  %v786 = vld [vmem:[%s1 + $0x1168] sm:$0xff]
  %v787 = vld [vmem:[%s1 + $0x1170] sm:$0xff]
  %v788 = vld [vmem:[%s1 + $0x1178] sm:$0xff]
  %v789 = vld [vmem:[%s1 + $0x1180] sm:$0xff]
  %v790 = vld [vmem:[%s1 + $0x1188] sm:$0xff]
  %v791 = vld [vmem:[%s1 + $0x1190] sm:$0xff]
  %v792 = vld [vmem:[%s1 + $0x1198] sm:$0xff]
  %v793 = vld [vmem:[%s1 + $0x11a0] sm:$0xff]
  %v794 = vld [vmem:[%s1 + $0x11a8] sm:$0xff]
  %v795 = vld [vmem:[%s1 + $0x11b0] sm:$0xff]
  %v796 = vld [vmem:[%s1 + $0x11b8] sm:$0xff]
  %v797 = vld [vmem:[%s1 + $0x11c0] sm:$0xff]
  %v798 = vld [vmem:[%s1 + $0x11c8] sm:$0xff]
  %v799 = vld [vmem:[%s1 + $0x11d0] sm:$0xff]
  %v800 = vld [vmem:[%s1 + $0x11d8] sm:$0xff]
  %v801 = vld [vmem:[%s1 + $0x11e0] sm:$0xff]
  %v802 = vld [vmem:[%s1 + $0x11e8] sm:$0xff]
  %v803 = vld [vmem:[%s1 + $0x11f0] sm:$0xff]
  %v804 = vld [vmem:[%s1 + $0x11f8] sm:$0xff]
  %v805 = vld [vmem:[%s1 + $0x1200] sm:$0xff]
  %v806 = vld [vmem:[%s1 + $0x1208] sm:$0xff]
  %v807 = vld [vmem:[%s1 + $0x1210] sm:$0xff]
  %v808 = vld [vmem:[%s1 + $0x1218] sm:$0xff]
  %v809 = vld [vmem:[%s1 + $0x1220] sm:$0xff]
  %v810 = vld [vmem:[%s1 + $0x1228] sm:$0xff]
  %v811 = vld [vmem:[%s1 + $0x1230] sm:$0xff]
  %v812 = vld [vmem:[%s1 + $0x1238] sm:$0xff]
  %v813 = vld [vmem:[%s1 + $0x1240] sm:$0xff]
  %v814 = vld [vmem:[%s1 + $0x1248] sm:$0xff]
  %v815 = vld [vmem:[%s1 + $0x1250] sm:$0xff]
  %v816 = vld [vmem:[%s1 + $0x1258] sm:$0xff]
  %v817 = vld [vmem:[%s1 + $0x1260] sm:$0xff]
  %v818 = vld [vmem:[%s1 + $0x1268] sm:$0xff]
  %v819 = vld [vmem:[%s1 + $0x1270] sm:$0xff]
  %v820 = vld [vmem:[%s1 + $0x1278] sm:$0xff]
  %v821 = vld [vmem:[%s1 + $0x1280] sm:$0xff]
  %v822 = vld [vmem:[%s1 + $0x1288] sm:$0xff]
  %v823 = vld [vmem:[%s1 + $0x1290] sm:$0xff]
  %v824 = vld [vmem:[%s1 + $0x1298] sm:$0xff]
  %v825 = vld [vmem:[%s1 + $0x12a0] sm:$0xff]
  %v826 = vld [vmem:[%s1 + $0x12a8] sm:$0xff]
  %v827 = vld [vmem:[%s1 + $0x12b0] sm:$0xff]
  %v828 = vld [vmem:[%s1 + $0x12b8] sm:$0xff]
  %v829 = vld [vmem:[%s1 + $0x12c0] sm:$0xff]
  %v830 = vld [vmem:[%s1 + $0x12c8] sm:$0xff]
  %v831 = vld [vmem:[%s1 + $0x12d0] sm:$0xff]
  %v832 = vld [vmem:[%s1 + $0x12d8] sm:$0xff]
  %v833 = vld [vmem:[%s1 + $0x12e0] sm:$0xff]
  %v834 = vld [vmem:[%s1 + $0x12e8] sm:$0xff]
  %v835 = vld [vmem:[%s1 + $0x12f0] sm:$0xff]
  %v836 = vld [vmem:[%s1 + $0x12f8] sm:$0xff]
  %v837 = vld [vmem:[%s1 + $0x1300] sm:$0xff]
  %v838 = vld [vmem:[%s1 + $0x1308] sm:$0xff]
  %v839 = vld [vmem:[%s1 + $0x1310] sm:$0xff]
  %v840 = vld [vmem:[%s1 + $0x1318] sm:$0xff]
  %v841 = vld [vmem:[%s1 + $0x1320] sm:$0xff]
  %v842 = vld [vmem:[%s1 + $0x1328] sm:$0xff]
  %v843 = vld [vmem:[%s1 + $0x1330] sm:$0xff]
  %v844 = vld [vmem:[%s1 + $0x1338] sm:$0xff]
  %v845 = vld [vmem:[%s1 + $0x1340] sm:$0xff]
  %v846 = vld [vmem:[%s1 + $0x1348] sm:$0xff]
  %v847 = vld [vmem:[%s1 + $0x1350] sm:$0xff]
  %v848 = vld [vmem:[%s1 + $0x1358] sm:$0xff]
  %v849 = vld [vmem:[%s1 + $0x1360] sm:$0xff]
  %v850 = vld [vmem:[%s1 + $0x1368] sm:$0xff]
  %v851 = vld [vmem:[%s1 + $0x1370] sm:$0xff]
  %v852 = vld [vmem:[%s1 + $0x1378] sm:$0xff]
  %v853 = vld [vmem:[%s1 + $0x1380] sm:$0xff]
  %v854 = vld [vmem:[%s1 + $0x1388] sm:$0xff]
  %v855 = vld [vmem:[%s1 + $0x1390] sm:$0xff]
  %v856 = vld [vmem:[%s1 + $0x1398] sm:$0xff]
  %v857 = vld [vmem:[%s1 + $0x13a0] sm:$0xff]
  %v858 = vld [vmem:[%s1 + $0x13a8] sm:$0xff]
  %v859 = vld [vmem:[%s1 + $0x13b0] sm:$0xff]
  %v860 = vld [vmem:[%s1 + $0x13b8] sm:$0xff]
  %v861 = vld [vmem:[%s1 + $0x13c0] sm:$0xff]
  %v862 = vld [vmem:[%s1 + $0x13c8] sm:$0xff]
  %v863 = vld [vmem:[%s1 + $0x13d0] sm:$0xff]
  %v864 = vld [vmem:[%s1 + $0x13d8] sm:$0xff]
  %v865 = vld [vmem:[%s1 + $0x13e0] sm:$0xff]
  %v866 = vld [vmem:[%s1 + $0x13e8] sm:$0xff]
  %v867 = vld [vmem:[%s1 + $0x13f0] sm:$0xff]
  %v868 = vld [vmem:[%s1 + $0x13f8] sm:$0xff]
  %v869 = vld [vmem:[%s1 + $0x1400] sm:$0xff]
  %v870 = vld [vmem:[%s1 + $0x1408] sm:$0xff]
  %v871 = vld [vmem:[%s1 + $0x1410] sm:$0xff]
  %v872 = vld [vmem:[%s1 + $0x1418] sm:$0xff]
  %v873 = vld [vmem:[%s1 + $0x1420] sm:$0xff]
  %v874 = vld [vmem:[%s1 + $0x1428] sm:$0xff]
  %v875 = vld [vmem:[%s1 + $0x1430] sm:$0xff]
  %v876 = vld [vmem:[%s1 + $0x1438] sm:$0xff]
  %v877 = vld [vmem:[%s1 + $0x1440] sm:$0xff]
  %v878 = vld [vmem:[%s1 + $0x1448] sm:$0xff]
  %v879 = vld [vmem:[%s1 + $0x1450] sm:$0xff]
  %v880 = vld [vmem:[%s1 + $0x1458] sm:$0xff]
  %v881 = vld [vmem:[%s1 + $0x1460] sm:$0xff]
  %v882 = vld [vmem:[%s1 + $0x1468] sm:$0xff]
  %v883 = vld [vmem:[%s1 + $0x1470] sm:$0xff]
  %v884 = vld [vmem:[%s1 + $0x1478] sm:$0xff]
  %v885 = vld [vmem:[%s1 + $0x1480] sm:$0xff]
  %v886 = vld [vmem:[%s1 + $0x1488] sm:$0xff]
  %v887 = vld [vmem:[%s1 + $0x1490] sm:$0xff]
  %v888 = vld [vmem:[%s1 + $0x1498] sm:$0xff]
  %v889 = vld [vmem:[%s1 + $0x14a0] sm:$0xff]
  %v890 = vld [vmem:[%s1 + $0x14a8] sm:$0xff]
  %v891 = vld [vmem:[%s1 + $0x14b0] sm:$0xff]
  %v892 = vld [vmem:[%s1 + $0x14b8] sm:$0xff]
  %v893 = vld [vmem:[%s1 + $0x14c0] sm:$0xff]
  %v894 = vld [vmem:[%s1 + $0x14c8] sm:$0xff]
  %v895 = vld [vmem:[%s1 + $0x14d0] sm:$0xff]
  %v896 = vld [vmem:[%s1 + $0x14d8] sm:$0xff]
  %v897 = vld [vmem:[%s1 + $0x14e0] sm:$0xff]
  %v898 = vld [vmem:[%s1 + $0x14e8] sm:$0xff]
  %v899 = vld [vmem:[%s1 + $0x14f0] sm:$0xff]
  %v900 = vld [vmem:[%s1 + $0x14f8] sm:$0xff]
  %v901 = vld [vmem:[%s1 + $0x1500] sm:$0xff]
  %v902 = vld [vmem:[%s1 + $0x1508] sm:$0xff]
  %v903 = vld [vmem:[%s1 + $0x1510] sm:$0xff]
  %v904 = vld [vmem:[%s1 + $0x1518] sm:$0xff]
  %v905 = vld [vmem:[%s1 + $0x1520] sm:$0xff]
  %v906 = vld [vmem:[%s1 + $0x1528] sm:$0xff]
  %v907 = vld [vmem:[%s1 + $0x1530] sm:$0xff]
  %v908 = vld [vmem:[%s1 + $0x1538] sm:$0xff]
  %v909 = vld [vmem:[%s1 + $0x1540] sm:$0xff]
  %v910 = vld [vmem:[%s1 + $0x1548] sm:$0xff]
  %v911 = vld [vmem:[%s1 + $0x1550] sm:$0xff]
  %v912 = vld [vmem:[%s1 + $0x1558] sm:$0xff]
  %v913 = vld [vmem:[%s1 + $0x1560] sm:$0xff]
  %v914 = vld [vmem:[%s1 + $0x1568] sm:$0xff]
  %v915 = vld [vmem:[%s1 + $0x1570] sm:$0xff]
  %v916 = vld [vmem:[%s1 + $0x1578] sm:$0xff]
  %v917 = vld [vmem:[%s1 + $0x1580] sm:$0xff]
  %v918 = vld [vmem:[%s1 + $0x1588] sm:$0xff]
  %v919 = vld [vmem:[%s1 + $0x1590] sm:$0xff]
  %v920 = vld [vmem:[%s1 + $0x1598] sm:$0xff]
  %v921 = vld [vmem:[%s1 + $0x15a0] sm:$0xff]
  %v922 = vld [vmem:[%s1 + $0x15a8] sm:$0xff]
  %v923 = vld [vmem:[%s1 + $0x15b0] sm:$0xff]
  %v924 = vld [vmem:[%s1 + $0x15b8] sm:$0xff]
  %v925 = vld [vmem:[%s1 + $0x15c0] sm:$0xff]
  %v926 = vld [vmem:[%s1 + $0x15c8] sm:$0xff]
  %v927 = vld [vmem:[%s1 + $0x15d0] sm:$0xff]
  %v928 = vld [vmem:[%s1 + $0x15d8] sm:$0xff]
  %v929 = vld [vmem:[%s1 + $0x15e0] sm:$0xff]
  %v930 = vld [vmem:[%s1 + $0x15e8] sm:$0xff]
  %v931 = vld [vmem:[%s1 + $0x15f0] sm:$0xff]
  %v932 = vld [vmem:[%s1 + $0x15f8] sm:$0xff]
  %v933 = vld [vmem:[%s1 + $0x1600] sm:$0xff]
  %v934 = vld [vmem:[%s1 + $0x1608] sm:$0xff]
  %v935 = vld [vmem:[%s1 + $0x1610] sm:$0xff]
  %v936 = vld [vmem:[%s1 + $0x1618] sm:$0xff]
  %v937 = vld [vmem:[%s1 + $0x1620] sm:$0xff]
  %v938 = vld [vmem:[%s1 + $0x1628] sm:$0xff]
  %v939 = vld [vmem:[%s1 + $0x1630] sm:$0xff]
  %v940 = vld [vmem:[%s1 + $0x1638] sm:$0xff]
  %v941 = vld [vmem:[%s1 + $0x1640] sm:$0xff]
  %v942 = vld [vmem:[%s1 + $0x1648] sm:$0xff]
  %v943 = vld [vmem:[%s1 + $0x1650] sm:$0xff]
  %v944 = vld [vmem:[%s1 + $0x1658] sm:$0xff]
  %v945 = vld [vmem:[%s1 + $0x1660] sm:$0xff]
  %v946 = vld [vmem:[%s1 + $0x1668] sm:$0xff]
  %v947 = vld [vmem:[%s1 + $0x1670] sm:$0xff]
  %v948 = vld [vmem:[%s1 + $0x1678] sm:$0xff]
  %v949 = vld [vmem:[%s1 + $0x1680] sm:$0xff]
  %v950 = vld [vmem:[%s1 + $0x1688] sm:$0xff]
  %v951 = vld [vmem:[%s1 + $0x1690] sm:$0xff]
  %v952 = vld [vmem:[%s1 + $0x1698] sm:$0xff]
  %v953 = vld [vmem:[%s1 + $0x16a0] sm:$0xff]
  %v954 = vld [vmem:[%s1 + $0x16a8] sm:$0xff]
  %v955 = vld [vmem:[%s1 + $0x16b0] sm:$0xff]
  %v956 = vld [vmem:[%s1 + $0x16b8] sm:$0xff]
  %v957 = vld [vmem:[%s1 + $0x16c0] sm:$0xff]
  %v958 = vld [vmem:[%s1 + $0x16c8] sm:$0xff]
  %v959 = vld [vmem:[%s1 + $0x16d0] sm:$0xff]
  %v960 = vld [vmem:[%s1 + $0x16d8] sm:$0xff]
  %v961 = vld [vmem:[%s1 + $0x16e0] sm:$0xff]
  %v962 = vld [vmem:[%s1 + $0x16e8] sm:$0xff]
  %v963 = vld [vmem:[%s1 + $0x16f0] sm:$0xff]
  %v964 = vld [vmem:[%s1 + $0x16f8] sm:$0xff]
  %v965 = vld [vmem:[%s1 + $0x1700] sm:$0xff]
  %v966 = vld [vmem:[%s1 + $0x1708] sm:$0xff]
  %v967 = vld [vmem:[%s1 + $0x1710] sm:$0xff]
  %v968 = vld [vmem:[%s1 + $0x1718] sm:$0xff]
  %v969 = vld [vmem:[%s1 + $0x1720] sm:$0xff]
  %v970 = vld [vmem:[%s1 + $0x1728] sm:$0xff]
  %v971 = vld [vmem:[%s1 + $0x1730] sm:$0xff]
  %v972 = vld [vmem:[%s1 + $0x1738] sm:$0xff]
  %v973 = vld [vmem:[%s1 + $0x1740] sm:$0xff]
  %v974 = vld [vmem:[%s1 + $0x1748] sm:$0xff]
  %v975 = vld [vmem:[%s1 + $0x1750] sm:$0xff]
  %v976 = vld [vmem:[%s1 + $0x1758] sm:$0xff]
  %v977 = vld [vmem:[%s1 + $0x1760] sm:$0xff]
  %v978 = vld [vmem:[%s1 + $0x1768] sm:$0xff]
  %v979 = vld [vmem:[%s1 + $0x1770] sm:$0xff]
  %v980 = vld [vmem:[%s1 + $0x1778] sm:$0xff]
  %v981 = vld [vmem:[%s1 + $0x1780] sm:$0xff]
  %v982 = vld [vmem:[%s1 + $0x1788] sm:$0xff]
  %v983 = vld [vmem:[%s1 + $0x1790] sm:$0xff]
  %v984 = vld [vmem:[%s1 + $0x1798] sm:$0xff]
  %v985 = vld [vmem:[%s1 + $0x17a0] sm:$0xff]
  %v986 = vld [vmem:[%s1 + $0x17a8] sm:$0xff]
  %v987 = vld [vmem:[%s1 + $0x17b0] sm:$0xff]
  %v988 = vld [vmem:[%s1 + $0x17b8] sm:$0xff]
  %v989 = vld [vmem:[%s1 + $0x17c0] sm:$0xff]
  %v990 = vld [vmem:[%s1 + $0x17c8] sm:$0xff]
  %v991 = vld [vmem:[%s1 + $0x17d0] sm:$0xff]
  %v992 = vld [vmem:[%s1 + $0x17d8] sm:$0xff]
  %v993 = vld [vmem:[%s1 + $0x17e0] sm:$0xff]
  %v994 = vld [vmem:[%s1 + $0x17e8] sm:$0xff]
  %v995 = vld [vmem:[%s1 + $0x17f0] sm:$0xff]
  %v996 = vld [vmem:[%s1 + $0x17f8] sm:$0xff]
  %v997 = vld [vmem:[%s1 + $0x1800] sm:$0xff]
  %v998 = vld [vmem:[%s1 + $0x1808] sm:$0xff]
  %v999 = vld [vmem:[%s1 + $0x1810] sm:$0xff]
  %v1000 = vld [vmem:[%s1 + $0x1818] sm:$0xff]
  %v1001 = vld [vmem:[%s1 + $0x1820] sm:$0xff]
  %v1002 = vld [vmem:[%s1 + $0x1828] sm:$0xff]
  %v1003 = vld [vmem:[%s1 + $0x1830] sm:$0xff]
  %v1004 = vld [vmem:[%s1 + $0x1838] sm:$0xff]
  %v1005 = vld [vmem:[%s1 + $0x1840] sm:$0xff]
  %v1006 = vld [vmem:[%s1 + $0x1848] sm:$0xff]
  %v1007 = vld [vmem:[%s1 + $0x1850] sm:$0xff]
  %v1008 = vld [vmem:[%s1 + $0x1858] sm:$0xff]
  %v1009 = vld [vmem:[%s1 + $0x1860] sm:$0xff]
  %v1010 = vld [vmem:[%s1 + $0x1868] sm:$0xff]
  %v1011 = vld [vmem:[%s1 + $0x1870] sm:$0xff]
  %v1012 = vld [vmem:[%s1 + $0x1878] sm:$0xff]
  %v1013 = vld [vmem:[%s2] sm:$0xf]
  %v1015 = vperm.slane %v1013, 0
  %v1016 = vperm.slane %v1013, 1
  %v1017 = vperm.slane %v1013, 2
  %v1018 = vperm.slane %v1013, 3
  %v1231 = vunpack.c.l.b16 %v21
  %v1232 = vunpack.c.h.b16 %v21
  %v1233 = vunpack.c.l.b16 %v22
  %v1234 = vunpack.c.h.b16 %v22
  %v1235 = vunpack.c.l.b16 %v23
  %v1236 = vunpack.c.h.b16 %v23
  %v1237 = vunpack.c.l.b16 %v24
  %v1238 = vunpack.c.h.b16 %v24
  %v1239 = vunpack.c.l.b16 %v25
  %v1240 = vunpack.c.h.b16 %v25
  %v1241 = vunpack.c.l.b16 %v26
  %v1242 = vunpack.c.h.b16 %v26
  %v1243 = vunpack.c.l.b16 %v27
  %v1244 = vunpack.c.h.b16 %v27
  %v1245 = vunpack.c.l.b16 %v28
  %v1246 = vunpack.c.h.b16 %v28
  %v1247 = vunpack.c.l.b16 %v29
  %v1248 = vunpack.c.h.b16 %v29
  %v1249 = vunpack.c.l.b16 %v30
  %v1250 = vunpack.c.h.b16 %v30
  %v1251 = vunpack.c.l.b16 %v31
  %v1252 = vunpack.c.h.b16 %v31
  %v1253 = vunpack.c.l.b16 %v32
  %v1254 = vunpack.c.h.b16 %v32
  %v1255 = vunpack.c.l.b16 %v33
  %v1256 = vunpack.c.l.b16 %v34
  %v1257 = vunpack.c.h.b16 %v34
  %v1258 = vunpack.c.l.b16 %v35
  %v1259 = vunpack.c.h.b16 %v35
  %v1260 = vunpack.c.l.b16 %v36
  %v1261 = vunpack.c.h.b16 %v36
  %v1262 = vunpack.c.l.b16 %v37
  %v1263 = vunpack.c.h.b16 %v37
  %v1264 = vunpack.c.l.b16 %v38
  %v1265 = vunpack.c.h.b16 %v38
  %v1266 = vunpack.c.l.b16 %v39
  %v1267 = vunpack.c.h.b16 %v39
  %v1268 = vunpack.c.l.b16 %v40
  %v1269 = vunpack.c.h.b16 %v40
  %v1270 = vunpack.c.l.b16 %v41
  %v1271 = vunpack.c.h.b16 %v41
  %v1272 = vunpack.c.l.b16 %v42
  %v1273 = vunpack.c.h.b16 %v42
  %v1274 = vunpack.c.l.b16 %v43
  %v1275 = vunpack.c.h.b16 %v43
  %v1276 = vunpack.c.l.b16 %v44
  %v1277 = vunpack.c.h.b16 %v44
  %v1278 = vunpack.c.l.b16 %v45
  %v1279 = vunpack.c.h.b16 %v45
  %v1280 = vunpack.c.l.b16 %v46
  %v1281 = vunpack.c.l.b16 %v47
  %v1282 = vunpack.c.h.b16 %v47
  %v1283 = vunpack.c.l.b16 %v48
  %v1284 = vunpack.c.h.b16 %v48
  %v1285 = vunpack.c.l.b16 %v49
  %v1286 = vunpack.c.h.b16 %v49
  %v1287 = vunpack.c.l.b16 %v50
  %v1288 = vunpack.c.h.b16 %v50
  %v1289 = vunpack.c.l.b16 %v51
  %v1290 = vunpack.c.h.b16 %v51
  %v1291 = vunpack.c.l.b16 %v52
  %v1292 = vunpack.c.h.b16 %v52
  %v1293 = vunpack.c.l.b16 %v53
  %v1294 = vunpack.c.h.b16 %v53
  %v1295 = vunpack.c.l.b16 %v54
  %v1296 = vunpack.c.h.b16 %v54
  %v1297 = vunpack.c.l.b16 %v55
  %v1298 = vunpack.c.h.b16 %v55
  %v1299 = vunpack.c.l.b16 %v56
  %v1300 = vunpack.c.h.b16 %v56
  %v1301 = vunpack.c.l.b16 %v57
  %v1302 = vunpack.c.h.b16 %v57
  %v1303 = vunpack.c.l.b16 %v58
  %v1304 = vunpack.c.h.b16 %v58
  %v1305 = vunpack.c.l.b16 %v59
  %v1306 = vunpack.c.l.b16 %v60
  %v1307 = vunpack.c.h.b16 %v60
  %v1308 = vunpack.c.l.b16 %v61
  %v1309 = vunpack.c.h.b16 %v61
  %v1310 = vunpack.c.l.b16 %v62
  %v1311 = vunpack.c.h.b16 %v62
  %v1312 = vunpack.c.l.b16 %v63
  %v1313 = vunpack.c.h.b16 %v63
  %v1314 = vunpack.c.l.b16 %v64
  %v1315 = vunpack.c.h.b16 %v64
  %v1316 = vunpack.c.l.b16 %v65
  %v1317 = vunpack.c.h.b16 %v65
  %v1318 = vunpack.c.l.b16 %v66
  %v1319 = vunpack.c.h.b16 %v66
  %v1320 = vunpack.c.l.b16 %v67
  %v1321 = vunpack.c.h.b16 %v67
  %v1322 = vunpack.c.l.b16 %v68
  %v1323 = vunpack.c.h.b16 %v68
  %v1324 = vunpack.c.l.b16 %v69
  %v1325 = vunpack.c.h.b16 %v69
  %v1326 = vunpack.c.l.b16 %v70
  %v1327 = vunpack.c.h.b16 %v70
  %v1328 = vunpack.c.l.b16 %v71
  %v1329 = vunpack.c.h.b16 %v71
  %v1330 = vunpack.c.l.b16 %v72
  %v1331 = vunpack.c.l.b16 %v73
  %v1332 = vunpack.c.h.b16 %v73
  %v1333 = vunpack.c.l.b16 %v74
  %v1334 = vunpack.c.h.b16 %v74
  %v1335 = vunpack.c.l.b16 %v75
  %v1336 = vunpack.c.h.b16 %v75
  %v1337 = vunpack.c.l.b16 %v76
  %v1338 = vunpack.c.h.b16 %v76
  %v1339 = vunpack.c.l.b16 %v77
  %v1340 = vunpack.c.h.b16 %v77
  %v1341 = vunpack.c.l.b16 %v78
  %v1342 = vunpack.c.h.b16 %v78
  %v1343 = vunpack.c.l.b16 %v79
  %v1344 = vunpack.c.h.b16 %v79
  %v1345 = vunpack.c.l.b16 %v80
  %v1346 = vunpack.c.h.b16 %v80
  %v1347 = vunpack.c.l.b16 %v81
  %v1348 = vunpack.c.h.b16 %v81
  %v1349 = vunpack.c.l.b16 %v82
  %v1350 = vunpack.c.h.b16 %v82
  %v1351 = vunpack.c.l.b16 %v83
  %v1352 = vunpack.c.h.b16 %v83
  %v1353 = vunpack.c.l.b16 %v84
  %v1354 = vunpack.c.h.b16 %v84
  %v1355 = vunpack.c.l.b16 %v85
  %v1356 = vunpack.c.l.b16 %v86
  %v1357 = vunpack.c.h.b16 %v86
  %v1358 = vunpack.c.l.b16 %v87
  %v1359 = vunpack.c.h.b16 %v87
  %v1360 = vunpack.c.l.b16 %v88
  %v1361 = vunpack.c.h.b16 %v88
  %v1362 = vunpack.c.l.b16 %v89
  %v1363 = vunpack.c.h.b16 %v89
  %v1364 = vunpack.c.l.b16 %v90
  %v1365 = vunpack.c.h.b16 %v90
  %v1366 = vunpack.c.l.b16 %v91
  %v1367 = vunpack.c.h.b16 %v91
  %v1368 = vunpack.c.l.b16 %v92
  %v1369 = vunpack.c.h.b16 %v92
  %v1370 = vunpack.c.l.b16 %v93
  %v1371 = vunpack.c.h.b16 %v93
  %v1372 = vunpack.c.l.b16 %v94
  %v1373 = vunpack.c.h.b16 %v94
  %v1374 = vunpack.c.l.b16 %v95
  %v1375 = vunpack.c.h.b16 %v95
  %v1376 = vunpack.c.l.b16 %v96
  %v1377 = vunpack.c.h.b16 %v96
  %v1378 = vunpack.c.l.b16 %v97
  %v1379 = vunpack.c.h.b16 %v97
  %v1380 = vunpack.c.l.b16 %v98
  %v1381 = vunpack.c.l.b16 %v99
  %v1382 = vunpack.c.h.b16 %v99
  %v1383 = vunpack.c.l.b16 %v100
  %v1384 = vunpack.c.h.b16 %v100
  %v1385 = vunpack.c.l.b16 %v101
  %v1386 = vunpack.c.h.b16 %v101
  %v1387 = vunpack.c.l.b16 %v102
  %v1388 = vunpack.c.h.b16 %v102
  %v1389 = vunpack.c.l.b16 %v103
  %v1390 = vunpack.c.h.b16 %v103
  %v1391 = vunpack.c.l.b16 %v104
  %v1392 = vunpack.c.h.b16 %v104
  %v1393 = vunpack.c.l.b16 %v105
  %v1394 = vunpack.c.h.b16 %v105
  %v1395 = vunpack.c.l.b16 %v106
  %v1396 = vunpack.c.h.b16 %v106
  %v1397 = vunpack.c.l.b16 %v107
  %v1398 = vunpack.c.h.b16 %v107
  %v1399 = vunpack.c.l.b16 %v108
  %v1400 = vunpack.c.h.b16 %v108
  %v1401 = vunpack.c.l.b16 %v109
  %v1402 = vunpack.c.h.b16 %v109
  %v1403 = vunpack.c.l.b16 %v110
  %v1404 = vunpack.c.h.b16 %v110
  %v1405 = vunpack.c.l.b16 %v111
  %v1406 = vunpack.c.l.b16 %v112
  %v1407 = vunpack.c.h.b16 %v112
  %v1408 = vunpack.c.l.b16 %v113
  %v1409 = vunpack.c.h.b16 %v113
  %v1410 = vunpack.c.l.b16 %v114
  %v1411 = vunpack.c.h.b16 %v114
  %v1412 = vunpack.c.l.b16 %v115
  %v1413 = vunpack.c.h.b16 %v115
  %v1414 = vunpack.c.l.b16 %v116
  %v1415 = vunpack.c.h.b16 %v116
  %v1416 = vunpack.c.l.b16 %v117
  %v1417 = vunpack.c.h.b16 %v117
  %v1418 = vunpack.c.l.b16 %v118
  %v1419 = vunpack.c.h.b16 %v118
  %v1420 = vunpack.c.l.b16 %v119
  %v1421 = vunpack.c.h.b16 %v119
  %v1422 = vunpack.c.l.b16 %v120
  %v1423 = vunpack.c.h.b16 %v120
  %v1424 = vunpack.c.l.b16 %v121
  %v1425 = vunpack.c.h.b16 %v121
  %v1426 = vunpack.c.l.b16 %v122
  %v1427 = vunpack.c.h.b16 %v122
  %v1428 = vunpack.c.l.b16 %v123
  %v1429 = vunpack.c.h.b16 %v123
  %v1430 = vunpack.c.l.b16 %v124
  %v1431 = vunpack.c.l.b16 %v125
  %v1432 = vunpack.c.h.b16 %v125
  %v1433 = vunpack.c.l.b16 %v126
  %v1434 = vunpack.c.h.b16 %v126
  %v1435 = vunpack.c.l.b16 %v127
  %v1436 = vunpack.c.h.b16 %v127
  %v1437 = vunpack.c.l.b16 %v128
  %v1438 = vunpack.c.h.b16 %v128
  %v1439 = vunpack.c.l.b16 %v129
  %v1440 = vunpack.c.h.b16 %v129
  %v1441 = vunpack.c.l.b16 %v130
  %v1442 = vunpack.c.h.b16 %v130
  %v1443 = vunpack.c.l.b16 %v131
  %v1444 = vunpack.c.h.b16 %v131
  %v1445 = vunpack.c.l.b16 %v132
  %v1446 = vunpack.c.h.b16 %v132
  %v1447 = vunpack.c.l.b16 %v133
  %v1448 = vunpack.c.h.b16 %v133
  %v1449 = vunpack.c.l.b16 %v134
  %v1450 = vunpack.c.h.b16 %v134
  %v1451 = vunpack.c.l.b16 %v135
  %v1452 = vunpack.c.h.b16 %v135
  %v1453 = vunpack.c.l.b16 %v136
  %v1454 = vunpack.c.h.b16 %v136
  %v1455 = vunpack.c.l.b16 %v137
  %v1456 = vunpack.c.l.b16 %v138
  %v1457 = vunpack.c.h.b16 %v138
  %v1458 = vunpack.c.l.b16 %v139
  %v1459 = vunpack.c.h.b16 %v139
  %v1460 = vunpack.c.l.b16 %v140
  %v1461 = vunpack.c.h.b16 %v140
  %v1462 = vunpack.c.l.b16 %v141
  %v1463 = vunpack.c.h.b16 %v141
  %v1464 = vunpack.c.l.b16 %v142
  %v1465 = vunpack.c.h.b16 %v142
  %v1466 = vunpack.c.l.b16 %v143
  %v1467 = vunpack.c.h.b16 %v143
  %v1468 = vunpack.c.l.b16 %v144
  %v1469 = vunpack.c.h.b16 %v144
  %v1470 = vunpack.c.l.b16 %v145
  %v1471 = vunpack.c.h.b16 %v145
  %v1472 = vunpack.c.l.b16 %v146
  %v1473 = vunpack.c.h.b16 %v146
  %v1474 = vunpack.c.l.b16 %v147
  %v1475 = vunpack.c.h.b16 %v147
  %v1476 = vunpack.c.l.b16 %v148
  %v1477 = vunpack.c.h.b16 %v148
  %v1478 = vunpack.c.l.b16 %v149
  %v1479 = vunpack.c.h.b16 %v149
  %v1480 = vunpack.c.l.b16 %v150
  %v1481 = vunpack.c.l.b16 %v151
  %v1482 = vunpack.c.h.b16 %v151
  %v1483 = vunpack.c.l.b16 %v152
  %v1484 = vunpack.c.h.b16 %v152
  %v1485 = vunpack.c.l.b16 %v153
  %v1486 = vunpack.c.h.b16 %v153
  %v1487 = vunpack.c.l.b16 %v154
  %v1488 = vunpack.c.h.b16 %v154
  %v1489 = vunpack.c.l.b16 %v155
  %v1490 = vunpack.c.h.b16 %v155
  %v1491 = vunpack.c.l.b16 %v156
  %v1492 = vunpack.c.h.b16 %v156
  %v1493 = vunpack.c.l.b16 %v157
  %v1494 = vunpack.c.h.b16 %v157
  %v1495 = vunpack.c.l.b16 %v158
  %v1496 = vunpack.c.h.b16 %v158
  %v1497 = vunpack.c.l.b16 %v159
  %v1498 = vunpack.c.h.b16 %v159
  %v1499 = vunpack.c.l.b16 %v160
  %v1500 = vunpack.c.h.b16 %v160
  %v1501 = vunpack.c.l.b16 %v161
  %v1502 = vunpack.c.h.b16 %v161
  %v1503 = vunpack.c.l.b16 %v162
  %v1504 = vunpack.c.h.b16 %v162
  %v1505 = vunpack.c.l.b16 %v163
  %v1506 = vunpack.c.l.b16 %v164
  %v1507 = vunpack.c.h.b16 %v164
  %v1508 = vunpack.c.l.b16 %v165
  %v1509 = vunpack.c.h.b16 %v165
  %v1510 = vunpack.c.l.b16 %v166
  %v1511 = vunpack.c.h.b16 %v166
  %v1512 = vunpack.c.l.b16 %v167
  %v1513 = vunpack.c.h.b16 %v167
  %v1514 = vunpack.c.l.b16 %v168
  %v1515 = vunpack.c.h.b16 %v168
  %v1516 = vunpack.c.l.b16 %v169
  %v1517 = vunpack.c.h.b16 %v169
  %v1518 = vunpack.c.l.b16 %v170
  %v1519 = vunpack.c.h.b16 %v170
  %v1520 = vunpack.c.l.b16 %v171
  %v1521 = vunpack.c.h.b16 %v171
  %v1522 = vunpack.c.l.b16 %v172
  %v1523 = vunpack.c.h.b16 %v172
  %v1524 = vunpack.c.l.b16 %v173
  %v1525 = vunpack.c.h.b16 %v173
  %v1526 = vunpack.c.l.b16 %v174
  %v1527 = vunpack.c.h.b16 %v174
  %v1528 = vunpack.c.l.b16 %v175
  %v1529 = vunpack.c.h.b16 %v175
  %v1530 = vunpack.c.l.b16 %v176
  %v1531 = vunpack.c.l.b16 %v177
  %v1532 = vunpack.c.h.b16 %v177
  %v1533 = vunpack.c.l.b16 %v178
  %v1534 = vunpack.c.h.b16 %v178
  %v1535 = vunpack.c.l.b16 %v179
  %v1536 = vunpack.c.h.b16 %v179
  %v1537 = vunpack.c.l.b16 %v180
  %v1538 = vunpack.c.h.b16 %v180
  %v1539 = vunpack.c.l.b16 %v181
  %v1540 = vunpack.c.h.b16 %v181
  %v1541 = vunpack.c.l.b16 %v182
  %v1542 = vunpack.c.h.b16 %v182
  %v1543 = vunpack.c.l.b16 %v183
  %v1544 = vunpack.c.h.b16 %v183
  %v1545 = vunpack.c.l.b16 %v184
  %v1546 = vunpack.c.h.b16 %v184
  %v1547 = vunpack.c.l.b16 %v185
  %v1548 = vunpack.c.h.b16 %v185
  %v1549 = vunpack.c.l.b16 %v186
  %v1550 = vunpack.c.h.b16 %v186
  %v1551 = vunpack.c.l.b16 %v187
  %v1552 = vunpack.c.h.b16 %v187
  %v1553 = vunpack.c.l.b16 %v188
  %v1554 = vunpack.c.h.b16 %v188
  %v1555 = vunpack.c.l.b16 %v189
  %v1556 = vunpack.c.l.b16 %v190
  %v1557 = vunpack.c.h.b16 %v190
  %v1558 = vunpack.c.l.b16 %v191
  %v1559 = vunpack.c.h.b16 %v191
  %v1560 = vunpack.c.l.b16 %v192
  %v1561 = vunpack.c.h.b16 %v192
  %v1562 = vunpack.c.l.b16 %v193
  %v1563 = vunpack.c.h.b16 %v193
  %v1564 = vunpack.c.l.b16 %v194
  %v1565 = vunpack.c.h.b16 %v194
  %v1566 = vunpack.c.l.b16 %v195
  %v1567 = vunpack.c.h.b16 %v195
  %v1568 = vunpack.c.l.b16 %v196
  %v1569 = vunpack.c.h.b16 %v196
  %v1570 = vunpack.c.l.b16 %v197
  %v1571 = vunpack.c.h.b16 %v197
  %v1572 = vunpack.c.l.b16 %v198
  %v1573 = vunpack.c.h.b16 %v198
  %v1574 = vunpack.c.l.b16 %v199
  %v1575 = vunpack.c.h.b16 %v199
  %v1576 = vunpack.c.l.b16 %v200
  %v1577 = vunpack.c.h.b16 %v200
  %v1578 = vunpack.c.l.b16 %v201
  %v1579 = vunpack.c.h.b16 %v201
  %v1580 = vunpack.c.l.b16 %v202
  %v1581 = vunpack.c.l.b16 %v203
  %v1582 = vunpack.c.h.b16 %v203
  %v1583 = vunpack.c.l.b16 %v204
  %v1584 = vunpack.c.h.b16 %v204
  %v1585 = vunpack.c.l.b16 %v205
  %v1586 = vunpack.c.h.b16 %v205
  %v1587 = vunpack.c.l.b16 %v206
  %v1588 = vunpack.c.h.b16 %v206
  %v1589 = vunpack.c.l.b16 %v207
  %v1590 = vunpack.c.h.b16 %v207
  %v1591 = vunpack.c.l.b16 %v208
  %v1592 = vunpack.c.h.b16 %v208
  %v1593 = vunpack.c.l.b16 %v209
  %v1594 = vunpack.c.h.b16 %v209
  %v1595 = vunpack.c.l.b16 %v210
  %v1596 = vunpack.c.h.b16 %v210
  %v1597 = vunpack.c.l.b16 %v211
  %v1598 = vunpack.c.h.b16 %v211
  %v1599 = vunpack.c.l.b16 %v212
  %v1600 = vunpack.c.h.b16 %v212
  %v1601 = vunpack.c.l.b16 %v213
  %v1602 = vunpack.c.h.b16 %v213
  %v1603 = vunpack.c.l.b16 %v214
  %v1604 = vunpack.c.h.b16 %v214
  %v1605 = vunpack.c.l.b16 %v215
  %v1606 = vunpack.c.l.b16 %v216
  %v1607 = vunpack.c.h.b16 %v216
  %v1608 = vunpack.c.l.b16 %v217
  %v1609 = vunpack.c.h.b16 %v217
  %v1610 = vunpack.c.l.b16 %v218
  %v1611 = vunpack.c.h.b16 %v218
  %v1612 = vunpack.c.l.b16 %v219
  %v1613 = vunpack.c.h.b16 %v219
  %v1614 = vunpack.c.l.b16 %v220
  %v1615 = vunpack.c.h.b16 %v220
  %v1616 = vunpack.c.l.b16 %v221
  %v1617 = vunpack.c.h.b16 %v221
  %v1618 = vunpack.c.l.b16 %v222
  %v1619 = vunpack.c.h.b16 %v222
  %v1620 = vunpack.c.l.b16 %v223
  %v1621 = vunpack.c.h.b16 %v223
  %v1622 = vunpack.c.l.b16 %v224
  %v1623 = vunpack.c.h.b16 %v224
  %v1624 = vunpack.c.l.b16 %v225
  %v1625 = vunpack.c.h.b16 %v225
  %v1626 = vunpack.c.l.b16 %v226
  %v1627 = vunpack.c.h.b16 %v226
  %v1628 = vunpack.c.l.b16 %v227
  %v1629 = vunpack.c.h.b16 %v227
  %v1630 = vunpack.c.l.b16 %v228
  %v1631 = vpack.c.b16 %v1256, %v1231
  %v1632 = vpack.c.b16 %v1257, %v1232
  %v1633 = vpack.c.b16 %v1258, %v1233
  %v1634 = vpack.c.b16 %v1259, %v1234
  %v1635 = vpack.c.b16 %v1260, %v1235
  %v1636 = vpack.c.b16 %v1261, %v1236
  %v1637 = vpack.c.b16 %v1262, %v1237
  %v1638 = vpack.c.b16 %v1263, %v1238
  %v1639 = vpack.c.b16 %v1264, %v1239
  %v1640 = vpack.c.b16 %v1265, %v1240
  %v1641 = vpack.c.b16 %v1266, %v1241
  %v1642 = vpack.c.b16 %v1267, %v1242
  %v1643 = vpack.c.b16 %v1268, %v1243
  %v1644 = vpack.c.b16 %v1269, %v1244
  %v1645 = vpack.c.b16 %v1270, %v1245
  %v1646 = vpack.c.b16 %v1271, %v1246
  %v1647 = vpack.c.b16 %v1272, %v1247
  %v1648 = vpack.c.b16 %v1273, %v1248
  %v1649 = vpack.c.b16 %v1274, %v1249
  %v1650 = vpack.c.b16 %v1275, %v1250
  %v1651 = vpack.c.b16 %v1276, %v1251
  %v1652 = vpack.c.b16 %v1277, %v1252
  %v1653 = vpack.c.b16 %v1278, %v1253
  %v1654 = vpack.c.b16 %v1279, %v1254
  %v1655 = vpack.c.b16 %v1280, %v1255
  %v1656 = vpack.c.b16 %v1306, %v1281
  %v1657 = vpack.c.b16 %v1307, %v1282
  %v1658 = vpack.c.b16 %v1308, %v1283
  %v1659 = vpack.c.b16 %v1309, %v1284
  %v1660 = vpack.c.b16 %v1310, %v1285
  %v1661 = vpack.c.b16 %v1311, %v1286
  %v1662 = vpack.c.b16 %v1312, %v1287
  %v1663 = vpack.c.b16 %v1313, %v1288
  %v1664 = vpack.c.b16 %v1314, %v1289
  %v1665 = vpack.c.b16 %v1315, %v1290
  %v1666 = vpack.c.b16 %v1316, %v1291
  %v1667 = vpack.c.b16 %v1317, %v1292
  %v1668 = vpack.c.b16 %v1318, %v1293
  %v1669 = vpack.c.b16 %v1319, %v1294
  %v1670 = vpack.c.b16 %v1320, %v1295
  %v1671 = vpack.c.b16 %v1321, %v1296
  %v1672 = vpack.c.b16 %v1322, %v1297
  %v1673 = vpack.c.b16 %v1323, %v1298
  %v1674 = vpack.c.b16 %v1324, %v1299
  %v1675 = vpack.c.b16 %v1325, %v1300
  %v1676 = vpack.c.b16 %v1326, %v1301
  %v1677 = vpack.c.b16 %v1327, %v1302
  %v1678 = vpack.c.b16 %v1328, %v1303
  %v1679 = vpack.c.b16 %v1329, %v1304
  %v1680 = vpack.c.b16 %v1330, %v1305
  %v1681 = vpack.c.b16 %v1356, %v1331
  %v1682 = vpack.c.b16 %v1357, %v1332
  %v1683 = vpack.c.b16 %v1358, %v1333
  %v1684 = vpack.c.b16 %v1359, %v1334
  %v1685 = vpack.c.b16 %v1360, %v1335
  %v1686 = vpack.c.b16 %v1361, %v1336
  %v1687 = vpack.c.b16 %v1362, %v1337
  %v1688 = vpack.c.b16 %v1363, %v1338
  %v1689 = vpack.c.b16 %v1364, %v1339
  %v1690 = vpack.c.b16 %v1365, %v1340
  %v1691 = vpack.c.b16 %v1366, %v1341
  %v1692 = vpack.c.b16 %v1367, %v1342
  %v1693 = vpack.c.b16 %v1368, %v1343
  %v1694 = vpack.c.b16 %v1369, %v1344
  %v1695 = vpack.c.b16 %v1370, %v1345
  %v1696 = vpack.c.b16 %v1371, %v1346
  %v1697 = vpack.c.b16 %v1372, %v1347
  %v1698 = vpack.c.b16 %v1373, %v1348
  %v1699 = vpack.c.b16 %v1374, %v1349
  %v1700 = vpack.c.b16 %v1375, %v1350
  %v1701 = vpack.c.b16 %v1376, %v1351
  %v1702 = vpack.c.b16 %v1377, %v1352
  %v1703 = vpack.c.b16 %v1378, %v1353
  %v1704 = vpack.c.b16 %v1379, %v1354
  %v1705 = vpack.c.b16 %v1380, %v1355
  %v1706 = vpack.c.b16 %v1406, %v1381
  %v1707 = vpack.c.b16 %v1407, %v1382
  %v1708 = vpack.c.b16 %v1408, %v1383
  %v1709 = vpack.c.b16 %v1409, %v1384
  %v1710 = vpack.c.b16 %v1410, %v1385
  %v1711 = vpack.c.b16 %v1411, %v1386
  %v1712 = vpack.c.b16 %v1412, %v1387
  %v1713 = vpack.c.b16 %v1413, %v1388
  %v1714 = vpack.c.b16 %v1414, %v1389
  %v1715 = vpack.c.b16 %v1415, %v1390
  %v1716 = vpack.c.b16 %v1416, %v1391
  %v1717 = vpack.c.b16 %v1417, %v1392
  %v1718 = vpack.c.b16 %v1418, %v1393
  %v1719 = vpack.c.b16 %v1419, %v1394
  %v1720 = vpack.c.b16 %v1420, %v1395
  %v1721 = vpack.c.b16 %v1421, %v1396
  %v1722 = vpack.c.b16 %v1422, %v1397
  %v1723 = vpack.c.b16 %v1423, %v1398
  %v1724 = vpack.c.b16 %v1424, %v1399
  %v1725 = vpack.c.b16 %v1425, %v1400
  %v1726 = vpack.c.b16 %v1426, %v1401
  %v1727 = vpack.c.b16 %v1427, %v1402
  %v1728 = vpack.c.b16 %v1428, %v1403
  %v1729 = vpack.c.b16 %v1429, %v1404
  %v1730 = vpack.c.b16 %v1430, %v1405
  %v1731 = vpack.c.b16 %v1456, %v1431
  %v1732 = vpack.c.b16 %v1457, %v1432
  %v1733 = vpack.c.b16 %v1458, %v1433
  %v1734 = vpack.c.b16 %v1459, %v1434
  %v1735 = vpack.c.b16 %v1460, %v1435
  %v1736 = vpack.c.b16 %v1461, %v1436
  %v1737 = vpack.c.b16 %v1462, %v1437
  %v1738 = vpack.c.b16 %v1463, %v1438
  %v1739 = vpack.c.b16 %v1464, %v1439
  %v1740 = vpack.c.b16 %v1465, %v1440
  %v1741 = vpack.c.b16 %v1466, %v1441
  %v1742 = vpack.c.b16 %v1467, %v1442
  %v1743 = vpack.c.b16 %v1468, %v1443
  %v1744 = vpack.c.b16 %v1469, %v1444
  %v1745 = vpack.c.b16 %v1470, %v1445
  %v1746 = vpack.c.b16 %v1471, %v1446
  %v1747 = vpack.c.b16 %v1472, %v1447
  %v1748 = vpack.c.b16 %v1473, %v1448
  %v1749 = vpack.c.b16 %v1474, %v1449
  %v1750 = vpack.c.b16 %v1475, %v1450
  %v1751 = vpack.c.b16 %v1476, %v1451
  %v1752 = vpack.c.b16 %v1477, %v1452
  %v1753 = vpack.c.b16 %v1478, %v1453
  %v1754 = vpack.c.b16 %v1479, %v1454
  %v1755 = vpack.c.b16 %v1480, %v1455
  %v1756 = vpack.c.b16 %v1506, %v1481
  %v1757 = vpack.c.b16 %v1507, %v1482
  %v1758 = vpack.c.b16 %v1508, %v1483
  %v1759 = vpack.c.b16 %v1509, %v1484
  %v1760 = vpack.c.b16 %v1510, %v1485
  %v1761 = vpack.c.b16 %v1511, %v1486
  %v1762 = vpack.c.b16 %v1512, %v1487
  %v1763 = vpack.c.b16 %v1513, %v1488
  %v1764 = vpack.c.b16 %v1514, %v1489
  %v1765 = vpack.c.b16 %v1515, %v1490
  %v1766 = vpack.c.b16 %v1516, %v1491
  %v1767 = vpack.c.b16 %v1517, %v1492
  %v1768 = vpack.c.b16 %v1518, %v1493
  %v1769 = vpack.c.b16 %v1519, %v1494
  %v1770 = vpack.c.b16 %v1520, %v1495
  %v1771 = vpack.c.b16 %v1521, %v1496
  %v1772 = vpack.c.b16 %v1522, %v1497
  %v1773 = vpack.c.b16 %v1523, %v1498
  %v1774 = vpack.c.b16 %v1524, %v1499
  %v1775 = vpack.c.b16 %v1525, %v1500
  %v1776 = vpack.c.b16 %v1526, %v1501
  %v1777 = vpack.c.b16 %v1527, %v1502
  %v1778 = vpack.c.b16 %v1528, %v1503
  %v1779 = vpack.c.b16 %v1529, %v1504
  %v1780 = vpack.c.b16 %v1530, %v1505
  %v1781 = vpack.c.b16 %v1556, %v1531
  %v1782 = vpack.c.b16 %v1557, %v1532
  %v1783 = vpack.c.b16 %v1558, %v1533
  %v1784 = vpack.c.b16 %v1559, %v1534
  %v1785 = vpack.c.b16 %v1560, %v1535
  %v1786 = vpack.c.b16 %v1561, %v1536
  %v1787 = vpack.c.b16 %v1562, %v1537
  %v1788 = vpack.c.b16 %v1563, %v1538
  %v1789 = vpack.c.b16 %v1564, %v1539
  %v1790 = vpack.c.b16 %v1565, %v1540
  %v1791 = vpack.c.b16 %v1566, %v1541
  %v1792 = vpack.c.b16 %v1567, %v1542
  %v1793 = vpack.c.b16 %v1568, %v1543
  %v1794 = vpack.c.b16 %v1569, %v1544
  %v1795 = vpack.c.b16 %v1570, %v1545
  %v1796 = vpack.c.b16 %v1571, %v1546
  %v1797 = vpack.c.b16 %v1572, %v1547
  %v1798 = vpack.c.b16 %v1573, %v1548
  %v1799 = vpack.c.b16 %v1574, %v1549
  %v1800 = vpack.c.b16 %v1575, %v1550
  %v1801 = vpack.c.b16 %v1576, %v1551
  %v1802 = vpack.c.b16 %v1577, %v1552
  %v1803 = vpack.c.b16 %v1578, %v1553
  %v1804 = vpack.c.b16 %v1579, %v1554
  %v1805 = vpack.c.b16 %v1580, %v1555
  %v1806 = vpack.c.b16 %v1606, %v1581
  %v1807 = vpack.c.b16 %v1607, %v1582
  %v1808 = vpack.c.b16 %v1608, %v1583
  %v1809 = vpack.c.b16 %v1609, %v1584
  %v1810 = vpack.c.b16 %v1610, %v1585
  %v1811 = vpack.c.b16 %v1611, %v1586
  %v1812 = vpack.c.b16 %v1612, %v1587
  %v1813 = vpack.c.b16 %v1613, %v1588
  %v1814 = vpack.c.b16 %v1614, %v1589
  %v1815 = vpack.c.b16 %v1615, %v1590
  %v1816 = vpack.c.b16 %v1616, %v1591
  %v1817 = vpack.c.b16 %v1617, %v1592
  %v1818 = vpack.c.b16 %v1618, %v1593
  %v1819 = vpack.c.b16 %v1619, %v1594
  %v1820 = vpack.c.b16 %v1620, %v1595
  %v1821 = vpack.c.b16 %v1621, %v1596
  %v1822 = vpack.c.b16 %v1622, %v1597
  %v1823 = vpack.c.b16 %v1623, %v1598
  %v1824 = vpack.c.b16 %v1624, %v1599
  %v1825 = vpack.c.b16 %v1625, %v1600
  %v1826 = vpack.c.b16 %v1626, %v1601
  %v1827 = vpack.c.b16 %v1627, %v1602
  %v1828 = vpack.c.b16 %v1628, %v1603
  %v1829 = vpack.c.b16 %v1629, %v1604
  %v1830 = vpack.c.b16 %v1630, %v1605
  %v2807 = vunpack.c.l.b16 %v229
  %v2808 = vunpack.c.h.b16 %v229
  %v2809 = vunpack.c.l.b16 %v230
  %v2810 = vunpack.c.h.b16 %v230
  %v2811 = vunpack.c.l.b16 %v231
  %v2812 = vunpack.c.h.b16 %v231
  %v2813 = vunpack.c.l.b16 %v232
  %v2814 = vunpack.c.h.b16 %v232
  %v2815 = vunpack.c.l.b16 %v233
  %v2816 = vunpack.c.h.b16 %v233
  %v2817 = vunpack.c.l.b16 %v234
  %v2818 = vunpack.c.h.b16 %v234
  %v2819 = vunpack.c.l.b16 %v235
  %v2820 = vunpack.c.h.b16 %v235
  %v2821 = vunpack.c.l.b16 %v236
  %v2822 = vunpack.c.h.b16 %v236
  %v2823 = vunpack.c.l.b16 %v237
  %v2824 = vunpack.c.h.b16 %v237
  %v2825 = vunpack.c.l.b16 %v238
  %v2826 = vunpack.c.h.b16 %v238
  %v2827 = vunpack.c.l.b16 %v239
  %v2828 = vunpack.c.h.b16 %v239
  %v2829 = vunpack.c.l.b16 %v240
  %v2830 = vunpack.c.h.b16 %v240
  %v2831 = vunpack.c.l.b16 %v241
  %v2832 = vunpack.c.h.b16 %v241
  %v2833 = vunpack.c.l.b16 %v242
  %v2834 = vunpack.c.h.b16 %v242
  %v2835 = vunpack.c.l.b16 %v243
  %v2836 = vunpack.c.h.b16 %v243
  %v2837 = vunpack.c.l.b16 %v244
  %v2838 = vunpack.c.h.b16 %v244
  %v2839 = vunpack.c.l.b16 %v245
  %v2840 = vunpack.c.h.b16 %v245
  %v2841 = vunpack.c.l.b16 %v246
  %v2842 = vunpack.c.h.b16 %v246
  %v2843 = vunpack.c.l.b16 %v247
  %v2844 = vunpack.c.h.b16 %v247
  %v2845 = vunpack.c.l.b16 %v248
  %v2846 = vunpack.c.h.b16 %v248
  %v2847 = vunpack.c.l.b16 %v249
  %v2848 = vunpack.c.h.b16 %v249
  %v2849 = vunpack.c.l.b16 %v250
  %v2850 = vunpack.c.h.b16 %v250
  %v2851 = vunpack.c.l.b16 %v251
  %v2852 = vunpack.c.h.b16 %v251
  %v2853 = vunpack.c.l.b16 %v252
  %v2854 = vunpack.c.h.b16 %v252
  %v2855 = vunpack.c.l.b16 %v253
  %v2856 = vunpack.c.h.b16 %v253
  %v2857 = vunpack.c.l.b16 %v254
  %v2858 = vunpack.c.h.b16 %v254
  %v2859 = vunpack.c.l.b16 %v255
  %v2860 = vunpack.c.h.b16 %v255
  %v2861 = vunpack.c.l.b16 %v256
  %v2862 = vunpack.c.h.b16 %v256
  %v2863 = vunpack.c.l.b16 %v257
  %v2864 = vunpack.c.h.b16 %v257
  %v2865 = vunpack.c.l.b16 %v258
  %v2866 = vunpack.c.h.b16 %v258
  %v2867 = vunpack.c.l.b16 %v259
  %v2868 = vunpack.c.h.b16 %v259
  %v2869 = vunpack.c.l.b16 %v260
  %v2870 = vunpack.c.h.b16 %v260
  %v2871 = vunpack.c.l.b16 %v261
  %v2872 = vunpack.c.h.b16 %v261
  %v2873 = vunpack.c.l.b16 %v262
  %v2874 = vunpack.c.h.b16 %v262
  %v2875 = vunpack.c.l.b16 %v263
  %v2876 = vunpack.c.h.b16 %v263
  %v2877 = vunpack.c.l.b16 %v264
  %v2878 = vunpack.c.h.b16 %v264
  %v2879 = vunpack.c.l.b16 %v265
  %v2880 = vunpack.c.h.b16 %v265
  %v2881 = vunpack.c.l.b16 %v266
  %v2882 = vunpack.c.h.b16 %v266
  %v2883 = vunpack.c.l.b16 %v267
  %v2884 = vunpack.c.h.b16 %v267
  %v2885 = vunpack.c.l.b16 %v268
  %v2886 = vunpack.c.h.b16 %v268
  %v2887 = vunpack.c.l.b16 %v269
  %v2888 = vunpack.c.h.b16 %v269
  %v2889 = vunpack.c.l.b16 %v270
  %v2890 = vunpack.c.h.b16 %v270
  %v2891 = vunpack.c.l.b16 %v271
  %v2892 = vunpack.c.h.b16 %v271
  %v2893 = vunpack.c.l.b16 %v272
  %v2894 = vunpack.c.h.b16 %v272
  %v2895 = vunpack.c.l.b16 %v273
  %v2896 = vunpack.c.h.b16 %v273
  %v2897 = vunpack.c.l.b16 %v274
  %v2898 = vunpack.c.h.b16 %v274
  %v2899 = vunpack.c.l.b16 %v275
  %v2900 = vunpack.c.h.b16 %v275
  %v2901 = vunpack.c.l.b16 %v276
  %v2902 = vunpack.c.h.b16 %v276
  %v2903 = vunpack.c.l.b16 %v277
  %v2904 = vunpack.c.h.b16 %v277
  %v2905 = vunpack.c.l.b16 %v278
  %v2906 = vunpack.c.h.b16 %v278
  %v2907 = vunpack.c.l.b16 %v279
  %v2908 = vunpack.c.h.b16 %v279
  %v2909 = vunpack.c.l.b16 %v280
  %v2910 = vunpack.c.h.b16 %v280
  %v2911 = vunpack.c.l.b16 %v281
  %v2912 = vunpack.c.h.b16 %v281
  %v2913 = vunpack.c.l.b16 %v282
  %v2914 = vunpack.c.h.b16 %v282
  %v2915 = vunpack.c.l.b16 %v283
  %v2916 = vunpack.c.h.b16 %v283
  %v2917 = vunpack.c.l.b16 %v284
  %v2918 = vunpack.c.h.b16 %v284
  %v2919 = vunpack.c.l.b16 %v285
  %v2920 = vunpack.c.h.b16 %v285
  %v2921 = vunpack.c.l.b16 %v286
  %v2922 = vunpack.c.h.b16 %v286
  %v2923 = vunpack.c.l.b16 %v287
  %v2924 = vunpack.c.h.b16 %v287
  %v2925 = vunpack.c.l.b16 %v288
  %v2926 = vunpack.c.h.b16 %v288
  %v2927 = vunpack.c.l.b16 %v289
  %v2928 = vunpack.c.h.b16 %v289
  %v2929 = vunpack.c.l.b16 %v290
  %v2930 = vunpack.c.h.b16 %v290
  %v2931 = vunpack.c.l.b16 %v291
  %v2932 = vunpack.c.h.b16 %v291
  %v2933 = vunpack.c.l.b16 %v292
  %v2934 = vunpack.c.h.b16 %v292
  %v2935 = vunpack.c.l.b16 %v293
  %v2936 = vunpack.c.h.b16 %v293
  %v2937 = vunpack.c.l.b16 %v294
  %v2938 = vunpack.c.h.b16 %v294
  %v2939 = vunpack.c.l.b16 %v295
  %v2940 = vunpack.c.h.b16 %v295
  %v2941 = vunpack.c.l.b16 %v296
  %v2942 = vunpack.c.h.b16 %v296
  %v2943 = vunpack.c.l.b16 %v297
  %v2944 = vunpack.c.h.b16 %v297
  %v2945 = vunpack.c.l.b16 %v298
  %v2946 = vunpack.c.h.b16 %v298
  %v2947 = vunpack.c.l.b16 %v299
  %v2948 = vunpack.c.h.b16 %v299
  %v2949 = vunpack.c.l.b16 %v300
  %v2950 = vunpack.c.h.b16 %v300
  %v2951 = vunpack.c.l.b16 %v301
  %v2952 = vunpack.c.h.b16 %v301
  %v2953 = vunpack.c.l.b16 %v302
  %v2954 = vunpack.c.h.b16 %v302
  %v2955 = vunpack.c.l.b16 %v303
  %v2956 = vunpack.c.h.b16 %v303
  %v2957 = vunpack.c.l.b16 %v304
  %v2958 = vunpack.c.h.b16 %v304
  %v2959 = vunpack.c.l.b16 %v305
  %v2960 = vunpack.c.h.b16 %v305
  %v2961 = vunpack.c.l.b16 %v306
  %v2962 = vunpack.c.h.b16 %v306
  %v2963 = vunpack.c.l.b16 %v307
  %v2964 = vunpack.c.h.b16 %v307
  %v2965 = vunpack.c.l.b16 %v308
  %v2966 = vunpack.c.h.b16 %v308
  %v2967 = vunpack.c.l.b16 %v309
  %v2968 = vunpack.c.h.b16 %v309
  %v2969 = vunpack.c.l.b16 %v310
  %v2970 = vunpack.c.h.b16 %v310
  %v2971 = vunpack.c.l.b16 %v311
  %v2972 = vunpack.c.h.b16 %v311
  %v2973 = vunpack.c.l.b16 %v312
  %v2974 = vunpack.c.h.b16 %v312
  %v2975 = vunpack.c.l.b16 %v313
  %v2976 = vunpack.c.h.b16 %v313
  %v2977 = vunpack.c.l.b16 %v314
  %v2978 = vunpack.c.h.b16 %v314
  %v2979 = vunpack.c.l.b16 %v315
  %v2980 = vunpack.c.h.b16 %v315
  %v2981 = vunpack.c.l.b16 %v316
  %v2982 = vunpack.c.h.b16 %v316
  %v2983 = vunpack.c.l.b16 %v317
  %v2984 = vunpack.c.h.b16 %v317
  %v2985 = vunpack.c.l.b16 %v318
  %v2986 = vunpack.c.h.b16 %v318
  %v2987 = vunpack.c.l.b16 %v319
  %v2988 = vunpack.c.h.b16 %v319
  %v2989 = vunpack.c.l.b16 %v320
  %v2990 = vunpack.c.h.b16 %v320
  %v2991 = vunpack.c.l.b16 %v321
  %v2992 = vunpack.c.h.b16 %v321
  %v2993 = vunpack.c.l.b16 %v322
  %v2994 = vunpack.c.h.b16 %v322
  %v2995 = vunpack.c.l.b16 %v323
  %v2996 = vunpack.c.h.b16 %v323
  %v2997 = vunpack.c.l.b16 %v324
  %v2998 = vunpack.c.h.b16 %v324
  %v2999 = vunpack.c.l.b16 %v325
  %v3000 = vunpack.c.h.b16 %v325
  %v3001 = vunpack.c.l.b16 %v326
  %v3002 = vunpack.c.h.b16 %v326
  %v3003 = vunpack.c.l.b16 %v327
  %v3004 = vunpack.c.h.b16 %v327
  %v3005 = vunpack.c.l.b16 %v328
  %v3006 = vunpack.c.h.b16 %v328
  %v3007 = vunpack.c.l.b16 %v329
  %v3008 = vunpack.c.h.b16 %v329
  %v3009 = vunpack.c.l.b16 %v330
  %v3010 = vunpack.c.h.b16 %v330
  %v3011 = vunpack.c.l.b16 %v331
  %v3012 = vunpack.c.h.b16 %v331
  %v3013 = vunpack.c.l.b16 %v332
  %v3014 = vunpack.c.h.b16 %v332
  %v3015 = vunpack.c.l.b16 %v333
  %v3016 = vunpack.c.h.b16 %v333
  %v3017 = vunpack.c.l.b16 %v334
  %v3018 = vunpack.c.h.b16 %v334
  %v3019 = vunpack.c.l.b16 %v335
  %v3020 = vunpack.c.h.b16 %v335
  %v3021 = vunpack.c.l.b16 %v336
  %v3022 = vunpack.c.h.b16 %v336
  %v3023 = vunpack.c.l.b16 %v337
  %v3024 = vunpack.c.h.b16 %v337
  %v3025 = vunpack.c.l.b16 %v338
  %v3026 = vunpack.c.h.b16 %v338
  %v3027 = vunpack.c.l.b16 %v339
  %v3028 = vunpack.c.h.b16 %v339
  %v3029 = vunpack.c.l.b16 %v340
  %v3030 = vunpack.c.h.b16 %v340
  %v3031 = vunpack.c.l.b16 %v341
  %v3032 = vunpack.c.h.b16 %v341
  %v3033 = vunpack.c.l.b16 %v342
  %v3034 = vunpack.c.h.b16 %v342
  %v3035 = vunpack.c.l.b16 %v343
  %v3036 = vunpack.c.h.b16 %v343
  %v3037 = vunpack.c.l.b16 %v344
  %v3038 = vunpack.c.h.b16 %v344
  %v3039 = vunpack.c.l.b16 %v345
  %v3040 = vunpack.c.h.b16 %v345
  %v3041 = vunpack.c.l.b16 %v346
  %v3042 = vunpack.c.h.b16 %v346
  %v3043 = vunpack.c.l.b16 %v347
  %v3044 = vunpack.c.h.b16 %v347
  %v3045 = vunpack.c.l.b16 %v348
  %v3046 = vunpack.c.h.b16 %v348
  %v3047 = vunpack.c.l.b16 %v349
  %v3048 = vunpack.c.h.b16 %v349
  %v3049 = vunpack.c.l.b16 %v350
  %v3050 = vunpack.c.h.b16 %v350
  %v3051 = vunpack.c.l.b16 %v351
  %v3052 = vunpack.c.h.b16 %v351
  %v3053 = vunpack.c.l.b16 %v352
  %v3054 = vunpack.c.h.b16 %v352
  %v3055 = vunpack.c.l.b16 %v353
  %v3056 = vunpack.c.h.b16 %v353
  %v3057 = vunpack.c.l.b16 %v354
  %v3058 = vunpack.c.h.b16 %v354
  %v3059 = vunpack.c.l.b16 %v355
  %v3060 = vunpack.c.h.b16 %v355
  %v3061 = vunpack.c.l.b16 %v356
  %v3062 = vunpack.c.h.b16 %v356
  %v3063 = vunpack.c.l.b16 %v357
  %v3064 = vunpack.c.h.b16 %v357
  %v3065 = vunpack.c.l.b16 %v358
  %v3066 = vunpack.c.h.b16 %v358
  %v3067 = vunpack.c.l.b16 %v359
  %v3068 = vunpack.c.h.b16 %v359
  %v3069 = vunpack.c.l.b16 %v360
  %v3070 = vunpack.c.h.b16 %v360
  %v3071 = vunpack.c.l.b16 %v361
  %v3072 = vunpack.c.h.b16 %v361
  %v3073 = vunpack.c.l.b16 %v362
  %v3074 = vunpack.c.h.b16 %v362
  %v3075 = vunpack.c.l.b16 %v363
  %v3076 = vunpack.c.h.b16 %v363
  %v3077 = vunpack.c.l.b16 %v364
  %v3078 = vunpack.c.h.b16 %v364
  %v3079 = vunpack.c.l.b16 %v365
  %v3080 = vunpack.c.h.b16 %v365
  %v3081 = vunpack.c.l.b16 %v366
  %v3082 = vunpack.c.h.b16 %v366
  %v3083 = vunpack.c.l.b16 %v367
  %v3084 = vunpack.c.h.b16 %v367
  %v3085 = vunpack.c.l.b16 %v368
  %v3086 = vunpack.c.h.b16 %v368
  %v3087 = vunpack.c.l.b16 %v369
  %v3088 = vunpack.c.h.b16 %v369
  %v3089 = vunpack.c.l.b16 %v370
  %v3090 = vunpack.c.h.b16 %v370
  %v3091 = vunpack.c.l.b16 %v371
  %v3092 = vunpack.c.h.b16 %v371
  %v3093 = vunpack.c.l.b16 %v372
  %v3094 = vunpack.c.h.b16 %v372
  %v3095 = vunpack.c.l.b16 %v373
  %v3096 = vunpack.c.h.b16 %v373
  %v3097 = vunpack.c.l.b16 %v374
  %v3098 = vunpack.c.h.b16 %v374
  %v3099 = vunpack.c.l.b16 %v375
  %v3100 = vunpack.c.h.b16 %v375
  %v3101 = vunpack.c.l.b16 %v376
  %v3102 = vunpack.c.h.b16 %v376
  %v3103 = vunpack.c.l.b16 %v377
  %v3104 = vunpack.c.h.b16 %v377
  %v3105 = vunpack.c.l.b16 %v378
  %v3106 = vunpack.c.h.b16 %v378
  %v3107 = vunpack.c.l.b16 %v379
  %v3108 = vunpack.c.h.b16 %v379
  %v3109 = vunpack.c.l.b16 %v380
  %v3110 = vunpack.c.h.b16 %v380
  %v3111 = vunpack.c.l.b16 %v381
  %v3112 = vunpack.c.h.b16 %v381
  %v3113 = vunpack.c.l.b16 %v382
  %v3114 = vunpack.c.h.b16 %v382
  %v3115 = vunpack.c.l.b16 %v383
  %v3116 = vunpack.c.h.b16 %v383
  %v3117 = vunpack.c.l.b16 %v384
  %v3118 = vunpack.c.h.b16 %v384
  %v3119 = vunpack.c.l.b16 %v385
  %v3120 = vunpack.c.h.b16 %v385
  %v3121 = vunpack.c.l.b16 %v386
  %v3122 = vunpack.c.h.b16 %v386
  %v3123 = vunpack.c.l.b16 %v387
  %v3124 = vunpack.c.h.b16 %v387
  %v3125 = vunpack.c.l.b16 %v388
  %v3126 = vunpack.c.h.b16 %v388
  %v3127 = vunpack.c.l.b16 %v389
  %v3128 = vunpack.c.h.b16 %v389
  %v3129 = vunpack.c.l.b16 %v390
  %v3130 = vunpack.c.h.b16 %v390
  %v3131 = vunpack.c.l.b16 %v391
  %v3132 = vunpack.c.h.b16 %v391
  %v3133 = vunpack.c.l.b16 %v392
  %v3134 = vunpack.c.h.b16 %v392
  %v3135 = vunpack.c.l.b16 %v393
  %v3136 = vunpack.c.h.b16 %v393
  %v3137 = vunpack.c.l.b16 %v394
  %v3138 = vunpack.c.h.b16 %v394
  %v3139 = vunpack.c.l.b16 %v395
  %v3140 = vunpack.c.h.b16 %v395
  %v3141 = vunpack.c.l.b16 %v396
  %v3142 = vunpack.c.h.b16 %v396
  %v3143 = vunpack.c.l.b16 %v397
  %v3144 = vunpack.c.h.b16 %v397
  %v3145 = vunpack.c.l.b16 %v398
  %v3146 = vunpack.c.h.b16 %v398
  %v3147 = vunpack.c.l.b16 %v399
  %v3148 = vunpack.c.h.b16 %v399
  %v3149 = vunpack.c.l.b16 %v400
  %v3150 = vunpack.c.h.b16 %v400
  %v3151 = vunpack.c.l.b16 %v401
  %v3152 = vunpack.c.h.b16 %v401
  %v3153 = vunpack.c.l.b16 %v402
  %v3154 = vunpack.c.h.b16 %v402
  %v3155 = vunpack.c.l.b16 %v403
  %v3156 = vunpack.c.h.b16 %v403
  %v3157 = vunpack.c.l.b16 %v404
  %v3158 = vunpack.c.h.b16 %v404
  %v3159 = vunpack.c.l.b16 %v405
  %v3160 = vunpack.c.h.b16 %v405
  %v3161 = vunpack.c.l.b16 %v406
  %v3162 = vunpack.c.h.b16 %v406
  %v3163 = vunpack.c.l.b16 %v407
  %v3164 = vunpack.c.h.b16 %v407
  %v3165 = vunpack.c.l.b16 %v408
  %v3166 = vunpack.c.h.b16 %v408
  %v3167 = vunpack.c.l.b16 %v409
  %v3168 = vunpack.c.h.b16 %v409
  %v3169 = vunpack.c.l.b16 %v410
  %v3170 = vunpack.c.h.b16 %v410
  %v3171 = vunpack.c.l.b16 %v411
  %v3172 = vunpack.c.h.b16 %v411
  %v3173 = vunpack.c.l.b16 %v412
  %v3174 = vunpack.c.h.b16 %v412
  %v3175 = vunpack.c.l.b16 %v413
  %v3176 = vunpack.c.h.b16 %v413
  %v3177 = vunpack.c.l.b16 %v414
  %v3178 = vunpack.c.h.b16 %v414
  %v3179 = vunpack.c.l.b16 %v415
  %v3180 = vunpack.c.h.b16 %v415
  %v3181 = vunpack.c.l.b16 %v416
  %v3182 = vunpack.c.h.b16 %v416
  %v3183 = vunpack.c.l.b16 %v417
  %v3184 = vunpack.c.h.b16 %v417
  %v3185 = vunpack.c.l.b16 %v418
  %v3186 = vunpack.c.h.b16 %v418
  %v3187 = vunpack.c.l.b16 %v419
  %v3188 = vunpack.c.h.b16 %v419
  %v3189 = vunpack.c.l.b16 %v420
  %v3190 = vunpack.c.h.b16 %v420
  %v3191 = vunpack.c.l.b16 %v421
  %v3192 = vunpack.c.h.b16 %v421
  %v3193 = vunpack.c.l.b16 %v422
  %v3194 = vunpack.c.h.b16 %v422
  %v3195 = vunpack.c.l.b16 %v423
  %v3196 = vunpack.c.h.b16 %v423
  %v3197 = vunpack.c.l.b16 %v424
  %v3198 = vunpack.c.h.b16 %v424
  %v3199 = vunpack.c.l.b16 %v425
  %v3200 = vunpack.c.h.b16 %v425
  %v3201 = vunpack.c.l.b16 %v426
  %v3202 = vunpack.c.h.b16 %v426
  %v3203 = vunpack.c.l.b16 %v427
  %v3204 = vunpack.c.h.b16 %v427
  %v3205 = vunpack.c.l.b16 %v428
  %v3206 = vunpack.c.h.b16 %v428
  %v3207 = vunpack.c.l.b16 %v429
  %v3208 = vunpack.c.h.b16 %v429
  %v3209 = vunpack.c.l.b16 %v430
  %v3210 = vunpack.c.h.b16 %v430
  %v3211 = vunpack.c.l.b16 %v431
  %v3212 = vunpack.c.h.b16 %v431
  %v3213 = vunpack.c.l.b16 %v432
  %v3214 = vunpack.c.h.b16 %v432
  %v3215 = vunpack.c.l.b16 %v433
  %v3216 = vunpack.c.h.b16 %v433
  %v3217 = vunpack.c.l.b16 %v434
  %v3218 = vunpack.c.h.b16 %v434
  %v3219 = vunpack.c.l.b16 %v435
  %v3220 = vunpack.c.h.b16 %v435
  %v3221 = vunpack.c.l.b16 %v436
  %v3222 = vunpack.c.h.b16 %v436
  %v3223 = vunpack.c.l.b16 %v437
  %v3224 = vunpack.c.h.b16 %v437
  %v3225 = vunpack.c.l.b16 %v438
  %v3226 = vunpack.c.h.b16 %v438
  %v3227 = vunpack.c.l.b16 %v439
  %v3228 = vunpack.c.h.b16 %v439
  %v3229 = vunpack.c.l.b16 %v440
  %v3230 = vunpack.c.h.b16 %v440
  %v3231 = vunpack.c.l.b16 %v441
  %v3232 = vunpack.c.h.b16 %v441
  %v3233 = vunpack.c.l.b16 %v442
  %v3234 = vunpack.c.h.b16 %v442
  %v3235 = vunpack.c.l.b16 %v443
  %v3236 = vunpack.c.h.b16 %v443
  %v3237 = vunpack.c.l.b16 %v444
  %v3238 = vunpack.c.h.b16 %v444
  %v3239 = vunpack.c.l.b16 %v445
  %v3240 = vunpack.c.h.b16 %v445
  %v3241 = vunpack.c.l.b16 %v446
  %v3242 = vunpack.c.h.b16 %v446
  %v3243 = vunpack.c.l.b16 %v447
  %v3244 = vunpack.c.h.b16 %v447
  %v3245 = vunpack.c.l.b16 %v448
  %v3246 = vunpack.c.h.b16 %v448
  %v3247 = vunpack.c.l.b16 %v449
  %v3248 = vunpack.c.h.b16 %v449
  %v3249 = vunpack.c.l.b16 %v450
  %v3250 = vunpack.c.h.b16 %v450
  %v3251 = vunpack.c.l.b16 %v451
  %v3252 = vunpack.c.h.b16 %v451
  %v3253 = vunpack.c.l.b16 %v452
  %v3254 = vunpack.c.h.b16 %v452
  %v3255 = vunpack.c.l.b16 %v453
  %v3256 = vunpack.c.h.b16 %v453
  %v3257 = vunpack.c.l.b16 %v454
  %v3258 = vunpack.c.h.b16 %v454
  %v3259 = vunpack.c.l.b16 %v455
  %v3260 = vunpack.c.h.b16 %v455
  %v3261 = vunpack.c.l.b16 %v456
  %v3262 = vunpack.c.h.b16 %v456
  %v3263 = vunpack.c.l.b16 %v457
  %v3264 = vunpack.c.h.b16 %v457
  %v3265 = vunpack.c.l.b16 %v458
  %v3266 = vunpack.c.h.b16 %v458
  %v3267 = vunpack.c.l.b16 %v459
  %v3268 = vunpack.c.h.b16 %v459
  %v3269 = vunpack.c.l.b16 %v460
  %v3270 = vunpack.c.h.b16 %v460
  %v3271 = vunpack.c.l.b16 %v461
  %v3272 = vunpack.c.h.b16 %v461
  %v3273 = vunpack.c.l.b16 %v462
  %v3274 = vunpack.c.h.b16 %v462
  %v3275 = vunpack.c.l.b16 %v463
  %v3276 = vunpack.c.h.b16 %v463
  %v3277 = vunpack.c.l.b16 %v464
  %v3278 = vunpack.c.h.b16 %v464
  %v3279 = vunpack.c.l.b16 %v465
  %v3280 = vunpack.c.h.b16 %v465
  %v3281 = vunpack.c.l.b16 %v466
  %v3282 = vunpack.c.h.b16 %v466
  %v3283 = vunpack.c.l.b16 %v467
  %v3284 = vunpack.c.h.b16 %v467
  %v3285 = vunpack.c.l.b16 %v468
  %v3286 = vunpack.c.h.b16 %v468
  %v3287 = vunpack.c.l.b16 %v469
  %v3288 = vunpack.c.h.b16 %v469
  %v3289 = vunpack.c.l.b16 %v470
  %v3290 = vunpack.c.h.b16 %v470
  %v3291 = vunpack.c.l.b16 %v471
  %v3292 = vunpack.c.h.b16 %v471
  %v3293 = vunpack.c.l.b16 %v472
  %v3294 = vunpack.c.h.b16 %v472
  %v3295 = vunpack.c.l.b16 %v473
  %v3296 = vunpack.c.h.b16 %v473
  %v3297 = vunpack.c.l.b16 %v474
  %v3298 = vunpack.c.h.b16 %v474
  %v3299 = vunpack.c.l.b16 %v475
  %v3300 = vunpack.c.h.b16 %v475
  %v3301 = vunpack.c.l.b16 %v476
  %v3302 = vunpack.c.h.b16 %v476
  %v3303 = vunpack.c.l.b16 %v477
  %v3304 = vunpack.c.h.b16 %v477
  %v3305 = vunpack.c.l.b16 %v478
  %v3306 = vunpack.c.h.b16 %v478
  %v3307 = vunpack.c.l.b16 %v479
  %v3308 = vunpack.c.h.b16 %v479
  %v3309 = vunpack.c.l.b16 %v480
  %v3310 = vunpack.c.h.b16 %v480
  %v3311 = vunpack.c.l.b16 %v481
  %v3312 = vunpack.c.h.b16 %v481
  %v3313 = vunpack.c.l.b16 %v482
  %v3314 = vunpack.c.h.b16 %v482
  %v3315 = vunpack.c.l.b16 %v483
  %v3316 = vunpack.c.h.b16 %v483
  %v3317 = vunpack.c.l.b16 %v484
  %v3318 = vunpack.c.h.b16 %v484
  %v3319 = vunpack.c.l.b16 %v485
  %v3320 = vunpack.c.h.b16 %v485
  %v3321 = vunpack.c.l.b16 %v486
  %v3322 = vunpack.c.h.b16 %v486
  %v3323 = vunpack.c.l.b16 %v487
  %v3324 = vunpack.c.h.b16 %v487
  %v3325 = vunpack.c.l.b16 %v488
  %v3326 = vunpack.c.h.b16 %v488
  %v3327 = vunpack.c.l.b16 %v489
  %v3328 = vunpack.c.h.b16 %v489
  %v3329 = vunpack.c.l.b16 %v490
  %v3330 = vunpack.c.h.b16 %v490
  %v3331 = vunpack.c.l.b16 %v491
  %v3332 = vunpack.c.h.b16 %v491
  %v3333 = vunpack.c.l.b16 %v492
  %v3334 = vunpack.c.h.b16 %v492
  %v3335 = vunpack.c.l.b16 %v493
  %v3336 = vunpack.c.h.b16 %v493
  %v3337 = vunpack.c.l.b16 %v494
  %v3338 = vunpack.c.h.b16 %v494
  %v3339 = vunpack.c.l.b16 %v495
  %v3340 = vunpack.c.h.b16 %v495
  %v3341 = vunpack.c.l.b16 %v496
  %v3342 = vunpack.c.h.b16 %v496
  %v3343 = vunpack.c.l.b16 %v497
  %v3344 = vunpack.c.h.b16 %v497
  %v3345 = vunpack.c.l.b16 %v498
  %v3346 = vunpack.c.h.b16 %v498
  %v3347 = vunpack.c.l.b16 %v499
  %v3348 = vunpack.c.h.b16 %v499
  %v3349 = vunpack.c.l.b16 %v500
  %v3350 = vunpack.c.h.b16 %v500
  %v3351 = vunpack.c.l.b16 %v501
  %v3352 = vunpack.c.h.b16 %v501
  %v3353 = vunpack.c.l.b16 %v502
  %v3354 = vunpack.c.h.b16 %v502
  %v3355 = vunpack.c.l.b16 %v503
  %v3356 = vunpack.c.h.b16 %v503
  %v3357 = vunpack.c.l.b16 %v504
  %v3358 = vunpack.c.h.b16 %v504
  %v3359 = vunpack.c.l.b16 %v505
  %v3360 = vunpack.c.h.b16 %v505
  %v3361 = vunpack.c.l.b16 %v506
  %v3362 = vunpack.c.h.b16 %v506
  %v3363 = vunpack.c.l.b16 %v507
  %v3364 = vunpack.c.h.b16 %v507
  %v3365 = vunpack.c.l.b16 %v508
  %v3366 = vunpack.c.h.b16 %v508
  %v3367 = vunpack.c.l.b16 %v509
  %v3368 = vunpack.c.h.b16 %v509
  %v3369 = vunpack.c.l.b16 %v510
  %v3370 = vunpack.c.h.b16 %v510
  %v3371 = vunpack.c.l.b16 %v511
  %v3372 = vunpack.c.h.b16 %v511
  %v3373 = vunpack.c.l.b16 %v512
  %v3374 = vunpack.c.h.b16 %v512
  %v3375 = vunpack.c.l.b16 %v513
  %v3376 = vunpack.c.h.b16 %v513
  %v3377 = vunpack.c.l.b16 %v514
  %v3378 = vunpack.c.h.b16 %v514
  %v3379 = vunpack.c.l.b16 %v515
  %v3380 = vunpack.c.h.b16 %v515
  %v3381 = vunpack.c.l.b16 %v516
  %v3382 = vunpack.c.h.b16 %v516
  %v3383 = vunpack.c.l.b16 %v517
  %v3384 = vunpack.c.h.b16 %v517
  %v3385 = vunpack.c.l.b16 %v518
  %v3386 = vunpack.c.h.b16 %v518
  %v3387 = vunpack.c.l.b16 %v519
  %v3388 = vunpack.c.h.b16 %v519
  %v3389 = vunpack.c.l.b16 %v520
  %v3390 = vunpack.c.h.b16 %v520
  %v3391 = vunpack.c.l.b16 %v521
  %v3392 = vunpack.c.h.b16 %v521
  %v3393 = vunpack.c.l.b16 %v522
  %v3394 = vunpack.c.h.b16 %v522
  %v3395 = vunpack.c.l.b16 %v523
  %v3396 = vunpack.c.h.b16 %v523
  %v3397 = vunpack.c.l.b16 %v524
  %v3398 = vunpack.c.h.b16 %v524
  %v3399 = vunpack.c.l.b16 %v525
  %v3400 = vunpack.c.h.b16 %v525
  %v3401 = vunpack.c.l.b16 %v526
  %v3402 = vunpack.c.h.b16 %v526
  %v3403 = vunpack.c.l.b16 %v527
  %v3404 = vunpack.c.h.b16 %v527
  %v3405 = vunpack.c.l.b16 %v528
  %v3406 = vunpack.c.h.b16 %v528
  %v3407 = vunpack.c.l.b16 %v529
  %v3408 = vunpack.c.h.b16 %v529
  %v3409 = vunpack.c.l.b16 %v530
  %v3410 = vunpack.c.h.b16 %v530
  %v3411 = vunpack.c.l.b16 %v531
  %v3412 = vunpack.c.h.b16 %v531
  %v3413 = vunpack.c.l.b16 %v532
  %v3414 = vunpack.c.h.b16 %v532
  %v3415 = vunpack.c.l.b16 %v533
  %v3416 = vunpack.c.h.b16 %v533
  %v3417 = vunpack.c.l.b16 %v534
  %v3418 = vunpack.c.h.b16 %v534
  %v3419 = vunpack.c.l.b16 %v535
  %v3420 = vunpack.c.h.b16 %v535
  %v3421 = vunpack.c.l.b16 %v536
  %v3422 = vunpack.c.h.b16 %v536
  %v3423 = vunpack.c.l.b16 %v537
  %v3424 = vunpack.c.h.b16 %v537
  %v3425 = vunpack.c.l.b16 %v538
  %v3426 = vunpack.c.h.b16 %v538
  %v3427 = vunpack.c.l.b16 %v539
  %v3428 = vunpack.c.h.b16 %v539
  %v3429 = vunpack.c.l.b16 %v540
  %v3430 = vunpack.c.h.b16 %v540
  %v3431 = vunpack.c.l.b16 %v541
  %v3432 = vunpack.c.h.b16 %v541
  %v3433 = vunpack.c.l.b16 %v542
  %v3434 = vunpack.c.h.b16 %v542
  %v3435 = vunpack.c.l.b16 %v543
  %v3436 = vunpack.c.h.b16 %v543
  %v3437 = vunpack.c.l.b16 %v544
  %v3438 = vunpack.c.h.b16 %v544
  %v3439 = vunpack.c.l.b16 %v545
  %v3440 = vunpack.c.h.b16 %v545
  %v3441 = vunpack.c.l.b16 %v546
  %v3442 = vunpack.c.h.b16 %v546
  %v3443 = vunpack.c.l.b16 %v547
  %v3444 = vunpack.c.h.b16 %v547
  %v3445 = vunpack.c.l.b16 %v548
  %v3446 = vunpack.c.h.b16 %v548
  %v3447 = vunpack.c.l.b16 %v549
  %v3448 = vunpack.c.h.b16 %v549
  %v3449 = vunpack.c.l.b16 %v550
  %v3450 = vunpack.c.h.b16 %v550
  %v3451 = vunpack.c.l.b16 %v551
  %v3452 = vunpack.c.h.b16 %v551
  %v3453 = vunpack.c.l.b16 %v552
  %v3454 = vunpack.c.h.b16 %v552
  %v3455 = vunpack.c.l.b16 %v553
  %v3456 = vunpack.c.h.b16 %v553
  %v3457 = vunpack.c.l.b16 %v554
  %v3458 = vunpack.c.h.b16 %v554
  %v3459 = vunpack.c.l.b16 %v555
  %v3460 = vunpack.c.h.b16 %v555
  %v3461 = vunpack.c.l.b16 %v556
  %v3462 = vunpack.c.h.b16 %v556
  %v3463 = vunpack.c.l.b16 %v557
  %v3464 = vunpack.c.h.b16 %v557
  %v3465 = vunpack.c.l.b16 %v558
  %v3466 = vunpack.c.h.b16 %v558
  %v3467 = vunpack.c.l.b16 %v559
  %v3468 = vunpack.c.h.b16 %v559
  %v3469 = vunpack.c.l.b16 %v560
  %v3470 = vunpack.c.h.b16 %v560
  %v3471 = vunpack.c.l.b16 %v561
  %v3472 = vunpack.c.h.b16 %v561
  %v3473 = vunpack.c.l.b16 %v562
  %v3474 = vunpack.c.h.b16 %v562
  %v3475 = vunpack.c.l.b16 %v563
  %v3476 = vunpack.c.h.b16 %v563
  %v3477 = vunpack.c.l.b16 %v564
  %v3478 = vunpack.c.h.b16 %v564
  %v3479 = vunpack.c.l.b16 %v565
  %v3480 = vunpack.c.h.b16 %v565
  %v3481 = vunpack.c.l.b16 %v566
  %v3482 = vunpack.c.h.b16 %v566
  %v3483 = vunpack.c.l.b16 %v567
  %v3484 = vunpack.c.h.b16 %v567
  %v3485 = vunpack.c.l.b16 %v568
  %v3486 = vunpack.c.h.b16 %v568
  %v3487 = vunpack.c.l.b16 %v569
  %v3488 = vunpack.c.h.b16 %v569
  %v3489 = vunpack.c.l.b16 %v570
  %v3490 = vunpack.c.h.b16 %v570
  %v3491 = vunpack.c.l.b16 %v571
  %v3492 = vunpack.c.h.b16 %v571
  %v3493 = vunpack.c.l.b16 %v572
  %v3494 = vunpack.c.h.b16 %v572
  %v3495 = vunpack.c.l.b16 %v573
  %v3496 = vunpack.c.h.b16 %v573
  %v3497 = vunpack.c.l.b16 %v574
  %v3498 = vunpack.c.h.b16 %v574
  %v3499 = vunpack.c.l.b16 %v575
  %v3500 = vunpack.c.h.b16 %v575
  %v3501 = vunpack.c.l.b16 %v576
  %v3502 = vunpack.c.h.b16 %v576
  %v3503 = vunpack.c.l.b16 %v577
  %v3504 = vunpack.c.h.b16 %v577
  %v3505 = vunpack.c.l.b16 %v578
  %v3506 = vunpack.c.h.b16 %v578
  %v3507 = vunpack.c.l.b16 %v579
  %v3508 = vunpack.c.h.b16 %v579
  %v3509 = vunpack.c.l.b16 %v580
  %v3510 = vunpack.c.h.b16 %v580
  %v3511 = vunpack.c.l.b16 %v581
  %v3512 = vunpack.c.h.b16 %v581
  %v3513 = vunpack.c.l.b16 %v582
  %v3514 = vunpack.c.h.b16 %v582
  %v3515 = vunpack.c.l.b16 %v583
  %v3516 = vunpack.c.h.b16 %v583
  %v3517 = vunpack.c.l.b16 %v584
  %v3518 = vunpack.c.h.b16 %v584
  %v3519 = vunpack.c.l.b16 %v585
  %v3520 = vunpack.c.h.b16 %v585
  %v3521 = vunpack.c.l.b16 %v586
  %v3522 = vunpack.c.h.b16 %v586
  %v3523 = vunpack.c.l.b16 %v587
  %v3524 = vunpack.c.h.b16 %v587
  %v3525 = vunpack.c.l.b16 %v588
  %v3526 = vunpack.c.h.b16 %v588
  %v3527 = vunpack.c.l.b16 %v589
  %v3528 = vunpack.c.h.b16 %v589
  %v3529 = vunpack.c.l.b16 %v590
  %v3530 = vunpack.c.h.b16 %v590
  %v3531 = vunpack.c.l.b16 %v591
  %v3532 = vunpack.c.h.b16 %v591
  %v3533 = vunpack.c.l.b16 %v592
  %v3534 = vunpack.c.h.b16 %v592
  %v3535 = vunpack.c.l.b16 %v593
  %v3536 = vunpack.c.h.b16 %v593
  %v3537 = vunpack.c.l.b16 %v594
  %v3538 = vunpack.c.h.b16 %v594
  %v3539 = vunpack.c.l.b16 %v595
  %v3540 = vunpack.c.h.b16 %v595
  %v3541 = vunpack.c.l.b16 %v596
  %v3542 = vunpack.c.h.b16 %v596
  %v3543 = vunpack.c.l.b16 %v597
  %v3544 = vunpack.c.h.b16 %v597
  %v3545 = vunpack.c.l.b16 %v598
  %v3546 = vunpack.c.h.b16 %v598
  %v3547 = vunpack.c.l.b16 %v599
  %v3548 = vunpack.c.h.b16 %v599
  %v3549 = vunpack.c.l.b16 %v600
  %v3550 = vunpack.c.h.b16 %v600
  %v3551 = vunpack.c.l.b16 %v601
  %v3552 = vunpack.c.h.b16 %v601
  %v3553 = vunpack.c.l.b16 %v602
  %v3554 = vunpack.c.h.b16 %v602
  %v3555 = vunpack.c.l.b16 %v603
  %v3556 = vunpack.c.h.b16 %v603
  %v3557 = vunpack.c.l.b16 %v604
  %v3558 = vunpack.c.h.b16 %v604
  %v3559 = vunpack.c.l.b16 %v605
  %v3560 = vunpack.c.h.b16 %v605
  %v3561 = vunpack.c.l.b16 %v606
  %v3562 = vunpack.c.h.b16 %v606
  %v3563 = vunpack.c.l.b16 %v607
  %v3564 = vunpack.c.h.b16 %v607
  %v3565 = vunpack.c.l.b16 %v608
  %v3566 = vunpack.c.h.b16 %v608
  %v3567 = vunpack.c.l.b16 %v609
  %v3568 = vunpack.c.h.b16 %v609
  %v3569 = vunpack.c.l.b16 %v610
  %v3570 = vunpack.c.h.b16 %v610
  %v3571 = vunpack.c.l.b16 %v611
  %v3572 = vunpack.c.h.b16 %v611
  %v3573 = vunpack.c.l.b16 %v612
  %v3574 = vunpack.c.h.b16 %v612
  %v3575 = vunpack.c.l.b16 %v613
  %v3576 = vunpack.c.h.b16 %v613
  %v3577 = vunpack.c.l.b16 %v614
  %v3578 = vunpack.c.h.b16 %v614
  %v3579 = vunpack.c.l.b16 %v615
  %v3580 = vunpack.c.h.b16 %v615
  %v3581 = vunpack.c.l.b16 %v616
  %v3582 = vunpack.c.h.b16 %v616
  %v3583 = vunpack.c.l.b16 %v617
  %v3584 = vunpack.c.h.b16 %v617
  %v3585 = vunpack.c.l.b16 %v618
  %v3586 = vunpack.c.h.b16 %v618
  %v3587 = vunpack.c.l.b16 %v619
  %v3588 = vunpack.c.h.b16 %v619
  %v3589 = vunpack.c.l.b16 %v620
  %v3590 = vunpack.c.h.b16 %v620
  %v3591 = vunpack.c.l.b16 %v621
  %v3592 = vunpack.c.h.b16 %v621
  %v3593 = vunpack.c.l.b16 %v622
  %v3594 = vunpack.c.h.b16 %v622
  %v3595 = vunpack.c.l.b16 %v623
  %v3596 = vunpack.c.h.b16 %v623
  %v3597 = vunpack.c.l.b16 %v624
  %v3598 = vunpack.c.h.b16 %v624
  %v3599 = vunpack.c.l.b16 %v625
  %v3600 = vunpack.c.h.b16 %v625
  %v3601 = vunpack.c.l.b16 %v626
  %v3602 = vunpack.c.h.b16 %v626
  %v3603 = vunpack.c.l.b16 %v627
  %v3604 = vunpack.c.h.b16 %v627
  %v3605 = vunpack.c.l.b16 %v628
  %v3606 = vunpack.c.h.b16 %v628
  %v3607 = vunpack.c.l.b16 %v629
  %v3608 = vunpack.c.h.b16 %v629
  %v3609 = vunpack.c.l.b16 %v630
  %v3610 = vunpack.c.h.b16 %v630
  %v3611 = vunpack.c.l.b16 %v631
  %v3612 = vunpack.c.h.b16 %v631
  %v3613 = vunpack.c.l.b16 %v632
  %v3614 = vunpack.c.h.b16 %v632
  %v3615 = vunpack.c.l.b16 %v633
  %v3616 = vunpack.c.h.b16 %v633
  %v3617 = vunpack.c.l.b16 %v634
  %v3618 = vunpack.c.h.b16 %v634
  %v3619 = vunpack.c.l.b16 %v635
  %v3620 = vunpack.c.h.b16 %v635
  %v3621 = vunpack.c.l.b16 %v636
  %v3622 = vunpack.c.h.b16 %v636
  %v3623 = vunpack.c.l.b16 %v637
  %v3624 = vunpack.c.h.b16 %v637
  %v3625 = vunpack.c.l.b16 %v638
  %v3626 = vunpack.c.h.b16 %v638
  %v3627 = vunpack.c.l.b16 %v639
  %v3628 = vunpack.c.h.b16 %v639
  %v3629 = vunpack.c.l.b16 %v640
  %v3630 = vunpack.c.h.b16 %v640
  %v3631 = vunpack.c.l.b16 %v641
  %v3632 = vunpack.c.h.b16 %v641
  %v3633 = vunpack.c.l.b16 %v642
  %v3634 = vunpack.c.h.b16 %v642
  %v3635 = vunpack.c.l.b16 %v643
  %v3636 = vunpack.c.h.b16 %v643
  %v3637 = vunpack.c.l.b16 %v644
  %v3638 = vunpack.c.h.b16 %v644
  %v3639 = vunpack.c.l.b16 %v645
  %v3640 = vunpack.c.h.b16 %v645
  %v3641 = vunpack.c.l.b16 %v646
  %v3642 = vunpack.c.h.b16 %v646
  %v3643 = vunpack.c.l.b16 %v647
  %v3644 = vunpack.c.h.b16 %v647
  %v3645 = vunpack.c.l.b16 %v648
  %v3646 = vunpack.c.h.b16 %v648
  %v3647 = vunpack.c.l.b16 %v649
  %v3648 = vunpack.c.h.b16 %v649
  %v3649 = vunpack.c.l.b16 %v650
  %v3650 = vunpack.c.h.b16 %v650
  %v3651 = vunpack.c.l.b16 %v651
  %v3652 = vunpack.c.h.b16 %v651
  %v3653 = vunpack.c.l.b16 %v652
  %v3654 = vunpack.c.h.b16 %v652
  %v3655 = vunpack.c.l.b16 %v653
  %v3656 = vunpack.c.h.b16 %v653
  %v3657 = vunpack.c.l.b16 %v654
  %v3658 = vunpack.c.h.b16 %v654
  %v3659 = vunpack.c.l.b16 %v655
  %v3660 = vunpack.c.h.b16 %v655
  %v3661 = vunpack.c.l.b16 %v656
  %v3662 = vunpack.c.h.b16 %v656
  %v3663 = vunpack.c.l.b16 %v657
  %v3664 = vunpack.c.h.b16 %v657
  %v3665 = vunpack.c.l.b16 %v658
  %v3666 = vunpack.c.h.b16 %v658
  %v3667 = vunpack.c.l.b16 %v659
  %v3668 = vunpack.c.h.b16 %v659
  %v3669 = vunpack.c.l.b16 %v660
  %v3670 = vunpack.c.h.b16 %v660
  %v3671 = vunpack.c.l.b16 %v661
  %v3672 = vunpack.c.h.b16 %v661
  %v3673 = vunpack.c.l.b16 %v662
  %v3674 = vunpack.c.h.b16 %v662
  %v3675 = vunpack.c.l.b16 %v663
  %v3676 = vunpack.c.h.b16 %v663
  %v3677 = vunpack.c.l.b16 %v664
  %v3678 = vunpack.c.h.b16 %v664
  %v3679 = vunpack.c.l.b16 %v665
  %v3680 = vunpack.c.h.b16 %v665
  %v3681 = vunpack.c.l.b16 %v666
  %v3682 = vunpack.c.h.b16 %v666
  %v3683 = vunpack.c.l.b16 %v667
  %v3684 = vunpack.c.h.b16 %v667
  %v3685 = vunpack.c.l.b16 %v668
  %v3686 = vunpack.c.h.b16 %v668
  %v3687 = vunpack.c.l.b16 %v669
  %v3688 = vunpack.c.h.b16 %v669
  %v3689 = vunpack.c.l.b16 %v670
  %v3690 = vunpack.c.h.b16 %v670
  %v3691 = vunpack.c.l.b16 %v671
  %v3692 = vunpack.c.h.b16 %v671
  %v3693 = vunpack.c.l.b16 %v672
  %v3694 = vunpack.c.h.b16 %v672
  %v3695 = vunpack.c.l.b16 %v673
  %v3696 = vunpack.c.h.b16 %v673
  %v3697 = vunpack.c.l.b16 %v674
  %v3698 = vunpack.c.h.b16 %v674
  %v3699 = vunpack.c.l.b16 %v675
  %v3700 = vunpack.c.h.b16 %v675
  %v3701 = vunpack.c.l.b16 %v676
  %v3702 = vunpack.c.h.b16 %v676
  %v3703 = vunpack.c.l.b16 %v677
  %v3704 = vunpack.c.h.b16 %v677
  %v3705 = vunpack.c.l.b16 %v678
  %v3706 = vunpack.c.h.b16 %v678
  %v3707 = vunpack.c.l.b16 %v679
  %v3708 = vunpack.c.h.b16 %v679
  %v3709 = vunpack.c.l.b16 %v680
  %v3710 = vunpack.c.h.b16 %v680
  %v3711 = vunpack.c.l.b16 %v681
  %v3712 = vunpack.c.h.b16 %v681
  %v3713 = vunpack.c.l.b16 %v682
  %v3714 = vunpack.c.h.b16 %v682
  %v3715 = vunpack.c.l.b16 %v683
  %v3716 = vunpack.c.h.b16 %v683
  %v3717 = vunpack.c.l.b16 %v684
  %v3718 = vunpack.c.h.b16 %v684
  %v3719 = vunpack.c.l.b16 %v685
  %v3720 = vunpack.c.h.b16 %v685
  %v3721 = vunpack.c.l.b16 %v686
  %v3722 = vunpack.c.h.b16 %v686
  %v3723 = vunpack.c.l.b16 %v687
  %v3724 = vunpack.c.h.b16 %v687
  %v3725 = vunpack.c.l.b16 %v688
  %v3726 = vunpack.c.h.b16 %v688
  %v3727 = vunpack.c.l.b16 %v689
  %v3728 = vunpack.c.h.b16 %v689
  %v3729 = vunpack.c.l.b16 %v690
  %v3730 = vunpack.c.h.b16 %v690
  %v3731 = vunpack.c.l.b16 %v691
  %v3732 = vunpack.c.h.b16 %v691
  %v3733 = vunpack.c.l.b16 %v692
  %v3734 = vunpack.c.h.b16 %v692
  %v3735 = vunpack.c.l.b16 %v693
  %v3736 = vunpack.c.h.b16 %v693
  %v3737 = vunpack.c.l.b16 %v694
  %v3738 = vunpack.c.h.b16 %v694
  %v3739 = vunpack.c.l.b16 %v695
  %v3740 = vunpack.c.h.b16 %v695
  %v3741 = vunpack.c.l.b16 %v696
  %v3742 = vunpack.c.h.b16 %v696
  %v3743 = vunpack.c.l.b16 %v697
  %v3744 = vunpack.c.h.b16 %v697
  %v3745 = vunpack.c.l.b16 %v698
  %v3746 = vunpack.c.h.b16 %v698
  %v3747 = vunpack.c.l.b16 %v699
  %v3748 = vunpack.c.h.b16 %v699
  %v3749 = vunpack.c.l.b16 %v700
  %v3750 = vunpack.c.h.b16 %v700
  %v3751 = vunpack.c.l.b16 %v701
  %v3752 = vunpack.c.h.b16 %v701
  %v3753 = vunpack.c.l.b16 %v702
  %v3754 = vunpack.c.h.b16 %v702
  %v3755 = vunpack.c.l.b16 %v703
  %v3756 = vunpack.c.h.b16 %v703
  %v3757 = vunpack.c.l.b16 %v704
  %v3758 = vunpack.c.h.b16 %v704
  %v3759 = vunpack.c.l.b16 %v705
  %v3760 = vunpack.c.h.b16 %v705
  %v3761 = vunpack.c.l.b16 %v706
  %v3762 = vunpack.c.h.b16 %v706
  %v3763 = vunpack.c.l.b16 %v707
  %v3764 = vunpack.c.h.b16 %v707
  %v3765 = vunpack.c.l.b16 %v708
  %v3766 = vunpack.c.h.b16 %v708
  %v3767 = vunpack.c.l.b16 %v709
  %v3768 = vunpack.c.h.b16 %v709
  %v3769 = vunpack.c.l.b16 %v710
  %v3770 = vunpack.c.h.b16 %v710
  %v3771 = vunpack.c.l.b16 %v711
  %v3772 = vunpack.c.h.b16 %v711
  %v3773 = vunpack.c.l.b16 %v712
  %v3774 = vunpack.c.h.b16 %v712
  %v3775 = vunpack.c.l.b16 %v713
  %v3776 = vunpack.c.h.b16 %v713
  %v3777 = vunpack.c.l.b16 %v714
  %v3778 = vunpack.c.h.b16 %v714
  %v3779 = vunpack.c.l.b16 %v715
  %v3780 = vunpack.c.h.b16 %v715
  %v3781 = vunpack.c.l.b16 %v716
  %v3782 = vunpack.c.h.b16 %v716
  %v3783 = vunpack.c.l.b16 %v717
  %v3784 = vunpack.c.h.b16 %v717
  %v3785 = vunpack.c.l.b16 %v718
  %v3786 = vunpack.c.h.b16 %v718
  %v3787 = vunpack.c.l.b16 %v719
  %v3788 = vunpack.c.h.b16 %v719
  %v3789 = vunpack.c.l.b16 %v720
  %v3790 = vunpack.c.h.b16 %v720
  %v3791 = vunpack.c.l.b16 %v721
  %v3792 = vunpack.c.h.b16 %v721
  %v3793 = vunpack.c.l.b16 %v722
  %v3794 = vunpack.c.h.b16 %v722
  %v3795 = vunpack.c.l.b16 %v723
  %v3796 = vunpack.c.h.b16 %v723
  %v3797 = vunpack.c.l.b16 %v724
  %v3798 = vunpack.c.h.b16 %v724
  %v3799 = vunpack.c.l.b16 %v725
  %v3800 = vunpack.c.h.b16 %v725
  %v3801 = vunpack.c.l.b16 %v726
  %v3802 = vunpack.c.h.b16 %v726
  %v3803 = vunpack.c.l.b16 %v727
  %v3804 = vunpack.c.h.b16 %v727
  %v3805 = vunpack.c.l.b16 %v728
  %v3806 = vunpack.c.h.b16 %v728
  %v3807 = vunpack.c.l.b16 %v729
  %v3808 = vunpack.c.h.b16 %v729
  %v3809 = vunpack.c.l.b16 %v730
  %v3810 = vunpack.c.h.b16 %v730
  %v3811 = vunpack.c.l.b16 %v731
  %v3812 = vunpack.c.h.b16 %v731
  %v3813 = vunpack.c.l.b16 %v732
  %v3814 = vunpack.c.h.b16 %v732
  %v3815 = vunpack.c.l.b16 %v733
  %v3816 = vunpack.c.h.b16 %v733
  %v3817 = vunpack.c.l.b16 %v734
  %v3818 = vunpack.c.h.b16 %v734
  %v3819 = vunpack.c.l.b16 %v735
  %v3820 = vunpack.c.h.b16 %v735
  %v3821 = vunpack.c.l.b16 %v736
  %v3822 = vunpack.c.h.b16 %v736
  %v3823 = vunpack.c.l.b16 %v737
  %v3824 = vunpack.c.h.b16 %v737
  %v3825 = vunpack.c.l.b16 %v738
  %v3826 = vunpack.c.h.b16 %v738
  %v3827 = vunpack.c.l.b16 %v739
  %v3828 = vunpack.c.h.b16 %v739
  %v3829 = vunpack.c.l.b16 %v740
  %v3830 = vunpack.c.h.b16 %v740
  %v3831 = vunpack.c.l.b16 %v741
  %v3832 = vunpack.c.h.b16 %v741
  %v3833 = vunpack.c.l.b16 %v742
  %v3834 = vunpack.c.h.b16 %v742
  %v3835 = vunpack.c.l.b16 %v743
  %v3836 = vunpack.c.h.b16 %v743
  %v3837 = vunpack.c.l.b16 %v744
  %v3838 = vunpack.c.h.b16 %v744
  %v3839 = vunpack.c.l.b16 %v745
  %v3840 = vunpack.c.h.b16 %v745
  %v3841 = vunpack.c.l.b16 %v746
  %v3842 = vunpack.c.h.b16 %v746
  %v3843 = vunpack.c.l.b16 %v747
  %v3844 = vunpack.c.h.b16 %v747
  %v3845 = vunpack.c.l.b16 %v748
  %v3846 = vunpack.c.h.b16 %v748
  %v3847 = vunpack.c.l.b16 %v749
  %v3848 = vunpack.c.h.b16 %v749
  %v3849 = vunpack.c.l.b16 %v750
  %v3850 = vunpack.c.h.b16 %v750
  %v3851 = vunpack.c.l.b16 %v751
  %v3852 = vunpack.c.h.b16 %v751
  %v3853 = vunpack.c.l.b16 %v752
  %v3854 = vunpack.c.h.b16 %v752
  %v3855 = vunpack.c.l.b16 %v753
  %v3856 = vunpack.c.h.b16 %v753
  %v3857 = vunpack.c.l.b16 %v754
  %v3858 = vunpack.c.h.b16 %v754
  %v3859 = vunpack.c.l.b16 %v755
  %v3860 = vunpack.c.h.b16 %v755
  %v3861 = vunpack.c.l.b16 %v756
  %v3862 = vunpack.c.h.b16 %v756
  %v3863 = vunpack.c.l.b16 %v757
  %v3864 = vunpack.c.h.b16 %v757
  %v3865 = vunpack.c.l.b16 %v758
  %v3866 = vunpack.c.h.b16 %v758
  %v3867 = vunpack.c.l.b16 %v759
  %v3868 = vunpack.c.h.b16 %v759
  %v3869 = vunpack.c.l.b16 %v760
  %v3870 = vunpack.c.h.b16 %v760
  %v3871 = vunpack.c.l.b16 %v761
  %v3872 = vunpack.c.h.b16 %v761
  %v3873 = vunpack.c.l.b16 %v762
  %v3874 = vunpack.c.h.b16 %v762
  %v3875 = vunpack.c.l.b16 %v763
  %v3876 = vunpack.c.h.b16 %v763
  %v3877 = vunpack.c.l.b16 %v764
  %v3878 = vunpack.c.h.b16 %v764
  %v3879 = vunpack.c.l.b16 %v765
  %v3880 = vunpack.c.h.b16 %v765
  %v3881 = vunpack.c.l.b16 %v766
  %v3882 = vunpack.c.h.b16 %v766
  %v3883 = vunpack.c.l.b16 %v767
  %v3884 = vunpack.c.h.b16 %v767
  %v3885 = vunpack.c.l.b16 %v768
  %v3886 = vunpack.c.h.b16 %v768
  %v3887 = vunpack.c.l.b16 %v769
  %v3888 = vunpack.c.h.b16 %v769
  %v3889 = vunpack.c.l.b16 %v770
  %v3890 = vunpack.c.h.b16 %v770
  %v3891 = vunpack.c.l.b16 %v771
  %v3892 = vunpack.c.h.b16 %v771
  %v3893 = vunpack.c.l.b16 %v772
  %v3894 = vunpack.c.h.b16 %v772
  %v3895 = vunpack.c.l.b16 %v773
  %v3896 = vunpack.c.h.b16 %v773
  %v3897 = vunpack.c.l.b16 %v774
  %v3898 = vunpack.c.h.b16 %v774
  %v3899 = vunpack.c.l.b16 %v775
  %v3900 = vunpack.c.h.b16 %v775
  %v3901 = vunpack.c.l.b16 %v776
  %v3902 = vunpack.c.h.b16 %v776
  %v3903 = vunpack.c.l.b16 %v777
  %v3904 = vunpack.c.h.b16 %v777
  %v3905 = vunpack.c.l.b16 %v778
  %v3906 = vunpack.c.h.b16 %v778
  %v3907 = vunpack.c.l.b16 %v779
  %v3908 = vunpack.c.h.b16 %v779
  %v3909 = vunpack.c.l.b16 %v780
  %v3910 = vunpack.c.h.b16 %v780
  %v3911 = vunpack.c.l.b16 %v781
  %v3912 = vunpack.c.h.b16 %v781
  %v3913 = vunpack.c.l.b16 %v782
  %v3914 = vunpack.c.h.b16 %v782
  %v3915 = vunpack.c.l.b16 %v783
  %v3916 = vunpack.c.h.b16 %v783
  %v3917 = vunpack.c.l.b16 %v784
  %v3918 = vunpack.c.h.b16 %v784
  %v3919 = vunpack.c.l.b16 %v785
  %v3920 = vunpack.c.h.b16 %v785
  %v3921 = vunpack.c.l.b16 %v786
  %v3922 = vunpack.c.h.b16 %v786
  %v3923 = vunpack.c.l.b16 %v787
  %v3924 = vunpack.c.h.b16 %v787
  %v3925 = vunpack.c.l.b16 %v788
  %v3926 = vunpack.c.h.b16 %v788
  %v3927 = vunpack.c.l.b16 %v789
  %v3928 = vunpack.c.h.b16 %v789
  %v3929 = vunpack.c.l.b16 %v790
  %v3930 = vunpack.c.h.b16 %v790
  %v3931 = vunpack.c.l.b16 %v791
  %v3932 = vunpack.c.h.b16 %v791
  %v3933 = vunpack.c.l.b16 %v792
  %v3934 = vunpack.c.h.b16 %v792
  %v3935 = vunpack.c.l.b16 %v793
  %v3936 = vunpack.c.h.b16 %v793
  %v3937 = vunpack.c.l.b16 %v794
  %v3938 = vunpack.c.h.b16 %v794
  %v3939 = vunpack.c.l.b16 %v795
  %v3940 = vunpack.c.h.b16 %v795
  %v3941 = vunpack.c.l.b16 %v796
  %v3942 = vunpack.c.h.b16 %v796
  %v3943 = vunpack.c.l.b16 %v797
  %v3944 = vunpack.c.h.b16 %v797
  %v3945 = vunpack.c.l.b16 %v798
  %v3946 = vunpack.c.h.b16 %v798
  %v3947 = vunpack.c.l.b16 %v799
  %v3948 = vunpack.c.h.b16 %v799
  %v3949 = vunpack.c.l.b16 %v800
  %v3950 = vunpack.c.h.b16 %v800
  %v3951 = vunpack.c.l.b16 %v801
  %v3952 = vunpack.c.h.b16 %v801
  %v3953 = vunpack.c.l.b16 %v802
  %v3954 = vunpack.c.h.b16 %v802
  %v3955 = vunpack.c.l.b16 %v803
  %v3956 = vunpack.c.h.b16 %v803
  %v3957 = vunpack.c.l.b16 %v804
  %v3958 = vunpack.c.h.b16 %v804
  %v3959 = vunpack.c.l.b16 %v805
  %v3960 = vunpack.c.h.b16 %v805
  %v3961 = vunpack.c.l.b16 %v806
  %v3962 = vunpack.c.h.b16 %v806
  %v3963 = vunpack.c.l.b16 %v807
  %v3964 = vunpack.c.h.b16 %v807
  %v3965 = vunpack.c.l.b16 %v808
  %v3966 = vunpack.c.h.b16 %v808
  %v3967 = vunpack.c.l.b16 %v809
  %v3968 = vunpack.c.h.b16 %v809
  %v3969 = vunpack.c.l.b16 %v810
  %v3970 = vunpack.c.h.b16 %v810
  %v3971 = vunpack.c.l.b16 %v811
  %v3972 = vunpack.c.h.b16 %v811
  %v3973 = vunpack.c.l.b16 %v812
  %v3974 = vunpack.c.h.b16 %v812
  %v3975 = vunpack.c.l.b16 %v813
  %v3976 = vunpack.c.h.b16 %v813
  %v3977 = vunpack.c.l.b16 %v814
  %v3978 = vunpack.c.h.b16 %v814
  %v3979 = vunpack.c.l.b16 %v815
  %v3980 = vunpack.c.h.b16 %v815
  %v3981 = vunpack.c.l.b16 %v816
  %v3982 = vunpack.c.h.b16 %v816
  %v3983 = vunpack.c.l.b16 %v817
  %v3984 = vunpack.c.h.b16 %v817
  %v3985 = vunpack.c.l.b16 %v818
  %v3986 = vunpack.c.h.b16 %v818
  %v3987 = vunpack.c.l.b16 %v819
  %v3988 = vunpack.c.h.b16 %v819
  %v3989 = vunpack.c.l.b16 %v820
  %v3990 = vunpack.c.h.b16 %v820
  %v3991 = vunpack.c.l.b16 %v821
  %v3992 = vunpack.c.h.b16 %v821
  %v3993 = vunpack.c.l.b16 %v822
  %v3994 = vunpack.c.h.b16 %v822
  %v3995 = vunpack.c.l.b16 %v823
  %v3996 = vunpack.c.h.b16 %v823
  %v3997 = vunpack.c.l.b16 %v824
  %v3998 = vunpack.c.h.b16 %v824
  %v3999 = vunpack.c.l.b16 %v825
  %v4000 = vunpack.c.h.b16 %v825
  %v4001 = vunpack.c.l.b16 %v826
  %v4002 = vunpack.c.h.b16 %v826
  %v4003 = vunpack.c.l.b16 %v827
  %v4004 = vunpack.c.h.b16 %v827
  %v4005 = vunpack.c.l.b16 %v828
  %v4006 = vunpack.c.h.b16 %v828
  %v4007 = vunpack.c.l.b16 %v829
  %v4008 = vunpack.c.h.b16 %v829
  %v4009 = vunpack.c.l.b16 %v830
  %v4010 = vunpack.c.h.b16 %v830
  %v4011 = vunpack.c.l.b16 %v831
  %v4012 = vunpack.c.h.b16 %v831
  %v4013 = vunpack.c.l.b16 %v832
  %v4014 = vunpack.c.h.b16 %v832
  %v4015 = vunpack.c.l.b16 %v833
  %v4016 = vunpack.c.h.b16 %v833
  %v4017 = vunpack.c.l.b16 %v834
  %v4018 = vunpack.c.h.b16 %v834
  %v4019 = vunpack.c.l.b16 %v835
  %v4020 = vunpack.c.h.b16 %v835
  %v4021 = vunpack.c.l.b16 %v836
  %v4022 = vunpack.c.h.b16 %v836
  %v4023 = vunpack.c.l.b16 %v837
  %v4024 = vunpack.c.h.b16 %v837
  %v4025 = vunpack.c.l.b16 %v838
  %v4026 = vunpack.c.h.b16 %v838
  %v4027 = vunpack.c.l.b16 %v839
  %v4028 = vunpack.c.h.b16 %v839
  %v4029 = vunpack.c.l.b16 %v840
  %v4030 = vunpack.c.h.b16 %v840
  %v4031 = vunpack.c.l.b16 %v841
  %v4032 = vunpack.c.h.b16 %v841
  %v4033 = vunpack.c.l.b16 %v842
  %v4034 = vunpack.c.h.b16 %v842
  %v4035 = vunpack.c.l.b16 %v843
  %v4036 = vunpack.c.h.b16 %v843
  %v4037 = vunpack.c.l.b16 %v844
  %v4038 = vunpack.c.h.b16 %v844
  %v4039 = vunpack.c.l.b16 %v845
  %v4040 = vunpack.c.h.b16 %v845
  %v4041 = vunpack.c.l.b16 %v846
  %v4042 = vunpack.c.h.b16 %v846
  %v4043 = vunpack.c.l.b16 %v847
  %v4044 = vunpack.c.h.b16 %v847
  %v4045 = vunpack.c.l.b16 %v848
  %v4046 = vunpack.c.h.b16 %v848
  %v4047 = vunpack.c.l.b16 %v849
  %v4048 = vunpack.c.h.b16 %v849
  %v4049 = vunpack.c.l.b16 %v850
  %v4050 = vunpack.c.h.b16 %v850
  %v4051 = vunpack.c.l.b16 %v851
  %v4052 = vunpack.c.h.b16 %v851
  %v4053 = vunpack.c.l.b16 %v852
  %v4054 = vunpack.c.h.b16 %v852
  %v4055 = vunpack.c.l.b16 %v853
  %v4056 = vunpack.c.h.b16 %v853
  %v4057 = vunpack.c.l.b16 %v854
  %v4058 = vunpack.c.h.b16 %v854
  %v4059 = vunpack.c.l.b16 %v855
  %v4060 = vunpack.c.h.b16 %v855
  %v4061 = vunpack.c.l.b16 %v856
  %v4062 = vunpack.c.h.b16 %v856
  %v4063 = vunpack.c.l.b16 %v857
  %v4064 = vunpack.c.h.b16 %v857
  %v4065 = vunpack.c.l.b16 %v858
  %v4066 = vunpack.c.h.b16 %v858
  %v4067 = vunpack.c.l.b16 %v859
  %v4068 = vunpack.c.h.b16 %v859
  %v4069 = vunpack.c.l.b16 %v860
  %v4070 = vunpack.c.h.b16 %v860
  %v4071 = vunpack.c.l.b16 %v861
  %v4072 = vunpack.c.h.b16 %v861
  %v4073 = vunpack.c.l.b16 %v862
  %v4074 = vunpack.c.h.b16 %v862
  %v4075 = vunpack.c.l.b16 %v863
  %v4076 = vunpack.c.h.b16 %v863
  %v4077 = vunpack.c.l.b16 %v864
  %v4078 = vunpack.c.h.b16 %v864
  %v4079 = vunpack.c.l.b16 %v865
  %v4080 = vunpack.c.h.b16 %v865
  %v4081 = vunpack.c.l.b16 %v866
  %v4082 = vunpack.c.h.b16 %v866
  %v4083 = vunpack.c.l.b16 %v867
  %v4084 = vunpack.c.h.b16 %v867
  %v4085 = vunpack.c.l.b16 %v868
  %v4086 = vunpack.c.h.b16 %v868
  %v4087 = vunpack.c.l.b16 %v869
  %v4088 = vunpack.c.h.b16 %v869
  %v4089 = vunpack.c.l.b16 %v870
  %v4090 = vunpack.c.h.b16 %v870
  %v4091 = vunpack.c.l.b16 %v871
  %v4092 = vunpack.c.h.b16 %v871
  %v4093 = vunpack.c.l.b16 %v872
  %v4094 = vunpack.c.h.b16 %v872
  %v4095 = vunpack.c.l.b16 %v873
  %v4096 = vunpack.c.h.b16 %v873
  %v4097 = vunpack.c.l.b16 %v874
  %v4098 = vunpack.c.h.b16 %v874
  %v4099 = vunpack.c.l.b16 %v875
  %v4100 = vunpack.c.h.b16 %v875
  %v4101 = vunpack.c.l.b16 %v876
  %v4102 = vunpack.c.h.b16 %v876
  %v4103 = vunpack.c.l.b16 %v877
  %v4104 = vunpack.c.h.b16 %v877
  %v4105 = vunpack.c.l.b16 %v878
  %v4106 = vunpack.c.h.b16 %v878
  %v4107 = vunpack.c.l.b16 %v879
  %v4108 = vunpack.c.h.b16 %v879
  %v4109 = vunpack.c.l.b16 %v880
  %v4110 = vunpack.c.h.b16 %v880
  %v4111 = vunpack.c.l.b16 %v881
  %v4112 = vunpack.c.h.b16 %v881
  %v4113 = vunpack.c.l.b16 %v882
  %v4114 = vunpack.c.h.b16 %v882
  %v4115 = vunpack.c.l.b16 %v883
  %v4116 = vunpack.c.h.b16 %v883
  %v4117 = vunpack.c.l.b16 %v884
  %v4118 = vunpack.c.h.b16 %v884
  %v4119 = vunpack.c.l.b16 %v885
  %v4120 = vunpack.c.h.b16 %v885
  %v4121 = vunpack.c.l.b16 %v886
  %v4122 = vunpack.c.h.b16 %v886
  %v4123 = vunpack.c.l.b16 %v887
  %v4124 = vunpack.c.h.b16 %v887
  %v4125 = vunpack.c.l.b16 %v888
  %v4126 = vunpack.c.h.b16 %v888
  %v4127 = vunpack.c.l.b16 %v889
  %v4128 = vunpack.c.h.b16 %v889
  %v4129 = vunpack.c.l.b16 %v890
  %v4130 = vunpack.c.h.b16 %v890
  %v4131 = vunpack.c.l.b16 %v891
  %v4132 = vunpack.c.h.b16 %v891
  %v4133 = vunpack.c.l.b16 %v892
  %v4134 = vunpack.c.h.b16 %v892
  %v4135 = vunpack.c.l.b16 %v893
  %v4136 = vunpack.c.h.b16 %v893
  %v4137 = vunpack.c.l.b16 %v894
  %v4138 = vunpack.c.h.b16 %v894
  %v4139 = vunpack.c.l.b16 %v895
  %v4140 = vunpack.c.h.b16 %v895
  %v4141 = vunpack.c.l.b16 %v896
  %v4142 = vunpack.c.h.b16 %v896
  %v4143 = vunpack.c.l.b16 %v897
  %v4144 = vunpack.c.h.b16 %v897
  %v4145 = vunpack.c.l.b16 %v898
  %v4146 = vunpack.c.h.b16 %v898
  %v4147 = vunpack.c.l.b16 %v899
  %v4148 = vunpack.c.h.b16 %v899
  %v4149 = vunpack.c.l.b16 %v900
  %v4150 = vunpack.c.h.b16 %v900
  %v4151 = vunpack.c.l.b16 %v901
  %v4152 = vunpack.c.h.b16 %v901
  %v4153 = vunpack.c.l.b16 %v902
  %v4154 = vunpack.c.h.b16 %v902
  %v4155 = vunpack.c.l.b16 %v903
  %v4156 = vunpack.c.h.b16 %v903
  %v4157 = vunpack.c.l.b16 %v904
  %v4158 = vunpack.c.h.b16 %v904
  %v4159 = vunpack.c.l.b16 %v905
  %v4160 = vunpack.c.h.b16 %v905
  %v4161 = vunpack.c.l.b16 %v906
  %v4162 = vunpack.c.h.b16 %v906
  %v4163 = vunpack.c.l.b16 %v907
  %v4164 = vunpack.c.h.b16 %v907
  %v4165 = vunpack.c.l.b16 %v908
  %v4166 = vunpack.c.h.b16 %v908
  %v4167 = vunpack.c.l.b16 %v909
  %v4168 = vunpack.c.h.b16 %v909
  %v4169 = vunpack.c.l.b16 %v910
  %v4170 = vunpack.c.h.b16 %v910
  %v4171 = vunpack.c.l.b16 %v911
  %v4172 = vunpack.c.h.b16 %v911
  %v4173 = vunpack.c.l.b16 %v912
  %v4174 = vunpack.c.h.b16 %v912
  %v4175 = vunpack.c.l.b16 %v913
  %v4176 = vunpack.c.h.b16 %v913
  %v4177 = vunpack.c.l.b16 %v914
  %v4178 = vunpack.c.h.b16 %v914
  %v4179 = vunpack.c.l.b16 %v915
  %v4180 = vunpack.c.h.b16 %v915
  %v4181 = vunpack.c.l.b16 %v916
  %v4182 = vunpack.c.h.b16 %v916
  %v4183 = vunpack.c.l.b16 %v917
  %v4184 = vunpack.c.h.b16 %v917
  %v4185 = vunpack.c.l.b16 %v918
  %v4186 = vunpack.c.h.b16 %v918
  %v4187 = vunpack.c.l.b16 %v919
  %v4188 = vunpack.c.h.b16 %v919
  %v4189 = vunpack.c.l.b16 %v920
  %v4190 = vunpack.c.h.b16 %v920
  %v4191 = vunpack.c.l.b16 %v921
  %v4192 = vunpack.c.h.b16 %v921
  %v4193 = vunpack.c.l.b16 %v922
  %v4194 = vunpack.c.h.b16 %v922
  %v4195 = vunpack.c.l.b16 %v923
  %v4196 = vunpack.c.h.b16 %v923
  %v4197 = vunpack.c.l.b16 %v924
  %v4198 = vunpack.c.h.b16 %v924
  %v4199 = vunpack.c.l.b16 %v925
  %v4200 = vunpack.c.h.b16 %v925
  %v4201 = vunpack.c.l.b16 %v926
  %v4202 = vunpack.c.h.b16 %v926
  %v4203 = vunpack.c.l.b16 %v927
  %v4204 = vunpack.c.h.b16 %v927
  %v4205 = vunpack.c.l.b16 %v928
  %v4206 = vunpack.c.h.b16 %v928
  %v4207 = vunpack.c.l.b16 %v929
  %v4208 = vunpack.c.h.b16 %v929
  %v4209 = vunpack.c.l.b16 %v930
  %v4210 = vunpack.c.h.b16 %v930
  %v4211 = vunpack.c.l.b16 %v931
  %v4212 = vunpack.c.h.b16 %v931
  %v4213 = vunpack.c.l.b16 %v932
  %v4214 = vunpack.c.h.b16 %v932
  %v4215 = vunpack.c.l.b16 %v933
  %v4216 = vunpack.c.h.b16 %v933
  %v4217 = vunpack.c.l.b16 %v934
  %v4218 = vunpack.c.h.b16 %v934
  %v4219 = vunpack.c.l.b16 %v935
  %v4220 = vunpack.c.h.b16 %v935
  %v4221 = vunpack.c.l.b16 %v936
  %v4222 = vunpack.c.h.b16 %v936
  %v4223 = vunpack.c.l.b16 %v937
  %v4224 = vunpack.c.h.b16 %v937
  %v4225 = vunpack.c.l.b16 %v938
  %v4226 = vunpack.c.h.b16 %v938
  %v4227 = vunpack.c.l.b16 %v939
  %v4228 = vunpack.c.h.b16 %v939
  %v4229 = vunpack.c.l.b16 %v940
  %v4230 = vunpack.c.h.b16 %v940
  %v4231 = vunpack.c.l.b16 %v941
  %v4232 = vunpack.c.h.b16 %v941
  %v4233 = vunpack.c.l.b16 %v942
  %v4234 = vunpack.c.h.b16 %v942
  %v4235 = vunpack.c.l.b16 %v943
  %v4236 = vunpack.c.h.b16 %v943
  %v4237 = vunpack.c.l.b16 %v944
  %v4238 = vunpack.c.h.b16 %v944
  %v4239 = vunpack.c.l.b16 %v945
  %v4240 = vunpack.c.h.b16 %v945
  %v4241 = vunpack.c.l.b16 %v946
  %v4242 = vunpack.c.h.b16 %v946
  %v4243 = vunpack.c.l.b16 %v947
  %v4244 = vunpack.c.h.b16 %v947
  %v4245 = vunpack.c.l.b16 %v948
  %v4246 = vunpack.c.h.b16 %v948
  %v4247 = vunpack.c.l.b16 %v949
  %v4248 = vunpack.c.h.b16 %v949
  %v4249 = vunpack.c.l.b16 %v950
  %v4250 = vunpack.c.h.b16 %v950
  %v4251 = vunpack.c.l.b16 %v951
  %v4252 = vunpack.c.h.b16 %v951
  %v4253 = vunpack.c.l.b16 %v952
  %v4254 = vunpack.c.h.b16 %v952
  %v4255 = vunpack.c.l.b16 %v953
  %v4256 = vunpack.c.h.b16 %v953
  %v4257 = vunpack.c.l.b16 %v954
  %v4258 = vunpack.c.h.b16 %v954
  %v4259 = vunpack.c.l.b16 %v955
  %v4260 = vunpack.c.h.b16 %v955
  %v4261 = vunpack.c.l.b16 %v956
  %v4262 = vunpack.c.h.b16 %v956
  %v4263 = vunpack.c.l.b16 %v957
  %v4264 = vunpack.c.h.b16 %v957
  %v4265 = vunpack.c.l.b16 %v958
  %v4266 = vunpack.c.h.b16 %v958
  %v4267 = vunpack.c.l.b16 %v959
  %v4268 = vunpack.c.h.b16 %v959
  %v4269 = vunpack.c.l.b16 %v960
  %v4270 = vunpack.c.h.b16 %v960
  %v4271 = vunpack.c.l.b16 %v961
  %v4272 = vunpack.c.h.b16 %v961
  %v4273 = vunpack.c.l.b16 %v962
  %v4274 = vunpack.c.h.b16 %v962
  %v4275 = vunpack.c.l.b16 %v963
  %v4276 = vunpack.c.h.b16 %v963
  %v4277 = vunpack.c.l.b16 %v964
  %v4278 = vunpack.c.h.b16 %v964
  %v4279 = vunpack.c.l.b16 %v965
  %v4280 = vunpack.c.h.b16 %v965
  %v4281 = vunpack.c.l.b16 %v966
  %v4282 = vunpack.c.h.b16 %v966
  %v4283 = vunpack.c.l.b16 %v967
  %v4284 = vunpack.c.h.b16 %v967
  %v4285 = vunpack.c.l.b16 %v968
  %v4286 = vunpack.c.h.b16 %v968
  %v4287 = vunpack.c.l.b16 %v969
  %v4288 = vunpack.c.h.b16 %v969
  %v4289 = vunpack.c.l.b16 %v970
  %v4290 = vunpack.c.h.b16 %v970
  %v4291 = vunpack.c.l.b16 %v971
  %v4292 = vunpack.c.h.b16 %v971
  %v4293 = vunpack.c.l.b16 %v972
  %v4294 = vunpack.c.h.b16 %v972
  %v4295 = vunpack.c.l.b16 %v973
  %v4296 = vunpack.c.h.b16 %v973
  %v4297 = vunpack.c.l.b16 %v974
  %v4298 = vunpack.c.h.b16 %v974
  %v4299 = vunpack.c.l.b16 %v975
  %v4300 = vunpack.c.h.b16 %v975
  %v4301 = vunpack.c.l.b16 %v976
  %v4302 = vunpack.c.h.b16 %v976
  %v4303 = vunpack.c.l.b16 %v977
  %v4304 = vunpack.c.h.b16 %v977
  %v4305 = vunpack.c.l.b16 %v978
  %v4306 = vunpack.c.h.b16 %v978
  %v4307 = vunpack.c.l.b16 %v979
  %v4308 = vunpack.c.h.b16 %v979
  %v4309 = vunpack.c.l.b16 %v980
  %v4310 = vunpack.c.h.b16 %v980
  %v4311 = vunpack.c.l.b16 %v981
  %v4312 = vunpack.c.h.b16 %v981
  %v4313 = vunpack.c.l.b16 %v982
  %v4314 = vunpack.c.h.b16 %v982
  %v4315 = vunpack.c.l.b16 %v983
  %v4316 = vunpack.c.h.b16 %v983
  %v4317 = vunpack.c.l.b16 %v984
  %v4318 = vunpack.c.h.b16 %v984
  %v4319 = vunpack.c.l.b16 %v985
  %v4320 = vunpack.c.h.b16 %v985
  %v4321 = vunpack.c.l.b16 %v986
  %v4322 = vunpack.c.h.b16 %v986
  %v4323 = vunpack.c.l.b16 %v987
  %v4324 = vunpack.c.h.b16 %v987
  %v4325 = vunpack.c.l.b16 %v988
  %v4326 = vunpack.c.h.b16 %v988
  %v4327 = vunpack.c.l.b16 %v989
  %v4328 = vunpack.c.h.b16 %v989
  %v4329 = vunpack.c.l.b16 %v990
  %v4330 = vunpack.c.h.b16 %v990
  %v4331 = vunpack.c.l.b16 %v991
  %v4332 = vunpack.c.h.b16 %v991
  %v4333 = vunpack.c.l.b16 %v992
  %v4334 = vunpack.c.h.b16 %v992
  %v4335 = vunpack.c.l.b16 %v993
  %v4336 = vunpack.c.h.b16 %v993
  %v4337 = vunpack.c.l.b16 %v994
  %v4338 = vunpack.c.h.b16 %v994
  %v4339 = vunpack.c.l.b16 %v995
  %v4340 = vunpack.c.h.b16 %v995
  %v4341 = vunpack.c.l.b16 %v996
  %v4342 = vunpack.c.h.b16 %v996
  %v4343 = vunpack.c.l.b16 %v997
  %v4344 = vunpack.c.h.b16 %v997
  %v4345 = vunpack.c.l.b16 %v998
  %v4346 = vunpack.c.h.b16 %v998
  %v4347 = vunpack.c.l.b16 %v999
  %v4348 = vunpack.c.h.b16 %v999
  %v4349 = vunpack.c.l.b16 %v1000
  %v4350 = vunpack.c.h.b16 %v1000
  %v4351 = vunpack.c.l.b16 %v1001
  %v4352 = vunpack.c.h.b16 %v1001
  %v4353 = vunpack.c.l.b16 %v1002
  %v4354 = vunpack.c.h.b16 %v1002
  %v4355 = vunpack.c.l.b16 %v1003
  %v4356 = vunpack.c.h.b16 %v1003
  %v4357 = vunpack.c.l.b16 %v1004
  %v4358 = vunpack.c.h.b16 %v1004
  %v4359 = vunpack.c.l.b16 %v1005
  %v4360 = vunpack.c.h.b16 %v1005
  %v4361 = vunpack.c.l.b16 %v1006
  %v4362 = vunpack.c.h.b16 %v1006
  %v4363 = vunpack.c.l.b16 %v1007
  %v4364 = vunpack.c.h.b16 %v1007
  %v4365 = vunpack.c.l.b16 %v1008
  %v4366 = vunpack.c.h.b16 %v1008
  %v4367 = vunpack.c.l.b16 %v1009
  %v4368 = vunpack.c.h.b16 %v1009
  %v4369 = vunpack.c.l.b16 %v1010
  %v4370 = vunpack.c.h.b16 %v1010
  %v4371 = vunpack.c.l.b16 %v1011
  %v4372 = vunpack.c.h.b16 %v1011
  %v4373 = vunpack.c.l.b16 %v1012
  %v4374 = vunpack.c.h.b16 %v1012
  %v4375 = vpack.c.b16 %v2811, %v2807
  %v4376 = vpack.c.b16 %v2812, %v2808
  %v4377 = vpack.c.b16 %v2813, %v2809
  %v4378 = vpack.c.b16 %v2814, %v2810
  %v4379 = vpack.c.b16 %v2819, %v2815
  %v4380 = vpack.c.b16 %v2820, %v2816
  %v4381 = vpack.c.b16 %v2821, %v2817
  %v4382 = vpack.c.b16 %v2822, %v2818
  %v4383 = vpack.c.b16 %v2827, %v2823
  %v4384 = vpack.c.b16 %v2828, %v2824
  %v4385 = vpack.c.b16 %v2829, %v2825
  %v4386 = vpack.c.b16 %v2830, %v2826
  %v4387 = vpack.c.b16 %v2835, %v2831
  %v4388 = vpack.c.b16 %v2836, %v2832
  %v4389 = vpack.c.b16 %v2837, %v2833
  %v4390 = vpack.c.b16 %v2838, %v2834
  %v4391 = vpack.c.b16 %v2843, %v2839
  %v4392 = vpack.c.b16 %v2844, %v2840
  %v4393 = vpack.c.b16 %v2845, %v2841
  %v4394 = vpack.c.b16 %v2846, %v2842
  %v4395 = vpack.c.b16 %v2851, %v2847
  %v4396 = vpack.c.b16 %v2852, %v2848
  %v4397 = vpack.c.b16 %v2853, %v2849
  %v4398 = vpack.c.b16 %v2854, %v2850
  %v4399 = vpack.c.b16 %v2859, %v2855
  %v4400 = vpack.c.b16 %v2860, %v2856
  %v4401 = vpack.c.b16 %v2861, %v2857
  %v4402 = vpack.c.b16 %v2862, %v2858
  %v4403 = vpack.c.b16 %v2867, %v2863
  %v4404 = vpack.c.b16 %v2868, %v2864
  %v4405 = vpack.c.b16 %v2869, %v2865
  %v4406 = vpack.c.b16 %v2870, %v2866
  %v4407 = vpack.c.b16 %v2875, %v2871
  %v4408 = vpack.c.b16 %v2876, %v2872
  %v4409 = vpack.c.b16 %v2877, %v2873
  %v4410 = vpack.c.b16 %v2878, %v2874
  %v4411 = vpack.c.b16 %v2883, %v2879
  %v4412 = vpack.c.b16 %v2884, %v2880
  %v4413 = vpack.c.b16 %v2885, %v2881
  %v4414 = vpack.c.b16 %v2886, %v2882
  %v4415 = vpack.c.b16 %v2891, %v2887
  %v4416 = vpack.c.b16 %v2892, %v2888
  %v4417 = vpack.c.b16 %v2893, %v2889
  %v4418 = vpack.c.b16 %v2894, %v2890
  %v4419 = vpack.c.b16 %v2899, %v2895
  %v4420 = vpack.c.b16 %v2900, %v2896
  %v4421 = vpack.c.b16 %v2901, %v2897
  %v4422 = vpack.c.b16 %v2902, %v2898
  %v4423 = vpack.c.b16 %v2907, %v2903
  %v4424 = vpack.c.b16 %v2908, %v2904
  %v4425 = vpack.c.b16 %v2909, %v2905
  %v4426 = vpack.c.b16 %v2910, %v2906
  %v4427 = vpack.c.b16 %v2915, %v2911
  %v4428 = vpack.c.b16 %v2916, %v2912
  %v4429 = vpack.c.b16 %v2917, %v2913
  %v4430 = vpack.c.b16 %v2918, %v2914
  %v4431 = vpack.c.b16 %v2923, %v2919
  %v4432 = vpack.c.b16 %v2924, %v2920
  %v4433 = vpack.c.b16 %v2925, %v2921
  %v4434 = vpack.c.b16 %v2926, %v2922
  %v4435 = vpack.c.b16 %v2931, %v2927
  %v4436 = vpack.c.b16 %v2932, %v2928
  %v4437 = vpack.c.b16 %v2933, %v2929
  %v4438 = vpack.c.b16 %v2934, %v2930
  %v4439 = vpack.c.b16 %v2939, %v2935
  %v4440 = vpack.c.b16 %v2940, %v2936
  %v4441 = vpack.c.b16 %v2941, %v2937
  %v4442 = vpack.c.b16 %v2942, %v2938
  %v4443 = vpack.c.b16 %v2947, %v2943
  %v4444 = vpack.c.b16 %v2948, %v2944
  %v4445 = vpack.c.b16 %v2949, %v2945
  %v4446 = vpack.c.b16 %v2950, %v2946
  %v4447 = vpack.c.b16 %v2955, %v2951
  %v4448 = vpack.c.b16 %v2956, %v2952
  %v4449 = vpack.c.b16 %v2957, %v2953
  %v4450 = vpack.c.b16 %v2958, %v2954
  %v4451 = vpack.c.b16 %v2963, %v2959
  %v4452 = vpack.c.b16 %v2964, %v2960
  %v4453 = vpack.c.b16 %v2965, %v2961
  %v4454 = vpack.c.b16 %v2966, %v2962
  %v4455 = vpack.c.b16 %v2971, %v2967
  %v4456 = vpack.c.b16 %v2972, %v2968
  %v4457 = vpack.c.b16 %v2973, %v2969
  %v4458 = vpack.c.b16 %v2974, %v2970
  %v4459 = vpack.c.b16 %v2979, %v2975
  %v4460 = vpack.c.b16 %v2980, %v2976
  %v4461 = vpack.c.b16 %v2981, %v2977
  %v4462 = vpack.c.b16 %v2982, %v2978
  %v4463 = vpack.c.b16 %v2987, %v2983
  %v4464 = vpack.c.b16 %v2988, %v2984
  %v4465 = vpack.c.b16 %v2989, %v2985
  %v4466 = vpack.c.b16 %v2990, %v2986
  %v4467 = vpack.c.b16 %v2995, %v2991
  %v4468 = vpack.c.b16 %v2996, %v2992
  %v4469 = vpack.c.b16 %v2997, %v2993
  %v4470 = vpack.c.b16 %v2998, %v2994
  %v4471 = vpack.c.b16 %v3003, %v2999
  %v4472 = vpack.c.b16 %v3004, %v3000
  %v4473 = vpack.c.b16 %v3005, %v3001
  %v4474 = vpack.c.b16 %v3006, %v3002
  %v4475 = vpack.c.b16 %v3011, %v3007
  %v4476 = vpack.c.b16 %v3012, %v3008
  %v4477 = vpack.c.b16 %v3013, %v3009
  %v4478 = vpack.c.b16 %v3014, %v3010
  %v4479 = vpack.c.b16 %v3019, %v3015
  %v4480 = vpack.c.b16 %v3020, %v3016
  %v4481 = vpack.c.b16 %v3021, %v3017
  %v4482 = vpack.c.b16 %v3022, %v3018
  %v4483 = vpack.c.b16 %v3027, %v3023
  %v4484 = vpack.c.b16 %v3028, %v3024
  %v4485 = vpack.c.b16 %v3029, %v3025
  %v4486 = vpack.c.b16 %v3030, %v3026
  %v4487 = vpack.c.b16 %v3035, %v3031
  %v4488 = vpack.c.b16 %v3036, %v3032
  %v4489 = vpack.c.b16 %v3037, %v3033
  %v4490 = vpack.c.b16 %v3038, %v3034
  %v4491 = vpack.c.b16 %v3043, %v3039
  %v4492 = vpack.c.b16 %v3044, %v3040
  %v4493 = vpack.c.b16 %v3045, %v3041
  %v4494 = vpack.c.b16 %v3046, %v3042
  %v4495 = vpack.c.b16 %v3051, %v3047
  %v4496 = vpack.c.b16 %v3052, %v3048
  %v4497 = vpack.c.b16 %v3053, %v3049
  %v4498 = vpack.c.b16 %v3054, %v3050
  %v4499 = vpack.c.b16 %v3059, %v3055
  %v4500 = vpack.c.b16 %v3060, %v3056
  %v4501 = vpack.c.b16 %v3061, %v3057
  %v4502 = vpack.c.b16 %v3062, %v3058
  %v4503 = vpack.c.b16 %v3067, %v3063
  %v4504 = vpack.c.b16 %v3068, %v3064
  %v4505 = vpack.c.b16 %v3069, %v3065
  %v4506 = vpack.c.b16 %v3070, %v3066
  %v4507 = vpack.c.b16 %v3075, %v3071
  %v4508 = vpack.c.b16 %v3076, %v3072
  %v4509 = vpack.c.b16 %v3077, %v3073
  %v4510 = vpack.c.b16 %v3078, %v3074
  %v4511 = vpack.c.b16 %v3083, %v3079
  %v4512 = vpack.c.b16 %v3084, %v3080
  %v4513 = vpack.c.b16 %v3085, %v3081
  %v4514 = vpack.c.b16 %v3086, %v3082
  %v4515 = vpack.c.b16 %v3091, %v3087
  %v4516 = vpack.c.b16 %v3092, %v3088
  %v4517 = vpack.c.b16 %v3093, %v3089
  %v4518 = vpack.c.b16 %v3094, %v3090
  %v4519 = vpack.c.b16 %v3099, %v3095
  %v4520 = vpack.c.b16 %v3100, %v3096
  %v4521 = vpack.c.b16 %v3101, %v3097
  %v4522 = vpack.c.b16 %v3102, %v3098
  %v4523 = vpack.c.b16 %v3107, %v3103
  %v4524 = vpack.c.b16 %v3108, %v3104
  %v4525 = vpack.c.b16 %v3109, %v3105
  %v4526 = vpack.c.b16 %v3110, %v3106
  %v4527 = vpack.c.b16 %v3115, %v3111
  %v4528 = vpack.c.b16 %v3116, %v3112
  %v4529 = vpack.c.b16 %v3117, %v3113
  %v4530 = vpack.c.b16 %v3118, %v3114
  %v4531 = vpack.c.b16 %v3123, %v3119
  %v4532 = vpack.c.b16 %v3124, %v3120
  %v4533 = vpack.c.b16 %v3125, %v3121
  %v4534 = vpack.c.b16 %v3126, %v3122
  %v4535 = vpack.c.b16 %v3131, %v3127
  %v4536 = vpack.c.b16 %v3132, %v3128
  %v4537 = vpack.c.b16 %v3133, %v3129
  %v4538 = vpack.c.b16 %v3134, %v3130
  %v4539 = vpack.c.b16 %v3139, %v3135
  %v4540 = vpack.c.b16 %v3140, %v3136
  %v4541 = vpack.c.b16 %v3141, %v3137
  %v4542 = vpack.c.b16 %v3142, %v3138
  %v4543 = vpack.c.b16 %v3147, %v3143
  %v4544 = vpack.c.b16 %v3148, %v3144
  %v4545 = vpack.c.b16 %v3149, %v3145
  %v4546 = vpack.c.b16 %v3150, %v3146
  %v4547 = vpack.c.b16 %v3155, %v3151
  %v4548 = vpack.c.b16 %v3156, %v3152
  %v4549 = vpack.c.b16 %v3157, %v3153
  %v4550 = vpack.c.b16 %v3158, %v3154
  %v4551 = vpack.c.b16 %v3163, %v3159
  %v4552 = vpack.c.b16 %v3164, %v3160
  %v4553 = vpack.c.b16 %v3165, %v3161
  %v4554 = vpack.c.b16 %v3166, %v3162
  %v4555 = vpack.c.b16 %v3171, %v3167
  %v4556 = vpack.c.b16 %v3172, %v3168
  %v4557 = vpack.c.b16 %v3173, %v3169
  %v4558 = vpack.c.b16 %v3174, %v3170
  %v4559 = vpack.c.b16 %v3179, %v3175
  %v4560 = vpack.c.b16 %v3180, %v3176
  %v4561 = vpack.c.b16 %v3181, %v3177
  %v4562 = vpack.c.b16 %v3182, %v3178
  %v4563 = vpack.c.b16 %v3187, %v3183
  %v4564 = vpack.c.b16 %v3188, %v3184
  %v4565 = vpack.c.b16 %v3189, %v3185
  %v4566 = vpack.c.b16 %v3190, %v3186
  %v4567 = vpack.c.b16 %v3195, %v3191
  %v4568 = vpack.c.b16 %v3196, %v3192
  %v4569 = vpack.c.b16 %v3197, %v3193
  %v4570 = vpack.c.b16 %v3198, %v3194
  %v4571 = vpack.c.b16 %v3203, %v3199
  %v4572 = vpack.c.b16 %v3204, %v3200
  %v4573 = vpack.c.b16 %v3205, %v3201
  %v4574 = vpack.c.b16 %v3206, %v3202
  %v4575 = vpack.c.b16 %v3211, %v3207
  %v4576 = vpack.c.b16 %v3212, %v3208
  %v4577 = vpack.c.b16 %v3213, %v3209
  %v4578 = vpack.c.b16 %v3214, %v3210
  %v4579 = vpack.c.b16 %v3219, %v3215
  %v4580 = vpack.c.b16 %v3220, %v3216
  %v4581 = vpack.c.b16 %v3221, %v3217
  %v4582 = vpack.c.b16 %v3222, %v3218
  %v4583 = vpack.c.b16 %v3227, %v3223
  %v4584 = vpack.c.b16 %v3228, %v3224
  %v4585 = vpack.c.b16 %v3229, %v3225
  %v4586 = vpack.c.b16 %v3230, %v3226
  %v4587 = vpack.c.b16 %v3235, %v3231
  %v4588 = vpack.c.b16 %v3236, %v3232
  %v4589 = vpack.c.b16 %v3237, %v3233
  %v4590 = vpack.c.b16 %v3238, %v3234
  %v4591 = vpack.c.b16 %v3243, %v3239
  %v4592 = vpack.c.b16 %v3244, %v3240
  %v4593 = vpack.c.b16 %v3245, %v3241
  %v4594 = vpack.c.b16 %v3246, %v3242
  %v4595 = vpack.c.b16 %v3251, %v3247
  %v4596 = vpack.c.b16 %v3252, %v3248
  %v4597 = vpack.c.b16 %v3253, %v3249
  %v4598 = vpack.c.b16 %v3254, %v3250
  %v4599 = vpack.c.b16 %v3259, %v3255
  %v4600 = vpack.c.b16 %v3260, %v3256
  %v4601 = vpack.c.b16 %v3261, %v3257
  %v4602 = vpack.c.b16 %v3262, %v3258
  %v4603 = vpack.c.b16 %v3267, %v3263
  %v4604 = vpack.c.b16 %v3268, %v3264
  %v4605 = vpack.c.b16 %v3269, %v3265
  %v4606 = vpack.c.b16 %v3270, %v3266
  %v4607 = vpack.c.b16 %v3275, %v3271
  %v4608 = vpack.c.b16 %v3276, %v3272
  %v4609 = vpack.c.b16 %v3277, %v3273
  %v4610 = vpack.c.b16 %v3278, %v3274
  %v4611 = vpack.c.b16 %v3283, %v3279
  %v4612 = vpack.c.b16 %v3284, %v3280
  %v4613 = vpack.c.b16 %v3285, %v3281
  %v4614 = vpack.c.b16 %v3286, %v3282
  %v4615 = vpack.c.b16 %v3291, %v3287
  %v4616 = vpack.c.b16 %v3292, %v3288
  %v4617 = vpack.c.b16 %v3293, %v3289
  %v4618 = vpack.c.b16 %v3294, %v3290
  %v4619 = vpack.c.b16 %v3299, %v3295
  %v4620 = vpack.c.b16 %v3300, %v3296
  %v4621 = vpack.c.b16 %v3301, %v3297
  %v4622 = vpack.c.b16 %v3302, %v3298
  %v4623 = vpack.c.b16 %v3307, %v3303
  %v4624 = vpack.c.b16 %v3308, %v3304
  %v4625 = vpack.c.b16 %v3309, %v3305
  %v4626 = vpack.c.b16 %v3310, %v3306
  %v4627 = vpack.c.b16 %v3315, %v3311
  %v4628 = vpack.c.b16 %v3316, %v3312
  %v4629 = vpack.c.b16 %v3317, %v3313
  %v4630 = vpack.c.b16 %v3318, %v3314
  %v4631 = vpack.c.b16 %v3323, %v3319
  %v4632 = vpack.c.b16 %v3324, %v3320
  %v4633 = vpack.c.b16 %v3325, %v3321
  %v4634 = vpack.c.b16 %v3326, %v3322
  %v4635 = vpack.c.b16 %v3331, %v3327
  %v4636 = vpack.c.b16 %v3332, %v3328
  %v4637 = vpack.c.b16 %v3333, %v3329
  %v4638 = vpack.c.b16 %v3334, %v3330
  %v4639 = vpack.c.b16 %v3339, %v3335
  %v4640 = vpack.c.b16 %v3340, %v3336
  %v4641 = vpack.c.b16 %v3341, %v3337
  %v4642 = vpack.c.b16 %v3342, %v3338
  %v4643 = vpack.c.b16 %v3347, %v3343
  %v4644 = vpack.c.b16 %v3348, %v3344
  %v4645 = vpack.c.b16 %v3349, %v3345
  %v4646 = vpack.c.b16 %v3350, %v3346
  %v4647 = vpack.c.b16 %v3355, %v3351
  %v4648 = vpack.c.b16 %v3356, %v3352
  %v4649 = vpack.c.b16 %v3357, %v3353
  %v4650 = vpack.c.b16 %v3358, %v3354
  %v4651 = vpack.c.b16 %v3363, %v3359
  %v4652 = vpack.c.b16 %v3364, %v3360
  %v4653 = vpack.c.b16 %v3365, %v3361
  %v4654 = vpack.c.b16 %v3366, %v3362
  %v4655 = vpack.c.b16 %v3371, %v3367
  %v4656 = vpack.c.b16 %v3372, %v3368
  %v4657 = vpack.c.b16 %v3373, %v3369
  %v4658 = vpack.c.b16 %v3374, %v3370
  %v4659 = vpack.c.b16 %v3379, %v3375
  %v4660 = vpack.c.b16 %v3380, %v3376
  %v4661 = vpack.c.b16 %v3381, %v3377
  %v4662 = vpack.c.b16 %v3382, %v3378
  %v4663 = vpack.c.b16 %v3387, %v3383
  %v4664 = vpack.c.b16 %v3388, %v3384
  %v4665 = vpack.c.b16 %v3389, %v3385
  %v4666 = vpack.c.b16 %v3390, %v3386
  %v4667 = vpack.c.b16 %v3395, %v3391
  %v4668 = vpack.c.b16 %v3396, %v3392
  %v4669 = vpack.c.b16 %v3397, %v3393
  %v4670 = vpack.c.b16 %v3398, %v3394
  %v4671 = vpack.c.b16 %v3403, %v3399
  %v4672 = vpack.c.b16 %v3404, %v3400
  %v4673 = vpack.c.b16 %v3405, %v3401
  %v4674 = vpack.c.b16 %v3406, %v3402
  %v4675 = vpack.c.b16 %v3411, %v3407
  %v4676 = vpack.c.b16 %v3412, %v3408
  %v4677 = vpack.c.b16 %v3413, %v3409
  %v4678 = vpack.c.b16 %v3414, %v3410
  %v4679 = vpack.c.b16 %v3419, %v3415
  %v4680 = vpack.c.b16 %v3420, %v3416
  %v4681 = vpack.c.b16 %v3421, %v3417
  %v4682 = vpack.c.b16 %v3422, %v3418
  %v4683 = vpack.c.b16 %v3427, %v3423
  %v4684 = vpack.c.b16 %v3428, %v3424
  %v4685 = vpack.c.b16 %v3429, %v3425
  %v4686 = vpack.c.b16 %v3430, %v3426
  %v4687 = vpack.c.b16 %v3435, %v3431
  %v4688 = vpack.c.b16 %v3436, %v3432
  %v4689 = vpack.c.b16 %v3437, %v3433
  %v4690 = vpack.c.b16 %v3438, %v3434
  %v4691 = vpack.c.b16 %v3443, %v3439
  %v4692 = vpack.c.b16 %v3444, %v3440
  %v4693 = vpack.c.b16 %v3445, %v3441
  %v4694 = vpack.c.b16 %v3446, %v3442
  %v4695 = vpack.c.b16 %v3451, %v3447
  %v4696 = vpack.c.b16 %v3452, %v3448
  %v4697 = vpack.c.b16 %v3453, %v3449
  %v4698 = vpack.c.b16 %v3454, %v3450
  %v4699 = vpack.c.b16 %v3459, %v3455
  %v4700 = vpack.c.b16 %v3460, %v3456
  %v4701 = vpack.c.b16 %v3461, %v3457
  %v4702 = vpack.c.b16 %v3462, %v3458
  %v4703 = vpack.c.b16 %v3467, %v3463
  %v4704 = vpack.c.b16 %v3468, %v3464
  %v4705 = vpack.c.b16 %v3469, %v3465
  %v4706 = vpack.c.b16 %v3470, %v3466
  %v4707 = vpack.c.b16 %v3475, %v3471
  %v4708 = vpack.c.b16 %v3476, %v3472
  %v4709 = vpack.c.b16 %v3477, %v3473
  %v4710 = vpack.c.b16 %v3478, %v3474
  %v4711 = vpack.c.b16 %v3483, %v3479
  %v4712 = vpack.c.b16 %v3484, %v3480
  %v4713 = vpack.c.b16 %v3485, %v3481
  %v4714 = vpack.c.b16 %v3486, %v3482
  %v4715 = vpack.c.b16 %v3491, %v3487
  %v4716 = vpack.c.b16 %v3492, %v3488
  %v4717 = vpack.c.b16 %v3493, %v3489
  %v4718 = vpack.c.b16 %v3494, %v3490
  %v4719 = vpack.c.b16 %v3499, %v3495
  %v4720 = vpack.c.b16 %v3500, %v3496
  %v4721 = vpack.c.b16 %v3501, %v3497
  %v4722 = vpack.c.b16 %v3502, %v3498
  %v4723 = vpack.c.b16 %v3507, %v3503
  %v4724 = vpack.c.b16 %v3508, %v3504
  %v4725 = vpack.c.b16 %v3509, %v3505
  %v4726 = vpack.c.b16 %v3510, %v3506
  %v4727 = vpack.c.b16 %v3515, %v3511
  %v4728 = vpack.c.b16 %v3516, %v3512
  %v4729 = vpack.c.b16 %v3517, %v3513
  %v4730 = vpack.c.b16 %v3518, %v3514
  %v4731 = vpack.c.b16 %v3523, %v3519
  %v4732 = vpack.c.b16 %v3524, %v3520
  %v4733 = vpack.c.b16 %v3525, %v3521
  %v4734 = vpack.c.b16 %v3526, %v3522
  %v4735 = vpack.c.b16 %v3531, %v3527
  %v4736 = vpack.c.b16 %v3532, %v3528
  %v4737 = vpack.c.b16 %v3533, %v3529
  %v4738 = vpack.c.b16 %v3534, %v3530
  %v4739 = vpack.c.b16 %v3539, %v3535
  %v4740 = vpack.c.b16 %v3540, %v3536
  %v4741 = vpack.c.b16 %v3541, %v3537
  %v4742 = vpack.c.b16 %v3542, %v3538
  %v4743 = vpack.c.b16 %v3547, %v3543
  %v4744 = vpack.c.b16 %v3548, %v3544
  %v4745 = vpack.c.b16 %v3549, %v3545
  %v4746 = vpack.c.b16 %v3550, %v3546
  %v4747 = vpack.c.b16 %v3555, %v3551
  %v4748 = vpack.c.b16 %v3556, %v3552
  %v4749 = vpack.c.b16 %v3557, %v3553
  %v4750 = vpack.c.b16 %v3558, %v3554
  %v4751 = vpack.c.b16 %v3563, %v3559
  %v4752 = vpack.c.b16 %v3564, %v3560
  %v4753 = vpack.c.b16 %v3565, %v3561
  %v4754 = vpack.c.b16 %v3566, %v3562
  %v4755 = vpack.c.b16 %v3571, %v3567
  %v4756 = vpack.c.b16 %v3572, %v3568
  %v4757 = vpack.c.b16 %v3573, %v3569
  %v4758 = vpack.c.b16 %v3574, %v3570
  %v4759 = vpack.c.b16 %v3579, %v3575
  %v4760 = vpack.c.b16 %v3580, %v3576
  %v4761 = vpack.c.b16 %v3581, %v3577
  %v4762 = vpack.c.b16 %v3582, %v3578
  %v4763 = vpack.c.b16 %v3587, %v3583
  %v4764 = vpack.c.b16 %v3588, %v3584
  %v4765 = vpack.c.b16 %v3589, %v3585
  %v4766 = vpack.c.b16 %v3590, %v3586
  %v4767 = vpack.c.b16 %v3595, %v3591
  %v4768 = vpack.c.b16 %v3596, %v3592
  %v4769 = vpack.c.b16 %v3597, %v3593
  %v4770 = vpack.c.b16 %v3598, %v3594
  %v4771 = vpack.c.b16 %v3603, %v3599
  %v4772 = vpack.c.b16 %v3604, %v3600
  %v4773 = vpack.c.b16 %v3605, %v3601
  %v4774 = vpack.c.b16 %v3606, %v3602
  %v4775 = vpack.c.b16 %v3611, %v3607
  %v4776 = vpack.c.b16 %v3612, %v3608
  %v4777 = vpack.c.b16 %v3613, %v3609
  %v4778 = vpack.c.b16 %v3614, %v3610
  %v4779 = vpack.c.b16 %v3619, %v3615
  %v4780 = vpack.c.b16 %v3620, %v3616
  %v4781 = vpack.c.b16 %v3621, %v3617
  %v4782 = vpack.c.b16 %v3622, %v3618
  %v4783 = vpack.c.b16 %v3627, %v3623
  %v4784 = vpack.c.b16 %v3628, %v3624
  %v4785 = vpack.c.b16 %v3629, %v3625
  %v4786 = vpack.c.b16 %v3630, %v3626
  %v4787 = vpack.c.b16 %v3635, %v3631
  %v4788 = vpack.c.b16 %v3636, %v3632
  %v4789 = vpack.c.b16 %v3637, %v3633
  %v4790 = vpack.c.b16 %v3638, %v3634
  %v4791 = vpack.c.b16 %v3643, %v3639
  %v4792 = vpack.c.b16 %v3644, %v3640
  %v4793 = vpack.c.b16 %v3645, %v3641
  %v4794 = vpack.c.b16 %v3646, %v3642
  %v4795 = vpack.c.b16 %v3651, %v3647
  %v4796 = vpack.c.b16 %v3652, %v3648
  %v4797 = vpack.c.b16 %v3653, %v3649
  %v4798 = vpack.c.b16 %v3654, %v3650
  %v4799 = vpack.c.b16 %v3659, %v3655
  %v4800 = vpack.c.b16 %v3660, %v3656
  %v4801 = vpack.c.b16 %v3661, %v3657
  %v4802 = vpack.c.b16 %v3662, %v3658
  %v4803 = vpack.c.b16 %v3667, %v3663
  %v4804 = vpack.c.b16 %v3668, %v3664
  %v4805 = vpack.c.b16 %v3669, %v3665
  %v4806 = vpack.c.b16 %v3670, %v3666
  %v4807 = vpack.c.b16 %v3675, %v3671
  %v4808 = vpack.c.b16 %v3676, %v3672
  %v4809 = vpack.c.b16 %v3677, %v3673
  %v4810 = vpack.c.b16 %v3678, %v3674
  %v4811 = vpack.c.b16 %v3683, %v3679
  %v4812 = vpack.c.b16 %v3684, %v3680
  %v4813 = vpack.c.b16 %v3685, %v3681
  %v4814 = vpack.c.b16 %v3686, %v3682
  %v4815 = vpack.c.b16 %v3691, %v3687
  %v4816 = vpack.c.b16 %v3692, %v3688
  %v4817 = vpack.c.b16 %v3693, %v3689
  %v4818 = vpack.c.b16 %v3694, %v3690
  %v4819 = vpack.c.b16 %v3699, %v3695
  %v4820 = vpack.c.b16 %v3700, %v3696
  %v4821 = vpack.c.b16 %v3701, %v3697
  %v4822 = vpack.c.b16 %v3702, %v3698
  %v4823 = vpack.c.b16 %v3707, %v3703
  %v4824 = vpack.c.b16 %v3708, %v3704
  %v4825 = vpack.c.b16 %v3709, %v3705
  %v4826 = vpack.c.b16 %v3710, %v3706
  %v4827 = vpack.c.b16 %v3715, %v3711
  %v4828 = vpack.c.b16 %v3716, %v3712
  %v4829 = vpack.c.b16 %v3717, %v3713
  %v4830 = vpack.c.b16 %v3718, %v3714
  %v4831 = vpack.c.b16 %v3723, %v3719
  %v4832 = vpack.c.b16 %v3724, %v3720
  %v4833 = vpack.c.b16 %v3725, %v3721
  %v4834 = vpack.c.b16 %v3726, %v3722
  %v4835 = vpack.c.b16 %v3731, %v3727
  %v4836 = vpack.c.b16 %v3732, %v3728
  %v4837 = vpack.c.b16 %v3733, %v3729
  %v4838 = vpack.c.b16 %v3734, %v3730
  %v4839 = vpack.c.b16 %v3739, %v3735
  %v4840 = vpack.c.b16 %v3740, %v3736
  %v4841 = vpack.c.b16 %v3741, %v3737
  %v4842 = vpack.c.b16 %v3742, %v3738
  %v4843 = vpack.c.b16 %v3747, %v3743
  %v4844 = vpack.c.b16 %v3748, %v3744
  %v4845 = vpack.c.b16 %v3749, %v3745
  %v4846 = vpack.c.b16 %v3750, %v3746
  %v4847 = vpack.c.b16 %v3755, %v3751
  %v4848 = vpack.c.b16 %v3756, %v3752
  %v4849 = vpack.c.b16 %v3757, %v3753
  %v4850 = vpack.c.b16 %v3758, %v3754
  %v4851 = vpack.c.b16 %v3763, %v3759
  %v4852 = vpack.c.b16 %v3764, %v3760
  %v4853 = vpack.c.b16 %v3765, %v3761
  %v4854 = vpack.c.b16 %v3766, %v3762
  %v4855 = vpack.c.b16 %v3771, %v3767
  %v4856 = vpack.c.b16 %v3772, %v3768
  %v4857 = vpack.c.b16 %v3773, %v3769
  %v4858 = vpack.c.b16 %v3774, %v3770
  %v4859 = vpack.c.b16 %v3779, %v3775
  %v4860 = vpack.c.b16 %v3780, %v3776
  %v4861 = vpack.c.b16 %v3781, %v3777
  %v4862 = vpack.c.b16 %v3782, %v3778
  %v4863 = vpack.c.b16 %v3787, %v3783
  %v4864 = vpack.c.b16 %v3788, %v3784
  %v4865 = vpack.c.b16 %v3789, %v3785
  %v4866 = vpack.c.b16 %v3790, %v3786
  %v4867 = vpack.c.b16 %v3795, %v3791
  %v4868 = vpack.c.b16 %v3796, %v3792
  %v4869 = vpack.c.b16 %v3797, %v3793
  %v4870 = vpack.c.b16 %v3798, %v3794
  %v4871 = vpack.c.b16 %v3803, %v3799
  %v4872 = vpack.c.b16 %v3804, %v3800
  %v4873 = vpack.c.b16 %v3805, %v3801
  %v4874 = vpack.c.b16 %v3806, %v3802
  %v4875 = vpack.c.b16 %v3811, %v3807
  %v4876 = vpack.c.b16 %v3812, %v3808
  %v4877 = vpack.c.b16 %v3813, %v3809
  %v4878 = vpack.c.b16 %v3814, %v3810
  %v4879 = vpack.c.b16 %v3819, %v3815
  %v4880 = vpack.c.b16 %v3820, %v3816
  %v4881 = vpack.c.b16 %v3821, %v3817
  %v4882 = vpack.c.b16 %v3822, %v3818
  %v4883 = vpack.c.b16 %v3827, %v3823
  %v4884 = vpack.c.b16 %v3828, %v3824
  %v4885 = vpack.c.b16 %v3829, %v3825
  %v4886 = vpack.c.b16 %v3830, %v3826
  %v4887 = vpack.c.b16 %v3835, %v3831
  %v4888 = vpack.c.b16 %v3836, %v3832
  %v4889 = vpack.c.b16 %v3837, %v3833
  %v4890 = vpack.c.b16 %v3838, %v3834
  %v4891 = vpack.c.b16 %v3843, %v3839
  %v4892 = vpack.c.b16 %v3844, %v3840
  %v4893 = vpack.c.b16 %v3845, %v3841
  %v4894 = vpack.c.b16 %v3846, %v3842
  %v4895 = vpack.c.b16 %v3851, %v3847
  %v4896 = vpack.c.b16 %v3852, %v3848
  %v4897 = vpack.c.b16 %v3853, %v3849
  %v4898 = vpack.c.b16 %v3854, %v3850
  %v4899 = vpack.c.b16 %v3859, %v3855
  %v4900 = vpack.c.b16 %v3860, %v3856
  %v4901 = vpack.c.b16 %v3861, %v3857
  %v4902 = vpack.c.b16 %v3862, %v3858
  %v4903 = vpack.c.b16 %v3867, %v3863
  %v4904 = vpack.c.b16 %v3868, %v3864
  %v4905 = vpack.c.b16 %v3869, %v3865
  %v4906 = vpack.c.b16 %v3870, %v3866
  %v4907 = vpack.c.b16 %v3875, %v3871
  %v4908 = vpack.c.b16 %v3876, %v3872
  %v4909 = vpack.c.b16 %v3877, %v3873
  %v4910 = vpack.c.b16 %v3878, %v3874
  %v4911 = vpack.c.b16 %v3883, %v3879
  %v4912 = vpack.c.b16 %v3884, %v3880
  %v4913 = vpack.c.b16 %v3885, %v3881
  %v4914 = vpack.c.b16 %v3886, %v3882
  %v4915 = vpack.c.b16 %v3891, %v3887
  %v4916 = vpack.c.b16 %v3892, %v3888
  %v4917 = vpack.c.b16 %v3893, %v3889
  %v4918 = vpack.c.b16 %v3894, %v3890
  %v4919 = vpack.c.b16 %v3899, %v3895
  %v4920 = vpack.c.b16 %v3900, %v3896
  %v4921 = vpack.c.b16 %v3901, %v3897
  %v4922 = vpack.c.b16 %v3902, %v3898
  %v4923 = vpack.c.b16 %v3907, %v3903
  %v4924 = vpack.c.b16 %v3908, %v3904
  %v4925 = vpack.c.b16 %v3909, %v3905
  %v4926 = vpack.c.b16 %v3910, %v3906
  %v4927 = vpack.c.b16 %v3915, %v3911
  %v4928 = vpack.c.b16 %v3916, %v3912
  %v4929 = vpack.c.b16 %v3917, %v3913
  %v4930 = vpack.c.b16 %v3918, %v3914
  %v4931 = vpack.c.b16 %v3923, %v3919
  %v4932 = vpack.c.b16 %v3924, %v3920
  %v4933 = vpack.c.b16 %v3925, %v3921
  %v4934 = vpack.c.b16 %v3926, %v3922
  %v4935 = vpack.c.b16 %v3931, %v3927
  %v4936 = vpack.c.b16 %v3932, %v3928
  %v4937 = vpack.c.b16 %v3933, %v3929
  %v4938 = vpack.c.b16 %v3934, %v3930
  %v4939 = vpack.c.b16 %v3939, %v3935
  %v4940 = vpack.c.b16 %v3940, %v3936
  %v4941 = vpack.c.b16 %v3941, %v3937
  %v4942 = vpack.c.b16 %v3942, %v3938
  %v4943 = vpack.c.b16 %v3947, %v3943
  %v4944 = vpack.c.b16 %v3948, %v3944
  %v4945 = vpack.c.b16 %v3949, %v3945
  %v4946 = vpack.c.b16 %v3950, %v3946
  %v4947 = vpack.c.b16 %v3955, %v3951
  %v4948 = vpack.c.b16 %v3956, %v3952
  %v4949 = vpack.c.b16 %v3957, %v3953
  %v4950 = vpack.c.b16 %v3958, %v3954
  %v4951 = vpack.c.b16 %v3963, %v3959
  %v4952 = vpack.c.b16 %v3964, %v3960
  %v4953 = vpack.c.b16 %v3965, %v3961
  %v4954 = vpack.c.b16 %v3966, %v3962
  %v4955 = vpack.c.b16 %v3971, %v3967
  %v4956 = vpack.c.b16 %v3972, %v3968
  %v4957 = vpack.c.b16 %v3973, %v3969
  %v4958 = vpack.c.b16 %v3974, %v3970
  %v4959 = vpack.c.b16 %v3979, %v3975
  %v4960 = vpack.c.b16 %v3980, %v3976
  %v4961 = vpack.c.b16 %v3981, %v3977
  %v4962 = vpack.c.b16 %v3982, %v3978
  %v4963 = vpack.c.b16 %v3987, %v3983
  %v4964 = vpack.c.b16 %v3988, %v3984
  %v4965 = vpack.c.b16 %v3989, %v3985
  %v4966 = vpack.c.b16 %v3990, %v3986
  %v4967 = vpack.c.b16 %v3995, %v3991
  %v4968 = vpack.c.b16 %v3996, %v3992
  %v4969 = vpack.c.b16 %v3997, %v3993
  %v4970 = vpack.c.b16 %v3998, %v3994
  %v4971 = vpack.c.b16 %v4003, %v3999
  %v4972 = vpack.c.b16 %v4004, %v4000
  %v4973 = vpack.c.b16 %v4005, %v4001
  %v4974 = vpack.c.b16 %v4006, %v4002
  %v4975 = vpack.c.b16 %v4011, %v4007
  %v4976 = vpack.c.b16 %v4012, %v4008
  %v4977 = vpack.c.b16 %v4013, %v4009
  %v4978 = vpack.c.b16 %v4014, %v4010
  %v4979 = vpack.c.b16 %v4019, %v4015
  %v4980 = vpack.c.b16 %v4020, %v4016
  %v4981 = vpack.c.b16 %v4021, %v4017
  %v4982 = vpack.c.b16 %v4022, %v4018
  %v4983 = vpack.c.b16 %v4027, %v4023
  %v4984 = vpack.c.b16 %v4028, %v4024
  %v4985 = vpack.c.b16 %v4029, %v4025
  %v4986 = vpack.c.b16 %v4030, %v4026
  %v4987 = vpack.c.b16 %v4035, %v4031
  %v4988 = vpack.c.b16 %v4036, %v4032
  %v4989 = vpack.c.b16 %v4037, %v4033
  %v4990 = vpack.c.b16 %v4038, %v4034
  %v4991 = vpack.c.b16 %v4043, %v4039
  %v4992 = vpack.c.b16 %v4044, %v4040
  %v4993 = vpack.c.b16 %v4045, %v4041
  %v4994 = vpack.c.b16 %v4046, %v4042
  %v4995 = vpack.c.b16 %v4051, %v4047
  %v4996 = vpack.c.b16 %v4052, %v4048
  %v4997 = vpack.c.b16 %v4053, %v4049
  %v4998 = vpack.c.b16 %v4054, %v4050
  %v4999 = vpack.c.b16 %v4059, %v4055
  %v5000 = vpack.c.b16 %v4060, %v4056
  %v5001 = vpack.c.b16 %v4061, %v4057
  %v5002 = vpack.c.b16 %v4062, %v4058
  %v5003 = vpack.c.b16 %v4067, %v4063
  %v5004 = vpack.c.b16 %v4068, %v4064
  %v5005 = vpack.c.b16 %v4069, %v4065
  %v5006 = vpack.c.b16 %v4070, %v4066
  %v5007 = vpack.c.b16 %v4075, %v4071
  %v5008 = vpack.c.b16 %v4076, %v4072
  %v5009 = vpack.c.b16 %v4077, %v4073
  %v5010 = vpack.c.b16 %v4078, %v4074
  %v5011 = vpack.c.b16 %v4083, %v4079
  %v5012 = vpack.c.b16 %v4084, %v4080
  %v5013 = vpack.c.b16 %v4085, %v4081
  %v5014 = vpack.c.b16 %v4086, %v4082
  %v5015 = vpack.c.b16 %v4091, %v4087
  %v5016 = vpack.c.b16 %v4092, %v4088
  %v5017 = vpack.c.b16 %v4093, %v4089
  %v5018 = vpack.c.b16 %v4094, %v4090
  %v5019 = vpack.c.b16 %v4099, %v4095
  %v5020 = vpack.c.b16 %v4100, %v4096
  %v5021 = vpack.c.b16 %v4101, %v4097
  %v5022 = vpack.c.b16 %v4102, %v4098
  %v5023 = vpack.c.b16 %v4107, %v4103
  %v5024 = vpack.c.b16 %v4108, %v4104
  %v5025 = vpack.c.b16 %v4109, %v4105
  %v5026 = vpack.c.b16 %v4110, %v4106
  %v5027 = vpack.c.b16 %v4115, %v4111
  %v5028 = vpack.c.b16 %v4116, %v4112
  %v5029 = vpack.c.b16 %v4117, %v4113
  %v5030 = vpack.c.b16 %v4118, %v4114
  %v5031 = vpack.c.b16 %v4123, %v4119
  %v5032 = vpack.c.b16 %v4124, %v4120
  %v5033 = vpack.c.b16 %v4125, %v4121
  %v5034 = vpack.c.b16 %v4126, %v4122
  %v5035 = vpack.c.b16 %v4131, %v4127
  %v5036 = vpack.c.b16 %v4132, %v4128
  %v5037 = vpack.c.b16 %v4133, %v4129
  %v5038 = vpack.c.b16 %v4134, %v4130
  %v5039 = vpack.c.b16 %v4139, %v4135
  %v5040 = vpack.c.b16 %v4140, %v4136
  %v5041 = vpack.c.b16 %v4141, %v4137
  %v5042 = vpack.c.b16 %v4142, %v4138
  %v5043 = vpack.c.b16 %v4147, %v4143
  %v5044 = vpack.c.b16 %v4148, %v4144
  %v5045 = vpack.c.b16 %v4149, %v4145
  %v5046 = vpack.c.b16 %v4150, %v4146
  %v5047 = vpack.c.b16 %v4155, %v4151
  %v5048 = vpack.c.b16 %v4156, %v4152
  %v5049 = vpack.c.b16 %v4157, %v4153
  %v5050 = vpack.c.b16 %v4158, %v4154
  %v5051 = vpack.c.b16 %v4163, %v4159
  %v5052 = vpack.c.b16 %v4164, %v4160
  %v5053 = vpack.c.b16 %v4165, %v4161
  %v5054 = vpack.c.b16 %v4166, %v4162
  %v5055 = vpack.c.b16 %v4171, %v4167
  %v5056 = vpack.c.b16 %v4172, %v4168
  %v5057 = vpack.c.b16 %v4173, %v4169
  %v5058 = vpack.c.b16 %v4174, %v4170
  %v5059 = vpack.c.b16 %v4179, %v4175
  %v5060 = vpack.c.b16 %v4180, %v4176
  %v5061 = vpack.c.b16 %v4181, %v4177
  %v5062 = vpack.c.b16 %v4182, %v4178
  %v5063 = vpack.c.b16 %v4187, %v4183
  %v5064 = vpack.c.b16 %v4188, %v4184
  %v5065 = vpack.c.b16 %v4189, %v4185
  %v5066 = vpack.c.b16 %v4190, %v4186
  %v5067 = vpack.c.b16 %v4195, %v4191
  %v5068 = vpack.c.b16 %v4196, %v4192
  %v5069 = vpack.c.b16 %v4197, %v4193
  %v5070 = vpack.c.b16 %v4198, %v4194
  %v5071 = vpack.c.b16 %v4203, %v4199
  %v5072 = vpack.c.b16 %v4204, %v4200
  %v5073 = vpack.c.b16 %v4205, %v4201
  %v5074 = vpack.c.b16 %v4206, %v4202
  %v5075 = vpack.c.b16 %v4211, %v4207
  %v5076 = vpack.c.b16 %v4212, %v4208
  %v5077 = vpack.c.b16 %v4213, %v4209
  %v5078 = vpack.c.b16 %v4214, %v4210
  %v5079 = vpack.c.b16 %v4219, %v4215
  %v5080 = vpack.c.b16 %v4220, %v4216
  %v5081 = vpack.c.b16 %v4221, %v4217
  %v5082 = vpack.c.b16 %v4222, %v4218
  %v5083 = vpack.c.b16 %v4227, %v4223
  %v5084 = vpack.c.b16 %v4228, %v4224
  %v5085 = vpack.c.b16 %v4229, %v4225
  %v5086 = vpack.c.b16 %v4230, %v4226
  %v5087 = vpack.c.b16 %v4235, %v4231
  %v5088 = vpack.c.b16 %v4236, %v4232
  %v5089 = vpack.c.b16 %v4237, %v4233
  %v5090 = vpack.c.b16 %v4238, %v4234
  %v5091 = vpack.c.b16 %v4243, %v4239
  %v5092 = vpack.c.b16 %v4244, %v4240
  %v5093 = vpack.c.b16 %v4245, %v4241
  %v5094 = vpack.c.b16 %v4246, %v4242
  %v5095 = vpack.c.b16 %v4251, %v4247
  %v5096 = vpack.c.b16 %v4252, %v4248
  %v5097 = vpack.c.b16 %v4253, %v4249
  %v5098 = vpack.c.b16 %v4254, %v4250
  %v5099 = vpack.c.b16 %v4259, %v4255
  %v5100 = vpack.c.b16 %v4260, %v4256
  %v5101 = vpack.c.b16 %v4261, %v4257
  %v5102 = vpack.c.b16 %v4262, %v4258
  %v5103 = vpack.c.b16 %v4267, %v4263
  %v5104 = vpack.c.b16 %v4268, %v4264
  %v5105 = vpack.c.b16 %v4269, %v4265
  %v5106 = vpack.c.b16 %v4270, %v4266
  %v5107 = vpack.c.b16 %v4275, %v4271
  %v5108 = vpack.c.b16 %v4276, %v4272
  %v5109 = vpack.c.b16 %v4277, %v4273
  %v5110 = vpack.c.b16 %v4278, %v4274
  %v5111 = vpack.c.b16 %v4283, %v4279
  %v5112 = vpack.c.b16 %v4284, %v4280
  %v5113 = vpack.c.b16 %v4285, %v4281
  %v5114 = vpack.c.b16 %v4286, %v4282
  %v5115 = vpack.c.b16 %v4291, %v4287
  %v5116 = vpack.c.b16 %v4292, %v4288
  %v5117 = vpack.c.b16 %v4293, %v4289
  %v5118 = vpack.c.b16 %v4294, %v4290
  %v5119 = vpack.c.b16 %v4299, %v4295
  %v5120 = vpack.c.b16 %v4300, %v4296
  %v5121 = vpack.c.b16 %v4301, %v4297
  %v5122 = vpack.c.b16 %v4302, %v4298
  %v5123 = vpack.c.b16 %v4307, %v4303
  %v5124 = vpack.c.b16 %v4308, %v4304
  %v5125 = vpack.c.b16 %v4309, %v4305
  %v5126 = vpack.c.b16 %v4310, %v4306
  %v5127 = vpack.c.b16 %v4315, %v4311
  %v5128 = vpack.c.b16 %v4316, %v4312
  %v5129 = vpack.c.b16 %v4317, %v4313
  %v5130 = vpack.c.b16 %v4318, %v4314
  %v5131 = vpack.c.b16 %v4323, %v4319
  %v5132 = vpack.c.b16 %v4324, %v4320
  %v5133 = vpack.c.b16 %v4325, %v4321
  %v5134 = vpack.c.b16 %v4326, %v4322
  %v5135 = vpack.c.b16 %v4331, %v4327
  %v5136 = vpack.c.b16 %v4332, %v4328
  %v5137 = vpack.c.b16 %v4333, %v4329
  %v5138 = vpack.c.b16 %v4334, %v4330
  %v5139 = vpack.c.b16 %v4339, %v4335
  %v5140 = vpack.c.b16 %v4340, %v4336
  %v5141 = vpack.c.b16 %v4341, %v4337
  %v5142 = vpack.c.b16 %v4342, %v4338
  %v5143 = vpack.c.b16 %v4347, %v4343
  %v5144 = vpack.c.b16 %v4348, %v4344
  %v5145 = vpack.c.b16 %v4349, %v4345
  %v5146 = vpack.c.b16 %v4350, %v4346
  %v5147 = vpack.c.b16 %v4355, %v4351
  %v5148 = vpack.c.b16 %v4356, %v4352
  %v5149 = vpack.c.b16 %v4357, %v4353
  %v5150 = vpack.c.b16 %v4358, %v4354
  %v5151 = vpack.c.b16 %v4363, %v4359
  %v5152 = vpack.c.b16 %v4364, %v4360
  %v5153 = vpack.c.b16 %v4365, %v4361
  %v5154 = vpack.c.b16 %v4366, %v4362
  %v5155 = vpack.c.b16 %v4371, %v4367
  %v5156 = vpack.c.b16 %v4372, %v4368
  %v5157 = vpack.c.b16 %v4373, %v4369
  %v5158 = vpack.c.b16 %v4374, %v4370
  %vm5943 = vcmask 523264
  %v5945 = vsel %vm5943, %v1655, 0
  %v5948 = vsel %vm5943, %v1680, 0
  %v5951 = vsel %vm5943, %v1705, 0
  %v5954 = vsel %vm5943, %v1730, 0
  %v5957 = vsel %vm5943, %v1755, 0
  %v5960 = vsel %vm5943, %v1780, 0
  %v5963 = vsel %vm5943, %v1805, 0
  %v5966 = vsel %vm5943, %v1830, 0
  %5968 = vmatpush.bf16.msra.mxu0 %v4403
  %5969 = vmatpush.bf16.msra.mxu0 %v4399
  %5970 = vmatpush.bf16.msra.mxu0 %v4395
  %5971 = vmatpush.bf16.msra.mxu0 %v4391
  %5972 = vmatpush.bf16.msra.mxu0 %v4387
  %5973 = vmatpush.bf16.msra.mxu0 %v4383
  %5974 = vmatpush.bf16.msra.mxu0 %v4379
  %5975 = vmatpush.bf16.msra.mxu0 %v4375
  %5976 = vmatmul.bf16.gmra.mxu0 %v1631
  %v5977 = vpop.f32.mrf.mxu0
  %v5978 = vadd.f32 %v1015, %v5977
  %v5979 = vpop.f32.mrf.mxu0
  %v5980 = vadd.f32 %v1015, %v5979
  %5981 = vmatmul.bf16.gmra.mxu0 %v1656
  %v5982 = vpop.f32.mrf.mxu0
  %v5983 = vadd.f32 %v1015, %v5982
  %v5984 = vpop.f32.mrf.mxu0
  %v5985 = vadd.f32 %v1015, %v5984
  %5986 = vmatmul.bf16.gmra.mxu0 %v1681
  %v5987 = vpop.f32.mrf.mxu0
  %v5988 = vadd.f32 %v1015, %v5987
  %v5989 = vpop.f32.mrf.mxu0
  %v5990 = vadd.f32 %v1015, %v5989
  %5991 = vmatmul.bf16.gmra.mxu0 %v1706
  %v5992 = vpop.f32.mrf.mxu0
  %v5993 = vadd.f32 %v1015, %v5992
  %v5994 = vpop.f32.mrf.mxu0
  %v5995 = vadd.f32 %v1015, %v5994
  %5996 = vmatmul.bf16.gmra.mxu0 %v1731
  %v5997 = vpop.f32.mrf.mxu0
  %v5998 = vadd.f32 %v1015, %v5997
  %v5999 = vpop.f32.mrf.mxu0
  %v6000 = vadd.f32 %v1015, %v5999
  %6001 = vmatmul.bf16.gmra.mxu0 %v1756
  %v6002 = vpop.f32.mrf.mxu0
  %v6003 = vadd.f32 %v1015, %v6002
  %v6004 = vpop.f32.mrf.mxu0
  %v6005 = vadd.f32 %v1015, %v6004
  %6006 = vmatmul.bf16.gmra.mxu0 %v1781
  %v6007 = vpop.f32.mrf.mxu0
  %v6008 = vadd.f32 %v1015, %v6007
  %v6009 = vpop.f32.mrf.mxu0
  %v6010 = vadd.f32 %v1015, %v6009
  %6011 = vmatmul.bf16.gmra.mxu0 %v1806
  %v6012 = vpop.f32.mrf.mxu0
  %v6013 = vadd.f32 %v1015, %v6012
  %v6014 = vpop.f32.mrf.mxu0
  %v6015 = vadd.f32 %v1015, %v6014
  %6016 = vdwg.mxu0
  %6017 = vmatpush.bf16.msra.mxu0 %v4435
  %6018 = vmatpush.bf16.msra.mxu0 %v4431
  %6019 = vmatpush.bf16.msra.mxu0 %v4427
  %6020 = vmatpush.bf16.msra.mxu0 %v4423
  %6021 = vmatpush.bf16.msra.mxu0 %v4419
  %6022 = vmatpush.bf16.msra.mxu0 %v4415
  %6023 = vmatpush.bf16.msra.mxu0 %v4411
  %6024 = vmatpush.bf16.msra.mxu0 %v4407
  %6025 = vmatmul.bf16.gmra.mxu0 %v1632
  %v6026 = vpop.f32.mrf.mxu0
  %v6027 = vadd.f32 %v5978, %v6026
  %v6028 = vpop.f32.mrf.mxu0
  %v6029 = vadd.f32 %v5980, %v6028
  %6030 = vmatmul.bf16.gmra.mxu0 %v1657
  %v6031 = vpop.f32.mrf.mxu0
  %v6032 = vadd.f32 %v5983, %v6031
  %v6033 = vpop.f32.mrf.mxu0
  %v6034 = vadd.f32 %v5985, %v6033
  %6035 = vmatmul.bf16.gmra.mxu0 %v1682
  %v6036 = vpop.f32.mrf.mxu0
  %v6037 = vadd.f32 %v5988, %v6036
  %v6038 = vpop.f32.mrf.mxu0
  %v6039 = vadd.f32 %v5990, %v6038
  %6040 = vmatmul.bf16.gmra.mxu0 %v1707
  %v6041 = vpop.f32.mrf.mxu0
  %v6042 = vadd.f32 %v5993, %v6041
  %v6043 = vpop.f32.mrf.mxu0
  %v6044 = vadd.f32 %v5995, %v6043
  %6045 = vmatmul.bf16.gmra.mxu0 %v1732
  %v6046 = vpop.f32.mrf.mxu0
  %v6047 = vadd.f32 %v5998, %v6046
  %v6048 = vpop.f32.mrf.mxu0
  %v6049 = vadd.f32 %v6000, %v6048
  %6050 = vmatmul.bf16.gmra.mxu0 %v1757
  %v6051 = vpop.f32.mrf.mxu0
  %v6052 = vadd.f32 %v6003, %v6051
  %v6053 = vpop.f32.mrf.mxu0
  %v6054 = vadd.f32 %v6005, %v6053
  %6055 = vmatmul.bf16.gmra.mxu0 %v1782
  %v6056 = vpop.f32.mrf.mxu0
  %v6057 = vadd.f32 %v6008, %v6056
  %v6058 = vpop.f32.mrf.mxu0
  %v6059 = vadd.f32 %v6010, %v6058
  %6060 = vmatmul.bf16.gmra.mxu0 %v1807
  %v6061 = vpop.f32.mrf.mxu0
  %v6062 = vadd.f32 %v6013, %v6061
  %v6063 = vpop.f32.mrf.mxu0
  %v6064 = vadd.f32 %v6015, %v6063
  %6065 = vdwg.mxu0
  %6066 = vmatpush.bf16.msra.mxu0 %v4467
  %6067 = vmatpush.bf16.msra.mxu0 %v4463
  %6068 = vmatpush.bf16.msra.mxu0 %v4459
  %6069 = vmatpush.bf16.msra.mxu0 %v4455
  %6070 = vmatpush.bf16.msra.mxu0 %v4451
  %6071 = vmatpush.bf16.msra.mxu0 %v4447
  %6072 = vmatpush.bf16.msra.mxu0 %v4443
  %6073 = vmatpush.bf16.msra.mxu0 %v4439
  %6074 = vmatmul.bf16.gmra.mxu0 %v1633
  %v6075 = vpop.f32.mrf.mxu0
  %v6076 = vadd.f32 %v6027, %v6075
  %v6077 = vpop.f32.mrf.mxu0
  %v6078 = vadd.f32 %v6029, %v6077
  %6079 = vmatmul.bf16.gmra.mxu0 %v1658
  %v6080 = vpop.f32.mrf.mxu0
  %v6081 = vadd.f32 %v6032, %v6080
  %v6082 = vpop.f32.mrf.mxu0
  %v6083 = vadd.f32 %v6034, %v6082
  %6084 = vmatmul.bf16.gmra.mxu0 %v1683
  %v6085 = vpop.f32.mrf.mxu0
  %v6086 = vadd.f32 %v6037, %v6085
  %v6087 = vpop.f32.mrf.mxu0
  %v6088 = vadd.f32 %v6039, %v6087
  %6089 = vmatmul.bf16.gmra.mxu0 %v1708
  %v6090 = vpop.f32.mrf.mxu0
  %v6091 = vadd.f32 %v6042, %v6090
  %v6092 = vpop.f32.mrf.mxu0
  %v6093 = vadd.f32 %v6044, %v6092
  %6094 = vmatmul.bf16.gmra.mxu0 %v1733
  %v6095 = vpop.f32.mrf.mxu0
  %v6096 = vadd.f32 %v6047, %v6095
  %v6097 = vpop.f32.mrf.mxu0
  %v6098 = vadd.f32 %v6049, %v6097
  %6099 = vmatmul.bf16.gmra.mxu0 %v1758
  %v6100 = vpop.f32.mrf.mxu0
  %v6101 = vadd.f32 %v6052, %v6100
  %v6102 = vpop.f32.mrf.mxu0
  %v6103 = vadd.f32 %v6054, %v6102
  %6104 = vmatmul.bf16.gmra.mxu0 %v1783
  %v6105 = vpop.f32.mrf.mxu0
  %v6106 = vadd.f32 %v6057, %v6105
  %v6107 = vpop.f32.mrf.mxu0
  %v6108 = vadd.f32 %v6059, %v6107
  %6109 = vmatmul.bf16.gmra.mxu0 %v1808
  %v6110 = vpop.f32.mrf.mxu0
  %v6111 = vadd.f32 %v6062, %v6110
  %v6112 = vpop.f32.mrf.mxu0
  %v6113 = vadd.f32 %v6064, %v6112
  %6114 = vdwg.mxu0
  %6115 = vmatpush.bf16.msra.mxu0 %v4499
  %6116 = vmatpush.bf16.msra.mxu0 %v4495
  %6117 = vmatpush.bf16.msra.mxu0 %v4491
  %6118 = vmatpush.bf16.msra.mxu0 %v4487
  %6119 = vmatpush.bf16.msra.mxu0 %v4483
  %6120 = vmatpush.bf16.msra.mxu0 %v4479
  %6121 = vmatpush.bf16.msra.mxu0 %v4475
  %6122 = vmatpush.bf16.msra.mxu0 %v4471
  %6123 = vmatmul.bf16.gmra.mxu0 %v1634
  %v6124 = vpop.f32.mrf.mxu0
  %v6125 = vadd.f32 %v6076, %v6124
  %v6126 = vpop.f32.mrf.mxu0
  %v6127 = vadd.f32 %v6078, %v6126
  %6128 = vmatmul.bf16.gmra.mxu0 %v1659
  %v6129 = vpop.f32.mrf.mxu0
  %v6130 = vadd.f32 %v6081, %v6129
  %v6131 = vpop.f32.mrf.mxu0
  %v6132 = vadd.f32 %v6083, %v6131
  %6133 = vmatmul.bf16.gmra.mxu0 %v1684
  %v6134 = vpop.f32.mrf.mxu0
  %v6135 = vadd.f32 %v6086, %v6134
  %v6136 = vpop.f32.mrf.mxu0
  %v6137 = vadd.f32 %v6088, %v6136
  %6138 = vmatmul.bf16.gmra.mxu0 %v1709
  %v6139 = vpop.f32.mrf.mxu0
  %v6140 = vadd.f32 %v6091, %v6139
  %v6141 = vpop.f32.mrf.mxu0
  %v6142 = vadd.f32 %v6093, %v6141
  %6143 = vmatmul.bf16.gmra.mxu0 %v1734
  %v6144 = vpop.f32.mrf.mxu0
  %v6145 = vadd.f32 %v6096, %v6144
  %v6146 = vpop.f32.mrf.mxu0
  %v6147 = vadd.f32 %v6098, %v6146
  %6148 = vmatmul.bf16.gmra.mxu0 %v1759
  %v6149 = vpop.f32.mrf.mxu0
  %v6150 = vadd.f32 %v6101, %v6149
  %v6151 = vpop.f32.mrf.mxu0
  %v6152 = vadd.f32 %v6103, %v6151
  %6153 = vmatmul.bf16.gmra.mxu0 %v1784
  %v6154 = vpop.f32.mrf.mxu0
  %v6155 = vadd.f32 %v6106, %v6154
  %v6156 = vpop.f32.mrf.mxu0
  %v6157 = vadd.f32 %v6108, %v6156
  %6158 = vmatmul.bf16.gmra.mxu0 %v1809
  %v6159 = vpop.f32.mrf.mxu0
  %v6160 = vadd.f32 %v6111, %v6159
  %v6161 = vpop.f32.mrf.mxu0
  %v6162 = vadd.f32 %v6113, %v6161
  %6163 = vdwg.mxu0
  %6164 = vmatpush.bf16.msra.mxu0 %v4531
  %6165 = vmatpush.bf16.msra.mxu0 %v4527
  %6166 = vmatpush.bf16.msra.mxu0 %v4523
  %6167 = vmatpush.bf16.msra.mxu0 %v4519
  %6168 = vmatpush.bf16.msra.mxu0 %v4515
  %6169 = vmatpush.bf16.msra.mxu0 %v4511
  %6170 = vmatpush.bf16.msra.mxu0 %v4507
  %6171 = vmatpush.bf16.msra.mxu0 %v4503
  %6172 = vmatmul.bf16.gmra.mxu0 %v1635
  %v6173 = vpop.f32.mrf.mxu0
  %v6174 = vadd.f32 %v6125, %v6173
  %v6175 = vpop.f32.mrf.mxu0
  %v6176 = vadd.f32 %v6127, %v6175
  %6177 = vmatmul.bf16.gmra.mxu0 %v1660
  %v6178 = vpop.f32.mrf.mxu0
  %v6179 = vadd.f32 %v6130, %v6178
  %v6180 = vpop.f32.mrf.mxu0
  %v6181 = vadd.f32 %v6132, %v6180
  %6182 = vmatmul.bf16.gmra.mxu0 %v1685
  %v6183 = vpop.f32.mrf.mxu0
  %v6184 = vadd.f32 %v6135, %v6183
  %v6185 = vpop.f32.mrf.mxu0
  %v6186 = vadd.f32 %v6137, %v6185
  %6187 = vmatmul.bf16.gmra.mxu0 %v1710
  %v6188 = vpop.f32.mrf.mxu0
  %v6189 = vadd.f32 %v6140, %v6188
  %v6190 = vpop.f32.mrf.mxu0
  %v6191 = vadd.f32 %v6142, %v6190
  %6192 = vmatmul.bf16.gmra.mxu0 %v1735
  %v6193 = vpop.f32.mrf.mxu0
  %v6194 = vadd.f32 %v6145, %v6193
  %v6195 = vpop.f32.mrf.mxu0
  %v6196 = vadd.f32 %v6147, %v6195
  %6197 = vmatmul.bf16.gmra.mxu0 %v1760
  %v6198 = vpop.f32.mrf.mxu0
  %v6199 = vadd.f32 %v6150, %v6198
  %v6200 = vpop.f32.mrf.mxu0
  %v6201 = vadd.f32 %v6152, %v6200
  %6202 = vmatmul.bf16.gmra.mxu0 %v1785
  %v6203 = vpop.f32.mrf.mxu0
  %v6204 = vadd.f32 %v6155, %v6203
  %v6205 = vpop.f32.mrf.mxu0
  %v6206 = vadd.f32 %v6157, %v6205
  %6207 = vmatmul.bf16.gmra.mxu0 %v1810
  %v6208 = vpop.f32.mrf.mxu0
  %v6209 = vadd.f32 %v6160, %v6208
  %v6210 = vpop.f32.mrf.mxu0
  %v6211 = vadd.f32 %v6162, %v6210
  %6212 = vdwg.mxu0
  %6213 = vmatpush.bf16.msra.mxu0 %v4563
  %6214 = vmatpush.bf16.msra.mxu0 %v4559
  %6215 = vmatpush.bf16.msra.mxu0 %v4555
  %6216 = vmatpush.bf16.msra.mxu0 %v4551
  %6217 = vmatpush.bf16.msra.mxu0 %v4547
  %6218 = vmatpush.bf16.msra.mxu0 %v4543
  %6219 = vmatpush.bf16.msra.mxu0 %v4539
  %6220 = vmatpush.bf16.msra.mxu0 %v4535
  %6221 = vmatmul.bf16.gmra.mxu0 %v1636
  %v6222 = vpop.f32.mrf.mxu0
  %v6223 = vadd.f32 %v6174, %v6222
  %v6224 = vpop.f32.mrf.mxu0
  %v6225 = vadd.f32 %v6176, %v6224
  %6226 = vmatmul.bf16.gmra.mxu0 %v1661
  %v6227 = vpop.f32.mrf.mxu0
  %v6228 = vadd.f32 %v6179, %v6227
  %v6229 = vpop.f32.mrf.mxu0
  %v6230 = vadd.f32 %v6181, %v6229
  %6231 = vmatmul.bf16.gmra.mxu0 %v1686
  %v6232 = vpop.f32.mrf.mxu0
  %v6233 = vadd.f32 %v6184, %v6232
  %v6234 = vpop.f32.mrf.mxu0
  %v6235 = vadd.f32 %v6186, %v6234
  %6236 = vmatmul.bf16.gmra.mxu0 %v1711
  %v6237 = vpop.f32.mrf.mxu0
  %v6238 = vadd.f32 %v6189, %v6237
  %v6239 = vpop.f32.mrf.mxu0
  %v6240 = vadd.f32 %v6191, %v6239
  %6241 = vmatmul.bf16.gmra.mxu0 %v1736
  %v6242 = vpop.f32.mrf.mxu0
  %v6243 = vadd.f32 %v6194, %v6242
  %v6244 = vpop.f32.mrf.mxu0
  %v6245 = vadd.f32 %v6196, %v6244
  %6246 = vmatmul.bf16.gmra.mxu0 %v1761
  %v6247 = vpop.f32.mrf.mxu0
  %v6248 = vadd.f32 %v6199, %v6247
  %v6249 = vpop.f32.mrf.mxu0
  %v6250 = vadd.f32 %v6201, %v6249
  %6251 = vmatmul.bf16.gmra.mxu0 %v1786
  %v6252 = vpop.f32.mrf.mxu0
  %v6253 = vadd.f32 %v6204, %v6252
  %v6254 = vpop.f32.mrf.mxu0
  %v6255 = vadd.f32 %v6206, %v6254
  %6256 = vmatmul.bf16.gmra.mxu0 %v1811
  %v6257 = vpop.f32.mrf.mxu0
  %v6258 = vadd.f32 %v6209, %v6257
  %v6259 = vpop.f32.mrf.mxu0
  %v6260 = vadd.f32 %v6211, %v6259
  %6261 = vdwg.mxu0
  %6262 = vmatpush.bf16.msra.mxu0 %v4595
  %6263 = vmatpush.bf16.msra.mxu0 %v4591
  %6264 = vmatpush.bf16.msra.mxu0 %v4587
  %6265 = vmatpush.bf16.msra.mxu0 %v4583
  %6266 = vmatpush.bf16.msra.mxu0 %v4579
  %6267 = vmatpush.bf16.msra.mxu0 %v4575
  %6268 = vmatpush.bf16.msra.mxu0 %v4571
  %6269 = vmatpush.bf16.msra.mxu0 %v4567
  %6270 = vmatmul.bf16.gmra.mxu0 %v1637
  %v6271 = vpop.f32.mrf.mxu0
  %v6272 = vadd.f32 %v6223, %v6271
  %v6273 = vpop.f32.mrf.mxu0
  %v6274 = vadd.f32 %v6225, %v6273
  %6275 = vmatmul.bf16.gmra.mxu0 %v1662
  %v6276 = vpop.f32.mrf.mxu0
  %v6277 = vadd.f32 %v6228, %v6276
  %v6278 = vpop.f32.mrf.mxu0
  %v6279 = vadd.f32 %v6230, %v6278
  %6280 = vmatmul.bf16.gmra.mxu0 %v1687
  %v6281 = vpop.f32.mrf.mxu0
  %v6282 = vadd.f32 %v6233, %v6281
  %v6283 = vpop.f32.mrf.mxu0
  %v6284 = vadd.f32 %v6235, %v6283
  %6285 = vmatmul.bf16.gmra.mxu0 %v1712
  %v6286 = vpop.f32.mrf.mxu0
  %v6287 = vadd.f32 %v6238, %v6286
  %v6288 = vpop.f32.mrf.mxu0
  %v6289 = vadd.f32 %v6240, %v6288
  %6290 = vmatmul.bf16.gmra.mxu0 %v1737
  %v6291 = vpop.f32.mrf.mxu0
  %v6292 = vadd.f32 %v6243, %v6291
  %v6293 = vpop.f32.mrf.mxu0
  %v6294 = vadd.f32 %v6245, %v6293
  %6295 = vmatmul.bf16.gmra.mxu0 %v1762
  %v6296 = vpop.f32.mrf.mxu0
  %v6297 = vadd.f32 %v6248, %v6296
  %v6298 = vpop.f32.mrf.mxu0
  %v6299 = vadd.f32 %v6250, %v6298
  %6300 = vmatmul.bf16.gmra.mxu0 %v1787
  %v6301 = vpop.f32.mrf.mxu0
  %v6302 = vadd.f32 %v6253, %v6301
  %v6303 = vpop.f32.mrf.mxu0
  %v6304 = vadd.f32 %v6255, %v6303
  %6305 = vmatmul.bf16.gmra.mxu0 %v1812
  %v6306 = vpop.f32.mrf.mxu0
  %v6307 = vadd.f32 %v6258, %v6306
  %v6308 = vpop.f32.mrf.mxu0
  %v6309 = vadd.f32 %v6260, %v6308
  %6310 = vdwg.mxu0
  %6311 = vmatpush.bf16.msra.mxu0 %v4627
  %6312 = vmatpush.bf16.msra.mxu0 %v4623
  %6313 = vmatpush.bf16.msra.mxu0 %v4619
  %6314 = vmatpush.bf16.msra.mxu0 %v4615
  %6315 = vmatpush.bf16.msra.mxu0 %v4611
  %6316 = vmatpush.bf16.msra.mxu0 %v4607
  %6317 = vmatpush.bf16.msra.mxu0 %v4603
  %6318 = vmatpush.bf16.msra.mxu0 %v4599
  %6319 = vmatmul.bf16.gmra.mxu0 %v1638
  %v6320 = vpop.f32.mrf.mxu0
  %v6321 = vadd.f32 %v6272, %v6320
  %v6322 = vpop.f32.mrf.mxu0
  %v6323 = vadd.f32 %v6274, %v6322
  %6324 = vmatmul.bf16.gmra.mxu0 %v1663
  %v6325 = vpop.f32.mrf.mxu0
  %v6326 = vadd.f32 %v6277, %v6325
  %v6327 = vpop.f32.mrf.mxu0
  %v6328 = vadd.f32 %v6279, %v6327
  %6329 = vmatmul.bf16.gmra.mxu0 %v1688
  %v6330 = vpop.f32.mrf.mxu0
  %v6331 = vadd.f32 %v6282, %v6330
  %v6332 = vpop.f32.mrf.mxu0
  %v6333 = vadd.f32 %v6284, %v6332
  %6334 = vmatmul.bf16.gmra.mxu0 %v1713
  %v6335 = vpop.f32.mrf.mxu0
  %v6336 = vadd.f32 %v6287, %v6335
  %v6337 = vpop.f32.mrf.mxu0
  %v6338 = vadd.f32 %v6289, %v6337
  %6339 = vmatmul.bf16.gmra.mxu0 %v1738
  %v6340 = vpop.f32.mrf.mxu0
  %v6341 = vadd.f32 %v6292, %v6340
  %v6342 = vpop.f32.mrf.mxu0
  %v6343 = vadd.f32 %v6294, %v6342
  %6344 = vmatmul.bf16.gmra.mxu0 %v1763
  %v6345 = vpop.f32.mrf.mxu0
  %v6346 = vadd.f32 %v6297, %v6345
  %v6347 = vpop.f32.mrf.mxu0
  %v6348 = vadd.f32 %v6299, %v6347
  %6349 = vmatmul.bf16.gmra.mxu0 %v1788
  %v6350 = vpop.f32.mrf.mxu0
  %v6351 = vadd.f32 %v6302, %v6350
  %v6352 = vpop.f32.mrf.mxu0
  %v6353 = vadd.f32 %v6304, %v6352
  %6354 = vmatmul.bf16.gmra.mxu0 %v1813
  %v6355 = vpop.f32.mrf.mxu0
  %v6356 = vadd.f32 %v6307, %v6355
  %v6357 = vpop.f32.mrf.mxu0
  %v6358 = vadd.f32 %v6309, %v6357
  %6359 = vdwg.mxu0
  %6360 = vmatpush.bf16.msra.mxu0 %v4659
  %6361 = vmatpush.bf16.msra.mxu0 %v4655
  %6362 = vmatpush.bf16.msra.mxu0 %v4651
  %6363 = vmatpush.bf16.msra.mxu0 %v4647
  %6364 = vmatpush.bf16.msra.mxu0 %v4643
  %6365 = vmatpush.bf16.msra.mxu0 %v4639
  %6366 = vmatpush.bf16.msra.mxu0 %v4635
  %6367 = vmatpush.bf16.msra.mxu0 %v4631
  %6368 = vmatmul.bf16.gmra.mxu0 %v1639
  %v6369 = vpop.f32.mrf.mxu0
  %v6370 = vadd.f32 %v6321, %v6369
  %v6371 = vpop.f32.mrf.mxu0
  %v6372 = vadd.f32 %v6323, %v6371
  %6373 = vmatmul.bf16.gmra.mxu0 %v1664
  %v6374 = vpop.f32.mrf.mxu0
  %v6375 = vadd.f32 %v6326, %v6374
  %v6376 = vpop.f32.mrf.mxu0
  %v6377 = vadd.f32 %v6328, %v6376
  %6378 = vmatmul.bf16.gmra.mxu0 %v1689
  %v6379 = vpop.f32.mrf.mxu0
  %v6380 = vadd.f32 %v6331, %v6379
  %v6381 = vpop.f32.mrf.mxu0
  %v6382 = vadd.f32 %v6333, %v6381
  %6383 = vmatmul.bf16.gmra.mxu0 %v1714
  %v6384 = vpop.f32.mrf.mxu0
  %v6385 = vadd.f32 %v6336, %v6384
  %v6386 = vpop.f32.mrf.mxu0
  %v6387 = vadd.f32 %v6338, %v6386
  %6388 = vmatmul.bf16.gmra.mxu0 %v1739
  %v6389 = vpop.f32.mrf.mxu0
  %v6390 = vadd.f32 %v6341, %v6389
  %v6391 = vpop.f32.mrf.mxu0
  %v6392 = vadd.f32 %v6343, %v6391
  %6393 = vmatmul.bf16.gmra.mxu0 %v1764
  %v6394 = vpop.f32.mrf.mxu0
  %v6395 = vadd.f32 %v6346, %v6394
  %v6396 = vpop.f32.mrf.mxu0
  %v6397 = vadd.f32 %v6348, %v6396
  %6398 = vmatmul.bf16.gmra.mxu0 %v1789
  %v6399 = vpop.f32.mrf.mxu0
  %v6400 = vadd.f32 %v6351, %v6399
  %v6401 = vpop.f32.mrf.mxu0
  %v6402 = vadd.f32 %v6353, %v6401
  %6403 = vmatmul.bf16.gmra.mxu0 %v1814
  %v6404 = vpop.f32.mrf.mxu0
  %v6405 = vadd.f32 %v6356, %v6404
  %v6406 = vpop.f32.mrf.mxu0
  %v6407 = vadd.f32 %v6358, %v6406
  %6408 = vdwg.mxu0
  %6409 = vmatpush.bf16.msra.mxu0 %v4691
  %6410 = vmatpush.bf16.msra.mxu0 %v4687
  %6411 = vmatpush.bf16.msra.mxu0 %v4683
  %6412 = vmatpush.bf16.msra.mxu0 %v4679
  %6413 = vmatpush.bf16.msra.mxu0 %v4675
  %6414 = vmatpush.bf16.msra.mxu0 %v4671
  %6415 = vmatpush.bf16.msra.mxu0 %v4667
  %6416 = vmatpush.bf16.msra.mxu0 %v4663
  %6417 = vmatmul.bf16.gmra.mxu0 %v1640
  %v6418 = vpop.f32.mrf.mxu0
  %v6419 = vadd.f32 %v6370, %v6418
  %v6420 = vpop.f32.mrf.mxu0
  %v6421 = vadd.f32 %v6372, %v6420
  %6422 = vmatmul.bf16.gmra.mxu0 %v1665
  %v6423 = vpop.f32.mrf.mxu0
  %v6424 = vadd.f32 %v6375, %v6423
  %v6425 = vpop.f32.mrf.mxu0
  %v6426 = vadd.f32 %v6377, %v6425
  %6427 = vmatmul.bf16.gmra.mxu0 %v1690
  %v6428 = vpop.f32.mrf.mxu0
  %v6429 = vadd.f32 %v6380, %v6428
  %v6430 = vpop.f32.mrf.mxu0
  %v6431 = vadd.f32 %v6382, %v6430
  %6432 = vmatmul.bf16.gmra.mxu0 %v1715
  %v6433 = vpop.f32.mrf.mxu0
  %v6434 = vadd.f32 %v6385, %v6433
  %v6435 = vpop.f32.mrf.mxu0
  %v6436 = vadd.f32 %v6387, %v6435
  %6437 = vmatmul.bf16.gmra.mxu0 %v1740
  %v6438 = vpop.f32.mrf.mxu0
  %v6439 = vadd.f32 %v6390, %v6438
  %v6440 = vpop.f32.mrf.mxu0
  %v6441 = vadd.f32 %v6392, %v6440
  %6442 = vmatmul.bf16.gmra.mxu0 %v1765
  %v6443 = vpop.f32.mrf.mxu0
  %v6444 = vadd.f32 %v6395, %v6443
  %v6445 = vpop.f32.mrf.mxu0
  %v6446 = vadd.f32 %v6397, %v6445
  %6447 = vmatmul.bf16.gmra.mxu0 %v1790
  %v6448 = vpop.f32.mrf.mxu0
  %v6449 = vadd.f32 %v6400, %v6448
  %v6450 = vpop.f32.mrf.mxu0
  %v6451 = vadd.f32 %v6402, %v6450
  %6452 = vmatmul.bf16.gmra.mxu0 %v1815
  %v6453 = vpop.f32.mrf.mxu0
  %v6454 = vadd.f32 %v6405, %v6453
  %v6455 = vpop.f32.mrf.mxu0
  %v6456 = vadd.f32 %v6407, %v6455
  %6457 = vdwg.mxu0
  %6458 = vmatpush.bf16.msra.mxu0 %v4723
  %6459 = vmatpush.bf16.msra.mxu0 %v4719
  %6460 = vmatpush.bf16.msra.mxu0 %v4715
  %6461 = vmatpush.bf16.msra.mxu0 %v4711
  %6462 = vmatpush.bf16.msra.mxu0 %v4707
  %6463 = vmatpush.bf16.msra.mxu0 %v4703
  %6464 = vmatpush.bf16.msra.mxu0 %v4699
  %6465 = vmatpush.bf16.msra.mxu0 %v4695
  %6466 = vmatmul.bf16.gmra.mxu0 %v1641
  %v6467 = vpop.f32.mrf.mxu0
  %v6468 = vadd.f32 %v6419, %v6467
  %v6469 = vpop.f32.mrf.mxu0
  %v6470 = vadd.f32 %v6421, %v6469
  %6471 = vmatmul.bf16.gmra.mxu0 %v1666
  %v6472 = vpop.f32.mrf.mxu0
  %v6473 = vadd.f32 %v6424, %v6472
  %v6474 = vpop.f32.mrf.mxu0
  %v6475 = vadd.f32 %v6426, %v6474
  %6476 = vmatmul.bf16.gmra.mxu0 %v1691
  %v6477 = vpop.f32.mrf.mxu0
  %v6478 = vadd.f32 %v6429, %v6477
  %v6479 = vpop.f32.mrf.mxu0
  %v6480 = vadd.f32 %v6431, %v6479
  %6481 = vmatmul.bf16.gmra.mxu0 %v1716
  %v6482 = vpop.f32.mrf.mxu0
  %v6483 = vadd.f32 %v6434, %v6482
  %v6484 = vpop.f32.mrf.mxu0
  %v6485 = vadd.f32 %v6436, %v6484
  %6486 = vmatmul.bf16.gmra.mxu0 %v1741
  %v6487 = vpop.f32.mrf.mxu0
  %v6488 = vadd.f32 %v6439, %v6487
  %v6489 = vpop.f32.mrf.mxu0
  %v6490 = vadd.f32 %v6441, %v6489
  %6491 = vmatmul.bf16.gmra.mxu0 %v1766
  %v6492 = vpop.f32.mrf.mxu0
  %v6493 = vadd.f32 %v6444, %v6492
  %v6494 = vpop.f32.mrf.mxu0
  %v6495 = vadd.f32 %v6446, %v6494
  %6496 = vmatmul.bf16.gmra.mxu0 %v1791
  %v6497 = vpop.f32.mrf.mxu0
  %v6498 = vadd.f32 %v6449, %v6497
  %v6499 = vpop.f32.mrf.mxu0
  %v6500 = vadd.f32 %v6451, %v6499
  %6501 = vmatmul.bf16.gmra.mxu0 %v1816
  %v6502 = vpop.f32.mrf.mxu0
  %v6503 = vadd.f32 %v6454, %v6502
  %v6504 = vpop.f32.mrf.mxu0
  %v6505 = vadd.f32 %v6456, %v6504
  %6506 = vdwg.mxu0
  %6507 = vmatpush.bf16.msra.mxu0 %v4755
  %6508 = vmatpush.bf16.msra.mxu0 %v4751
  %6509 = vmatpush.bf16.msra.mxu0 %v4747
  %6510 = vmatpush.bf16.msra.mxu0 %v4743
  %6511 = vmatpush.bf16.msra.mxu0 %v4739
  %6512 = vmatpush.bf16.msra.mxu0 %v4735
  %6513 = vmatpush.bf16.msra.mxu0 %v4731
  %6514 = vmatpush.bf16.msra.mxu0 %v4727
  %6515 = vmatmul.bf16.gmra.mxu0 %v1642
  %v6516 = vpop.f32.mrf.mxu0
  %v6517 = vadd.f32 %v6468, %v6516
  %v6518 = vpop.f32.mrf.mxu0
  %v6519 = vadd.f32 %v6470, %v6518
  %6520 = vmatmul.bf16.gmra.mxu0 %v1667
  %v6521 = vpop.f32.mrf.mxu0
  %v6522 = vadd.f32 %v6473, %v6521
  %v6523 = vpop.f32.mrf.mxu0
  %v6524 = vadd.f32 %v6475, %v6523
  %6525 = vmatmul.bf16.gmra.mxu0 %v1692
  %v6526 = vpop.f32.mrf.mxu0
  %v6527 = vadd.f32 %v6478, %v6526
  %v6528 = vpop.f32.mrf.mxu0
  %v6529 = vadd.f32 %v6480, %v6528
  %6530 = vmatmul.bf16.gmra.mxu0 %v1717
  %v6531 = vpop.f32.mrf.mxu0
  %v6532 = vadd.f32 %v6483, %v6531
  %v6533 = vpop.f32.mrf.mxu0
  %v6534 = vadd.f32 %v6485, %v6533
  %6535 = vmatmul.bf16.gmra.mxu0 %v1742
  %v6536 = vpop.f32.mrf.mxu0
  %v6537 = vadd.f32 %v6488, %v6536
  %v6538 = vpop.f32.mrf.mxu0
  %v6539 = vadd.f32 %v6490, %v6538
  %6540 = vmatmul.bf16.gmra.mxu0 %v1767
  %v6541 = vpop.f32.mrf.mxu0
  %v6542 = vadd.f32 %v6493, %v6541
  %v6543 = vpop.f32.mrf.mxu0
  %v6544 = vadd.f32 %v6495, %v6543
  %6545 = vmatmul.bf16.gmra.mxu0 %v1792
  %v6546 = vpop.f32.mrf.mxu0
  %v6547 = vadd.f32 %v6498, %v6546
  %v6548 = vpop.f32.mrf.mxu0
  %v6549 = vadd.f32 %v6500, %v6548
  %6550 = vmatmul.bf16.gmra.mxu0 %v1817
  %v6551 = vpop.f32.mrf.mxu0
  %v6552 = vadd.f32 %v6503, %v6551
  %v6553 = vpop.f32.mrf.mxu0
  %v6554 = vadd.f32 %v6505, %v6553
  %6555 = vdwg.mxu0
  %6556 = vmatpush.bf16.msra.mxu0 %v4787
  %6557 = vmatpush.bf16.msra.mxu0 %v4783
  %6558 = vmatpush.bf16.msra.mxu0 %v4779
  %6559 = vmatpush.bf16.msra.mxu0 %v4775
  %6560 = vmatpush.bf16.msra.mxu0 %v4771
  %6561 = vmatpush.bf16.msra.mxu0 %v4767
  %6562 = vmatpush.bf16.msra.mxu0 %v4763
  %6563 = vmatpush.bf16.msra.mxu0 %v4759
  %6564 = vmatmul.bf16.gmra.mxu0 %v1643
  %v6565 = vpop.f32.mrf.mxu0
  %v6566 = vadd.f32 %v6517, %v6565
  %v6567 = vpop.f32.mrf.mxu0
  %v6568 = vadd.f32 %v6519, %v6567
  %6569 = vmatmul.bf16.gmra.mxu0 %v1668
  %v6570 = vpop.f32.mrf.mxu0
  %v6571 = vadd.f32 %v6522, %v6570
  %v6572 = vpop.f32.mrf.mxu0
  %v6573 = vadd.f32 %v6524, %v6572
  %6574 = vmatmul.bf16.gmra.mxu0 %v1693
  %v6575 = vpop.f32.mrf.mxu0
  %v6576 = vadd.f32 %v6527, %v6575
  %v6577 = vpop.f32.mrf.mxu0
  %v6578 = vadd.f32 %v6529, %v6577
  %6579 = vmatmul.bf16.gmra.mxu0 %v1718
  %v6580 = vpop.f32.mrf.mxu0
  %v6581 = vadd.f32 %v6532, %v6580
  %v6582 = vpop.f32.mrf.mxu0
  %v6583 = vadd.f32 %v6534, %v6582
  %6584 = vmatmul.bf16.gmra.mxu0 %v1743
  %v6585 = vpop.f32.mrf.mxu0
  %v6586 = vadd.f32 %v6537, %v6585
  %v6587 = vpop.f32.mrf.mxu0
  %v6588 = vadd.f32 %v6539, %v6587
  %6589 = vmatmul.bf16.gmra.mxu0 %v1768
  %v6590 = vpop.f32.mrf.mxu0
  %v6591 = vadd.f32 %v6542, %v6590
  %v6592 = vpop.f32.mrf.mxu0
  %v6593 = vadd.f32 %v6544, %v6592
  %6594 = vmatmul.bf16.gmra.mxu0 %v1793
  %v6595 = vpop.f32.mrf.mxu0
  %v6596 = vadd.f32 %v6547, %v6595
  %v6597 = vpop.f32.mrf.mxu0
  %v6598 = vadd.f32 %v6549, %v6597
  %6599 = vmatmul.bf16.gmra.mxu0 %v1818
  %v6600 = vpop.f32.mrf.mxu0
  %v6601 = vadd.f32 %v6552, %v6600
  %v6602 = vpop.f32.mrf.mxu0
  %v6603 = vadd.f32 %v6554, %v6602
  %6604 = vdwg.mxu0
  %6605 = vmatpush.bf16.msra.mxu0 %v4819
  %6606 = vmatpush.bf16.msra.mxu0 %v4815
  %6607 = vmatpush.bf16.msra.mxu0 %v4811
  %6608 = vmatpush.bf16.msra.mxu0 %v4807
  %6609 = vmatpush.bf16.msra.mxu0 %v4803
  %6610 = vmatpush.bf16.msra.mxu0 %v4799
  %6611 = vmatpush.bf16.msra.mxu0 %v4795
  %6612 = vmatpush.bf16.msra.mxu0 %v4791
  %6613 = vmatmul.bf16.gmra.mxu0 %v1644
  %v6614 = vpop.f32.mrf.mxu0
  %v6615 = vadd.f32 %v6566, %v6614
  %v6616 = vpop.f32.mrf.mxu0
  %v6617 = vadd.f32 %v6568, %v6616
  %6618 = vmatmul.bf16.gmra.mxu0 %v1669
  %v6619 = vpop.f32.mrf.mxu0
  %v6620 = vadd.f32 %v6571, %v6619
  %v6621 = vpop.f32.mrf.mxu0
  %v6622 = vadd.f32 %v6573, %v6621
  %6623 = vmatmul.bf16.gmra.mxu0 %v1694
  %v6624 = vpop.f32.mrf.mxu0
  %v6625 = vadd.f32 %v6576, %v6624
  %v6626 = vpop.f32.mrf.mxu0
  %v6627 = vadd.f32 %v6578, %v6626
  %6628 = vmatmul.bf16.gmra.mxu0 %v1719
  %v6629 = vpop.f32.mrf.mxu0
  %v6630 = vadd.f32 %v6581, %v6629
  %v6631 = vpop.f32.mrf.mxu0
  %v6632 = vadd.f32 %v6583, %v6631
  %6633 = vmatmul.bf16.gmra.mxu0 %v1744
  %v6634 = vpop.f32.mrf.mxu0
  %v6635 = vadd.f32 %v6586, %v6634
  %v6636 = vpop.f32.mrf.mxu0
  %v6637 = vadd.f32 %v6588, %v6636
  %6638 = vmatmul.bf16.gmra.mxu0 %v1769
  %v6639 = vpop.f32.mrf.mxu0
  %v6640 = vadd.f32 %v6591, %v6639
  %v6641 = vpop.f32.mrf.mxu0
  %v6642 = vadd.f32 %v6593, %v6641
  %6643 = vmatmul.bf16.gmra.mxu0 %v1794
  %v6644 = vpop.f32.mrf.mxu0
  %v6645 = vadd.f32 %v6596, %v6644
  %v6646 = vpop.f32.mrf.mxu0
  %v6647 = vadd.f32 %v6598, %v6646
  %6648 = vmatmul.bf16.gmra.mxu0 %v1819
  %v6649 = vpop.f32.mrf.mxu0
  %v6650 = vadd.f32 %v6601, %v6649
  %v6651 = vpop.f32.mrf.mxu0
  %v6652 = vadd.f32 %v6603, %v6651
  %6653 = vdwg.mxu0
  %6654 = vmatpush.bf16.msra.mxu0 %v4851
  %6655 = vmatpush.bf16.msra.mxu0 %v4847
  %6656 = vmatpush.bf16.msra.mxu0 %v4843
  %6657 = vmatpush.bf16.msra.mxu0 %v4839
  %6658 = vmatpush.bf16.msra.mxu0 %v4835
  %6659 = vmatpush.bf16.msra.mxu0 %v4831
  %6660 = vmatpush.bf16.msra.mxu0 %v4827
  %6661 = vmatpush.bf16.msra.mxu0 %v4823
  %6662 = vmatmul.bf16.gmra.mxu0 %v1645
  %v6663 = vpop.f32.mrf.mxu0
  %v6664 = vadd.f32 %v6615, %v6663
  %v6665 = vpop.f32.mrf.mxu0
  %v6666 = vadd.f32 %v6617, %v6665
  %6667 = vmatmul.bf16.gmra.mxu0 %v1670
  %v6668 = vpop.f32.mrf.mxu0
  %v6669 = vadd.f32 %v6620, %v6668
  %v6670 = vpop.f32.mrf.mxu0
  %v6671 = vadd.f32 %v6622, %v6670
  %6672 = vmatmul.bf16.gmra.mxu0 %v1695
  %v6673 = vpop.f32.mrf.mxu0
  %v6674 = vadd.f32 %v6625, %v6673
  %v6675 = vpop.f32.mrf.mxu0
  %v6676 = vadd.f32 %v6627, %v6675
  %6677 = vmatmul.bf16.gmra.mxu0 %v1720
  %v6678 = vpop.f32.mrf.mxu0
  %v6679 = vadd.f32 %v6630, %v6678
  %v6680 = vpop.f32.mrf.mxu0
  %v6681 = vadd.f32 %v6632, %v6680
  %6682 = vmatmul.bf16.gmra.mxu0 %v1745
  %v6683 = vpop.f32.mrf.mxu0
  %v6684 = vadd.f32 %v6635, %v6683
  %v6685 = vpop.f32.mrf.mxu0
  %v6686 = vadd.f32 %v6637, %v6685
  %6687 = vmatmul.bf16.gmra.mxu0 %v1770
  %v6688 = vpop.f32.mrf.mxu0
  %v6689 = vadd.f32 %v6640, %v6688
  %v6690 = vpop.f32.mrf.mxu0
  %v6691 = vadd.f32 %v6642, %v6690
  %6692 = vmatmul.bf16.gmra.mxu0 %v1795
  %v6693 = vpop.f32.mrf.mxu0
  %v6694 = vadd.f32 %v6645, %v6693
  %v6695 = vpop.f32.mrf.mxu0
  %v6696 = vadd.f32 %v6647, %v6695
  %6697 = vmatmul.bf16.gmra.mxu0 %v1820
  %v6698 = vpop.f32.mrf.mxu0
  %v6699 = vadd.f32 %v6650, %v6698
  %v6700 = vpop.f32.mrf.mxu0
  %v6701 = vadd.f32 %v6652, %v6700
  %6702 = vdwg.mxu0
  %6703 = vmatpush.bf16.msra.mxu0 %v4883
  %6704 = vmatpush.bf16.msra.mxu0 %v4879
  %6705 = vmatpush.bf16.msra.mxu0 %v4875
  %6706 = vmatpush.bf16.msra.mxu0 %v4871
  %6707 = vmatpush.bf16.msra.mxu0 %v4867
  %6708 = vmatpush.bf16.msra.mxu0 %v4863
  %6709 = vmatpush.bf16.msra.mxu0 %v4859
  %6710 = vmatpush.bf16.msra.mxu0 %v4855
  %6711 = vmatmul.bf16.gmra.mxu0 %v1646
  %v6712 = vpop.f32.mrf.mxu0
  %v6713 = vadd.f32 %v6664, %v6712
  %v6714 = vpop.f32.mrf.mxu0
  %v6715 = vadd.f32 %v6666, %v6714
  %6716 = vmatmul.bf16.gmra.mxu0 %v1671
  %v6717 = vpop.f32.mrf.mxu0
  %v6718 = vadd.f32 %v6669, %v6717
  %v6719 = vpop.f32.mrf.mxu0
  %v6720 = vadd.f32 %v6671, %v6719
  %6721 = vmatmul.bf16.gmra.mxu0 %v1696
  %v6722 = vpop.f32.mrf.mxu0
  %v6723 = vadd.f32 %v6674, %v6722
  %v6724 = vpop.f32.mrf.mxu0
  %v6725 = vadd.f32 %v6676, %v6724
  %6726 = vmatmul.bf16.gmra.mxu0 %v1721
  %v6727 = vpop.f32.mrf.mxu0
  %v6728 = vadd.f32 %v6679, %v6727
  %v6729 = vpop.f32.mrf.mxu0
  %v6730 = vadd.f32 %v6681, %v6729
  %6731 = vmatmul.bf16.gmra.mxu0 %v1746
  %v6732 = vpop.f32.mrf.mxu0
  %v6733 = vadd.f32 %v6684, %v6732
  %v6734 = vpop.f32.mrf.mxu0
  %v6735 = vadd.f32 %v6686, %v6734
  %6736 = vmatmul.bf16.gmra.mxu0 %v1771
  %v6737 = vpop.f32.mrf.mxu0
  %v6738 = vadd.f32 %v6689, %v6737
  %v6739 = vpop.f32.mrf.mxu0
  %v6740 = vadd.f32 %v6691, %v6739
  %6741 = vmatmul.bf16.gmra.mxu0 %v1796
  %v6742 = vpop.f32.mrf.mxu0
  %v6743 = vadd.f32 %v6694, %v6742
  %v6744 = vpop.f32.mrf.mxu0
  %v6745 = vadd.f32 %v6696, %v6744
  %6746 = vmatmul.bf16.gmra.mxu0 %v1821
  %v6747 = vpop.f32.mrf.mxu0
  %v6748 = vadd.f32 %v6699, %v6747
  %v6749 = vpop.f32.mrf.mxu0
  %v6750 = vadd.f32 %v6701, %v6749
  %6751 = vdwg.mxu0
  %6752 = vmatpush.bf16.msra.mxu0 %v4915
  %6753 = vmatpush.bf16.msra.mxu0 %v4911
  %6754 = vmatpush.bf16.msra.mxu0 %v4907
  %6755 = vmatpush.bf16.msra.mxu0 %v4903
  %6756 = vmatpush.bf16.msra.mxu0 %v4899
  %6757 = vmatpush.bf16.msra.mxu0 %v4895
  %6758 = vmatpush.bf16.msra.mxu0 %v4891
  %6759 = vmatpush.bf16.msra.mxu0 %v4887
  %6760 = vmatmul.bf16.gmra.mxu0 %v1647
  %v6761 = vpop.f32.mrf.mxu0
  %v6762 = vadd.f32 %v6713, %v6761
  %v6763 = vpop.f32.mrf.mxu0
  %v6764 = vadd.f32 %v6715, %v6763
  %6765 = vmatmul.bf16.gmra.mxu0 %v1672
  %v6766 = vpop.f32.mrf.mxu0
  %v6767 = vadd.f32 %v6718, %v6766
  %v6768 = vpop.f32.mrf.mxu0
  %v6769 = vadd.f32 %v6720, %v6768
  %6770 = vmatmul.bf16.gmra.mxu0 %v1697
  %v6771 = vpop.f32.mrf.mxu0
  %v6772 = vadd.f32 %v6723, %v6771
  %v6773 = vpop.f32.mrf.mxu0
  %v6774 = vadd.f32 %v6725, %v6773
  %6775 = vmatmul.bf16.gmra.mxu0 %v1722
  %v6776 = vpop.f32.mrf.mxu0
  %v6777 = vadd.f32 %v6728, %v6776
  %v6778 = vpop.f32.mrf.mxu0
  %v6779 = vadd.f32 %v6730, %v6778
  %6780 = vmatmul.bf16.gmra.mxu0 %v1747
  %v6781 = vpop.f32.mrf.mxu0
  %v6782 = vadd.f32 %v6733, %v6781
  %v6783 = vpop.f32.mrf.mxu0
  %v6784 = vadd.f32 %v6735, %v6783
  %6785 = vmatmul.bf16.gmra.mxu0 %v1772
  %v6786 = vpop.f32.mrf.mxu0
  %v6787 = vadd.f32 %v6738, %v6786
  %v6788 = vpop.f32.mrf.mxu0
  %v6789 = vadd.f32 %v6740, %v6788
  %6790 = vmatmul.bf16.gmra.mxu0 %v1797
  %v6791 = vpop.f32.mrf.mxu0
  %v6792 = vadd.f32 %v6743, %v6791
  %v6793 = vpop.f32.mrf.mxu0
  %v6794 = vadd.f32 %v6745, %v6793
  %6795 = vmatmul.bf16.gmra.mxu0 %v1822
  %v6796 = vpop.f32.mrf.mxu0
  %v6797 = vadd.f32 %v6748, %v6796
  %v6798 = vpop.f32.mrf.mxu0
  %v6799 = vadd.f32 %v6750, %v6798
  %6800 = vdwg.mxu0
  %6801 = vmatpush.bf16.msra.mxu0 %v4947
  %6802 = vmatpush.bf16.msra.mxu0 %v4943
  %6803 = vmatpush.bf16.msra.mxu0 %v4939
  %6804 = vmatpush.bf16.msra.mxu0 %v4935
  %6805 = vmatpush.bf16.msra.mxu0 %v4931
  %6806 = vmatpush.bf16.msra.mxu0 %v4927
  %6807 = vmatpush.bf16.msra.mxu0 %v4923
  %6808 = vmatpush.bf16.msra.mxu0 %v4919
  %6809 = vmatmul.bf16.gmra.mxu0 %v1648
  %v6810 = vpop.f32.mrf.mxu0
  %v6811 = vadd.f32 %v6762, %v6810
  %v6812 = vpop.f32.mrf.mxu0
  %v6813 = vadd.f32 %v6764, %v6812
  %6814 = vmatmul.bf16.gmra.mxu0 %v1673
  %v6815 = vpop.f32.mrf.mxu0
  %v6816 = vadd.f32 %v6767, %v6815
  %v6817 = vpop.f32.mrf.mxu0
  %v6818 = vadd.f32 %v6769, %v6817
  %6819 = vmatmul.bf16.gmra.mxu0 %v1698
  %v6820 = vpop.f32.mrf.mxu0
  %v6821 = vadd.f32 %v6772, %v6820
  %v6822 = vpop.f32.mrf.mxu0
  %v6823 = vadd.f32 %v6774, %v6822
  %6824 = vmatmul.bf16.gmra.mxu0 %v1723
  %v6825 = vpop.f32.mrf.mxu0
  %v6826 = vadd.f32 %v6777, %v6825
  %v6827 = vpop.f32.mrf.mxu0
  %v6828 = vadd.f32 %v6779, %v6827
  %6829 = vmatmul.bf16.gmra.mxu0 %v1748
  %v6830 = vpop.f32.mrf.mxu0
  %v6831 = vadd.f32 %v6782, %v6830
  %v6832 = vpop.f32.mrf.mxu0
  %v6833 = vadd.f32 %v6784, %v6832
  %6834 = vmatmul.bf16.gmra.mxu0 %v1773
  %v6835 = vpop.f32.mrf.mxu0
  %v6836 = vadd.f32 %v6787, %v6835
  %v6837 = vpop.f32.mrf.mxu0
  %v6838 = vadd.f32 %v6789, %v6837
  %6839 = vmatmul.bf16.gmra.mxu0 %v1798
  %v6840 = vpop.f32.mrf.mxu0
  %v6841 = vadd.f32 %v6792, %v6840
  %v6842 = vpop.f32.mrf.mxu0
  %v6843 = vadd.f32 %v6794, %v6842
  %6844 = vmatmul.bf16.gmra.mxu0 %v1823
  %v6845 = vpop.f32.mrf.mxu0
  %v6846 = vadd.f32 %v6797, %v6845
  %v6847 = vpop.f32.mrf.mxu0
  %v6848 = vadd.f32 %v6799, %v6847
  %6849 = vdwg.mxu0
  %6850 = vmatpush.bf16.msra.mxu0 %v4979
  %6851 = vmatpush.bf16.msra.mxu0 %v4975
  %6852 = vmatpush.bf16.msra.mxu0 %v4971
  %6853 = vmatpush.bf16.msra.mxu0 %v4967
  %6854 = vmatpush.bf16.msra.mxu0 %v4963
  %6855 = vmatpush.bf16.msra.mxu0 %v4959
  %6856 = vmatpush.bf16.msra.mxu0 %v4955
  %6857 = vmatpush.bf16.msra.mxu0 %v4951
  %6858 = vmatmul.bf16.gmra.mxu0 %v1649
  %v6859 = vpop.f32.mrf.mxu0
  %v6860 = vadd.f32 %v6811, %v6859
  %v6861 = vpop.f32.mrf.mxu0
  %v6862 = vadd.f32 %v6813, %v6861
  %6863 = vmatmul.bf16.gmra.mxu0 %v1674
  %v6864 = vpop.f32.mrf.mxu0
  %v6865 = vadd.f32 %v6816, %v6864
  %v6866 = vpop.f32.mrf.mxu0
  %v6867 = vadd.f32 %v6818, %v6866
  %6868 = vmatmul.bf16.gmra.mxu0 %v1699
  %v6869 = vpop.f32.mrf.mxu0
  %v6870 = vadd.f32 %v6821, %v6869
  %v6871 = vpop.f32.mrf.mxu0
  %v6872 = vadd.f32 %v6823, %v6871
  %6873 = vmatmul.bf16.gmra.mxu0 %v1724
  %v6874 = vpop.f32.mrf.mxu0
  %v6875 = vadd.f32 %v6826, %v6874
  %v6876 = vpop.f32.mrf.mxu0
  %v6877 = vadd.f32 %v6828, %v6876
  %6878 = vmatmul.bf16.gmra.mxu0 %v1749
  %v6879 = vpop.f32.mrf.mxu0
  %v6880 = vadd.f32 %v6831, %v6879
  %v6881 = vpop.f32.mrf.mxu0
  %v6882 = vadd.f32 %v6833, %v6881
  %6883 = vmatmul.bf16.gmra.mxu0 %v1774
  %v6884 = vpop.f32.mrf.mxu0
  %v6885 = vadd.f32 %v6836, %v6884
  %v6886 = vpop.f32.mrf.mxu0
  %v6887 = vadd.f32 %v6838, %v6886
  %6888 = vmatmul.bf16.gmra.mxu0 %v1799
  %v6889 = vpop.f32.mrf.mxu0
  %v6890 = vadd.f32 %v6841, %v6889
  %v6891 = vpop.f32.mrf.mxu0
  %v6892 = vadd.f32 %v6843, %v6891
  %6893 = vmatmul.bf16.gmra.mxu0 %v1824
  %v6894 = vpop.f32.mrf.mxu0
  %v6895 = vadd.f32 %v6846, %v6894
  %v6896 = vpop.f32.mrf.mxu0
  %v6897 = vadd.f32 %v6848, %v6896
  %6898 = vdwg.mxu0
  %6899 = vmatpush.bf16.msra.mxu0 %v5011
  %6900 = vmatpush.bf16.msra.mxu0 %v5007
  %6901 = vmatpush.bf16.msra.mxu0 %v5003
  %6902 = vmatpush.bf16.msra.mxu0 %v4999
  %6903 = vmatpush.bf16.msra.mxu0 %v4995
  %6904 = vmatpush.bf16.msra.mxu0 %v4991
  %6905 = vmatpush.bf16.msra.mxu0 %v4987
  %6906 = vmatpush.bf16.msra.mxu0 %v4983
  %6907 = vmatmul.bf16.gmra.mxu0 %v1650
  %v6908 = vpop.f32.mrf.mxu0
  %v6909 = vadd.f32 %v6860, %v6908
  %v6910 = vpop.f32.mrf.mxu0
  %v6911 = vadd.f32 %v6862, %v6910
  %6912 = vmatmul.bf16.gmra.mxu0 %v1675
  %v6913 = vpop.f32.mrf.mxu0
  %v6914 = vadd.f32 %v6865, %v6913
  %v6915 = vpop.f32.mrf.mxu0
  %v6916 = vadd.f32 %v6867, %v6915
  %6917 = vmatmul.bf16.gmra.mxu0 %v1700
  %v6918 = vpop.f32.mrf.mxu0
  %v6919 = vadd.f32 %v6870, %v6918
  %v6920 = vpop.f32.mrf.mxu0
  %v6921 = vadd.f32 %v6872, %v6920
  %6922 = vmatmul.bf16.gmra.mxu0 %v1725
  %v6923 = vpop.f32.mrf.mxu0
  %v6924 = vadd.f32 %v6875, %v6923
  %v6925 = vpop.f32.mrf.mxu0
  %v6926 = vadd.f32 %v6877, %v6925
  %6927 = vmatmul.bf16.gmra.mxu0 %v1750
  %v6928 = vpop.f32.mrf.mxu0
  %v6929 = vadd.f32 %v6880, %v6928
  %v6930 = vpop.f32.mrf.mxu0
  %v6931 = vadd.f32 %v6882, %v6930
  %6932 = vmatmul.bf16.gmra.mxu0 %v1775
  %v6933 = vpop.f32.mrf.mxu0
  %v6934 = vadd.f32 %v6885, %v6933
  %v6935 = vpop.f32.mrf.mxu0
  %v6936 = vadd.f32 %v6887, %v6935
  %6937 = vmatmul.bf16.gmra.mxu0 %v1800
  %v6938 = vpop.f32.mrf.mxu0
  %v6939 = vadd.f32 %v6890, %v6938
  %v6940 = vpop.f32.mrf.mxu0
  %v6941 = vadd.f32 %v6892, %v6940
  %6942 = vmatmul.bf16.gmra.mxu0 %v1825
  %v6943 = vpop.f32.mrf.mxu0
  %v6944 = vadd.f32 %v6895, %v6943
  %v6945 = vpop.f32.mrf.mxu0
  %v6946 = vadd.f32 %v6897, %v6945
  %6947 = vdwg.mxu0
  %6948 = vmatpush.bf16.msra.mxu0 %v5043
  %6949 = vmatpush.bf16.msra.mxu0 %v5039
  %6950 = vmatpush.bf16.msra.mxu0 %v5035
  %6951 = vmatpush.bf16.msra.mxu0 %v5031
  %6952 = vmatpush.bf16.msra.mxu0 %v5027
  %6953 = vmatpush.bf16.msra.mxu0 %v5023
  %6954 = vmatpush.bf16.msra.mxu0 %v5019
  %6955 = vmatpush.bf16.msra.mxu0 %v5015
  %6956 = vmatmul.bf16.gmra.mxu0 %v1651
  %v6957 = vpop.f32.mrf.mxu0
  %v6958 = vadd.f32 %v6909, %v6957
  %v6959 = vpop.f32.mrf.mxu0
  %v6960 = vadd.f32 %v6911, %v6959
  %6961 = vmatmul.bf16.gmra.mxu0 %v1676
  %v6962 = vpop.f32.mrf.mxu0
  %v6963 = vadd.f32 %v6914, %v6962
  %v6964 = vpop.f32.mrf.mxu0
  %v6965 = vadd.f32 %v6916, %v6964
  %6966 = vmatmul.bf16.gmra.mxu0 %v1701
  %v6967 = vpop.f32.mrf.mxu0
  %v6968 = vadd.f32 %v6919, %v6967
  %v6969 = vpop.f32.mrf.mxu0
  %v6970 = vadd.f32 %v6921, %v6969
  %6971 = vmatmul.bf16.gmra.mxu0 %v1726
  %v6972 = vpop.f32.mrf.mxu0
  %v6973 = vadd.f32 %v6924, %v6972
  %v6974 = vpop.f32.mrf.mxu0
  %v6975 = vadd.f32 %v6926, %v6974
  %6976 = vmatmul.bf16.gmra.mxu0 %v1751
  %v6977 = vpop.f32.mrf.mxu0
  %v6978 = vadd.f32 %v6929, %v6977
  %v6979 = vpop.f32.mrf.mxu0
  %v6980 = vadd.f32 %v6931, %v6979
  %6981 = vmatmul.bf16.gmra.mxu0 %v1776
  %v6982 = vpop.f32.mrf.mxu0
  %v6983 = vadd.f32 %v6934, %v6982
  %v6984 = vpop.f32.mrf.mxu0
  %v6985 = vadd.f32 %v6936, %v6984
  %6986 = vmatmul.bf16.gmra.mxu0 %v1801
  %v6987 = vpop.f32.mrf.mxu0
  %v6988 = vadd.f32 %v6939, %v6987
  %v6989 = vpop.f32.mrf.mxu0
  %v6990 = vadd.f32 %v6941, %v6989
  %6991 = vmatmul.bf16.gmra.mxu0 %v1826
  %v6992 = vpop.f32.mrf.mxu0
  %v6993 = vadd.f32 %v6944, %v6992
  %v6994 = vpop.f32.mrf.mxu0
  %v6995 = vadd.f32 %v6946, %v6994
  %6996 = vdwg.mxu0
  %6997 = vmatpush.bf16.msra.mxu0 %v5075
  %6998 = vmatpush.bf16.msra.mxu0 %v5071
  %6999 = vmatpush.bf16.msra.mxu0 %v5067
  %7000 = vmatpush.bf16.msra.mxu0 %v5063
  %7001 = vmatpush.bf16.msra.mxu0 %v5059
  %7002 = vmatpush.bf16.msra.mxu0 %v5055
  %7003 = vmatpush.bf16.msra.mxu0 %v5051
  %7004 = vmatpush.bf16.msra.mxu0 %v5047
  %7005 = vmatmul.bf16.gmra.mxu0 %v1652
  %v7006 = vpop.f32.mrf.mxu0
  %v7007 = vadd.f32 %v6958, %v7006
  %v7008 = vpop.f32.mrf.mxu0
  %v7009 = vadd.f32 %v6960, %v7008
  %7010 = vmatmul.bf16.gmra.mxu0 %v1677
  %v7011 = vpop.f32.mrf.mxu0
  %v7012 = vadd.f32 %v6963, %v7011
  %v7013 = vpop.f32.mrf.mxu0
  %v7014 = vadd.f32 %v6965, %v7013
  %7015 = vmatmul.bf16.gmra.mxu0 %v1702
  %v7016 = vpop.f32.mrf.mxu0
  %v7017 = vadd.f32 %v6968, %v7016
  %v7018 = vpop.f32.mrf.mxu0
  %v7019 = vadd.f32 %v6970, %v7018
  %7020 = vmatmul.bf16.gmra.mxu0 %v1727
  %v7021 = vpop.f32.mrf.mxu0
  %v7022 = vadd.f32 %v6973, %v7021
  %v7023 = vpop.f32.mrf.mxu0
  %v7024 = vadd.f32 %v6975, %v7023
  %7025 = vmatmul.bf16.gmra.mxu0 %v1752
  %v7026 = vpop.f32.mrf.mxu0
  %v7027 = vadd.f32 %v6978, %v7026
  %v7028 = vpop.f32.mrf.mxu0
  %v7029 = vadd.f32 %v6980, %v7028
  %7030 = vmatmul.bf16.gmra.mxu0 %v1777
  %v7031 = vpop.f32.mrf.mxu0
  %v7032 = vadd.f32 %v6983, %v7031
  %v7033 = vpop.f32.mrf.mxu0
  %v7034 = vadd.f32 %v6985, %v7033
  %7035 = vmatmul.bf16.gmra.mxu0 %v1802
  %v7036 = vpop.f32.mrf.mxu0
  %v7037 = vadd.f32 %v6988, %v7036
  %v7038 = vpop.f32.mrf.mxu0
  %v7039 = vadd.f32 %v6990, %v7038
  %7040 = vmatmul.bf16.gmra.mxu0 %v1827
  %v7041 = vpop.f32.mrf.mxu0
  %v7042 = vadd.f32 %v6993, %v7041
  %v7043 = vpop.f32.mrf.mxu0
  %v7044 = vadd.f32 %v6995, %v7043
  %7045 = vdwg.mxu0
  %7046 = vmatpush.bf16.msra.mxu0 %v5107
  %7047 = vmatpush.bf16.msra.mxu0 %v5103
  %7048 = vmatpush.bf16.msra.mxu0 %v5099
  %7049 = vmatpush.bf16.msra.mxu0 %v5095
  %7050 = vmatpush.bf16.msra.mxu0 %v5091
  %7051 = vmatpush.bf16.msra.mxu0 %v5087
  %7052 = vmatpush.bf16.msra.mxu0 %v5083
  %7053 = vmatpush.bf16.msra.mxu0 %v5079
  %7054 = vmatmul.bf16.gmra.mxu0 %v1653
  %v7055 = vpop.f32.mrf.mxu0
  %v7056 = vadd.f32 %v7007, %v7055
  %v7057 = vpop.f32.mrf.mxu0
  %v7058 = vadd.f32 %v7009, %v7057
  %7059 = vmatmul.bf16.gmra.mxu0 %v1678
  %v7060 = vpop.f32.mrf.mxu0
  %v7061 = vadd.f32 %v7012, %v7060
  %v7062 = vpop.f32.mrf.mxu0
  %v7063 = vadd.f32 %v7014, %v7062
  %7064 = vmatmul.bf16.gmra.mxu0 %v1703
  %v7065 = vpop.f32.mrf.mxu0
  %v7066 = vadd.f32 %v7017, %v7065
  %v7067 = vpop.f32.mrf.mxu0
  %v7068 = vadd.f32 %v7019, %v7067
  %7069 = vmatmul.bf16.gmra.mxu0 %v1728
  %v7070 = vpop.f32.mrf.mxu0
  %v7071 = vadd.f32 %v7022, %v7070
  %v7072 = vpop.f32.mrf.mxu0
  %v7073 = vadd.f32 %v7024, %v7072
  %7074 = vmatmul.bf16.gmra.mxu0 %v1753
  %v7075 = vpop.f32.mrf.mxu0
  %v7076 = vadd.f32 %v7027, %v7075
  %v7077 = vpop.f32.mrf.mxu0
  %v7078 = vadd.f32 %v7029, %v7077
  %7079 = vmatmul.bf16.gmra.mxu0 %v1778
  %v7080 = vpop.f32.mrf.mxu0
  %v7081 = vadd.f32 %v7032, %v7080
  %v7082 = vpop.f32.mrf.mxu0
  %v7083 = vadd.f32 %v7034, %v7082
  %7084 = vmatmul.bf16.gmra.mxu0 %v1803
  %v7085 = vpop.f32.mrf.mxu0
  %v7086 = vadd.f32 %v7037, %v7085
  %v7087 = vpop.f32.mrf.mxu0
  %v7088 = vadd.f32 %v7039, %v7087
  %7089 = vmatmul.bf16.gmra.mxu0 %v1828
  %v7090 = vpop.f32.mrf.mxu0
  %v7091 = vadd.f32 %v7042, %v7090
  %v7092 = vpop.f32.mrf.mxu0
  %v7093 = vadd.f32 %v7044, %v7092
  %7094 = vdwg.mxu0
  %7095 = vmatpush.bf16.msra.mxu0 %v5139
  %7096 = vmatpush.bf16.msra.mxu0 %v5135
  %7097 = vmatpush.bf16.msra.mxu0 %v5131
  %7098 = vmatpush.bf16.msra.mxu0 %v5127
  %7099 = vmatpush.bf16.msra.mxu0 %v5123
  %7100 = vmatpush.bf16.msra.mxu0 %v5119
  %7101 = vmatpush.bf16.msra.mxu0 %v5115
  %7102 = vmatpush.bf16.msra.mxu0 %v5111
  %7103 = vmatmul.bf16.gmra.mxu0 %v1654
  %v7104 = vpop.f32.mrf.mxu0
  %v7105 = vadd.f32 %v7056, %v7104
  %v7106 = vpop.f32.mrf.mxu0
  %v7107 = vadd.f32 %v7058, %v7106
  %7108 = vmatmul.bf16.gmra.mxu0 %v1679
  %v7109 = vpop.f32.mrf.mxu0
  %v7110 = vadd.f32 %v7061, %v7109
  %v7111 = vpop.f32.mrf.mxu0
  %v7112 = vadd.f32 %v7063, %v7111
  %7113 = vmatmul.bf16.gmra.mxu0 %v1704
  %v7114 = vpop.f32.mrf.mxu0
  %v7115 = vadd.f32 %v7066, %v7114
  %v7116 = vpop.f32.mrf.mxu0
  %v7117 = vadd.f32 %v7068, %v7116
  %7118 = vmatmul.bf16.gmra.mxu0 %v1729
  %v7119 = vpop.f32.mrf.mxu0
  %v7120 = vadd.f32 %v7071, %v7119
  %v7121 = vpop.f32.mrf.mxu0
  %v7122 = vadd.f32 %v7073, %v7121
  %7123 = vmatmul.bf16.gmra.mxu0 %v1754
  %v7124 = vpop.f32.mrf.mxu0
  %v7125 = vadd.f32 %v7076, %v7124
  %v7126 = vpop.f32.mrf.mxu0
  %v7127 = vadd.f32 %v7078, %v7126
  %7128 = vmatmul.bf16.gmra.mxu0 %v1779
  %v7129 = vpop.f32.mrf.mxu0
  %v7130 = vadd.f32 %v7081, %v7129
  %v7131 = vpop.f32.mrf.mxu0
  %v7132 = vadd.f32 %v7083, %v7131
  %7133 = vmatmul.bf16.gmra.mxu0 %v1804
  %v7134 = vpop.f32.mrf.mxu0
  %v7135 = vadd.f32 %v7086, %v7134
  %v7136 = vpop.f32.mrf.mxu0
  %v7137 = vadd.f32 %v7088, %v7136
  %7138 = vmatmul.bf16.gmra.mxu0 %v1829
  %v7139 = vpop.f32.mrf.mxu0
  %v7140 = vadd.f32 %v7091, %v7139
  %v7141 = vpop.f32.mrf.mxu0
  %v7142 = vadd.f32 %v7093, %v7141
  %7143 = vdwg.mxu0
  %7144 = vmatpush.bf16.msra.mxu0 0
  %7145 = vmatpush.bf16.msra.mxu0 0
  %7146 = vmatpush.bf16.msra.mxu0 0
  %7147 = vmatpush.bf16.msra.mxu0 0
  %7148 = vmatpush.bf16.msra.mxu0 %v5155
  %7149 = vmatpush.bf16.msra.mxu0 %v5151
  %7150 = vmatpush.bf16.msra.mxu0 %v5147
  %7151 = vmatpush.bf16.msra.mxu0 %v5143
  %7152 = vmatmul.bf16.gmra.mxu0 %v5945
  %v7153 = vpop.f32.mrf.mxu0
  %v7154 = vadd.f32 %v7105, %v7153
  %v7155 = vpop.f32.mrf.mxu0
  %v7156 = vadd.f32 %v7107, %v7155
  %7157 = vmatmul.bf16.gmra.mxu0 %v5948
  %v7158 = vpop.f32.mrf.mxu0
  %v7159 = vadd.f32 %v7110, %v7158
  %v7160 = vpop.f32.mrf.mxu0
  %v7161 = vadd.f32 %v7112, %v7160
  %7162 = vmatmul.bf16.gmra.mxu0 %v5951
  %v7163 = vpop.f32.mrf.mxu0
  %v7164 = vadd.f32 %v7115, %v7163
  %v7165 = vpop.f32.mrf.mxu0
  %v7166 = vadd.f32 %v7117, %v7165
  %7167 = vmatmul.bf16.gmra.mxu0 %v5954
  %v7168 = vpop.f32.mrf.mxu0
  %v7169 = vadd.f32 %v7120, %v7168
  %v7170 = vpop.f32.mrf.mxu0
  %v7171 = vadd.f32 %v7122, %v7170
  %7172 = vmatmul.bf16.gmra.mxu0 %v5957
  %v7173 = vpop.f32.mrf.mxu0
  %v7174 = vadd.f32 %v7125, %v7173
  %v7175 = vpop.f32.mrf.mxu0
  %v7176 = vadd.f32 %v7127, %v7175
  %7177 = vmatmul.bf16.gmra.mxu0 %v5960
  %v7178 = vpop.f32.mrf.mxu0
  %v7179 = vadd.f32 %v7130, %v7178
  %v7180 = vpop.f32.mrf.mxu0
  %v7181 = vadd.f32 %v7132, %v7180
  %7182 = vmatmul.bf16.gmra.mxu0 %v5963
  %v7183 = vpop.f32.mrf.mxu0
  %v7184 = vadd.f32 %v7135, %v7183
  %v7185 = vpop.f32.mrf.mxu0
  %v7186 = vadd.f32 %v7137, %v7185
  %7187 = vmatmul.bf16.gmra.mxu0 %v5966
  %v7188 = vpop.f32.mrf.mxu0
  %v7189 = vadd.f32 %v7140, %v7188
  %v7190 = vpop.f32.mrf.mxu0
  %v7191 = vadd.f32 %v7142, %v7190
  %7192 = vdwg.mxu0
  %7193 = vmatpush.bf16.msra.mxu0 %v4404
  %7194 = vmatpush.bf16.msra.mxu0 %v4400
  %7195 = vmatpush.bf16.msra.mxu0 %v4396
  %7196 = vmatpush.bf16.msra.mxu0 %v4392
  %7197 = vmatpush.bf16.msra.mxu0 %v4388
  %7198 = vmatpush.bf16.msra.mxu0 %v4384
  %7199 = vmatpush.bf16.msra.mxu0 %v4380
  %7200 = vmatpush.bf16.msra.mxu0 %v4376
  %7201 = vmatmul.bf16.gmra.mxu0 %v1631
  %v7202 = vpop.f32.mrf.mxu0
  %v7203 = vadd.f32 %v1016, %v7202
  %v7204 = vpop.f32.mrf.mxu0
  %v7205 = vadd.f32 %v1016, %v7204
  %7206 = vmatmul.bf16.gmra.mxu0 %v1656
  %v7207 = vpop.f32.mrf.mxu0
  %v7208 = vadd.f32 %v1016, %v7207
  %v7209 = vpop.f32.mrf.mxu0
  %v7210 = vadd.f32 %v1016, %v7209
  %7211 = vmatmul.bf16.gmra.mxu0 %v1681
  %v7212 = vpop.f32.mrf.mxu0
  %v7213 = vadd.f32 %v1016, %v7212
  %v7214 = vpop.f32.mrf.mxu0
  %v7215 = vadd.f32 %v1016, %v7214
  %7216 = vmatmul.bf16.gmra.mxu0 %v1706
  %v7217 = vpop.f32.mrf.mxu0
  %v7218 = vadd.f32 %v1016, %v7217
  %v7219 = vpop.f32.mrf.mxu0
  %v7220 = vadd.f32 %v1016, %v7219
  %7221 = vmatmul.bf16.gmra.mxu0 %v1731
  %v7222 = vpop.f32.mrf.mxu0
  %v7223 = vadd.f32 %v1016, %v7222
  %v7224 = vpop.f32.mrf.mxu0
  %v7225 = vadd.f32 %v1016, %v7224
  %7226 = vmatmul.bf16.gmra.mxu0 %v1756
  %v7227 = vpop.f32.mrf.mxu0
  %v7228 = vadd.f32 %v1016, %v7227
  %v7229 = vpop.f32.mrf.mxu0
  %v7230 = vadd.f32 %v1016, %v7229
  %7231 = vmatmul.bf16.gmra.mxu0 %v1781
  %v7232 = vpop.f32.mrf.mxu0
  %v7233 = vadd.f32 %v1016, %v7232
  %v7234 = vpop.f32.mrf.mxu0
  %v7235 = vadd.f32 %v1016, %v7234
  %7236 = vmatmul.bf16.gmra.mxu0 %v1806
  %v7237 = vpop.f32.mrf.mxu0
  %v7238 = vadd.f32 %v1016, %v7237
  %v7239 = vpop.f32.mrf.mxu0
  %v7240 = vadd.f32 %v1016, %v7239
  %7241 = vdwg.mxu0
  %7242 = vmatpush.bf16.msra.mxu0 %v4436
  %7243 = vmatpush.bf16.msra.mxu0 %v4432
  %7244 = vmatpush.bf16.msra.mxu0 %v4428
  %7245 = vmatpush.bf16.msra.mxu0 %v4424
  %7246 = vmatpush.bf16.msra.mxu0 %v4420
  %7247 = vmatpush.bf16.msra.mxu0 %v4416
  %7248 = vmatpush.bf16.msra.mxu0 %v4412
  %7249 = vmatpush.bf16.msra.mxu0 %v4408
  %7250 = vmatmul.bf16.gmra.mxu0 %v1632
  %v7251 = vpop.f32.mrf.mxu0
  %v7252 = vadd.f32 %v7203, %v7251
  %v7253 = vpop.f32.mrf.mxu0
  %v7254 = vadd.f32 %v7205, %v7253
  %7255 = vmatmul.bf16.gmra.mxu0 %v1657
  %v7256 = vpop.f32.mrf.mxu0
  %v7257 = vadd.f32 %v7208, %v7256
  %v7258 = vpop.f32.mrf.mxu0
  %v7259 = vadd.f32 %v7210, %v7258
  %7260 = vmatmul.bf16.gmra.mxu0 %v1682
  %v7261 = vpop.f32.mrf.mxu0
  %v7262 = vadd.f32 %v7213, %v7261
  %v7263 = vpop.f32.mrf.mxu0
  %v7264 = vadd.f32 %v7215, %v7263
  %7265 = vmatmul.bf16.gmra.mxu0 %v1707
  %v7266 = vpop.f32.mrf.mxu0
  %v7267 = vadd.f32 %v7218, %v7266
  %v7268 = vpop.f32.mrf.mxu0
  %v7269 = vadd.f32 %v7220, %v7268
  %7270 = vmatmul.bf16.gmra.mxu0 %v1732
  %v7271 = vpop.f32.mrf.mxu0
  %v7272 = vadd.f32 %v7223, %v7271
  %v7273 = vpop.f32.mrf.mxu0
  %v7274 = vadd.f32 %v7225, %v7273
  %7275 = vmatmul.bf16.gmra.mxu0 %v1757
  %v7276 = vpop.f32.mrf.mxu0
  %v7277 = vadd.f32 %v7228, %v7276
  %v7278 = vpop.f32.mrf.mxu0
  %v7279 = vadd.f32 %v7230, %v7278
  %7280 = vmatmul.bf16.gmra.mxu0 %v1782
  %v7281 = vpop.f32.mrf.mxu0
  %v7282 = vadd.f32 %v7233, %v7281
  %v7283 = vpop.f32.mrf.mxu0
  %v7284 = vadd.f32 %v7235, %v7283
  %7285 = vmatmul.bf16.gmra.mxu0 %v1807
  %v7286 = vpop.f32.mrf.mxu0
  %v7287 = vadd.f32 %v7238, %v7286
  %v7288 = vpop.f32.mrf.mxu0
  %v7289 = vadd.f32 %v7240, %v7288
  %7290 = vdwg.mxu0
  %7291 = vmatpush.bf16.msra.mxu0 %v4468
  %7292 = vmatpush.bf16.msra.mxu0 %v4464
  %7293 = vmatpush.bf16.msra.mxu0 %v4460
  %7294 = vmatpush.bf16.msra.mxu0 %v4456
  %7295 = vmatpush.bf16.msra.mxu0 %v4452
  %7296 = vmatpush.bf16.msra.mxu0 %v4448
  %7297 = vmatpush.bf16.msra.mxu0 %v4444
  %7298 = vmatpush.bf16.msra.mxu0 %v4440
  %7299 = vmatmul.bf16.gmra.mxu0 %v1633
  %v7300 = vpop.f32.mrf.mxu0
  %v7301 = vadd.f32 %v7252, %v7300
  %v7302 = vpop.f32.mrf.mxu0
  %v7303 = vadd.f32 %v7254, %v7302
  %7304 = vmatmul.bf16.gmra.mxu0 %v1658
  %v7305 = vpop.f32.mrf.mxu0
  %v7306 = vadd.f32 %v7257, %v7305
  %v7307 = vpop.f32.mrf.mxu0
  %v7308 = vadd.f32 %v7259, %v7307
  %7309 = vmatmul.bf16.gmra.mxu0 %v1683
  %v7310 = vpop.f32.mrf.mxu0
  %v7311 = vadd.f32 %v7262, %v7310
  %v7312 = vpop.f32.mrf.mxu0
  %v7313 = vadd.f32 %v7264, %v7312
  %7314 = vmatmul.bf16.gmra.mxu0 %v1708
  %v7315 = vpop.f32.mrf.mxu0
  %v7316 = vadd.f32 %v7267, %v7315
  %v7317 = vpop.f32.mrf.mxu0
  %v7318 = vadd.f32 %v7269, %v7317
  %7319 = vmatmul.bf16.gmra.mxu0 %v1733
  %v7320 = vpop.f32.mrf.mxu0
  %v7321 = vadd.f32 %v7272, %v7320
  %v7322 = vpop.f32.mrf.mxu0
  %v7323 = vadd.f32 %v7274, %v7322
  %7324 = vmatmul.bf16.gmra.mxu0 %v1758
  %v7325 = vpop.f32.mrf.mxu0
  %v7326 = vadd.f32 %v7277, %v7325
  %v7327 = vpop.f32.mrf.mxu0
  %v7328 = vadd.f32 %v7279, %v7327
  %7329 = vmatmul.bf16.gmra.mxu0 %v1783
  %v7330 = vpop.f32.mrf.mxu0
  %v7331 = vadd.f32 %v7282, %v7330
  %v7332 = vpop.f32.mrf.mxu0
  %v7333 = vadd.f32 %v7284, %v7332
  %7334 = vmatmul.bf16.gmra.mxu0 %v1808
  %v7335 = vpop.f32.mrf.mxu0
  %v7336 = vadd.f32 %v7287, %v7335
  %v7337 = vpop.f32.mrf.mxu0
  %v7338 = vadd.f32 %v7289, %v7337
  %7339 = vdwg.mxu0
  %7340 = vmatpush.bf16.msra.mxu0 %v4500
  %7341 = vmatpush.bf16.msra.mxu0 %v4496
  %7342 = vmatpush.bf16.msra.mxu0 %v4492
  %7343 = vmatpush.bf16.msra.mxu0 %v4488
  %7344 = vmatpush.bf16.msra.mxu0 %v4484
  %7345 = vmatpush.bf16.msra.mxu0 %v4480
  %7346 = vmatpush.bf16.msra.mxu0 %v4476
  %7347 = vmatpush.bf16.msra.mxu0 %v4472
  %7348 = vmatmul.bf16.gmra.mxu0 %v1634
  %v7349 = vpop.f32.mrf.mxu0
  %v7350 = vadd.f32 %v7301, %v7349
  %v7351 = vpop.f32.mrf.mxu0
  %v7352 = vadd.f32 %v7303, %v7351
  %7353 = vmatmul.bf16.gmra.mxu0 %v1659
  %v7354 = vpop.f32.mrf.mxu0
  %v7355 = vadd.f32 %v7306, %v7354
  %v7356 = vpop.f32.mrf.mxu0
  %v7357 = vadd.f32 %v7308, %v7356
  %7358 = vmatmul.bf16.gmra.mxu0 %v1684
  %v7359 = vpop.f32.mrf.mxu0
  %v7360 = vadd.f32 %v7311, %v7359
  %v7361 = vpop.f32.mrf.mxu0
  %v7362 = vadd.f32 %v7313, %v7361
  %7363 = vmatmul.bf16.gmra.mxu0 %v1709
  %v7364 = vpop.f32.mrf.mxu0
  %v7365 = vadd.f32 %v7316, %v7364
  %v7366 = vpop.f32.mrf.mxu0
  %v7367 = vadd.f32 %v7318, %v7366
  %7368 = vmatmul.bf16.gmra.mxu0 %v1734
  %v7369 = vpop.f32.mrf.mxu0
  %v7370 = vadd.f32 %v7321, %v7369
  %v7371 = vpop.f32.mrf.mxu0
  %v7372 = vadd.f32 %v7323, %v7371
  %7373 = vmatmul.bf16.gmra.mxu0 %v1759
  %v7374 = vpop.f32.mrf.mxu0
  %v7375 = vadd.f32 %v7326, %v7374
  %v7376 = vpop.f32.mrf.mxu0
  %v7377 = vadd.f32 %v7328, %v7376
  %7378 = vmatmul.bf16.gmra.mxu0 %v1784
  %v7379 = vpop.f32.mrf.mxu0
  %v7380 = vadd.f32 %v7331, %v7379
  %v7381 = vpop.f32.mrf.mxu0
  %v7382 = vadd.f32 %v7333, %v7381
  %7383 = vmatmul.bf16.gmra.mxu0 %v1809
  %v7384 = vpop.f32.mrf.mxu0
  %v7385 = vadd.f32 %v7336, %v7384
  %v7386 = vpop.f32.mrf.mxu0
  %v7387 = vadd.f32 %v7338, %v7386
  %7388 = vdwg.mxu0
  %7389 = vmatpush.bf16.msra.mxu0 %v4532
  %7390 = vmatpush.bf16.msra.mxu0 %v4528
  %7391 = vmatpush.bf16.msra.mxu0 %v4524
  %7392 = vmatpush.bf16.msra.mxu0 %v4520
  %7393 = vmatpush.bf16.msra.mxu0 %v4516
  %7394 = vmatpush.bf16.msra.mxu0 %v4512
  %7395 = vmatpush.bf16.msra.mxu0 %v4508
  %7396 = vmatpush.bf16.msra.mxu0 %v4504
  %7397 = vmatmul.bf16.gmra.mxu0 %v1635
  %v7398 = vpop.f32.mrf.mxu0
  %v7399 = vadd.f32 %v7350, %v7398
  %v7400 = vpop.f32.mrf.mxu0
  %v7401 = vadd.f32 %v7352, %v7400
  %7402 = vmatmul.bf16.gmra.mxu0 %v1660
  %v7403 = vpop.f32.mrf.mxu0
  %v7404 = vadd.f32 %v7355, %v7403
  %v7405 = vpop.f32.mrf.mxu0
  %v7406 = vadd.f32 %v7357, %v7405
  %7407 = vmatmul.bf16.gmra.mxu0 %v1685
  %v7408 = vpop.f32.mrf.mxu0
  %v7409 = vadd.f32 %v7360, %v7408
  %v7410 = vpop.f32.mrf.mxu0
  %v7411 = vadd.f32 %v7362, %v7410
  %7412 = vmatmul.bf16.gmra.mxu0 %v1710
  %v7413 = vpop.f32.mrf.mxu0
  %v7414 = vadd.f32 %v7365, %v7413
  %v7415 = vpop.f32.mrf.mxu0
  %v7416 = vadd.f32 %v7367, %v7415
  %7417 = vmatmul.bf16.gmra.mxu0 %v1735
  %v7418 = vpop.f32.mrf.mxu0
  %v7419 = vadd.f32 %v7370, %v7418
  %v7420 = vpop.f32.mrf.mxu0
  %v7421 = vadd.f32 %v7372, %v7420
  %7422 = vmatmul.bf16.gmra.mxu0 %v1760
  %v7423 = vpop.f32.mrf.mxu0
  %v7424 = vadd.f32 %v7375, %v7423
  %v7425 = vpop.f32.mrf.mxu0
  %v7426 = vadd.f32 %v7377, %v7425
  %7427 = vmatmul.bf16.gmra.mxu0 %v1785
  %v7428 = vpop.f32.mrf.mxu0
  %v7429 = vadd.f32 %v7380, %v7428
  %v7430 = vpop.f32.mrf.mxu0
  %v7431 = vadd.f32 %v7382, %v7430
  %7432 = vmatmul.bf16.gmra.mxu0 %v1810
  %v7433 = vpop.f32.mrf.mxu0
  %v7434 = vadd.f32 %v7385, %v7433
  %v7435 = vpop.f32.mrf.mxu0
  %v7436 = vadd.f32 %v7387, %v7435
  %7437 = vdwg.mxu0
  %7438 = vmatpush.bf16.msra.mxu0 %v4564
  %7439 = vmatpush.bf16.msra.mxu0 %v4560
  %7440 = vmatpush.bf16.msra.mxu0 %v4556
  %7441 = vmatpush.bf16.msra.mxu0 %v4552
  %7442 = vmatpush.bf16.msra.mxu0 %v4548
  %7443 = vmatpush.bf16.msra.mxu0 %v4544
  %7444 = vmatpush.bf16.msra.mxu0 %v4540
  %7445 = vmatpush.bf16.msra.mxu0 %v4536
  %7446 = vmatmul.bf16.gmra.mxu0 %v1636
  %v7447 = vpop.f32.mrf.mxu0
  %v7448 = vadd.f32 %v7399, %v7447
  %v7449 = vpop.f32.mrf.mxu0
  %v7450 = vadd.f32 %v7401, %v7449
  %7451 = vmatmul.bf16.gmra.mxu0 %v1661
  %v7452 = vpop.f32.mrf.mxu0
  %v7453 = vadd.f32 %v7404, %v7452
  %v7454 = vpop.f32.mrf.mxu0
  %v7455 = vadd.f32 %v7406, %v7454
  %7456 = vmatmul.bf16.gmra.mxu0 %v1686
  %v7457 = vpop.f32.mrf.mxu0
  %v7458 = vadd.f32 %v7409, %v7457
  %v7459 = vpop.f32.mrf.mxu0
  %v7460 = vadd.f32 %v7411, %v7459
  %7461 = vmatmul.bf16.gmra.mxu0 %v1711
  %v7462 = vpop.f32.mrf.mxu0
  %v7463 = vadd.f32 %v7414, %v7462
  %v7464 = vpop.f32.mrf.mxu0
  %v7465 = vadd.f32 %v7416, %v7464
  %7466 = vmatmul.bf16.gmra.mxu0 %v1736
  %v7467 = vpop.f32.mrf.mxu0
  %v7468 = vadd.f32 %v7419, %v7467
  %v7469 = vpop.f32.mrf.mxu0
  %v7470 = vadd.f32 %v7421, %v7469
  %7471 = vmatmul.bf16.gmra.mxu0 %v1761
  %v7472 = vpop.f32.mrf.mxu0
  %v7473 = vadd.f32 %v7424, %v7472
  %v7474 = vpop.f32.mrf.mxu0
  %v7475 = vadd.f32 %v7426, %v7474
  %7476 = vmatmul.bf16.gmra.mxu0 %v1786
  %v7477 = vpop.f32.mrf.mxu0
  %v7478 = vadd.f32 %v7429, %v7477
  %v7479 = vpop.f32.mrf.mxu0
  %v7480 = vadd.f32 %v7431, %v7479
  %7481 = vmatmul.bf16.gmra.mxu0 %v1811
  %v7482 = vpop.f32.mrf.mxu0
  %v7483 = vadd.f32 %v7434, %v7482
  %v7484 = vpop.f32.mrf.mxu0
  %v7485 = vadd.f32 %v7436, %v7484
  %7486 = vdwg.mxu0
  %7487 = vmatpush.bf16.msra.mxu0 %v4596
  %7488 = vmatpush.bf16.msra.mxu0 %v4592
  %7489 = vmatpush.bf16.msra.mxu0 %v4588
  %7490 = vmatpush.bf16.msra.mxu0 %v4584
  %7491 = vmatpush.bf16.msra.mxu0 %v4580
  %7492 = vmatpush.bf16.msra.mxu0 %v4576
  %7493 = vmatpush.bf16.msra.mxu0 %v4572
  %7494 = vmatpush.bf16.msra.mxu0 %v4568
  %7495 = vmatmul.bf16.gmra.mxu0 %v1637
  %v7496 = vpop.f32.mrf.mxu0
  %v7497 = vadd.f32 %v7448, %v7496
  %v7498 = vpop.f32.mrf.mxu0
  %v7499 = vadd.f32 %v7450, %v7498
  %7500 = vmatmul.bf16.gmra.mxu0 %v1662
  %v7501 = vpop.f32.mrf.mxu0
  %v7502 = vadd.f32 %v7453, %v7501
  %v7503 = vpop.f32.mrf.mxu0
  %v7504 = vadd.f32 %v7455, %v7503
  %7505 = vmatmul.bf16.gmra.mxu0 %v1687
  %v7506 = vpop.f32.mrf.mxu0
  %v7507 = vadd.f32 %v7458, %v7506
  %v7508 = vpop.f32.mrf.mxu0
  %v7509 = vadd.f32 %v7460, %v7508
  %7510 = vmatmul.bf16.gmra.mxu0 %v1712
  %v7511 = vpop.f32.mrf.mxu0
  %v7512 = vadd.f32 %v7463, %v7511
  %v7513 = vpop.f32.mrf.mxu0
  %v7514 = vadd.f32 %v7465, %v7513
  %7515 = vmatmul.bf16.gmra.mxu0 %v1737
  %v7516 = vpop.f32.mrf.mxu0
  %v7517 = vadd.f32 %v7468, %v7516
  %v7518 = vpop.f32.mrf.mxu0
  %v7519 = vadd.f32 %v7470, %v7518
  %7520 = vmatmul.bf16.gmra.mxu0 %v1762
  %v7521 = vpop.f32.mrf.mxu0
  %v7522 = vadd.f32 %v7473, %v7521
  %v7523 = vpop.f32.mrf.mxu0
  %v7524 = vadd.f32 %v7475, %v7523
  %7525 = vmatmul.bf16.gmra.mxu0 %v1787
  %v7526 = vpop.f32.mrf.mxu0
  %v7527 = vadd.f32 %v7478, %v7526
  %v7528 = vpop.f32.mrf.mxu0
  %v7529 = vadd.f32 %v7480, %v7528
  %7530 = vmatmul.bf16.gmra.mxu0 %v1812
  %v7531 = vpop.f32.mrf.mxu0
  %v7532 = vadd.f32 %v7483, %v7531
  %v7533 = vpop.f32.mrf.mxu0
  %v7534 = vadd.f32 %v7485, %v7533
  %7535 = vdwg.mxu0
  %7536 = vmatpush.bf16.msra.mxu0 %v4628
  %7537 = vmatpush.bf16.msra.mxu0 %v4624
  %7538 = vmatpush.bf16.msra.mxu0 %v4620
  %7539 = vmatpush.bf16.msra.mxu0 %v4616
  %7540 = vmatpush.bf16.msra.mxu0 %v4612
  %7541 = vmatpush.bf16.msra.mxu0 %v4608
  %7542 = vmatpush.bf16.msra.mxu0 %v4604
  %7543 = vmatpush.bf16.msra.mxu0 %v4600
  %7544 = vmatmul.bf16.gmra.mxu0 %v1638
  %v7545 = vpop.f32.mrf.mxu0
  %v7546 = vadd.f32 %v7497, %v7545
  %v7547 = vpop.f32.mrf.mxu0
  %v7548 = vadd.f32 %v7499, %v7547
  %7549 = vmatmul.bf16.gmra.mxu0 %v1663
  %v7550 = vpop.f32.mrf.mxu0
  %v7551 = vadd.f32 %v7502, %v7550
  %v7552 = vpop.f32.mrf.mxu0
  %v7553 = vadd.f32 %v7504, %v7552
  %7554 = vmatmul.bf16.gmra.mxu0 %v1688
  %v7555 = vpop.f32.mrf.mxu0
  %v7556 = vadd.f32 %v7507, %v7555
  %v7557 = vpop.f32.mrf.mxu0
  %v7558 = vadd.f32 %v7509, %v7557
  %7559 = vmatmul.bf16.gmra.mxu0 %v1713
  %v7560 = vpop.f32.mrf.mxu0
  %v7561 = vadd.f32 %v7512, %v7560
  %v7562 = vpop.f32.mrf.mxu0
  %v7563 = vadd.f32 %v7514, %v7562
  %7564 = vmatmul.bf16.gmra.mxu0 %v1738
  %v7565 = vpop.f32.mrf.mxu0
  %v7566 = vadd.f32 %v7517, %v7565
  %v7567 = vpop.f32.mrf.mxu0
  %v7568 = vadd.f32 %v7519, %v7567
  %7569 = vmatmul.bf16.gmra.mxu0 %v1763
  %v7570 = vpop.f32.mrf.mxu0
  %v7571 = vadd.f32 %v7522, %v7570
  %v7572 = vpop.f32.mrf.mxu0
  %v7573 = vadd.f32 %v7524, %v7572
  %7574 = vmatmul.bf16.gmra.mxu0 %v1788
  %v7575 = vpop.f32.mrf.mxu0
  %v7576 = vadd.f32 %v7527, %v7575
  %v7577 = vpop.f32.mrf.mxu0
  %v7578 = vadd.f32 %v7529, %v7577
  %7579 = vmatmul.bf16.gmra.mxu0 %v1813
  %v7580 = vpop.f32.mrf.mxu0
  %v7581 = vadd.f32 %v7532, %v7580
  %v7582 = vpop.f32.mrf.mxu0
  %v7583 = vadd.f32 %v7534, %v7582
  %7584 = vdwg.mxu0
  %7585 = vmatpush.bf16.msra.mxu0 %v4660
  %7586 = vmatpush.bf16.msra.mxu0 %v4656
  %7587 = vmatpush.bf16.msra.mxu0 %v4652
  %7588 = vmatpush.bf16.msra.mxu0 %v4648
  %7589 = vmatpush.bf16.msra.mxu0 %v4644
  %7590 = vmatpush.bf16.msra.mxu0 %v4640
  %7591 = vmatpush.bf16.msra.mxu0 %v4636
  %7592 = vmatpush.bf16.msra.mxu0 %v4632
  %7593 = vmatmul.bf16.gmra.mxu0 %v1639
  %v7594 = vpop.f32.mrf.mxu0
  %v7595 = vadd.f32 %v7546, %v7594
  %v7596 = vpop.f32.mrf.mxu0
  %v7597 = vadd.f32 %v7548, %v7596
  %7598 = vmatmul.bf16.gmra.mxu0 %v1664
  %v7599 = vpop.f32.mrf.mxu0
  %v7600 = vadd.f32 %v7551, %v7599
  %v7601 = vpop.f32.mrf.mxu0
  %v7602 = vadd.f32 %v7553, %v7601
  %7603 = vmatmul.bf16.gmra.mxu0 %v1689
  %v7604 = vpop.f32.mrf.mxu0
  %v7605 = vadd.f32 %v7556, %v7604
  %v7606 = vpop.f32.mrf.mxu0
  %v7607 = vadd.f32 %v7558, %v7606
  %7608 = vmatmul.bf16.gmra.mxu0 %v1714
  %v7609 = vpop.f32.mrf.mxu0
  %v7610 = vadd.f32 %v7561, %v7609
  %v7611 = vpop.f32.mrf.mxu0
  %v7612 = vadd.f32 %v7563, %v7611
  %7613 = vmatmul.bf16.gmra.mxu0 %v1739
  %v7614 = vpop.f32.mrf.mxu0
  %v7615 = vadd.f32 %v7566, %v7614
  %v7616 = vpop.f32.mrf.mxu0
  %v7617 = vadd.f32 %v7568, %v7616
  %7618 = vmatmul.bf16.gmra.mxu0 %v1764
  %v7619 = vpop.f32.mrf.mxu0
  %v7620 = vadd.f32 %v7571, %v7619
  %v7621 = vpop.f32.mrf.mxu0
  %v7622 = vadd.f32 %v7573, %v7621
  %7623 = vmatmul.bf16.gmra.mxu0 %v1789
  %v7624 = vpop.f32.mrf.mxu0
  %v7625 = vadd.f32 %v7576, %v7624
  %v7626 = vpop.f32.mrf.mxu0
  %v7627 = vadd.f32 %v7578, %v7626
  %7628 = vmatmul.bf16.gmra.mxu0 %v1814
  %v7629 = vpop.f32.mrf.mxu0
  %v7630 = vadd.f32 %v7581, %v7629
  %v7631 = vpop.f32.mrf.mxu0
  %v7632 = vadd.f32 %v7583, %v7631
  %7633 = vdwg.mxu0
  %7634 = vmatpush.bf16.msra.mxu0 %v4692
  %7635 = vmatpush.bf16.msra.mxu0 %v4688
  %7636 = vmatpush.bf16.msra.mxu0 %v4684
  %7637 = vmatpush.bf16.msra.mxu0 %v4680
  %7638 = vmatpush.bf16.msra.mxu0 %v4676
  %7639 = vmatpush.bf16.msra.mxu0 %v4672
  %7640 = vmatpush.bf16.msra.mxu0 %v4668
  %7641 = vmatpush.bf16.msra.mxu0 %v4664
  %7642 = vmatmul.bf16.gmra.mxu0 %v1640
  %v7643 = vpop.f32.mrf.mxu0
  %v7644 = vadd.f32 %v7595, %v7643
  %v7645 = vpop.f32.mrf.mxu0
  %v7646 = vadd.f32 %v7597, %v7645
  %7647 = vmatmul.bf16.gmra.mxu0 %v1665
  %v7648 = vpop.f32.mrf.mxu0
  %v7649 = vadd.f32 %v7600, %v7648
  %v7650 = vpop.f32.mrf.mxu0
  %v7651 = vadd.f32 %v7602, %v7650
  %7652 = vmatmul.bf16.gmra.mxu0 %v1690
  %v7653 = vpop.f32.mrf.mxu0
  %v7654 = vadd.f32 %v7605, %v7653
  %v7655 = vpop.f32.mrf.mxu0
  %v7656 = vadd.f32 %v7607, %v7655
  %7657 = vmatmul.bf16.gmra.mxu0 %v1715
  %v7658 = vpop.f32.mrf.mxu0
  %v7659 = vadd.f32 %v7610, %v7658
  %v7660 = vpop.f32.mrf.mxu0
  %v7661 = vadd.f32 %v7612, %v7660
  %7662 = vmatmul.bf16.gmra.mxu0 %v1740
  %v7663 = vpop.f32.mrf.mxu0
  %v7664 = vadd.f32 %v7615, %v7663
  %v7665 = vpop.f32.mrf.mxu0
  %v7666 = vadd.f32 %v7617, %v7665
  %7667 = vmatmul.bf16.gmra.mxu0 %v1765
  %v7668 = vpop.f32.mrf.mxu0
  %v7669 = vadd.f32 %v7620, %v7668
  %v7670 = vpop.f32.mrf.mxu0
  %v7671 = vadd.f32 %v7622, %v7670
  %7672 = vmatmul.bf16.gmra.mxu0 %v1790
  %v7673 = vpop.f32.mrf.mxu0
  %v7674 = vadd.f32 %v7625, %v7673
  %v7675 = vpop.f32.mrf.mxu0
  %v7676 = vadd.f32 %v7627, %v7675
  %7677 = vmatmul.bf16.gmra.mxu0 %v1815
  %v7678 = vpop.f32.mrf.mxu0
  %v7679 = vadd.f32 %v7630, %v7678
  %v7680 = vpop.f32.mrf.mxu0
  %v7681 = vadd.f32 %v7632, %v7680
  %7682 = vdwg.mxu0
  %7683 = vmatpush.bf16.msra.mxu0 %v4724
  %7684 = vmatpush.bf16.msra.mxu0 %v4720
  %7685 = vmatpush.bf16.msra.mxu0 %v4716
  %7686 = vmatpush.bf16.msra.mxu0 %v4712
  %7687 = vmatpush.bf16.msra.mxu0 %v4708
  %7688 = vmatpush.bf16.msra.mxu0 %v4704
  %7689 = vmatpush.bf16.msra.mxu0 %v4700
  %7690 = vmatpush.bf16.msra.mxu0 %v4696
  %7691 = vmatmul.bf16.gmra.mxu0 %v1641
  %v7692 = vpop.f32.mrf.mxu0
  %v7693 = vadd.f32 %v7644, %v7692
  %v7694 = vpop.f32.mrf.mxu0
  %v7695 = vadd.f32 %v7646, %v7694
  %7696 = vmatmul.bf16.gmra.mxu0 %v1666
  %v7697 = vpop.f32.mrf.mxu0
  %v7698 = vadd.f32 %v7649, %v7697
  %v7699 = vpop.f32.mrf.mxu0
  %v7700 = vadd.f32 %v7651, %v7699
  %7701 = vmatmul.bf16.gmra.mxu0 %v1691
  %v7702 = vpop.f32.mrf.mxu0
  %v7703 = vadd.f32 %v7654, %v7702
  %v7704 = vpop.f32.mrf.mxu0
  %v7705 = vadd.f32 %v7656, %v7704
  %7706 = vmatmul.bf16.gmra.mxu0 %v1716
  %v7707 = vpop.f32.mrf.mxu0
  %v7708 = vadd.f32 %v7659, %v7707
  %v7709 = vpop.f32.mrf.mxu0
  %v7710 = vadd.f32 %v7661, %v7709
  %7711 = vmatmul.bf16.gmra.mxu0 %v1741
  %v7712 = vpop.f32.mrf.mxu0
  %v7713 = vadd.f32 %v7664, %v7712
  %v7714 = vpop.f32.mrf.mxu0
  %v7715 = vadd.f32 %v7666, %v7714
  %7716 = vmatmul.bf16.gmra.mxu0 %v1766
  %v7717 = vpop.f32.mrf.mxu0
  %v7718 = vadd.f32 %v7669, %v7717
  %v7719 = vpop.f32.mrf.mxu0
  %v7720 = vadd.f32 %v7671, %v7719
  %7721 = vmatmul.bf16.gmra.mxu0 %v1791
  %v7722 = vpop.f32.mrf.mxu0
  %v7723 = vadd.f32 %v7674, %v7722
  %v7724 = vpop.f32.mrf.mxu0
  %v7725 = vadd.f32 %v7676, %v7724
  %7726 = vmatmul.bf16.gmra.mxu0 %v1816
  %v7727 = vpop.f32.mrf.mxu0
  %v7728 = vadd.f32 %v7679, %v7727
  %v7729 = vpop.f32.mrf.mxu0
  %v7730 = vadd.f32 %v7681, %v7729
  %7731 = vdwg.mxu0
  %7732 = vmatpush.bf16.msra.mxu0 %v4756
  %7733 = vmatpush.bf16.msra.mxu0 %v4752
  %7734 = vmatpush.bf16.msra.mxu0 %v4748
  %7735 = vmatpush.bf16.msra.mxu0 %v4744
  %7736 = vmatpush.bf16.msra.mxu0 %v4740
  %7737 = vmatpush.bf16.msra.mxu0 %v4736
  %7738 = vmatpush.bf16.msra.mxu0 %v4732
  %7739 = vmatpush.bf16.msra.mxu0 %v4728
  %7740 = vmatmul.bf16.gmra.mxu0 %v1642
  %v7741 = vpop.f32.mrf.mxu0
  %v7742 = vadd.f32 %v7693, %v7741
  %v7743 = vpop.f32.mrf.mxu0
  %v7744 = vadd.f32 %v7695, %v7743
  %7745 = vmatmul.bf16.gmra.mxu0 %v1667
  %v7746 = vpop.f32.mrf.mxu0
  %v7747 = vadd.f32 %v7698, %v7746
  %v7748 = vpop.f32.mrf.mxu0
  %v7749 = vadd.f32 %v7700, %v7748
  %7750 = vmatmul.bf16.gmra.mxu0 %v1692
  %v7751 = vpop.f32.mrf.mxu0
  %v7752 = vadd.f32 %v7703, %v7751
  %v7753 = vpop.f32.mrf.mxu0
  %v7754 = vadd.f32 %v7705, %v7753
  %7755 = vmatmul.bf16.gmra.mxu0 %v1717
  %v7756 = vpop.f32.mrf.mxu0
  %v7757 = vadd.f32 %v7708, %v7756
  %v7758 = vpop.f32.mrf.mxu0
  %v7759 = vadd.f32 %v7710, %v7758
  %7760 = vmatmul.bf16.gmra.mxu0 %v1742
  %v7761 = vpop.f32.mrf.mxu0
  %v7762 = vadd.f32 %v7713, %v7761
  %v7763 = vpop.f32.mrf.mxu0
  %v7764 = vadd.f32 %v7715, %v7763
  %7765 = vmatmul.bf16.gmra.mxu0 %v1767
  %v7766 = vpop.f32.mrf.mxu0
  %v7767 = vadd.f32 %v7718, %v7766
  %v7768 = vpop.f32.mrf.mxu0
  %v7769 = vadd.f32 %v7720, %v7768
  %7770 = vmatmul.bf16.gmra.mxu0 %v1792
  %v7771 = vpop.f32.mrf.mxu0
  %v7772 = vadd.f32 %v7723, %v7771
  %v7773 = vpop.f32.mrf.mxu0
  %v7774 = vadd.f32 %v7725, %v7773
  %7775 = vmatmul.bf16.gmra.mxu0 %v1817
  %v7776 = vpop.f32.mrf.mxu0
  %v7777 = vadd.f32 %v7728, %v7776
  %v7778 = vpop.f32.mrf.mxu0
  %v7779 = vadd.f32 %v7730, %v7778
  %7780 = vdwg.mxu0
  %7781 = vmatpush.bf16.msra.mxu0 %v4788
  %7782 = vmatpush.bf16.msra.mxu0 %v4784
  %7783 = vmatpush.bf16.msra.mxu0 %v4780
  %7784 = vmatpush.bf16.msra.mxu0 %v4776
  %7785 = vmatpush.bf16.msra.mxu0 %v4772
  %7786 = vmatpush.bf16.msra.mxu0 %v4768
  %7787 = vmatpush.bf16.msra.mxu0 %v4764
  %7788 = vmatpush.bf16.msra.mxu0 %v4760
  %7789 = vmatmul.bf16.gmra.mxu0 %v1643
  %v7790 = vpop.f32.mrf.mxu0
  %v7791 = vadd.f32 %v7742, %v7790
  %v7792 = vpop.f32.mrf.mxu0
  %v7793 = vadd.f32 %v7744, %v7792
  %7794 = vmatmul.bf16.gmra.mxu0 %v1668
  %v7795 = vpop.f32.mrf.mxu0
  %v7796 = vadd.f32 %v7747, %v7795
  %v7797 = vpop.f32.mrf.mxu0
  %v7798 = vadd.f32 %v7749, %v7797
  %7799 = vmatmul.bf16.gmra.mxu0 %v1693
  %v7800 = vpop.f32.mrf.mxu0
  %v7801 = vadd.f32 %v7752, %v7800
  %v7802 = vpop.f32.mrf.mxu0
  %v7803 = vadd.f32 %v7754, %v7802
  %7804 = vmatmul.bf16.gmra.mxu0 %v1718
  %v7805 = vpop.f32.mrf.mxu0
  %v7806 = vadd.f32 %v7757, %v7805
  %v7807 = vpop.f32.mrf.mxu0
  %v7808 = vadd.f32 %v7759, %v7807
  %7809 = vmatmul.bf16.gmra.mxu0 %v1743
  %v7810 = vpop.f32.mrf.mxu0
  %v7811 = vadd.f32 %v7762, %v7810
  %v7812 = vpop.f32.mrf.mxu0
  %v7813 = vadd.f32 %v7764, %v7812
  %7814 = vmatmul.bf16.gmra.mxu0 %v1768
  %v7815 = vpop.f32.mrf.mxu0
  %v7816 = vadd.f32 %v7767, %v7815
  %v7817 = vpop.f32.mrf.mxu0
  %v7818 = vadd.f32 %v7769, %v7817
  %7819 = vmatmul.bf16.gmra.mxu0 %v1793
  %v7820 = vpop.f32.mrf.mxu0
  %v7821 = vadd.f32 %v7772, %v7820
  %v7822 = vpop.f32.mrf.mxu0
  %v7823 = vadd.f32 %v7774, %v7822
  %7824 = vmatmul.bf16.gmra.mxu0 %v1818
  %v7825 = vpop.f32.mrf.mxu0
  %v7826 = vadd.f32 %v7777, %v7825
  %v7827 = vpop.f32.mrf.mxu0
  %v7828 = vadd.f32 %v7779, %v7827
  %7829 = vdwg.mxu0
  %7830 = vmatpush.bf16.msra.mxu0 %v4820
  %7831 = vmatpush.bf16.msra.mxu0 %v4816
  %7832 = vmatpush.bf16.msra.mxu0 %v4812
  %7833 = vmatpush.bf16.msra.mxu0 %v4808
  %7834 = vmatpush.bf16.msra.mxu0 %v4804
  %7835 = vmatpush.bf16.msra.mxu0 %v4800
  %7836 = vmatpush.bf16.msra.mxu0 %v4796
  %7837 = vmatpush.bf16.msra.mxu0 %v4792
  %7838 = vmatmul.bf16.gmra.mxu0 %v1644
  %v7839 = vpop.f32.mrf.mxu0
  %v7840 = vadd.f32 %v7791, %v7839
  %v7841 = vpop.f32.mrf.mxu0
  %v7842 = vadd.f32 %v7793, %v7841
  %7843 = vmatmul.bf16.gmra.mxu0 %v1669
  %v7844 = vpop.f32.mrf.mxu0
  %v7845 = vadd.f32 %v7796, %v7844
  %v7846 = vpop.f32.mrf.mxu0
  %v7847 = vadd.f32 %v7798, %v7846
  %7848 = vmatmul.bf16.gmra.mxu0 %v1694
  %v7849 = vpop.f32.mrf.mxu0
  %v7850 = vadd.f32 %v7801, %v7849
  %v7851 = vpop.f32.mrf.mxu0
  %v7852 = vadd.f32 %v7803, %v7851
  %7853 = vmatmul.bf16.gmra.mxu0 %v1719
  %v7854 = vpop.f32.mrf.mxu0
  %v7855 = vadd.f32 %v7806, %v7854
  %v7856 = vpop.f32.mrf.mxu0
  %v7857 = vadd.f32 %v7808, %v7856
  %7858 = vmatmul.bf16.gmra.mxu0 %v1744
  %v7859 = vpop.f32.mrf.mxu0
  %v7860 = vadd.f32 %v7811, %v7859
  %v7861 = vpop.f32.mrf.mxu0
  %v7862 = vadd.f32 %v7813, %v7861
  %7863 = vmatmul.bf16.gmra.mxu0 %v1769
  %v7864 = vpop.f32.mrf.mxu0
  %v7865 = vadd.f32 %v7816, %v7864
  %v7866 = vpop.f32.mrf.mxu0
  %v7867 = vadd.f32 %v7818, %v7866
  %7868 = vmatmul.bf16.gmra.mxu0 %v1794
  %v7869 = vpop.f32.mrf.mxu0
  %v7870 = vadd.f32 %v7821, %v7869
  %v7871 = vpop.f32.mrf.mxu0
  %v7872 = vadd.f32 %v7823, %v7871
  %7873 = vmatmul.bf16.gmra.mxu0 %v1819
  %v7874 = vpop.f32.mrf.mxu0
  %v7875 = vadd.f32 %v7826, %v7874
  %v7876 = vpop.f32.mrf.mxu0
  %v7877 = vadd.f32 %v7828, %v7876
  %7878 = vdwg.mxu0
  %7879 = vmatpush.bf16.msra.mxu0 %v4852
  %7880 = vmatpush.bf16.msra.mxu0 %v4848
  %7881 = vmatpush.bf16.msra.mxu0 %v4844
  %7882 = vmatpush.bf16.msra.mxu0 %v4840
  %7883 = vmatpush.bf16.msra.mxu0 %v4836
  %7884 = vmatpush.bf16.msra.mxu0 %v4832
  %7885 = vmatpush.bf16.msra.mxu0 %v4828
  %7886 = vmatpush.bf16.msra.mxu0 %v4824
  %7887 = vmatmul.bf16.gmra.mxu0 %v1645
  %v7888 = vpop.f32.mrf.mxu0
  %v7889 = vadd.f32 %v7840, %v7888
  %v7890 = vpop.f32.mrf.mxu0
  %v7891 = vadd.f32 %v7842, %v7890
  %7892 = vmatmul.bf16.gmra.mxu0 %v1670
  %v7893 = vpop.f32.mrf.mxu0
  %v7894 = vadd.f32 %v7845, %v7893
  %v7895 = vpop.f32.mrf.mxu0
  %v7896 = vadd.f32 %v7847, %v7895
  %7897 = vmatmul.bf16.gmra.mxu0 %v1695
  %v7898 = vpop.f32.mrf.mxu0
  %v7899 = vadd.f32 %v7850, %v7898
  %v7900 = vpop.f32.mrf.mxu0
  %v7901 = vadd.f32 %v7852, %v7900
  %7902 = vmatmul.bf16.gmra.mxu0 %v1720
  %v7903 = vpop.f32.mrf.mxu0
  %v7904 = vadd.f32 %v7855, %v7903
  %v7905 = vpop.f32.mrf.mxu0
  %v7906 = vadd.f32 %v7857, %v7905
  %7907 = vmatmul.bf16.gmra.mxu0 %v1745
  %v7908 = vpop.f32.mrf.mxu0
  %v7909 = vadd.f32 %v7860, %v7908
  %v7910 = vpop.f32.mrf.mxu0
  %v7911 = vadd.f32 %v7862, %v7910
  %7912 = vmatmul.bf16.gmra.mxu0 %v1770
  %v7913 = vpop.f32.mrf.mxu0
  %v7914 = vadd.f32 %v7865, %v7913
  %v7915 = vpop.f32.mrf.mxu0
  %v7916 = vadd.f32 %v7867, %v7915
  %7917 = vmatmul.bf16.gmra.mxu0 %v1795
  %v7918 = vpop.f32.mrf.mxu0
  %v7919 = vadd.f32 %v7870, %v7918
  %v7920 = vpop.f32.mrf.mxu0
  %v7921 = vadd.f32 %v7872, %v7920
  %7922 = vmatmul.bf16.gmra.mxu0 %v1820
  %v7923 = vpop.f32.mrf.mxu0
  %v7924 = vadd.f32 %v7875, %v7923
  %v7925 = vpop.f32.mrf.mxu0
  %v7926 = vadd.f32 %v7877, %v7925
  %7927 = vdwg.mxu0
  %7928 = vmatpush.bf16.msra.mxu0 %v4884
  %7929 = vmatpush.bf16.msra.mxu0 %v4880
  %7930 = vmatpush.bf16.msra.mxu0 %v4876
  %7931 = vmatpush.bf16.msra.mxu0 %v4872
  %7932 = vmatpush.bf16.msra.mxu0 %v4868
  %7933 = vmatpush.bf16.msra.mxu0 %v4864
  %7934 = vmatpush.bf16.msra.mxu0 %v4860
  %7935 = vmatpush.bf16.msra.mxu0 %v4856
  %7936 = vmatmul.bf16.gmra.mxu0 %v1646
  %v7937 = vpop.f32.mrf.mxu0
  %v7938 = vadd.f32 %v7889, %v7937
  %v7939 = vpop.f32.mrf.mxu0
  %v7940 = vadd.f32 %v7891, %v7939
  %7941 = vmatmul.bf16.gmra.mxu0 %v1671
  %v7942 = vpop.f32.mrf.mxu0
  %v7943 = vadd.f32 %v7894, %v7942
  %v7944 = vpop.f32.mrf.mxu0
  %v7945 = vadd.f32 %v7896, %v7944
  %7946 = vmatmul.bf16.gmra.mxu0 %v1696
  %v7947 = vpop.f32.mrf.mxu0
  %v7948 = vadd.f32 %v7899, %v7947
  %v7949 = vpop.f32.mrf.mxu0
  %v7950 = vadd.f32 %v7901, %v7949
  %7951 = vmatmul.bf16.gmra.mxu0 %v1721
  %v7952 = vpop.f32.mrf.mxu0
  %v7953 = vadd.f32 %v7904, %v7952
  %v7954 = vpop.f32.mrf.mxu0
  %v7955 = vadd.f32 %v7906, %v7954
  %7956 = vmatmul.bf16.gmra.mxu0 %v1746
  %v7957 = vpop.f32.mrf.mxu0
  %v7958 = vadd.f32 %v7909, %v7957
  %v7959 = vpop.f32.mrf.mxu0
  %v7960 = vadd.f32 %v7911, %v7959
  %7961 = vmatmul.bf16.gmra.mxu0 %v1771
  %v7962 = vpop.f32.mrf.mxu0
  %v7963 = vadd.f32 %v7914, %v7962
  %v7964 = vpop.f32.mrf.mxu0
  %v7965 = vadd.f32 %v7916, %v7964
  %7966 = vmatmul.bf16.gmra.mxu0 %v1796
  %v7967 = vpop.f32.mrf.mxu0
  %v7968 = vadd.f32 %v7919, %v7967
  %v7969 = vpop.f32.mrf.mxu0
  %v7970 = vadd.f32 %v7921, %v7969
  %7971 = vmatmul.bf16.gmra.mxu0 %v1821
  %v7972 = vpop.f32.mrf.mxu0
  %v7973 = vadd.f32 %v7924, %v7972
  %v7974 = vpop.f32.mrf.mxu0
  %v7975 = vadd.f32 %v7926, %v7974
  %7976 = vdwg.mxu0
  %7977 = vmatpush.bf16.msra.mxu0 %v4916
  %7978 = vmatpush.bf16.msra.mxu0 %v4912
  %7979 = vmatpush.bf16.msra.mxu0 %v4908
  %7980 = vmatpush.bf16.msra.mxu0 %v4904
  %7981 = vmatpush.bf16.msra.mxu0 %v4900
  %7982 = vmatpush.bf16.msra.mxu0 %v4896
  %7983 = vmatpush.bf16.msra.mxu0 %v4892
  %7984 = vmatpush.bf16.msra.mxu0 %v4888
  %7985 = vmatmul.bf16.gmra.mxu0 %v1647
  %v7986 = vpop.f32.mrf.mxu0
  %v7987 = vadd.f32 %v7938, %v7986
  %v7988 = vpop.f32.mrf.mxu0
  %v7989 = vadd.f32 %v7940, %v7988
  %7990 = vmatmul.bf16.gmra.mxu0 %v1672
  %v7991 = vpop.f32.mrf.mxu0
  %v7992 = vadd.f32 %v7943, %v7991
  %v7993 = vpop.f32.mrf.mxu0
  %v7994 = vadd.f32 %v7945, %v7993
  %7995 = vmatmul.bf16.gmra.mxu0 %v1697
  %v7996 = vpop.f32.mrf.mxu0
  %v7997 = vadd.f32 %v7948, %v7996
  %v7998 = vpop.f32.mrf.mxu0
  %v7999 = vadd.f32 %v7950, %v7998
  %8000 = vmatmul.bf16.gmra.mxu0 %v1722
  %v8001 = vpop.f32.mrf.mxu0
  %v8002 = vadd.f32 %v7953, %v8001
  %v8003 = vpop.f32.mrf.mxu0
  %v8004 = vadd.f32 %v7955, %v8003
  %8005 = vmatmul.bf16.gmra.mxu0 %v1747
  %v8006 = vpop.f32.mrf.mxu0
  %v8007 = vadd.f32 %v7958, %v8006
  %v8008 = vpop.f32.mrf.mxu0
  %v8009 = vadd.f32 %v7960, %v8008
  %8010 = vmatmul.bf16.gmra.mxu0 %v1772
  %v8011 = vpop.f32.mrf.mxu0
  %v8012 = vadd.f32 %v7963, %v8011
  %v8013 = vpop.f32.mrf.mxu0
  %v8014 = vadd.f32 %v7965, %v8013
  %8015 = vmatmul.bf16.gmra.mxu0 %v1797
  %v8016 = vpop.f32.mrf.mxu0
  %v8017 = vadd.f32 %v7968, %v8016
  %v8018 = vpop.f32.mrf.mxu0
  %v8019 = vadd.f32 %v7970, %v8018
  %8020 = vmatmul.bf16.gmra.mxu0 %v1822
  %v8021 = vpop.f32.mrf.mxu0
  %v8022 = vadd.f32 %v7973, %v8021
  %v8023 = vpop.f32.mrf.mxu0
  %v8024 = vadd.f32 %v7975, %v8023
  %8025 = vdwg.mxu0
  %8026 = vmatpush.bf16.msra.mxu0 %v4948
  %8027 = vmatpush.bf16.msra.mxu0 %v4944
  %8028 = vmatpush.bf16.msra.mxu0 %v4940
  %8029 = vmatpush.bf16.msra.mxu0 %v4936
  %8030 = vmatpush.bf16.msra.mxu0 %v4932
  %8031 = vmatpush.bf16.msra.mxu0 %v4928
  %8032 = vmatpush.bf16.msra.mxu0 %v4924
  %8033 = vmatpush.bf16.msra.mxu0 %v4920
  %8034 = vmatmul.bf16.gmra.mxu0 %v1648
  %v8035 = vpop.f32.mrf.mxu0
  %v8036 = vadd.f32 %v7987, %v8035
  %v8037 = vpop.f32.mrf.mxu0
  %v8038 = vadd.f32 %v7989, %v8037
  %8039 = vmatmul.bf16.gmra.mxu0 %v1673
  %v8040 = vpop.f32.mrf.mxu0
  %v8041 = vadd.f32 %v7992, %v8040
  %v8042 = vpop.f32.mrf.mxu0
  %v8043 = vadd.f32 %v7994, %v8042
  %8044 = vmatmul.bf16.gmra.mxu0 %v1698
  %v8045 = vpop.f32.mrf.mxu0
  %v8046 = vadd.f32 %v7997, %v8045
  %v8047 = vpop.f32.mrf.mxu0
  %v8048 = vadd.f32 %v7999, %v8047
  %8049 = vmatmul.bf16.gmra.mxu0 %v1723
  %v8050 = vpop.f32.mrf.mxu0
  %v8051 = vadd.f32 %v8002, %v8050
  %v8052 = vpop.f32.mrf.mxu0
  %v8053 = vadd.f32 %v8004, %v8052
  %8054 = vmatmul.bf16.gmra.mxu0 %v1748
  %v8055 = vpop.f32.mrf.mxu0
  %v8056 = vadd.f32 %v8007, %v8055
  %v8057 = vpop.f32.mrf.mxu0
  %v8058 = vadd.f32 %v8009, %v8057
  %8059 = vmatmul.bf16.gmra.mxu0 %v1773
  %v8060 = vpop.f32.mrf.mxu0
  %v8061 = vadd.f32 %v8012, %v8060
  %v8062 = vpop.f32.mrf.mxu0
  %v8063 = vadd.f32 %v8014, %v8062
  %8064 = vmatmul.bf16.gmra.mxu0 %v1798
  %v8065 = vpop.f32.mrf.mxu0
  %v8066 = vadd.f32 %v8017, %v8065
  %v8067 = vpop.f32.mrf.mxu0
  %v8068 = vadd.f32 %v8019, %v8067
  %8069 = vmatmul.bf16.gmra.mxu0 %v1823
  %v8070 = vpop.f32.mrf.mxu0
  %v8071 = vadd.f32 %v8022, %v8070
  %v8072 = vpop.f32.mrf.mxu0
  %v8073 = vadd.f32 %v8024, %v8072
  %8074 = vdwg.mxu0
  %8075 = vmatpush.bf16.msra.mxu0 %v4980
  %8076 = vmatpush.bf16.msra.mxu0 %v4976
  %8077 = vmatpush.bf16.msra.mxu0 %v4972
  %8078 = vmatpush.bf16.msra.mxu0 %v4968
  %8079 = vmatpush.bf16.msra.mxu0 %v4964
  %8080 = vmatpush.bf16.msra.mxu0 %v4960
  %8081 = vmatpush.bf16.msra.mxu0 %v4956
  %8082 = vmatpush.bf16.msra.mxu0 %v4952
  %8083 = vmatmul.bf16.gmra.mxu0 %v1649
  %v8084 = vpop.f32.mrf.mxu0
  %v8085 = vadd.f32 %v8036, %v8084
  %v8086 = vpop.f32.mrf.mxu0
  %v8087 = vadd.f32 %v8038, %v8086
  %8088 = vmatmul.bf16.gmra.mxu0 %v1674
  %v8089 = vpop.f32.mrf.mxu0
  %v8090 = vadd.f32 %v8041, %v8089
  %v8091 = vpop.f32.mrf.mxu0
  %v8092 = vadd.f32 %v8043, %v8091
  %8093 = vmatmul.bf16.gmra.mxu0 %v1699
  %v8094 = vpop.f32.mrf.mxu0
  %v8095 = vadd.f32 %v8046, %v8094
  %v8096 = vpop.f32.mrf.mxu0
  %v8097 = vadd.f32 %v8048, %v8096
  %8098 = vmatmul.bf16.gmra.mxu0 %v1724
  %v8099 = vpop.f32.mrf.mxu0
  %v8100 = vadd.f32 %v8051, %v8099
  %v8101 = vpop.f32.mrf.mxu0
  %v8102 = vadd.f32 %v8053, %v8101
  %8103 = vmatmul.bf16.gmra.mxu0 %v1749
  %v8104 = vpop.f32.mrf.mxu0
  %v8105 = vadd.f32 %v8056, %v8104
  %v8106 = vpop.f32.mrf.mxu0
  %v8107 = vadd.f32 %v8058, %v8106
  %8108 = vmatmul.bf16.gmra.mxu0 %v1774
  %v8109 = vpop.f32.mrf.mxu0
  %v8110 = vadd.f32 %v8061, %v8109
  %v8111 = vpop.f32.mrf.mxu0
  %v8112 = vadd.f32 %v8063, %v8111
  %8113 = vmatmul.bf16.gmra.mxu0 %v1799
  %v8114 = vpop.f32.mrf.mxu0
  %v8115 = vadd.f32 %v8066, %v8114
  %v8116 = vpop.f32.mrf.mxu0
  %v8117 = vadd.f32 %v8068, %v8116
  %8118 = vmatmul.bf16.gmra.mxu0 %v1824
  %v8119 = vpop.f32.mrf.mxu0
  %v8120 = vadd.f32 %v8071, %v8119
  %v8121 = vpop.f32.mrf.mxu0
  %v8122 = vadd.f32 %v8073, %v8121
  %8123 = vdwg.mxu0
  %8124 = vmatpush.bf16.msra.mxu0 %v5012
  %8125 = vmatpush.bf16.msra.mxu0 %v5008
  %8126 = vmatpush.bf16.msra.mxu0 %v5004
  %8127 = vmatpush.bf16.msra.mxu0 %v5000
  %8128 = vmatpush.bf16.msra.mxu0 %v4996
  %8129 = vmatpush.bf16.msra.mxu0 %v4992
  %8130 = vmatpush.bf16.msra.mxu0 %v4988
  %8131 = vmatpush.bf16.msra.mxu0 %v4984
  %8132 = vmatmul.bf16.gmra.mxu0 %v1650
  %v8133 = vpop.f32.mrf.mxu0
  %v8134 = vadd.f32 %v8085, %v8133
  %v8135 = vpop.f32.mrf.mxu0
  %v8136 = vadd.f32 %v8087, %v8135
  %8137 = vmatmul.bf16.gmra.mxu0 %v1675
  %v8138 = vpop.f32.mrf.mxu0
  %v8139 = vadd.f32 %v8090, %v8138
  %v8140 = vpop.f32.mrf.mxu0
  %v8141 = vadd.f32 %v8092, %v8140
  %8142 = vmatmul.bf16.gmra.mxu0 %v1700
  %v8143 = vpop.f32.mrf.mxu0
  %v8144 = vadd.f32 %v8095, %v8143
  %v8145 = vpop.f32.mrf.mxu0
  %v8146 = vadd.f32 %v8097, %v8145
  %8147 = vmatmul.bf16.gmra.mxu0 %v1725
  %v8148 = vpop.f32.mrf.mxu0
  %v8149 = vadd.f32 %v8100, %v8148
  %v8150 = vpop.f32.mrf.mxu0
  %v8151 = vadd.f32 %v8102, %v8150
  %8152 = vmatmul.bf16.gmra.mxu0 %v1750
  %v8153 = vpop.f32.mrf.mxu0
  %v8154 = vadd.f32 %v8105, %v8153
  %v8155 = vpop.f32.mrf.mxu0
  %v8156 = vadd.f32 %v8107, %v8155
  %8157 = vmatmul.bf16.gmra.mxu0 %v1775
  %v8158 = vpop.f32.mrf.mxu0
  %v8159 = vadd.f32 %v8110, %v8158
  %v8160 = vpop.f32.mrf.mxu0
  %v8161 = vadd.f32 %v8112, %v8160
  %8162 = vmatmul.bf16.gmra.mxu0 %v1800
  %v8163 = vpop.f32.mrf.mxu0
  %v8164 = vadd.f32 %v8115, %v8163
  %v8165 = vpop.f32.mrf.mxu0
  %v8166 = vadd.f32 %v8117, %v8165
  %8167 = vmatmul.bf16.gmra.mxu0 %v1825
  %v8168 = vpop.f32.mrf.mxu0
  %v8169 = vadd.f32 %v8120, %v8168
  %v8170 = vpop.f32.mrf.mxu0
  %v8171 = vadd.f32 %v8122, %v8170
  %8172 = vdwg.mxu0
  %8173 = vmatpush.bf16.msra.mxu0 %v5044
  %8174 = vmatpush.bf16.msra.mxu0 %v5040
  %8175 = vmatpush.bf16.msra.mxu0 %v5036
  %8176 = vmatpush.bf16.msra.mxu0 %v5032
  %8177 = vmatpush.bf16.msra.mxu0 %v5028
  %8178 = vmatpush.bf16.msra.mxu0 %v5024
  %8179 = vmatpush.bf16.msra.mxu0 %v5020
  %8180 = vmatpush.bf16.msra.mxu0 %v5016
  %8181 = vmatmul.bf16.gmra.mxu0 %v1651
  %v8182 = vpop.f32.mrf.mxu0
  %v8183 = vadd.f32 %v8134, %v8182
  %v8184 = vpop.f32.mrf.mxu0
  %v8185 = vadd.f32 %v8136, %v8184
  %8186 = vmatmul.bf16.gmra.mxu0 %v1676
  %v8187 = vpop.f32.mrf.mxu0
  %v8188 = vadd.f32 %v8139, %v8187
  %v8189 = vpop.f32.mrf.mxu0
  %v8190 = vadd.f32 %v8141, %v8189
  %8191 = vmatmul.bf16.gmra.mxu0 %v1701
  %v8192 = vpop.f32.mrf.mxu0
  %v8193 = vadd.f32 %v8144, %v8192
  %v8194 = vpop.f32.mrf.mxu0
  %v8195 = vadd.f32 %v8146, %v8194
  %8196 = vmatmul.bf16.gmra.mxu0 %v1726
  %v8197 = vpop.f32.mrf.mxu0
  %v8198 = vadd.f32 %v8149, %v8197
  %v8199 = vpop.f32.mrf.mxu0
  %v8200 = vadd.f32 %v8151, %v8199
  %8201 = vmatmul.bf16.gmra.mxu0 %v1751
  %v8202 = vpop.f32.mrf.mxu0
  %v8203 = vadd.f32 %v8154, %v8202
  %v8204 = vpop.f32.mrf.mxu0
  %v8205 = vadd.f32 %v8156, %v8204
  %8206 = vmatmul.bf16.gmra.mxu0 %v1776
  %v8207 = vpop.f32.mrf.mxu0
  %v8208 = vadd.f32 %v8159, %v8207
  %v8209 = vpop.f32.mrf.mxu0
  %v8210 = vadd.f32 %v8161, %v8209
  %8211 = vmatmul.bf16.gmra.mxu0 %v1801
  %v8212 = vpop.f32.mrf.mxu0
  %v8213 = vadd.f32 %v8164, %v8212
  %v8214 = vpop.f32.mrf.mxu0
  %v8215 = vadd.f32 %v8166, %v8214
  %8216 = vmatmul.bf16.gmra.mxu0 %v1826
  %v8217 = vpop.f32.mrf.mxu0
  %v8218 = vadd.f32 %v8169, %v8217
  %v8219 = vpop.f32.mrf.mxu0
  %v8220 = vadd.f32 %v8171, %v8219
  %8221 = vdwg.mxu0
  %8222 = vmatpush.bf16.msra.mxu0 %v5076
  %8223 = vmatpush.bf16.msra.mxu0 %v5072
  %8224 = vmatpush.bf16.msra.mxu0 %v5068
  %8225 = vmatpush.bf16.msra.mxu0 %v5064
  %8226 = vmatpush.bf16.msra.mxu0 %v5060
  %8227 = vmatpush.bf16.msra.mxu0 %v5056
  %8228 = vmatpush.bf16.msra.mxu0 %v5052
  %8229 = vmatpush.bf16.msra.mxu0 %v5048
  %8230 = vmatmul.bf16.gmra.mxu0 %v1652
  %v8231 = vpop.f32.mrf.mxu0
  %v8232 = vadd.f32 %v8183, %v8231
  %v8233 = vpop.f32.mrf.mxu0
  %v8234 = vadd.f32 %v8185, %v8233
  %8235 = vmatmul.bf16.gmra.mxu0 %v1677
  %v8236 = vpop.f32.mrf.mxu0
  %v8237 = vadd.f32 %v8188, %v8236
  %v8238 = vpop.f32.mrf.mxu0
  %v8239 = vadd.f32 %v8190, %v8238
  %8240 = vmatmul.bf16.gmra.mxu0 %v1702
  %v8241 = vpop.f32.mrf.mxu0
  %v8242 = vadd.f32 %v8193, %v8241
  %v8243 = vpop.f32.mrf.mxu0
  %v8244 = vadd.f32 %v8195, %v8243
  %8245 = vmatmul.bf16.gmra.mxu0 %v1727
  %v8246 = vpop.f32.mrf.mxu0
  %v8247 = vadd.f32 %v8198, %v8246
  %v8248 = vpop.f32.mrf.mxu0
  %v8249 = vadd.f32 %v8200, %v8248
  %8250 = vmatmul.bf16.gmra.mxu0 %v1752
  %v8251 = vpop.f32.mrf.mxu0
  %v8252 = vadd.f32 %v8203, %v8251
  %v8253 = vpop.f32.mrf.mxu0
  %v8254 = vadd.f32 %v8205, %v8253
  %8255 = vmatmul.bf16.gmra.mxu0 %v1777
  %v8256 = vpop.f32.mrf.mxu0
  %v8257 = vadd.f32 %v8208, %v8256
  %v8258 = vpop.f32.mrf.mxu0
  %v8259 = vadd.f32 %v8210, %v8258
  %8260 = vmatmul.bf16.gmra.mxu0 %v1802
  %v8261 = vpop.f32.mrf.mxu0
  %v8262 = vadd.f32 %v8213, %v8261
  %v8263 = vpop.f32.mrf.mxu0
  %v8264 = vadd.f32 %v8215, %v8263
  %8265 = vmatmul.bf16.gmra.mxu0 %v1827
  %v8266 = vpop.f32.mrf.mxu0
  %v8267 = vadd.f32 %v8218, %v8266
  %v8268 = vpop.f32.mrf.mxu0
  %v8269 = vadd.f32 %v8220, %v8268
  %8270 = vdwg.mxu0
  %8271 = vmatpush.bf16.msra.mxu0 %v5108
  %8272 = vmatpush.bf16.msra.mxu0 %v5104
  %8273 = vmatpush.bf16.msra.mxu0 %v5100
  %8274 = vmatpush.bf16.msra.mxu0 %v5096
  %8275 = vmatpush.bf16.msra.mxu0 %v5092
  %8276 = vmatpush.bf16.msra.mxu0 %v5088
  %8277 = vmatpush.bf16.msra.mxu0 %v5084
  %8278 = vmatpush.bf16.msra.mxu0 %v5080
  %8279 = vmatmul.bf16.gmra.mxu0 %v1653
  %v8280 = vpop.f32.mrf.mxu0
  %v8281 = vadd.f32 %v8232, %v8280
  %v8282 = vpop.f32.mrf.mxu0
  %v8283 = vadd.f32 %v8234, %v8282
  %8284 = vmatmul.bf16.gmra.mxu0 %v1678
  %v8285 = vpop.f32.mrf.mxu0
  %v8286 = vadd.f32 %v8237, %v8285
  %v8287 = vpop.f32.mrf.mxu0
  %v8288 = vadd.f32 %v8239, %v8287
  %8289 = vmatmul.bf16.gmra.mxu0 %v1703
  %v8290 = vpop.f32.mrf.mxu0
  %v8291 = vadd.f32 %v8242, %v8290
  %v8292 = vpop.f32.mrf.mxu0
  %v8293 = vadd.f32 %v8244, %v8292
  %8294 = vmatmul.bf16.gmra.mxu0 %v1728
  %v8295 = vpop.f32.mrf.mxu0
  %v8296 = vadd.f32 %v8247, %v8295
  %v8297 = vpop.f32.mrf.mxu0
  %v8298 = vadd.f32 %v8249, %v8297
  %8299 = vmatmul.bf16.gmra.mxu0 %v1753
  %v8300 = vpop.f32.mrf.mxu0
  %v8301 = vadd.f32 %v8252, %v8300
  %v8302 = vpop.f32.mrf.mxu0
  %v8303 = vadd.f32 %v8254, %v8302
  %8304 = vmatmul.bf16.gmra.mxu0 %v1778
  %v8305 = vpop.f32.mrf.mxu0
  %v8306 = vadd.f32 %v8257, %v8305
  %v8307 = vpop.f32.mrf.mxu0
  %v8308 = vadd.f32 %v8259, %v8307
  %8309 = vmatmul.bf16.gmra.mxu0 %v1803
  %v8310 = vpop.f32.mrf.mxu0
  %v8311 = vadd.f32 %v8262, %v8310
  %v8312 = vpop.f32.mrf.mxu0
  %v8313 = vadd.f32 %v8264, %v8312
  %8314 = vmatmul.bf16.gmra.mxu0 %v1828
  %v8315 = vpop.f32.mrf.mxu0
  %v8316 = vadd.f32 %v8267, %v8315
  %v8317 = vpop.f32.mrf.mxu0
  %v8318 = vadd.f32 %v8269, %v8317
  %8319 = vdwg.mxu0
  %8320 = vmatpush.bf16.msra.mxu0 %v5140
  %8321 = vmatpush.bf16.msra.mxu0 %v5136
  %8322 = vmatpush.bf16.msra.mxu0 %v5132
  %8323 = vmatpush.bf16.msra.mxu0 %v5128
  %8324 = vmatpush.bf16.msra.mxu0 %v5124
  %8325 = vmatpush.bf16.msra.mxu0 %v5120
  %8326 = vmatpush.bf16.msra.mxu0 %v5116
  %8327 = vmatpush.bf16.msra.mxu0 %v5112
  %8328 = vmatmul.bf16.gmra.mxu0 %v1654
  %v8329 = vpop.f32.mrf.mxu0
  %v8330 = vadd.f32 %v8281, %v8329
  %v8331 = vpop.f32.mrf.mxu0
  %v8332 = vadd.f32 %v8283, %v8331
  %8333 = vmatmul.bf16.gmra.mxu0 %v1679
  %v8334 = vpop.f32.mrf.mxu0
  %v8335 = vadd.f32 %v8286, %v8334
  %v8336 = vpop.f32.mrf.mxu0
  %v8337 = vadd.f32 %v8288, %v8336
  %8338 = vmatmul.bf16.gmra.mxu0 %v1704
  %v8339 = vpop.f32.mrf.mxu0
  %v8340 = vadd.f32 %v8291, %v8339
  %v8341 = vpop.f32.mrf.mxu0
  %v8342 = vadd.f32 %v8293, %v8341
  %8343 = vmatmul.bf16.gmra.mxu0 %v1729
  %v8344 = vpop.f32.mrf.mxu0
  %v8345 = vadd.f32 %v8296, %v8344
  %v8346 = vpop.f32.mrf.mxu0
  %v8347 = vadd.f32 %v8298, %v8346
  %8348 = vmatmul.bf16.gmra.mxu0 %v1754
  %v8349 = vpop.f32.mrf.mxu0
  %v8350 = vadd.f32 %v8301, %v8349
  %v8351 = vpop.f32.mrf.mxu0
  %v8352 = vadd.f32 %v8303, %v8351
  %8353 = vmatmul.bf16.gmra.mxu0 %v1779
  %v8354 = vpop.f32.mrf.mxu0
  %v8355 = vadd.f32 %v8306, %v8354
  %v8356 = vpop.f32.mrf.mxu0
  %v8357 = vadd.f32 %v8308, %v8356
  %8358 = vmatmul.bf16.gmra.mxu0 %v1804
  %v8359 = vpop.f32.mrf.mxu0
  %v8360 = vadd.f32 %v8311, %v8359
  %v8361 = vpop.f32.mrf.mxu0
  %v8362 = vadd.f32 %v8313, %v8361
  %8363 = vmatmul.bf16.gmra.mxu0 %v1829
  %v8364 = vpop.f32.mrf.mxu0
  %v8365 = vadd.f32 %v8316, %v8364
  %v8366 = vpop.f32.mrf.mxu0
  %v8367 = vadd.f32 %v8318, %v8366
  %8368 = vdwg.mxu0
  %8369 = vmatpush.bf16.msra.mxu0 0
  %8370 = vmatpush.bf16.msra.mxu0 0
  %8371 = vmatpush.bf16.msra.mxu0 0
  %8372 = vmatpush.bf16.msra.mxu0 0
  %8373 = vmatpush.bf16.msra.mxu0 %v5156
  %8374 = vmatpush.bf16.msra.mxu0 %v5152
  %8375 = vmatpush.bf16.msra.mxu0 %v5148
  %8376 = vmatpush.bf16.msra.mxu0 %v5144
  %8377 = vmatmul.bf16.gmra.mxu0 %v5945
  %v8378 = vpop.f32.mrf.mxu0
  %v8379 = vadd.f32 %v8330, %v8378
  %v8380 = vpop.f32.mrf.mxu0
  %v8381 = vadd.f32 %v8332, %v8380
  %8382 = vmatmul.bf16.gmra.mxu0 %v5948
  %v8383 = vpop.f32.mrf.mxu0
  %v8384 = vadd.f32 %v8335, %v8383
  %v8385 = vpop.f32.mrf.mxu0
  %v8386 = vadd.f32 %v8337, %v8385
  %8387 = vmatmul.bf16.gmra.mxu0 %v5951
  %v8388 = vpop.f32.mrf.mxu0
  %v8389 = vadd.f32 %v8340, %v8388
  %v8390 = vpop.f32.mrf.mxu0
  %v8391 = vadd.f32 %v8342, %v8390
  %8392 = vmatmul.bf16.gmra.mxu0 %v5954
  %v8393 = vpop.f32.mrf.mxu0
  %v8394 = vadd.f32 %v8345, %v8393
  %v8395 = vpop.f32.mrf.mxu0
  %v8396 = vadd.f32 %v8347, %v8395
  %8397 = vmatmul.bf16.gmra.mxu0 %v5957
  %v8398 = vpop.f32.mrf.mxu0
  %v8399 = vadd.f32 %v8350, %v8398
  %v8400 = vpop.f32.mrf.mxu0
  %v8401 = vadd.f32 %v8352, %v8400
  %8402 = vmatmul.bf16.gmra.mxu0 %v5960
  %v8403 = vpop.f32.mrf.mxu0
  %v8404 = vadd.f32 %v8355, %v8403
  %v8405 = vpop.f32.mrf.mxu0
  %v8406 = vadd.f32 %v8357, %v8405
  %8407 = vmatmul.bf16.gmra.mxu0 %v5963
  %v8408 = vpop.f32.mrf.mxu0
  %v8409 = vadd.f32 %v8360, %v8408
  %v8410 = vpop.f32.mrf.mxu0
  %v8411 = vadd.f32 %v8362, %v8410
  %8412 = vmatmul.bf16.gmra.mxu0 %v5966
  %v8413 = vpop.f32.mrf.mxu0
  %v8414 = vadd.f32 %v8365, %v8413
  %v8415 = vpop.f32.mrf.mxu0
  %v8416 = vadd.f32 %v8367, %v8415
  %8417 = vdwg.mxu0
  %8418 = vmatpush.bf16.msra.mxu0 %v4405
  %8419 = vmatpush.bf16.msra.mxu0 %v4401
  %8420 = vmatpush.bf16.msra.mxu0 %v4397
  %8421 = vmatpush.bf16.msra.mxu0 %v4393
  %8422 = vmatpush.bf16.msra.mxu0 %v4389
  %8423 = vmatpush.bf16.msra.mxu0 %v4385
  %8424 = vmatpush.bf16.msra.mxu0 %v4381
  %8425 = vmatpush.bf16.msra.mxu0 %v4377
  %8426 = vmatmul.bf16.gmra.mxu0 %v1631
  %v8427 = vpop.f32.mrf.mxu0
  %v8428 = vadd.f32 %v1017, %v8427
  %v8429 = vpop.f32.mrf.mxu0
  %v8430 = vadd.f32 %v1017, %v8429
  %8431 = vmatmul.bf16.gmra.mxu0 %v1656
  %v8432 = vpop.f32.mrf.mxu0
  %v8433 = vadd.f32 %v1017, %v8432
  %v8434 = vpop.f32.mrf.mxu0
  %v8435 = vadd.f32 %v1017, %v8434
  %8436 = vmatmul.bf16.gmra.mxu0 %v1681
  %v8437 = vpop.f32.mrf.mxu0
  %v8438 = vadd.f32 %v1017, %v8437
  %v8439 = vpop.f32.mrf.mxu0
  %v8440 = vadd.f32 %v1017, %v8439
  %8441 = vmatmul.bf16.gmra.mxu0 %v1706
  %v8442 = vpop.f32.mrf.mxu0
  %v8443 = vadd.f32 %v1017, %v8442
  %v8444 = vpop.f32.mrf.mxu0
  %v8445 = vadd.f32 %v1017, %v8444
  %8446 = vmatmul.bf16.gmra.mxu0 %v1731
  %v8447 = vpop.f32.mrf.mxu0
  %v8448 = vadd.f32 %v1017, %v8447
  %v8449 = vpop.f32.mrf.mxu0
  %v8450 = vadd.f32 %v1017, %v8449
  %8451 = vmatmul.bf16.gmra.mxu0 %v1756
  %v8452 = vpop.f32.mrf.mxu0
  %v8453 = vadd.f32 %v1017, %v8452
  %v8454 = vpop.f32.mrf.mxu0
  %v8455 = vadd.f32 %v1017, %v8454
  %8456 = vmatmul.bf16.gmra.mxu0 %v1781
  %v8457 = vpop.f32.mrf.mxu0
  %v8458 = vadd.f32 %v1017, %v8457
  %v8459 = vpop.f32.mrf.mxu0
  %v8460 = vadd.f32 %v1017, %v8459
  %8461 = vmatmul.bf16.gmra.mxu0 %v1806
  %v8462 = vpop.f32.mrf.mxu0
  %v8463 = vadd.f32 %v1017, %v8462
  %v8464 = vpop.f32.mrf.mxu0
  %v8465 = vadd.f32 %v1017, %v8464
  %8466 = vdwg.mxu0
  %8467 = vmatpush.bf16.msra.mxu0 %v4437
  %8468 = vmatpush.bf16.msra.mxu0 %v4433
  %8469 = vmatpush.bf16.msra.mxu0 %v4429
  %8470 = vmatpush.bf16.msra.mxu0 %v4425
  %8471 = vmatpush.bf16.msra.mxu0 %v4421
  %8472 = vmatpush.bf16.msra.mxu0 %v4417
  %8473 = vmatpush.bf16.msra.mxu0 %v4413
  %8474 = vmatpush.bf16.msra.mxu0 %v4409
  %8475 = vmatmul.bf16.gmra.mxu0 %v1632
  %v8476 = vpop.f32.mrf.mxu0
  %v8477 = vadd.f32 %v8428, %v8476
  %v8478 = vpop.f32.mrf.mxu0
  %v8479 = vadd.f32 %v8430, %v8478
  %8480 = vmatmul.bf16.gmra.mxu0 %v1657
  %v8481 = vpop.f32.mrf.mxu0
  %v8482 = vadd.f32 %v8433, %v8481
  %v8483 = vpop.f32.mrf.mxu0
  %v8484 = vadd.f32 %v8435, %v8483
  %8485 = vmatmul.bf16.gmra.mxu0 %v1682
  %v8486 = vpop.f32.mrf.mxu0
  %v8487 = vadd.f32 %v8438, %v8486
  %v8488 = vpop.f32.mrf.mxu0
  %v8489 = vadd.f32 %v8440, %v8488
  %8490 = vmatmul.bf16.gmra.mxu0 %v1707
  %v8491 = vpop.f32.mrf.mxu0
  %v8492 = vadd.f32 %v8443, %v8491
  %v8493 = vpop.f32.mrf.mxu0
  %v8494 = vadd.f32 %v8445, %v8493
  %8495 = vmatmul.bf16.gmra.mxu0 %v1732
  %v8496 = vpop.f32.mrf.mxu0
  %v8497 = vadd.f32 %v8448, %v8496
  %v8498 = vpop.f32.mrf.mxu0
  %v8499 = vadd.f32 %v8450, %v8498
  %8500 = vmatmul.bf16.gmra.mxu0 %v1757
  %v8501 = vpop.f32.mrf.mxu0
  %v8502 = vadd.f32 %v8453, %v8501
  %v8503 = vpop.f32.mrf.mxu0
  %v8504 = vadd.f32 %v8455, %v8503
  %8505 = vmatmul.bf16.gmra.mxu0 %v1782
  %v8506 = vpop.f32.mrf.mxu0
  %v8507 = vadd.f32 %v8458, %v8506
  %v8508 = vpop.f32.mrf.mxu0
  %v8509 = vadd.f32 %v8460, %v8508
  %8510 = vmatmul.bf16.gmra.mxu0 %v1807
  %v8511 = vpop.f32.mrf.mxu0
  %v8512 = vadd.f32 %v8463, %v8511
  %v8513 = vpop.f32.mrf.mxu0
  %v8514 = vadd.f32 %v8465, %v8513
  %8515 = vdwg.mxu0
  %8516 = vmatpush.bf16.msra.mxu0 %v4469
  %8517 = vmatpush.bf16.msra.mxu0 %v4465
  %8518 = vmatpush.bf16.msra.mxu0 %v4461
  %8519 = vmatpush.bf16.msra.mxu0 %v4457
  %8520 = vmatpush.bf16.msra.mxu0 %v4453
  %8521 = vmatpush.bf16.msra.mxu0 %v4449
  %8522 = vmatpush.bf16.msra.mxu0 %v4445
  %8523 = vmatpush.bf16.msra.mxu0 %v4441
  %8524 = vmatmul.bf16.gmra.mxu0 %v1633
  %v8525 = vpop.f32.mrf.mxu0
  %v8526 = vadd.f32 %v8477, %v8525
  %v8527 = vpop.f32.mrf.mxu0
  %v8528 = vadd.f32 %v8479, %v8527
  %8529 = vmatmul.bf16.gmra.mxu0 %v1658
  %v8530 = vpop.f32.mrf.mxu0
  %v8531 = vadd.f32 %v8482, %v8530
  %v8532 = vpop.f32.mrf.mxu0
  %v8533 = vadd.f32 %v8484, %v8532
  %8534 = vmatmul.bf16.gmra.mxu0 %v1683
  %v8535 = vpop.f32.mrf.mxu0
  %v8536 = vadd.f32 %v8487, %v8535
  %v8537 = vpop.f32.mrf.mxu0
  %v8538 = vadd.f32 %v8489, %v8537
  %8539 = vmatmul.bf16.gmra.mxu0 %v1708
  %v8540 = vpop.f32.mrf.mxu0
  %v8541 = vadd.f32 %v8492, %v8540
  %v8542 = vpop.f32.mrf.mxu0
  %v8543 = vadd.f32 %v8494, %v8542
  %8544 = vmatmul.bf16.gmra.mxu0 %v1733
  %v8545 = vpop.f32.mrf.mxu0
  %v8546 = vadd.f32 %v8497, %v8545
  %v8547 = vpop.f32.mrf.mxu0
  %v8548 = vadd.f32 %v8499, %v8547
  %8549 = vmatmul.bf16.gmra.mxu0 %v1758
  %v8550 = vpop.f32.mrf.mxu0
  %v8551 = vadd.f32 %v8502, %v8550
  %v8552 = vpop.f32.mrf.mxu0
  %v8553 = vadd.f32 %v8504, %v8552
  %8554 = vmatmul.bf16.gmra.mxu0 %v1783
  %v8555 = vpop.f32.mrf.mxu0
  %v8556 = vadd.f32 %v8507, %v8555
  %v8557 = vpop.f32.mrf.mxu0
  %v8558 = vadd.f32 %v8509, %v8557
  %8559 = vmatmul.bf16.gmra.mxu0 %v1808
  %v8560 = vpop.f32.mrf.mxu0
  %v8561 = vadd.f32 %v8512, %v8560
  %v8562 = vpop.f32.mrf.mxu0
  %v8563 = vadd.f32 %v8514, %v8562
  %8564 = vdwg.mxu0
  %8565 = vmatpush.bf16.msra.mxu0 %v4501
  %8566 = vmatpush.bf16.msra.mxu0 %v4497
  %8567 = vmatpush.bf16.msra.mxu0 %v4493
  %8568 = vmatpush.bf16.msra.mxu0 %v4489
  %8569 = vmatpush.bf16.msra.mxu0 %v4485
  %8570 = vmatpush.bf16.msra.mxu0 %v4481
  %8571 = vmatpush.bf16.msra.mxu0 %v4477
  %8572 = vmatpush.bf16.msra.mxu0 %v4473
  %8573 = vmatmul.bf16.gmra.mxu0 %v1634
  %v8574 = vpop.f32.mrf.mxu0
  %v8575 = vadd.f32 %v8526, %v8574
  %v8576 = vpop.f32.mrf.mxu0
  %v8577 = vadd.f32 %v8528, %v8576
  %8578 = vmatmul.bf16.gmra.mxu0 %v1659
  %v8579 = vpop.f32.mrf.mxu0
  %v8580 = vadd.f32 %v8531, %v8579
  %v8581 = vpop.f32.mrf.mxu0
  %v8582 = vadd.f32 %v8533, %v8581
  %8583 = vmatmul.bf16.gmra.mxu0 %v1684
  %v8584 = vpop.f32.mrf.mxu0
  %v8585 = vadd.f32 %v8536, %v8584
  %v8586 = vpop.f32.mrf.mxu0
  %v8587 = vadd.f32 %v8538, %v8586
  %8588 = vmatmul.bf16.gmra.mxu0 %v1709
  %v8589 = vpop.f32.mrf.mxu0
  %v8590 = vadd.f32 %v8541, %v8589
  %v8591 = vpop.f32.mrf.mxu0
  %v8592 = vadd.f32 %v8543, %v8591
  %8593 = vmatmul.bf16.gmra.mxu0 %v1734
  %v8594 = vpop.f32.mrf.mxu0
  %v8595 = vadd.f32 %v8546, %v8594
  %v8596 = vpop.f32.mrf.mxu0
  %v8597 = vadd.f32 %v8548, %v8596
  %8598 = vmatmul.bf16.gmra.mxu0 %v1759
  %v8599 = vpop.f32.mrf.mxu0
  %v8600 = vadd.f32 %v8551, %v8599
  %v8601 = vpop.f32.mrf.mxu0
  %v8602 = vadd.f32 %v8553, %v8601
  %8603 = vmatmul.bf16.gmra.mxu0 %v1784
  %v8604 = vpop.f32.mrf.mxu0
  %v8605 = vadd.f32 %v8556, %v8604
  %v8606 = vpop.f32.mrf.mxu0
  %v8607 = vadd.f32 %v8558, %v8606
  %8608 = vmatmul.bf16.gmra.mxu0 %v1809
  %v8609 = vpop.f32.mrf.mxu0
  %v8610 = vadd.f32 %v8561, %v8609
  %v8611 = vpop.f32.mrf.mxu0
  %v8612 = vadd.f32 %v8563, %v8611
  %8613 = vdwg.mxu0
  %8614 = vmatpush.bf16.msra.mxu0 %v4533
  %8615 = vmatpush.bf16.msra.mxu0 %v4529
  %8616 = vmatpush.bf16.msra.mxu0 %v4525
  %8617 = vmatpush.bf16.msra.mxu0 %v4521
  %8618 = vmatpush.bf16.msra.mxu0 %v4517
  %8619 = vmatpush.bf16.msra.mxu0 %v4513
  %8620 = vmatpush.bf16.msra.mxu0 %v4509
  %8621 = vmatpush.bf16.msra.mxu0 %v4505
  %8622 = vmatmul.bf16.gmra.mxu0 %v1635
  %v8623 = vpop.f32.mrf.mxu0
  %v8624 = vadd.f32 %v8575, %v8623
  %v8625 = vpop.f32.mrf.mxu0
  %v8626 = vadd.f32 %v8577, %v8625
  %8627 = vmatmul.bf16.gmra.mxu0 %v1660
  %v8628 = vpop.f32.mrf.mxu0
  %v8629 = vadd.f32 %v8580, %v8628
  %v8630 = vpop.f32.mrf.mxu0
  %v8631 = vadd.f32 %v8582, %v8630
  %8632 = vmatmul.bf16.gmra.mxu0 %v1685
  %v8633 = vpop.f32.mrf.mxu0
  %v8634 = vadd.f32 %v8585, %v8633
  %v8635 = vpop.f32.mrf.mxu0
  %v8636 = vadd.f32 %v8587, %v8635
  %8637 = vmatmul.bf16.gmra.mxu0 %v1710
  %v8638 = vpop.f32.mrf.mxu0
  %v8639 = vadd.f32 %v8590, %v8638
  %v8640 = vpop.f32.mrf.mxu0
  %v8641 = vadd.f32 %v8592, %v8640
  %8642 = vmatmul.bf16.gmra.mxu0 %v1735
  %v8643 = vpop.f32.mrf.mxu0
  %v8644 = vadd.f32 %v8595, %v8643
  %v8645 = vpop.f32.mrf.mxu0
  %v8646 = vadd.f32 %v8597, %v8645
  %8647 = vmatmul.bf16.gmra.mxu0 %v1760
  %v8648 = vpop.f32.mrf.mxu0
  %v8649 = vadd.f32 %v8600, %v8648
  %v8650 = vpop.f32.mrf.mxu0
  %v8651 = vadd.f32 %v8602, %v8650
  %8652 = vmatmul.bf16.gmra.mxu0 %v1785
  %v8653 = vpop.f32.mrf.mxu0
  %v8654 = vadd.f32 %v8605, %v8653
  %v8655 = vpop.f32.mrf.mxu0
  %v8656 = vadd.f32 %v8607, %v8655
  %8657 = vmatmul.bf16.gmra.mxu0 %v1810
  %v8658 = vpop.f32.mrf.mxu0
  %v8659 = vadd.f32 %v8610, %v8658
  %v8660 = vpop.f32.mrf.mxu0
  %v8661 = vadd.f32 %v8612, %v8660
  %8662 = vdwg.mxu0
  %8663 = vmatpush.bf16.msra.mxu0 %v4565
  %8664 = vmatpush.bf16.msra.mxu0 %v4561
  %8665 = vmatpush.bf16.msra.mxu0 %v4557
  %8666 = vmatpush.bf16.msra.mxu0 %v4553
  %8667 = vmatpush.bf16.msra.mxu0 %v4549
  %8668 = vmatpush.bf16.msra.mxu0 %v4545
  %8669 = vmatpush.bf16.msra.mxu0 %v4541
  %8670 = vmatpush.bf16.msra.mxu0 %v4537
  %8671 = vmatmul.bf16.gmra.mxu0 %v1636
  %v8672 = vpop.f32.mrf.mxu0
  %v8673 = vadd.f32 %v8624, %v8672
  %v8674 = vpop.f32.mrf.mxu0
  %v8675 = vadd.f32 %v8626, %v8674
  %8676 = vmatmul.bf16.gmra.mxu0 %v1661
  %v8677 = vpop.f32.mrf.mxu0
  %v8678 = vadd.f32 %v8629, %v8677
  %v8679 = vpop.f32.mrf.mxu0
  %v8680 = vadd.f32 %v8631, %v8679
  %8681 = vmatmul.bf16.gmra.mxu0 %v1686
  %v8682 = vpop.f32.mrf.mxu0
  %v8683 = vadd.f32 %v8634, %v8682
  %v8684 = vpop.f32.mrf.mxu0
  %v8685 = vadd.f32 %v8636, %v8684
  %8686 = vmatmul.bf16.gmra.mxu0 %v1711
  %v8687 = vpop.f32.mrf.mxu0
  %v8688 = vadd.f32 %v8639, %v8687
  %v8689 = vpop.f32.mrf.mxu0
  %v8690 = vadd.f32 %v8641, %v8689
  %8691 = vmatmul.bf16.gmra.mxu0 %v1736
  %v8692 = vpop.f32.mrf.mxu0
  %v8693 = vadd.f32 %v8644, %v8692
  %v8694 = vpop.f32.mrf.mxu0
  %v8695 = vadd.f32 %v8646, %v8694
  %8696 = vmatmul.bf16.gmra.mxu0 %v1761
  %v8697 = vpop.f32.mrf.mxu0
  %v8698 = vadd.f32 %v8649, %v8697
  %v8699 = vpop.f32.mrf.mxu0
  %v8700 = vadd.f32 %v8651, %v8699
  %8701 = vmatmul.bf16.gmra.mxu0 %v1786
  %v8702 = vpop.f32.mrf.mxu0
  %v8703 = vadd.f32 %v8654, %v8702
  %v8704 = vpop.f32.mrf.mxu0
  %v8705 = vadd.f32 %v8656, %v8704
  %8706 = vmatmul.bf16.gmra.mxu0 %v1811
  %v8707 = vpop.f32.mrf.mxu0
  %v8708 = vadd.f32 %v8659, %v8707
  %v8709 = vpop.f32.mrf.mxu0
  %v8710 = vadd.f32 %v8661, %v8709
  %8711 = vdwg.mxu0
  %8712 = vmatpush.bf16.msra.mxu0 %v4597
  %8713 = vmatpush.bf16.msra.mxu0 %v4593
  %8714 = vmatpush.bf16.msra.mxu0 %v4589
  %8715 = vmatpush.bf16.msra.mxu0 %v4585
  %8716 = vmatpush.bf16.msra.mxu0 %v4581
  %8717 = vmatpush.bf16.msra.mxu0 %v4577
  %8718 = vmatpush.bf16.msra.mxu0 %v4573
  %8719 = vmatpush.bf16.msra.mxu0 %v4569
  %8720 = vmatmul.bf16.gmra.mxu0 %v1637
  %v8721 = vpop.f32.mrf.mxu0
  %v8722 = vadd.f32 %v8673, %v8721
  %v8723 = vpop.f32.mrf.mxu0
  %v8724 = vadd.f32 %v8675, %v8723
  %8725 = vmatmul.bf16.gmra.mxu0 %v1662
  %v8726 = vpop.f32.mrf.mxu0
  %v8727 = vadd.f32 %v8678, %v8726
  %v8728 = vpop.f32.mrf.mxu0
  %v8729 = vadd.f32 %v8680, %v8728
  %8730 = vmatmul.bf16.gmra.mxu0 %v1687
  %v8731 = vpop.f32.mrf.mxu0
  %v8732 = vadd.f32 %v8683, %v8731
  %v8733 = vpop.f32.mrf.mxu0
  %v8734 = vadd.f32 %v8685, %v8733
  %8735 = vmatmul.bf16.gmra.mxu0 %v1712
  %v8736 = vpop.f32.mrf.mxu0
  %v8737 = vadd.f32 %v8688, %v8736
  %v8738 = vpop.f32.mrf.mxu0
  %v8739 = vadd.f32 %v8690, %v8738
  %8740 = vmatmul.bf16.gmra.mxu0 %v1737
  %v8741 = vpop.f32.mrf.mxu0
  %v8742 = vadd.f32 %v8693, %v8741
  %v8743 = vpop.f32.mrf.mxu0
  %v8744 = vadd.f32 %v8695, %v8743
  %8745 = vmatmul.bf16.gmra.mxu0 %v1762
  %v8746 = vpop.f32.mrf.mxu0
  %v8747 = vadd.f32 %v8698, %v8746
  %v8748 = vpop.f32.mrf.mxu0
  %v8749 = vadd.f32 %v8700, %v8748
  %8750 = vmatmul.bf16.gmra.mxu0 %v1787
  %v8751 = vpop.f32.mrf.mxu0
  %v8752 = vadd.f32 %v8703, %v8751
  %v8753 = vpop.f32.mrf.mxu0
  %v8754 = vadd.f32 %v8705, %v8753
  %8755 = vmatmul.bf16.gmra.mxu0 %v1812
  %v8756 = vpop.f32.mrf.mxu0
  %v8757 = vadd.f32 %v8708, %v8756
  %v8758 = vpop.f32.mrf.mxu0
  %v8759 = vadd.f32 %v8710, %v8758
  %8760 = vdwg.mxu0
  %8761 = vmatpush.bf16.msra.mxu0 %v4629
  %8762 = vmatpush.bf16.msra.mxu0 %v4625
  %8763 = vmatpush.bf16.msra.mxu0 %v4621
  %8764 = vmatpush.bf16.msra.mxu0 %v4617
  %8765 = vmatpush.bf16.msra.mxu0 %v4613
  %8766 = vmatpush.bf16.msra.mxu0 %v4609
  %8767 = vmatpush.bf16.msra.mxu0 %v4605
  %8768 = vmatpush.bf16.msra.mxu0 %v4601
  %8769 = vmatmul.bf16.gmra.mxu0 %v1638
  %v8770 = vpop.f32.mrf.mxu0
  %v8771 = vadd.f32 %v8722, %v8770
  %v8772 = vpop.f32.mrf.mxu0
  %v8773 = vadd.f32 %v8724, %v8772
  %8774 = vmatmul.bf16.gmra.mxu0 %v1663
  %v8775 = vpop.f32.mrf.mxu0
  %v8776 = vadd.f32 %v8727, %v8775
  %v8777 = vpop.f32.mrf.mxu0
  %v8778 = vadd.f32 %v8729, %v8777
  %8779 = vmatmul.bf16.gmra.mxu0 %v1688
  %v8780 = vpop.f32.mrf.mxu0
  %v8781 = vadd.f32 %v8732, %v8780
  %v8782 = vpop.f32.mrf.mxu0
  %v8783 = vadd.f32 %v8734, %v8782
  %8784 = vmatmul.bf16.gmra.mxu0 %v1713
  %v8785 = vpop.f32.mrf.mxu0
  %v8786 = vadd.f32 %v8737, %v8785
  %v8787 = vpop.f32.mrf.mxu0
  %v8788 = vadd.f32 %v8739, %v8787
  %8789 = vmatmul.bf16.gmra.mxu0 %v1738
  %v8790 = vpop.f32.mrf.mxu0
  %v8791 = vadd.f32 %v8742, %v8790
  %v8792 = vpop.f32.mrf.mxu0
  %v8793 = vadd.f32 %v8744, %v8792
  %8794 = vmatmul.bf16.gmra.mxu0 %v1763
  %v8795 = vpop.f32.mrf.mxu0
  %v8796 = vadd.f32 %v8747, %v8795
  %v8797 = vpop.f32.mrf.mxu0
  %v8798 = vadd.f32 %v8749, %v8797
  %8799 = vmatmul.bf16.gmra.mxu0 %v1788
  %v8800 = vpop.f32.mrf.mxu0
  %v8801 = vadd.f32 %v8752, %v8800
  %v8802 = vpop.f32.mrf.mxu0
  %v8803 = vadd.f32 %v8754, %v8802
  %8804 = vmatmul.bf16.gmra.mxu0 %v1813
  %v8805 = vpop.f32.mrf.mxu0
  %v8806 = vadd.f32 %v8757, %v8805
  %v8807 = vpop.f32.mrf.mxu0
  %v8808 = vadd.f32 %v8759, %v8807
  %8809 = vdwg.mxu0
  %8810 = vmatpush.bf16.msra.mxu0 %v4661
  %8811 = vmatpush.bf16.msra.mxu0 %v4657
  %8812 = vmatpush.bf16.msra.mxu0 %v4653
  %8813 = vmatpush.bf16.msra.mxu0 %v4649
  %8814 = vmatpush.bf16.msra.mxu0 %v4645
  %8815 = vmatpush.bf16.msra.mxu0 %v4641
  %8816 = vmatpush.bf16.msra.mxu0 %v4637
  %8817 = vmatpush.bf16.msra.mxu0 %v4633
  %8818 = vmatmul.bf16.gmra.mxu0 %v1639
  %v8819 = vpop.f32.mrf.mxu0
  %v8820 = vadd.f32 %v8771, %v8819
  %v8821 = vpop.f32.mrf.mxu0
  %v8822 = vadd.f32 %v8773, %v8821
  %8823 = vmatmul.bf16.gmra.mxu0 %v1664
  %v8824 = vpop.f32.mrf.mxu0
  %v8825 = vadd.f32 %v8776, %v8824
  %v8826 = vpop.f32.mrf.mxu0
  %v8827 = vadd.f32 %v8778, %v8826
  %8828 = vmatmul.bf16.gmra.mxu0 %v1689
  %v8829 = vpop.f32.mrf.mxu0
  %v8830 = vadd.f32 %v8781, %v8829
  %v8831 = vpop.f32.mrf.mxu0
  %v8832 = vadd.f32 %v8783, %v8831
  %8833 = vmatmul.bf16.gmra.mxu0 %v1714
  %v8834 = vpop.f32.mrf.mxu0
  %v8835 = vadd.f32 %v8786, %v8834
  %v8836 = vpop.f32.mrf.mxu0
  %v8837 = vadd.f32 %v8788, %v8836
  %8838 = vmatmul.bf16.gmra.mxu0 %v1739
  %v8839 = vpop.f32.mrf.mxu0
  %v8840 = vadd.f32 %v8791, %v8839
  %v8841 = vpop.f32.mrf.mxu0
  %v8842 = vadd.f32 %v8793, %v8841
  %8843 = vmatmul.bf16.gmra.mxu0 %v1764
  %v8844 = vpop.f32.mrf.mxu0
  %v8845 = vadd.f32 %v8796, %v8844
  %v8846 = vpop.f32.mrf.mxu0
  %v8847 = vadd.f32 %v8798, %v8846
  %8848 = vmatmul.bf16.gmra.mxu0 %v1789
  %v8849 = vpop.f32.mrf.mxu0
  %v8850 = vadd.f32 %v8801, %v8849
  %v8851 = vpop.f32.mrf.mxu0
  %v8852 = vadd.f32 %v8803, %v8851
  %8853 = vmatmul.bf16.gmra.mxu0 %v1814
  %v8854 = vpop.f32.mrf.mxu0
  %v8855 = vadd.f32 %v8806, %v8854
  %v8856 = vpop.f32.mrf.mxu0
  %v8857 = vadd.f32 %v8808, %v8856
  %8858 = vdwg.mxu0
  %8859 = vmatpush.bf16.msra.mxu0 %v4693
  %8860 = vmatpush.bf16.msra.mxu0 %v4689
  %8861 = vmatpush.bf16.msra.mxu0 %v4685
  %8862 = vmatpush.bf16.msra.mxu0 %v4681
  %8863 = vmatpush.bf16.msra.mxu0 %v4677
  %8864 = vmatpush.bf16.msra.mxu0 %v4673
  %8865 = vmatpush.bf16.msra.mxu0 %v4669
  %8866 = vmatpush.bf16.msra.mxu0 %v4665
  %8867 = vmatmul.bf16.gmra.mxu0 %v1640
  %v8868 = vpop.f32.mrf.mxu0
  %v8869 = vadd.f32 %v8820, %v8868
  %v8870 = vpop.f32.mrf.mxu0
  %v8871 = vadd.f32 %v8822, %v8870
  %8872 = vmatmul.bf16.gmra.mxu0 %v1665
  %v8873 = vpop.f32.mrf.mxu0
  %v8874 = vadd.f32 %v8825, %v8873
  %v8875 = vpop.f32.mrf.mxu0
  %v8876 = vadd.f32 %v8827, %v8875
  %8877 = vmatmul.bf16.gmra.mxu0 %v1690
  %v8878 = vpop.f32.mrf.mxu0
  %v8879 = vadd.f32 %v8830, %v8878
  %v8880 = vpop.f32.mrf.mxu0
  %v8881 = vadd.f32 %v8832, %v8880
  %8882 = vmatmul.bf16.gmra.mxu0 %v1715
  %v8883 = vpop.f32.mrf.mxu0
  %v8884 = vadd.f32 %v8835, %v8883
  %v8885 = vpop.f32.mrf.mxu0
  %v8886 = vadd.f32 %v8837, %v8885
  %8887 = vmatmul.bf16.gmra.mxu0 %v1740
  %v8888 = vpop.f32.mrf.mxu0
  %v8889 = vadd.f32 %v8840, %v8888
  %v8890 = vpop.f32.mrf.mxu0
  %v8891 = vadd.f32 %v8842, %v8890
  %8892 = vmatmul.bf16.gmra.mxu0 %v1765
  %v8893 = vpop.f32.mrf.mxu0
  %v8894 = vadd.f32 %v8845, %v8893
  %v8895 = vpop.f32.mrf.mxu0
  %v8896 = vadd.f32 %v8847, %v8895
  %8897 = vmatmul.bf16.gmra.mxu0 %v1790
  %v8898 = vpop.f32.mrf.mxu0
  %v8899 = vadd.f32 %v8850, %v8898
  %v8900 = vpop.f32.mrf.mxu0
  %v8901 = vadd.f32 %v8852, %v8900
  %8902 = vmatmul.bf16.gmra.mxu0 %v1815
  %v8903 = vpop.f32.mrf.mxu0
  %v8904 = vadd.f32 %v8855, %v8903
  %v8905 = vpop.f32.mrf.mxu0
  %v8906 = vadd.f32 %v8857, %v8905
  %8907 = vdwg.mxu0
  %8908 = vmatpush.bf16.msra.mxu0 %v4725
  %8909 = vmatpush.bf16.msra.mxu0 %v4721
  %8910 = vmatpush.bf16.msra.mxu0 %v4717
  %8911 = vmatpush.bf16.msra.mxu0 %v4713
  %8912 = vmatpush.bf16.msra.mxu0 %v4709
  %8913 = vmatpush.bf16.msra.mxu0 %v4705
  %8914 = vmatpush.bf16.msra.mxu0 %v4701
  %8915 = vmatpush.bf16.msra.mxu0 %v4697
  %8916 = vmatmul.bf16.gmra.mxu0 %v1641
  %v8917 = vpop.f32.mrf.mxu0
  %v8918 = vadd.f32 %v8869, %v8917
  %v8919 = vpop.f32.mrf.mxu0
  %v8920 = vadd.f32 %v8871, %v8919
  %8921 = vmatmul.bf16.gmra.mxu0 %v1666
  %v8922 = vpop.f32.mrf.mxu0
  %v8923 = vadd.f32 %v8874, %v8922
  %v8924 = vpop.f32.mrf.mxu0
  %v8925 = vadd.f32 %v8876, %v8924
  %8926 = vmatmul.bf16.gmra.mxu0 %v1691
  %v8927 = vpop.f32.mrf.mxu0
  %v8928 = vadd.f32 %v8879, %v8927
  %v8929 = vpop.f32.mrf.mxu0
  %v8930 = vadd.f32 %v8881, %v8929
  %8931 = vmatmul.bf16.gmra.mxu0 %v1716
  %v8932 = vpop.f32.mrf.mxu0
  %v8933 = vadd.f32 %v8884, %v8932
  %v8934 = vpop.f32.mrf.mxu0
  %v8935 = vadd.f32 %v8886, %v8934
  %8936 = vmatmul.bf16.gmra.mxu0 %v1741
  %v8937 = vpop.f32.mrf.mxu0
  %v8938 = vadd.f32 %v8889, %v8937
  %v8939 = vpop.f32.mrf.mxu0
  %v8940 = vadd.f32 %v8891, %v8939
  %8941 = vmatmul.bf16.gmra.mxu0 %v1766
  %v8942 = vpop.f32.mrf.mxu0
  %v8943 = vadd.f32 %v8894, %v8942
  %v8944 = vpop.f32.mrf.mxu0
  %v8945 = vadd.f32 %v8896, %v8944
  %8946 = vmatmul.bf16.gmra.mxu0 %v1791
  %v8947 = vpop.f32.mrf.mxu0
  %v8948 = vadd.f32 %v8899, %v8947
  %v8949 = vpop.f32.mrf.mxu0
  %v8950 = vadd.f32 %v8901, %v8949
  %8951 = vmatmul.bf16.gmra.mxu0 %v1816
  %v8952 = vpop.f32.mrf.mxu0
  %v8953 = vadd.f32 %v8904, %v8952
  %v8954 = vpop.f32.mrf.mxu0
  %v8955 = vadd.f32 %v8906, %v8954
  %8956 = vdwg.mxu0
  %8957 = vmatpush.bf16.msra.mxu0 %v4757
  %8958 = vmatpush.bf16.msra.mxu0 %v4753
  %8959 = vmatpush.bf16.msra.mxu0 %v4749
  %8960 = vmatpush.bf16.msra.mxu0 %v4745
  %8961 = vmatpush.bf16.msra.mxu0 %v4741
  %8962 = vmatpush.bf16.msra.mxu0 %v4737
  %8963 = vmatpush.bf16.msra.mxu0 %v4733
  %8964 = vmatpush.bf16.msra.mxu0 %v4729
  %8965 = vmatmul.bf16.gmra.mxu0 %v1642
  %v8966 = vpop.f32.mrf.mxu0
  %v8967 = vadd.f32 %v8918, %v8966
  %v8968 = vpop.f32.mrf.mxu0
  %v8969 = vadd.f32 %v8920, %v8968
  %8970 = vmatmul.bf16.gmra.mxu0 %v1667
  %v8971 = vpop.f32.mrf.mxu0
  %v8972 = vadd.f32 %v8923, %v8971
  %v8973 = vpop.f32.mrf.mxu0
  %v8974 = vadd.f32 %v8925, %v8973
  %8975 = vmatmul.bf16.gmra.mxu0 %v1692
  %v8976 = vpop.f32.mrf.mxu0
  %v8977 = vadd.f32 %v8928, %v8976
  %v8978 = vpop.f32.mrf.mxu0
  %v8979 = vadd.f32 %v8930, %v8978
  %8980 = vmatmul.bf16.gmra.mxu0 %v1717
  %v8981 = vpop.f32.mrf.mxu0
  %v8982 = vadd.f32 %v8933, %v8981
  %v8983 = vpop.f32.mrf.mxu0
  %v8984 = vadd.f32 %v8935, %v8983
  %8985 = vmatmul.bf16.gmra.mxu0 %v1742
  %v8986 = vpop.f32.mrf.mxu0
  %v8987 = vadd.f32 %v8938, %v8986
  %v8988 = vpop.f32.mrf.mxu0
  %v8989 = vadd.f32 %v8940, %v8988
  %8990 = vmatmul.bf16.gmra.mxu0 %v1767
  %v8991 = vpop.f32.mrf.mxu0
  %v8992 = vadd.f32 %v8943, %v8991
  %v8993 = vpop.f32.mrf.mxu0
  %v8994 = vadd.f32 %v8945, %v8993
  %8995 = vmatmul.bf16.gmra.mxu0 %v1792
  %v8996 = vpop.f32.mrf.mxu0
  %v8997 = vadd.f32 %v8948, %v8996
  %v8998 = vpop.f32.mrf.mxu0
  %v8999 = vadd.f32 %v8950, %v8998
  %9000 = vmatmul.bf16.gmra.mxu0 %v1817
  %v9001 = vpop.f32.mrf.mxu0
  %v9002 = vadd.f32 %v8953, %v9001
  %v9003 = vpop.f32.mrf.mxu0
  %v9004 = vadd.f32 %v8955, %v9003
  %9005 = vdwg.mxu0
  %9006 = vmatpush.bf16.msra.mxu0 %v4789
  %9007 = vmatpush.bf16.msra.mxu0 %v4785
  %9008 = vmatpush.bf16.msra.mxu0 %v4781
  %9009 = vmatpush.bf16.msra.mxu0 %v4777
  %9010 = vmatpush.bf16.msra.mxu0 %v4773
  %9011 = vmatpush.bf16.msra.mxu0 %v4769
  %9012 = vmatpush.bf16.msra.mxu0 %v4765
  %9013 = vmatpush.bf16.msra.mxu0 %v4761
  %9014 = vmatmul.bf16.gmra.mxu0 %v1643
  %v9015 = vpop.f32.mrf.mxu0
  %v9016 = vadd.f32 %v8967, %v9015
  %v9017 = vpop.f32.mrf.mxu0
  %v9018 = vadd.f32 %v8969, %v9017
  %9019 = vmatmul.bf16.gmra.mxu0 %v1668
  %v9020 = vpop.f32.mrf.mxu0
  %v9021 = vadd.f32 %v8972, %v9020
  %v9022 = vpop.f32.mrf.mxu0
  %v9023 = vadd.f32 %v8974, %v9022
  %9024 = vmatmul.bf16.gmra.mxu0 %v1693
  %v9025 = vpop.f32.mrf.mxu0
  %v9026 = vadd.f32 %v8977, %v9025
  %v9027 = vpop.f32.mrf.mxu0
  %v9028 = vadd.f32 %v8979, %v9027
  %9029 = vmatmul.bf16.gmra.mxu0 %v1718
  %v9030 = vpop.f32.mrf.mxu0
  %v9031 = vadd.f32 %v8982, %v9030
  %v9032 = vpop.f32.mrf.mxu0
  %v9033 = vadd.f32 %v8984, %v9032
  %9034 = vmatmul.bf16.gmra.mxu0 %v1743
  %v9035 = vpop.f32.mrf.mxu0
  %v9036 = vadd.f32 %v8987, %v9035
  %v9037 = vpop.f32.mrf.mxu0
  %v9038 = vadd.f32 %v8989, %v9037
  %9039 = vmatmul.bf16.gmra.mxu0 %v1768
  %v9040 = vpop.f32.mrf.mxu0
  %v9041 = vadd.f32 %v8992, %v9040
  %v9042 = vpop.f32.mrf.mxu0
  %v9043 = vadd.f32 %v8994, %v9042
  %9044 = vmatmul.bf16.gmra.mxu0 %v1793
  %v9045 = vpop.f32.mrf.mxu0
  %v9046 = vadd.f32 %v8997, %v9045
  %v9047 = vpop.f32.mrf.mxu0
  %v9048 = vadd.f32 %v8999, %v9047
  %9049 = vmatmul.bf16.gmra.mxu0 %v1818
  %v9050 = vpop.f32.mrf.mxu0
  %v9051 = vadd.f32 %v9002, %v9050
  %v9052 = vpop.f32.mrf.mxu0
  %v9053 = vadd.f32 %v9004, %v9052
  %9054 = vdwg.mxu0
  %9055 = vmatpush.bf16.msra.mxu0 %v4821
  %9056 = vmatpush.bf16.msra.mxu0 %v4817
  %9057 = vmatpush.bf16.msra.mxu0 %v4813
  %9058 = vmatpush.bf16.msra.mxu0 %v4809
  %9059 = vmatpush.bf16.msra.mxu0 %v4805
  %9060 = vmatpush.bf16.msra.mxu0 %v4801
  %9061 = vmatpush.bf16.msra.mxu0 %v4797
  %9062 = vmatpush.bf16.msra.mxu0 %v4793
  %9063 = vmatmul.bf16.gmra.mxu0 %v1644
  %v9064 = vpop.f32.mrf.mxu0
  %v9065 = vadd.f32 %v9016, %v9064
  %v9066 = vpop.f32.mrf.mxu0
  %v9067 = vadd.f32 %v9018, %v9066
  %9068 = vmatmul.bf16.gmra.mxu0 %v1669
  %v9069 = vpop.f32.mrf.mxu0
  %v9070 = vadd.f32 %v9021, %v9069
  %v9071 = vpop.f32.mrf.mxu0
  %v9072 = vadd.f32 %v9023, %v9071
  %9073 = vmatmul.bf16.gmra.mxu0 %v1694
  %v9074 = vpop.f32.mrf.mxu0
  %v9075 = vadd.f32 %v9026, %v9074
  %v9076 = vpop.f32.mrf.mxu0
  %v9077 = vadd.f32 %v9028, %v9076
  %9078 = vmatmul.bf16.gmra.mxu0 %v1719
  %v9079 = vpop.f32.mrf.mxu0
  %v9080 = vadd.f32 %v9031, %v9079
  %v9081 = vpop.f32.mrf.mxu0
  %v9082 = vadd.f32 %v9033, %v9081
  %9083 = vmatmul.bf16.gmra.mxu0 %v1744
  %v9084 = vpop.f32.mrf.mxu0
  %v9085 = vadd.f32 %v9036, %v9084
  %v9086 = vpop.f32.mrf.mxu0
  %v9087 = vadd.f32 %v9038, %v9086
  %9088 = vmatmul.bf16.gmra.mxu0 %v1769
  %v9089 = vpop.f32.mrf.mxu0
  %v9090 = vadd.f32 %v9041, %v9089
  %v9091 = vpop.f32.mrf.mxu0
  %v9092 = vadd.f32 %v9043, %v9091
  %9093 = vmatmul.bf16.gmra.mxu0 %v1794
  %v9094 = vpop.f32.mrf.mxu0
  %v9095 = vadd.f32 %v9046, %v9094
  %v9096 = vpop.f32.mrf.mxu0
  %v9097 = vadd.f32 %v9048, %v9096
  %9098 = vmatmul.bf16.gmra.mxu0 %v1819
  %v9099 = vpop.f32.mrf.mxu0
  %v9100 = vadd.f32 %v9051, %v9099
  %v9101 = vpop.f32.mrf.mxu0
  %v9102 = vadd.f32 %v9053, %v9101
  %9103 = vdwg.mxu0
  %9104 = vmatpush.bf16.msra.mxu0 %v4853
  %9105 = vmatpush.bf16.msra.mxu0 %v4849
  %9106 = vmatpush.bf16.msra.mxu0 %v4845
  %9107 = vmatpush.bf16.msra.mxu0 %v4841
  %9108 = vmatpush.bf16.msra.mxu0 %v4837
  %9109 = vmatpush.bf16.msra.mxu0 %v4833
  %9110 = vmatpush.bf16.msra.mxu0 %v4829
  %9111 = vmatpush.bf16.msra.mxu0 %v4825
  %9112 = vmatmul.bf16.gmra.mxu0 %v1645
  %v9113 = vpop.f32.mrf.mxu0
  %v9114 = vadd.f32 %v9065, %v9113
  %v9115 = vpop.f32.mrf.mxu0
  %v9116 = vadd.f32 %v9067, %v9115
  %9117 = vmatmul.bf16.gmra.mxu0 %v1670
  %v9118 = vpop.f32.mrf.mxu0
  %v9119 = vadd.f32 %v9070, %v9118
  %v9120 = vpop.f32.mrf.mxu0
  %v9121 = vadd.f32 %v9072, %v9120
  %9122 = vmatmul.bf16.gmra.mxu0 %v1695
  %v9123 = vpop.f32.mrf.mxu0
  %v9124 = vadd.f32 %v9075, %v9123
  %v9125 = vpop.f32.mrf.mxu0
  %v9126 = vadd.f32 %v9077, %v9125
  %9127 = vmatmul.bf16.gmra.mxu0 %v1720
  %v9128 = vpop.f32.mrf.mxu0
  %v9129 = vadd.f32 %v9080, %v9128
  %v9130 = vpop.f32.mrf.mxu0
  %v9131 = vadd.f32 %v9082, %v9130
  %9132 = vmatmul.bf16.gmra.mxu0 %v1745
  %v9133 = vpop.f32.mrf.mxu0
  %v9134 = vadd.f32 %v9085, %v9133
  %v9135 = vpop.f32.mrf.mxu0
  %v9136 = vadd.f32 %v9087, %v9135
  %9137 = vmatmul.bf16.gmra.mxu0 %v1770
  %v9138 = vpop.f32.mrf.mxu0
  %v9139 = vadd.f32 %v9090, %v9138
  %v9140 = vpop.f32.mrf.mxu0
  %v9141 = vadd.f32 %v9092, %v9140
  %9142 = vmatmul.bf16.gmra.mxu0 %v1795
  %v9143 = vpop.f32.mrf.mxu0
  %v9144 = vadd.f32 %v9095, %v9143
  %v9145 = vpop.f32.mrf.mxu0
  %v9146 = vadd.f32 %v9097, %v9145
  %9147 = vmatmul.bf16.gmra.mxu0 %v1820
  %v9148 = vpop.f32.mrf.mxu0
  %v9149 = vadd.f32 %v9100, %v9148
  %v9150 = vpop.f32.mrf.mxu0
  %v9151 = vadd.f32 %v9102, %v9150
  %9152 = vdwg.mxu0
  %9153 = vmatpush.bf16.msra.mxu0 %v4885
  %9154 = vmatpush.bf16.msra.mxu0 %v4881
  %9155 = vmatpush.bf16.msra.mxu0 %v4877
  %9156 = vmatpush.bf16.msra.mxu0 %v4873
  %9157 = vmatpush.bf16.msra.mxu0 %v4869
  %9158 = vmatpush.bf16.msra.mxu0 %v4865
  %9159 = vmatpush.bf16.msra.mxu0 %v4861
  %9160 = vmatpush.bf16.msra.mxu0 %v4857
  %9161 = vmatmul.bf16.gmra.mxu0 %v1646
  %v9162 = vpop.f32.mrf.mxu0
  %v9163 = vadd.f32 %v9114, %v9162
  %v9164 = vpop.f32.mrf.mxu0
  %v9165 = vadd.f32 %v9116, %v9164
  %9166 = vmatmul.bf16.gmra.mxu0 %v1671
  %v9167 = vpop.f32.mrf.mxu0
  %v9168 = vadd.f32 %v9119, %v9167
  %v9169 = vpop.f32.mrf.mxu0
  %v9170 = vadd.f32 %v9121, %v9169
  %9171 = vmatmul.bf16.gmra.mxu0 %v1696
  %v9172 = vpop.f32.mrf.mxu0
  %v9173 = vadd.f32 %v9124, %v9172
  %v9174 = vpop.f32.mrf.mxu0
  %v9175 = vadd.f32 %v9126, %v9174
  %9176 = vmatmul.bf16.gmra.mxu0 %v1721
  %v9177 = vpop.f32.mrf.mxu0
  %v9178 = vadd.f32 %v9129, %v9177
  %v9179 = vpop.f32.mrf.mxu0
  %v9180 = vadd.f32 %v9131, %v9179
  %9181 = vmatmul.bf16.gmra.mxu0 %v1746
  %v9182 = vpop.f32.mrf.mxu0
  %v9183 = vadd.f32 %v9134, %v9182
  %v9184 = vpop.f32.mrf.mxu0
  %v9185 = vadd.f32 %v9136, %v9184
  %9186 = vmatmul.bf16.gmra.mxu0 %v1771
  %v9187 = vpop.f32.mrf.mxu0
  %v9188 = vadd.f32 %v9139, %v9187
  %v9189 = vpop.f32.mrf.mxu0
  %v9190 = vadd.f32 %v9141, %v9189
  %9191 = vmatmul.bf16.gmra.mxu0 %v1796
  %v9192 = vpop.f32.mrf.mxu0
  %v9193 = vadd.f32 %v9144, %v9192
  %v9194 = vpop.f32.mrf.mxu0
  %v9195 = vadd.f32 %v9146, %v9194
  %9196 = vmatmul.bf16.gmra.mxu0 %v1821
  %v9197 = vpop.f32.mrf.mxu0
  %v9198 = vadd.f32 %v9149, %v9197
  %v9199 = vpop.f32.mrf.mxu0
  %v9200 = vadd.f32 %v9151, %v9199
  %9201 = vdwg.mxu0
  %9202 = vmatpush.bf16.msra.mxu0 %v4917
  %9203 = vmatpush.bf16.msra.mxu0 %v4913
  %9204 = vmatpush.bf16.msra.mxu0 %v4909
  %9205 = vmatpush.bf16.msra.mxu0 %v4905
  %9206 = vmatpush.bf16.msra.mxu0 %v4901
  %9207 = vmatpush.bf16.msra.mxu0 %v4897
  %9208 = vmatpush.bf16.msra.mxu0 %v4893
  %9209 = vmatpush.bf16.msra.mxu0 %v4889
  %9210 = vmatmul.bf16.gmra.mxu0 %v1647
  %v9211 = vpop.f32.mrf.mxu0
  %v9212 = vadd.f32 %v9163, %v9211
  %v9213 = vpop.f32.mrf.mxu0
  %v9214 = vadd.f32 %v9165, %v9213
  %9215 = vmatmul.bf16.gmra.mxu0 %v1672
  %v9216 = vpop.f32.mrf.mxu0
  %v9217 = vadd.f32 %v9168, %v9216
  %v9218 = vpop.f32.mrf.mxu0
  %v9219 = vadd.f32 %v9170, %v9218
  %9220 = vmatmul.bf16.gmra.mxu0 %v1697
  %v9221 = vpop.f32.mrf.mxu0
  %v9222 = vadd.f32 %v9173, %v9221
  %v9223 = vpop.f32.mrf.mxu0
  %v9224 = vadd.f32 %v9175, %v9223
  %9225 = vmatmul.bf16.gmra.mxu0 %v1722
  %v9226 = vpop.f32.mrf.mxu0
  %v9227 = vadd.f32 %v9178, %v9226
  %v9228 = vpop.f32.mrf.mxu0
  %v9229 = vadd.f32 %v9180, %v9228
  %9230 = vmatmul.bf16.gmra.mxu0 %v1747
  %v9231 = vpop.f32.mrf.mxu0
  %v9232 = vadd.f32 %v9183, %v9231
  %v9233 = vpop.f32.mrf.mxu0
  %v9234 = vadd.f32 %v9185, %v9233
  %9235 = vmatmul.bf16.gmra.mxu0 %v1772
  %v9236 = vpop.f32.mrf.mxu0
  %v9237 = vadd.f32 %v9188, %v9236
  %v9238 = vpop.f32.mrf.mxu0
  %v9239 = vadd.f32 %v9190, %v9238
  %9240 = vmatmul.bf16.gmra.mxu0 %v1797
  %v9241 = vpop.f32.mrf.mxu0
  %v9242 = vadd.f32 %v9193, %v9241
  %v9243 = vpop.f32.mrf.mxu0
  %v9244 = vadd.f32 %v9195, %v9243
  %9245 = vmatmul.bf16.gmra.mxu0 %v1822
  %v9246 = vpop.f32.mrf.mxu0
  %v9247 = vadd.f32 %v9198, %v9246
  %v9248 = vpop.f32.mrf.mxu0
  %v9249 = vadd.f32 %v9200, %v9248
  %9250 = vdwg.mxu0
  %9251 = vmatpush.bf16.msra.mxu0 %v4949
  %9252 = vmatpush.bf16.msra.mxu0 %v4945
  %9253 = vmatpush.bf16.msra.mxu0 %v4941
  %9254 = vmatpush.bf16.msra.mxu0 %v4937
  %9255 = vmatpush.bf16.msra.mxu0 %v4933
  %9256 = vmatpush.bf16.msra.mxu0 %v4929
  %9257 = vmatpush.bf16.msra.mxu0 %v4925
  %9258 = vmatpush.bf16.msra.mxu0 %v4921
  %9259 = vmatmul.bf16.gmra.mxu0 %v1648
  %v9260 = vpop.f32.mrf.mxu0
  %v9261 = vadd.f32 %v9212, %v9260
  %v9262 = vpop.f32.mrf.mxu0
  %v9263 = vadd.f32 %v9214, %v9262
  %9264 = vmatmul.bf16.gmra.mxu0 %v1673
  %v9265 = vpop.f32.mrf.mxu0
  %v9266 = vadd.f32 %v9217, %v9265
  %v9267 = vpop.f32.mrf.mxu0
  %v9268 = vadd.f32 %v9219, %v9267
  %9269 = vmatmul.bf16.gmra.mxu0 %v1698
  %v9270 = vpop.f32.mrf.mxu0
  %v9271 = vadd.f32 %v9222, %v9270
  %v9272 = vpop.f32.mrf.mxu0
  %v9273 = vadd.f32 %v9224, %v9272
  %9274 = vmatmul.bf16.gmra.mxu0 %v1723
  %v9275 = vpop.f32.mrf.mxu0
  %v9276 = vadd.f32 %v9227, %v9275
  %v9277 = vpop.f32.mrf.mxu0
  %v9278 = vadd.f32 %v9229, %v9277
  %9279 = vmatmul.bf16.gmra.mxu0 %v1748
  %v9280 = vpop.f32.mrf.mxu0
  %v9281 = vadd.f32 %v9232, %v9280
  %v9282 = vpop.f32.mrf.mxu0
  %v9283 = vadd.f32 %v9234, %v9282
  %9284 = vmatmul.bf16.gmra.mxu0 %v1773
  %v9285 = vpop.f32.mrf.mxu0
  %v9286 = vadd.f32 %v9237, %v9285
  %v9287 = vpop.f32.mrf.mxu0
  %v9288 = vadd.f32 %v9239, %v9287
  %9289 = vmatmul.bf16.gmra.mxu0 %v1798
  %v9290 = vpop.f32.mrf.mxu0
  %v9291 = vadd.f32 %v9242, %v9290
  %v9292 = vpop.f32.mrf.mxu0
  %v9293 = vadd.f32 %v9244, %v9292
  %9294 = vmatmul.bf16.gmra.mxu0 %v1823
  %v9295 = vpop.f32.mrf.mxu0
  %v9296 = vadd.f32 %v9247, %v9295
  %v9297 = vpop.f32.mrf.mxu0
  %v9298 = vadd.f32 %v9249, %v9297
  %9299 = vdwg.mxu0
  %9300 = vmatpush.bf16.msra.mxu0 %v4981
  %9301 = vmatpush.bf16.msra.mxu0 %v4977
  %9302 = vmatpush.bf16.msra.mxu0 %v4973
  %9303 = vmatpush.bf16.msra.mxu0 %v4969
  %9304 = vmatpush.bf16.msra.mxu0 %v4965
  %9305 = vmatpush.bf16.msra.mxu0 %v4961
  %9306 = vmatpush.bf16.msra.mxu0 %v4957
  %9307 = vmatpush.bf16.msra.mxu0 %v4953
  %9308 = vmatmul.bf16.gmra.mxu0 %v1649
  %v9309 = vpop.f32.mrf.mxu0
  %v9310 = vadd.f32 %v9261, %v9309
  %v9311 = vpop.f32.mrf.mxu0
  %v9312 = vadd.f32 %v9263, %v9311
  %9313 = vmatmul.bf16.gmra.mxu0 %v1674
  %v9314 = vpop.f32.mrf.mxu0
  %v9315 = vadd.f32 %v9266, %v9314
  %v9316 = vpop.f32.mrf.mxu0
  %v9317 = vadd.f32 %v9268, %v9316
  %9318 = vmatmul.bf16.gmra.mxu0 %v1699
  %v9319 = vpop.f32.mrf.mxu0
  %v9320 = vadd.f32 %v9271, %v9319
  %v9321 = vpop.f32.mrf.mxu0
  %v9322 = vadd.f32 %v9273, %v9321
  %9323 = vmatmul.bf16.gmra.mxu0 %v1724
  %v9324 = vpop.f32.mrf.mxu0
  %v9325 = vadd.f32 %v9276, %v9324
  %v9326 = vpop.f32.mrf.mxu0
  %v9327 = vadd.f32 %v9278, %v9326
  %9328 = vmatmul.bf16.gmra.mxu0 %v1749
  %v9329 = vpop.f32.mrf.mxu0
  %v9330 = vadd.f32 %v9281, %v9329
  %v9331 = vpop.f32.mrf.mxu0
  %v9332 = vadd.f32 %v9283, %v9331
  %9333 = vmatmul.bf16.gmra.mxu0 %v1774
  %v9334 = vpop.f32.mrf.mxu0
  %v9335 = vadd.f32 %v9286, %v9334
  %v9336 = vpop.f32.mrf.mxu0
  %v9337 = vadd.f32 %v9288, %v9336
  %9338 = vmatmul.bf16.gmra.mxu0 %v1799
  %v9339 = vpop.f32.mrf.mxu0
  %v9340 = vadd.f32 %v9291, %v9339
  %v9341 = vpop.f32.mrf.mxu0
  %v9342 = vadd.f32 %v9293, %v9341
  %9343 = vmatmul.bf16.gmra.mxu0 %v1824
  %v9344 = vpop.f32.mrf.mxu0
  %v9345 = vadd.f32 %v9296, %v9344
  %v9346 = vpop.f32.mrf.mxu0
  %v9347 = vadd.f32 %v9298, %v9346
  %9348 = vdwg.mxu0
  %9349 = vmatpush.bf16.msra.mxu0 %v5013
  %9350 = vmatpush.bf16.msra.mxu0 %v5009
  %9351 = vmatpush.bf16.msra.mxu0 %v5005
  %9352 = vmatpush.bf16.msra.mxu0 %v5001
  %9353 = vmatpush.bf16.msra.mxu0 %v4997
  %9354 = vmatpush.bf16.msra.mxu0 %v4993
  %9355 = vmatpush.bf16.msra.mxu0 %v4989
  %9356 = vmatpush.bf16.msra.mxu0 %v4985
  %9357 = vmatmul.bf16.gmra.mxu0 %v1650
  %v9358 = vpop.f32.mrf.mxu0
  %v9359 = vadd.f32 %v9310, %v9358
  %v9360 = vpop.f32.mrf.mxu0
  %v9361 = vadd.f32 %v9312, %v9360
  %9362 = vmatmul.bf16.gmra.mxu0 %v1675
  %v9363 = vpop.f32.mrf.mxu0
  %v9364 = vadd.f32 %v9315, %v9363
  %v9365 = vpop.f32.mrf.mxu0
  %v9366 = vadd.f32 %v9317, %v9365
  %9367 = vmatmul.bf16.gmra.mxu0 %v1700
  %v9368 = vpop.f32.mrf.mxu0
  %v9369 = vadd.f32 %v9320, %v9368
  %v9370 = vpop.f32.mrf.mxu0
  %v9371 = vadd.f32 %v9322, %v9370
  %9372 = vmatmul.bf16.gmra.mxu0 %v1725
  %v9373 = vpop.f32.mrf.mxu0
  %v9374 = vadd.f32 %v9325, %v9373
  %v9375 = vpop.f32.mrf.mxu0
  %v9376 = vadd.f32 %v9327, %v9375
  %9377 = vmatmul.bf16.gmra.mxu0 %v1750
  %v9378 = vpop.f32.mrf.mxu0
  %v9379 = vadd.f32 %v9330, %v9378
  %v9380 = vpop.f32.mrf.mxu0
  %v9381 = vadd.f32 %v9332, %v9380
  %9382 = vmatmul.bf16.gmra.mxu0 %v1775
  %v9383 = vpop.f32.mrf.mxu0
  %v9384 = vadd.f32 %v9335, %v9383
  %v9385 = vpop.f32.mrf.mxu0
  %v9386 = vadd.f32 %v9337, %v9385
  %9387 = vmatmul.bf16.gmra.mxu0 %v1800
  %v9388 = vpop.f32.mrf.mxu0
  %v9389 = vadd.f32 %v9340, %v9388
  %v9390 = vpop.f32.mrf.mxu0
  %v9391 = vadd.f32 %v9342, %v9390
  %9392 = vmatmul.bf16.gmra.mxu0 %v1825
  %v9393 = vpop.f32.mrf.mxu0
  %v9394 = vadd.f32 %v9345, %v9393
  %v9395 = vpop.f32.mrf.mxu0
  %v9396 = vadd.f32 %v9347, %v9395
  %9397 = vdwg.mxu0
  %9398 = vmatpush.bf16.msra.mxu0 %v5045
  %9399 = vmatpush.bf16.msra.mxu0 %v5041
  %9400 = vmatpush.bf16.msra.mxu0 %v5037
  %9401 = vmatpush.bf16.msra.mxu0 %v5033
  %9402 = vmatpush.bf16.msra.mxu0 %v5029
  %9403 = vmatpush.bf16.msra.mxu0 %v5025
  %9404 = vmatpush.bf16.msra.mxu0 %v5021
  %9405 = vmatpush.bf16.msra.mxu0 %v5017
  %9406 = vmatmul.bf16.gmra.mxu0 %v1651
  %v9407 = vpop.f32.mrf.mxu0
  %v9408 = vadd.f32 %v9359, %v9407
  %v9409 = vpop.f32.mrf.mxu0
  %v9410 = vadd.f32 %v9361, %v9409
  %9411 = vmatmul.bf16.gmra.mxu0 %v1676
  %v9412 = vpop.f32.mrf.mxu0
  %v9413 = vadd.f32 %v9364, %v9412
  %v9414 = vpop.f32.mrf.mxu0
  %v9415 = vadd.f32 %v9366, %v9414
  %9416 = vmatmul.bf16.gmra.mxu0 %v1701
  %v9417 = vpop.f32.mrf.mxu0
  %v9418 = vadd.f32 %v9369, %v9417
  %v9419 = vpop.f32.mrf.mxu0
  %v9420 = vadd.f32 %v9371, %v9419
  %9421 = vmatmul.bf16.gmra.mxu0 %v1726
  %v9422 = vpop.f32.mrf.mxu0
  %v9423 = vadd.f32 %v9374, %v9422
  %v9424 = vpop.f32.mrf.mxu0
  %v9425 = vadd.f32 %v9376, %v9424
  %9426 = vmatmul.bf16.gmra.mxu0 %v1751
  %v9427 = vpop.f32.mrf.mxu0
  %v9428 = vadd.f32 %v9379, %v9427
  %v9429 = vpop.f32.mrf.mxu0
  %v9430 = vadd.f32 %v9381, %v9429
  %9431 = vmatmul.bf16.gmra.mxu0 %v1776
  %v9432 = vpop.f32.mrf.mxu0
  %v9433 = vadd.f32 %v9384, %v9432
  %v9434 = vpop.f32.mrf.mxu0
  %v9435 = vadd.f32 %v9386, %v9434
  %9436 = vmatmul.bf16.gmra.mxu0 %v1801
  %v9437 = vpop.f32.mrf.mxu0
  %v9438 = vadd.f32 %v9389, %v9437
  %v9439 = vpop.f32.mrf.mxu0
  %v9440 = vadd.f32 %v9391, %v9439
  %9441 = vmatmul.bf16.gmra.mxu0 %v1826
  %v9442 = vpop.f32.mrf.mxu0
  %v9443 = vadd.f32 %v9394, %v9442
  %v9444 = vpop.f32.mrf.mxu0
  %v9445 = vadd.f32 %v9396, %v9444
  %9446 = vdwg.mxu0
  %9447 = vmatpush.bf16.msra.mxu0 %v5077
  %9448 = vmatpush.bf16.msra.mxu0 %v5073
  %9449 = vmatpush.bf16.msra.mxu0 %v5069
  %9450 = vmatpush.bf16.msra.mxu0 %v5065
  %9451 = vmatpush.bf16.msra.mxu0 %v5061
  %9452 = vmatpush.bf16.msra.mxu0 %v5057
  %9453 = vmatpush.bf16.msra.mxu0 %v5053
  %9454 = vmatpush.bf16.msra.mxu0 %v5049
  %9455 = vmatmul.bf16.gmra.mxu0 %v1652
  %v9456 = vpop.f32.mrf.mxu0
  %v9457 = vadd.f32 %v9408, %v9456
  %v9458 = vpop.f32.mrf.mxu0
  %v9459 = vadd.f32 %v9410, %v9458
  %9460 = vmatmul.bf16.gmra.mxu0 %v1677
  %v9461 = vpop.f32.mrf.mxu0
  %v9462 = vadd.f32 %v9413, %v9461
  %v9463 = vpop.f32.mrf.mxu0
  %v9464 = vadd.f32 %v9415, %v9463
  %9465 = vmatmul.bf16.gmra.mxu0 %v1702
  %v9466 = vpop.f32.mrf.mxu0
  %v9467 = vadd.f32 %v9418, %v9466
  %v9468 = vpop.f32.mrf.mxu0
  %v9469 = vadd.f32 %v9420, %v9468
  %9470 = vmatmul.bf16.gmra.mxu0 %v1727
  %v9471 = vpop.f32.mrf.mxu0
  %v9472 = vadd.f32 %v9423, %v9471
  %v9473 = vpop.f32.mrf.mxu0
  %v9474 = vadd.f32 %v9425, %v9473
  %9475 = vmatmul.bf16.gmra.mxu0 %v1752
  %v9476 = vpop.f32.mrf.mxu0
  %v9477 = vadd.f32 %v9428, %v9476
  %v9478 = vpop.f32.mrf.mxu0
  %v9479 = vadd.f32 %v9430, %v9478
  %9480 = vmatmul.bf16.gmra.mxu0 %v1777
  %v9481 = vpop.f32.mrf.mxu0
  %v9482 = vadd.f32 %v9433, %v9481
  %v9483 = vpop.f32.mrf.mxu0
  %v9484 = vadd.f32 %v9435, %v9483
  %9485 = vmatmul.bf16.gmra.mxu0 %v1802
  %v9486 = vpop.f32.mrf.mxu0
  %v9487 = vadd.f32 %v9438, %v9486
  %v9488 = vpop.f32.mrf.mxu0
  %v9489 = vadd.f32 %v9440, %v9488
  %9490 = vmatmul.bf16.gmra.mxu0 %v1827
  %v9491 = vpop.f32.mrf.mxu0
  %v9492 = vadd.f32 %v9443, %v9491
  %v9493 = vpop.f32.mrf.mxu0
  %v9494 = vadd.f32 %v9445, %v9493
  %9495 = vdwg.mxu0
  %9496 = vmatpush.bf16.msra.mxu0 %v5109
  %9497 = vmatpush.bf16.msra.mxu0 %v5105
  %9498 = vmatpush.bf16.msra.mxu0 %v5101
  %9499 = vmatpush.bf16.msra.mxu0 %v5097
  %9500 = vmatpush.bf16.msra.mxu0 %v5093
  %9501 = vmatpush.bf16.msra.mxu0 %v5089
  %9502 = vmatpush.bf16.msra.mxu0 %v5085
  %9503 = vmatpush.bf16.msra.mxu0 %v5081
  %9504 = vmatmul.bf16.gmra.mxu0 %v1653
  %v9505 = vpop.f32.mrf.mxu0
  %v9506 = vadd.f32 %v9457, %v9505
  %v9507 = vpop.f32.mrf.mxu0
  %v9508 = vadd.f32 %v9459, %v9507
  %9509 = vmatmul.bf16.gmra.mxu0 %v1678
  %v9510 = vpop.f32.mrf.mxu0
  %v9511 = vadd.f32 %v9462, %v9510
  %v9512 = vpop.f32.mrf.mxu0
  %v9513 = vadd.f32 %v9464, %v9512
  %9514 = vmatmul.bf16.gmra.mxu0 %v1703
  %v9515 = vpop.f32.mrf.mxu0
  %v9516 = vadd.f32 %v9467, %v9515
  %v9517 = vpop.f32.mrf.mxu0
  %v9518 = vadd.f32 %v9469, %v9517
  %9519 = vmatmul.bf16.gmra.mxu0 %v1728
  %v9520 = vpop.f32.mrf.mxu0
  %v9521 = vadd.f32 %v9472, %v9520
  %v9522 = vpop.f32.mrf.mxu0
  %v9523 = vadd.f32 %v9474, %v9522
  %9524 = vmatmul.bf16.gmra.mxu0 %v1753
  %v9525 = vpop.f32.mrf.mxu0
  %v9526 = vadd.f32 %v9477, %v9525
  %v9527 = vpop.f32.mrf.mxu0
  %v9528 = vadd.f32 %v9479, %v9527
  %9529 = vmatmul.bf16.gmra.mxu0 %v1778
  %v9530 = vpop.f32.mrf.mxu0
  %v9531 = vadd.f32 %v9482, %v9530
  %v9532 = vpop.f32.mrf.mxu0
  %v9533 = vadd.f32 %v9484, %v9532
  %9534 = vmatmul.bf16.gmra.mxu0 %v1803
  %v9535 = vpop.f32.mrf.mxu0
  %v9536 = vadd.f32 %v9487, %v9535
  %v9537 = vpop.f32.mrf.mxu0
  %v9538 = vadd.f32 %v9489, %v9537
  %9539 = vmatmul.bf16.gmra.mxu0 %v1828
  %v9540 = vpop.f32.mrf.mxu0
  %v9541 = vadd.f32 %v9492, %v9540
  %v9542 = vpop.f32.mrf.mxu0
  %v9543 = vadd.f32 %v9494, %v9542
  %9544 = vdwg.mxu0
  %9545 = vmatpush.bf16.msra.mxu0 %v5141
  %9546 = vmatpush.bf16.msra.mxu0 %v5137
  %9547 = vmatpush.bf16.msra.mxu0 %v5133
  %9548 = vmatpush.bf16.msra.mxu0 %v5129
  %9549 = vmatpush.bf16.msra.mxu0 %v5125
  %9550 = vmatpush.bf16.msra.mxu0 %v5121
  %9551 = vmatpush.bf16.msra.mxu0 %v5117
  %9552 = vmatpush.bf16.msra.mxu0 %v5113
  %9553 = vmatmul.bf16.gmra.mxu0 %v1654
  %v9554 = vpop.f32.mrf.mxu0
  %v9555 = vadd.f32 %v9506, %v9554
  %v9556 = vpop.f32.mrf.mxu0
  %v9557 = vadd.f32 %v9508, %v9556
  %9558 = vmatmul.bf16.gmra.mxu0 %v1679
  %v9559 = vpop.f32.mrf.mxu0
  %v9560 = vadd.f32 %v9511, %v9559
  %v9561 = vpop.f32.mrf.mxu0
  %v9562 = vadd.f32 %v9513, %v9561
  %9563 = vmatmul.bf16.gmra.mxu0 %v1704
  %v9564 = vpop.f32.mrf.mxu0
  %v9565 = vadd.f32 %v9516, %v9564
  %v9566 = vpop.f32.mrf.mxu0
  %v9567 = vadd.f32 %v9518, %v9566
  %9568 = vmatmul.bf16.gmra.mxu0 %v1729
  %v9569 = vpop.f32.mrf.mxu0
  %v9570 = vadd.f32 %v9521, %v9569
  %v9571 = vpop.f32.mrf.mxu0
  %v9572 = vadd.f32 %v9523, %v9571
  %9573 = vmatmul.bf16.gmra.mxu0 %v1754
  %v9574 = vpop.f32.mrf.mxu0
  %v9575 = vadd.f32 %v9526, %v9574
  %v9576 = vpop.f32.mrf.mxu0
  %v9577 = vadd.f32 %v9528, %v9576
  %9578 = vmatmul.bf16.gmra.mxu0 %v1779
  %v9579 = vpop.f32.mrf.mxu0
  %v9580 = vadd.f32 %v9531, %v9579
  %v9581 = vpop.f32.mrf.mxu0
  %v9582 = vadd.f32 %v9533, %v9581
  %9583 = vmatmul.bf16.gmra.mxu0 %v1804
  %v9584 = vpop.f32.mrf.mxu0
  %v9585 = vadd.f32 %v9536, %v9584
  %v9586 = vpop.f32.mrf.mxu0
  %v9587 = vadd.f32 %v9538, %v9586
  %9588 = vmatmul.bf16.gmra.mxu0 %v1829
  %v9589 = vpop.f32.mrf.mxu0
  %v9590 = vadd.f32 %v9541, %v9589
  %v9591 = vpop.f32.mrf.mxu0
  %v9592 = vadd.f32 %v9543, %v9591
  %9593 = vdwg.mxu0
  %9594 = vmatpush.bf16.msra.mxu0 0
  %9595 = vmatpush.bf16.msra.mxu0 0
  %9596 = vmatpush.bf16.msra.mxu0 0
  %9597 = vmatpush.bf16.msra.mxu0 0
  %9598 = vmatpush.bf16.msra.mxu0 %v5157
  %9599 = vmatpush.bf16.msra.mxu0 %v5153
  %9600 = vmatpush.bf16.msra.mxu0 %v5149
  %9601 = vmatpush.bf16.msra.mxu0 %v5145
  %9602 = vmatmul.bf16.gmra.mxu0 %v5945
  %v9603 = vpop.f32.mrf.mxu0
  %v9604 = vadd.f32 %v9555, %v9603
  %v9605 = vpop.f32.mrf.mxu0
  %v9606 = vadd.f32 %v9557, %v9605
  %9607 = vmatmul.bf16.gmra.mxu0 %v5948
  %v9608 = vpop.f32.mrf.mxu0
  %v9609 = vadd.f32 %v9560, %v9608
  %v9610 = vpop.f32.mrf.mxu0
  %v9611 = vadd.f32 %v9562, %v9610
  %9612 = vmatmul.bf16.gmra.mxu0 %v5951
  %v9613 = vpop.f32.mrf.mxu0
  %v9614 = vadd.f32 %v9565, %v9613
  %v9615 = vpop.f32.mrf.mxu0
  %v9616 = vadd.f32 %v9567, %v9615
  %9617 = vmatmul.bf16.gmra.mxu0 %v5954
  %v9618 = vpop.f32.mrf.mxu0
  %v9619 = vadd.f32 %v9570, %v9618
  %v9620 = vpop.f32.mrf.mxu0
  %v9621 = vadd.f32 %v9572, %v9620
  %9622 = vmatmul.bf16.gmra.mxu0 %v5957
  %v9623 = vpop.f32.mrf.mxu0
  %v9624 = vadd.f32 %v9575, %v9623
  %v9625 = vpop.f32.mrf.mxu0
  %v9626 = vadd.f32 %v9577, %v9625
  %9627 = vmatmul.bf16.gmra.mxu0 %v5960
  %v9628 = vpop.f32.mrf.mxu0
  %v9629 = vadd.f32 %v9580, %v9628
  %v9630 = vpop.f32.mrf.mxu0
  %v9631 = vadd.f32 %v9582, %v9630
  %9632 = vmatmul.bf16.gmra.mxu0 %v5963
  %v9633 = vpop.f32.mrf.mxu0
  %v9634 = vadd.f32 %v9585, %v9633
  %v9635 = vpop.f32.mrf.mxu0
  %v9636 = vadd.f32 %v9587, %v9635
  %9637 = vmatmul.bf16.gmra.mxu0 %v5966
  %v9638 = vpop.f32.mrf.mxu0
  %v9639 = vadd.f32 %v9590, %v9638
  %v9640 = vpop.f32.mrf.mxu0
  %v9641 = vadd.f32 %v9592, %v9640
  %9642 = vdwg.mxu0
  %9643 = vmatpush.bf16.msra.mxu0 %v4406
  %9644 = vmatpush.bf16.msra.mxu0 %v4402
  %9645 = vmatpush.bf16.msra.mxu0 %v4398
  %9646 = vmatpush.bf16.msra.mxu0 %v4394
  %9647 = vmatpush.bf16.msra.mxu0 %v4390
  %9648 = vmatpush.bf16.msra.mxu0 %v4386
  %9649 = vmatpush.bf16.msra.mxu0 %v4382
  %9650 = vmatpush.bf16.msra.mxu0 %v4378
  %9651 = vmatmul.bf16.gmra.mxu0 %v1631
  %v9652 = vpop.f32.mrf.mxu0
  %v9653 = vadd.f32 %v1018, %v9652
  %v9654 = vpop.f32.mrf.mxu0
  %v9655 = vadd.f32 %v1018, %v9654
  %9656 = vmatmul.bf16.gmra.mxu0 %v1656
  %v9657 = vpop.f32.mrf.mxu0
  %v9658 = vadd.f32 %v1018, %v9657
  %v9659 = vpop.f32.mrf.mxu0
  %v9660 = vadd.f32 %v1018, %v9659
  %9661 = vmatmul.bf16.gmra.mxu0 %v1681
  %v9662 = vpop.f32.mrf.mxu0
  %v9663 = vadd.f32 %v1018, %v9662
  %v9664 = vpop.f32.mrf.mxu0
  %v9665 = vadd.f32 %v1018, %v9664
  %9666 = vmatmul.bf16.gmra.mxu0 %v1706
  %v9667 = vpop.f32.mrf.mxu0
  %v9668 = vadd.f32 %v1018, %v9667
  %v9669 = vpop.f32.mrf.mxu0
  %v9670 = vadd.f32 %v1018, %v9669
  %9671 = vmatmul.bf16.gmra.mxu0 %v1731
  %v9672 = vpop.f32.mrf.mxu0
  %v9673 = vadd.f32 %v1018, %v9672
  %v9674 = vpop.f32.mrf.mxu0
  %v9675 = vadd.f32 %v1018, %v9674
  %9676 = vmatmul.bf16.gmra.mxu0 %v1756
  %v9677 = vpop.f32.mrf.mxu0
  %v9678 = vadd.f32 %v1018, %v9677
  %v9679 = vpop.f32.mrf.mxu0
  %v9680 = vadd.f32 %v1018, %v9679
  %9681 = vmatmul.bf16.gmra.mxu0 %v1781
  %v9682 = vpop.f32.mrf.mxu0
  %v9683 = vadd.f32 %v1018, %v9682
  %v9684 = vpop.f32.mrf.mxu0
  %v9685 = vadd.f32 %v1018, %v9684
  %9686 = vmatmul.bf16.gmra.mxu0 %v1806
  %v9687 = vpop.f32.mrf.mxu0
  %v9688 = vadd.f32 %v1018, %v9687
  %v9689 = vpop.f32.mrf.mxu0
  %v9690 = vadd.f32 %v1018, %v9689
  %9691 = vdwg.mxu0
  %9692 = vmatpush.bf16.msra.mxu0 %v4438
  %9693 = vmatpush.bf16.msra.mxu0 %v4434
  %9694 = vmatpush.bf16.msra.mxu0 %v4430
  %9695 = vmatpush.bf16.msra.mxu0 %v4426
  %9696 = vmatpush.bf16.msra.mxu0 %v4422
  %9697 = vmatpush.bf16.msra.mxu0 %v4418
  %9698 = vmatpush.bf16.msra.mxu0 %v4414
  %9699 = vmatpush.bf16.msra.mxu0 %v4410
  %9700 = vmatmul.bf16.gmra.mxu0 %v1632
  %v9701 = vpop.f32.mrf.mxu0
  %v9702 = vadd.f32 %v9653, %v9701
  %v9703 = vpop.f32.mrf.mxu0
  %v9704 = vadd.f32 %v9655, %v9703
  %9705 = vmatmul.bf16.gmra.mxu0 %v1657
  %v9706 = vpop.f32.mrf.mxu0
  %v9707 = vadd.f32 %v9658, %v9706
  %v9708 = vpop.f32.mrf.mxu0
  %v9709 = vadd.f32 %v9660, %v9708
  %9710 = vmatmul.bf16.gmra.mxu0 %v1682
  %v9711 = vpop.f32.mrf.mxu0
  %v9712 = vadd.f32 %v9663, %v9711
  %v9713 = vpop.f32.mrf.mxu0
  %v9714 = vadd.f32 %v9665, %v9713
  %9715 = vmatmul.bf16.gmra.mxu0 %v1707
  %v9716 = vpop.f32.mrf.mxu0
  %v9717 = vadd.f32 %v9668, %v9716
  %v9718 = vpop.f32.mrf.mxu0
  %v9719 = vadd.f32 %v9670, %v9718
  %9720 = vmatmul.bf16.gmra.mxu0 %v1732
  %v9721 = vpop.f32.mrf.mxu0
  %v9722 = vadd.f32 %v9673, %v9721
  %v9723 = vpop.f32.mrf.mxu0
  %v9724 = vadd.f32 %v9675, %v9723
  %9725 = vmatmul.bf16.gmra.mxu0 %v1757
  %v9726 = vpop.f32.mrf.mxu0
  %v9727 = vadd.f32 %v9678, %v9726
  %v9728 = vpop.f32.mrf.mxu0
  %v9729 = vadd.f32 %v9680, %v9728
  %9730 = vmatmul.bf16.gmra.mxu0 %v1782
  %v9731 = vpop.f32.mrf.mxu0
  %v9732 = vadd.f32 %v9683, %v9731
  %v9733 = vpop.f32.mrf.mxu0
  %v9734 = vadd.f32 %v9685, %v9733
  %9735 = vmatmul.bf16.gmra.mxu0 %v1807
  %v9736 = vpop.f32.mrf.mxu0
  %v9737 = vadd.f32 %v9688, %v9736
  %v9738 = vpop.f32.mrf.mxu0
  %v9739 = vadd.f32 %v9690, %v9738
  %9740 = vdwg.mxu0
  %9741 = vmatpush.bf16.msra.mxu0 %v4470
  %9742 = vmatpush.bf16.msra.mxu0 %v4466
  %9743 = vmatpush.bf16.msra.mxu0 %v4462
  %9744 = vmatpush.bf16.msra.mxu0 %v4458
  %9745 = vmatpush.bf16.msra.mxu0 %v4454
  %9746 = vmatpush.bf16.msra.mxu0 %v4450
  %9747 = vmatpush.bf16.msra.mxu0 %v4446
  %9748 = vmatpush.bf16.msra.mxu0 %v4442
  %9749 = vmatmul.bf16.gmra.mxu0 %v1633
  %v9750 = vpop.f32.mrf.mxu0
  %v9751 = vadd.f32 %v9702, %v9750
  %v9752 = vpop.f32.mrf.mxu0
  %v9753 = vadd.f32 %v9704, %v9752
  %9754 = vmatmul.bf16.gmra.mxu0 %v1658
  %v9755 = vpop.f32.mrf.mxu0
  %v9756 = vadd.f32 %v9707, %v9755
  %v9757 = vpop.f32.mrf.mxu0
  %v9758 = vadd.f32 %v9709, %v9757
  %9759 = vmatmul.bf16.gmra.mxu0 %v1683
  %v9760 = vpop.f32.mrf.mxu0
  %v9761 = vadd.f32 %v9712, %v9760
  %v9762 = vpop.f32.mrf.mxu0
  %v9763 = vadd.f32 %v9714, %v9762
  %9764 = vmatmul.bf16.gmra.mxu0 %v1708
  %v9765 = vpop.f32.mrf.mxu0
  %v9766 = vadd.f32 %v9717, %v9765
  %v9767 = vpop.f32.mrf.mxu0
  %v9768 = vadd.f32 %v9719, %v9767
  %9769 = vmatmul.bf16.gmra.mxu0 %v1733
  %v9770 = vpop.f32.mrf.mxu0
  %v9771 = vadd.f32 %v9722, %v9770
  %v9772 = vpop.f32.mrf.mxu0
  %v9773 = vadd.f32 %v9724, %v9772
  %9774 = vmatmul.bf16.gmra.mxu0 %v1758
  %v9775 = vpop.f32.mrf.mxu0
  %v9776 = vadd.f32 %v9727, %v9775
  %v9777 = vpop.f32.mrf.mxu0
  %v9778 = vadd.f32 %v9729, %v9777
  %9779 = vmatmul.bf16.gmra.mxu0 %v1783
  %v9780 = vpop.f32.mrf.mxu0
  %v9781 = vadd.f32 %v9732, %v9780
  %v9782 = vpop.f32.mrf.mxu0
  %v9783 = vadd.f32 %v9734, %v9782
  %9784 = vmatmul.bf16.gmra.mxu0 %v1808
  %v9785 = vpop.f32.mrf.mxu0
  %v9786 = vadd.f32 %v9737, %v9785
  %v9787 = vpop.f32.mrf.mxu0
  %v9788 = vadd.f32 %v9739, %v9787
  %9789 = vdwg.mxu0
  %9790 = vmatpush.bf16.msra.mxu0 %v4502
  %9791 = vmatpush.bf16.msra.mxu0 %v4498
  %9792 = vmatpush.bf16.msra.mxu0 %v4494
  %9793 = vmatpush.bf16.msra.mxu0 %v4490
  %9794 = vmatpush.bf16.msra.mxu0 %v4486
  %9795 = vmatpush.bf16.msra.mxu0 %v4482
  %9796 = vmatpush.bf16.msra.mxu0 %v4478
  %9797 = vmatpush.bf16.msra.mxu0 %v4474
  %9798 = vmatmul.bf16.gmra.mxu0 %v1634
  %v9799 = vpop.f32.mrf.mxu0
  %v9800 = vadd.f32 %v9751, %v9799
  %v9801 = vpop.f32.mrf.mxu0
  %v9802 = vadd.f32 %v9753, %v9801
  %9803 = vmatmul.bf16.gmra.mxu0 %v1659
  %v9804 = vpop.f32.mrf.mxu0
  %v9805 = vadd.f32 %v9756, %v9804
  %v9806 = vpop.f32.mrf.mxu0
  %v9807 = vadd.f32 %v9758, %v9806
  %9808 = vmatmul.bf16.gmra.mxu0 %v1684
  %v9809 = vpop.f32.mrf.mxu0
  %v9810 = vadd.f32 %v9761, %v9809
  %v9811 = vpop.f32.mrf.mxu0
  %v9812 = vadd.f32 %v9763, %v9811
  %9813 = vmatmul.bf16.gmra.mxu0 %v1709
  %v9814 = vpop.f32.mrf.mxu0
  %v9815 = vadd.f32 %v9766, %v9814
  %v9816 = vpop.f32.mrf.mxu0
  %v9817 = vadd.f32 %v9768, %v9816
  %9818 = vmatmul.bf16.gmra.mxu0 %v1734
  %v9819 = vpop.f32.mrf.mxu0
  %v9820 = vadd.f32 %v9771, %v9819
  %v9821 = vpop.f32.mrf.mxu0
  %v9822 = vadd.f32 %v9773, %v9821
  %9823 = vmatmul.bf16.gmra.mxu0 %v1759
  %v9824 = vpop.f32.mrf.mxu0
  %v9825 = vadd.f32 %v9776, %v9824
  %v9826 = vpop.f32.mrf.mxu0
  %v9827 = vadd.f32 %v9778, %v9826
  %9828 = vmatmul.bf16.gmra.mxu0 %v1784
  %v9829 = vpop.f32.mrf.mxu0
  %v9830 = vadd.f32 %v9781, %v9829
  %v9831 = vpop.f32.mrf.mxu0
  %v9832 = vadd.f32 %v9783, %v9831
  %9833 = vmatmul.bf16.gmra.mxu0 %v1809
  %v9834 = vpop.f32.mrf.mxu0
  %v9835 = vadd.f32 %v9786, %v9834
  %v9836 = vpop.f32.mrf.mxu0
  %v9837 = vadd.f32 %v9788, %v9836
  %9838 = vdwg.mxu0
  %9839 = vmatpush.bf16.msra.mxu0 %v4534
  %9840 = vmatpush.bf16.msra.mxu0 %v4530
  %9841 = vmatpush.bf16.msra.mxu0 %v4526
  %9842 = vmatpush.bf16.msra.mxu0 %v4522
  %9843 = vmatpush.bf16.msra.mxu0 %v4518
  %9844 = vmatpush.bf16.msra.mxu0 %v4514
  %9845 = vmatpush.bf16.msra.mxu0 %v4510
  %9846 = vmatpush.bf16.msra.mxu0 %v4506
  %9847 = vmatmul.bf16.gmra.mxu0 %v1635
  %v9848 = vpop.f32.mrf.mxu0
  %v9849 = vadd.f32 %v9800, %v9848
  %v9850 = vpop.f32.mrf.mxu0
  %v9851 = vadd.f32 %v9802, %v9850
  %9852 = vmatmul.bf16.gmra.mxu0 %v1660
  %v9853 = vpop.f32.mrf.mxu0
  %v9854 = vadd.f32 %v9805, %v9853
  %v9855 = vpop.f32.mrf.mxu0
  %v9856 = vadd.f32 %v9807, %v9855
  %9857 = vmatmul.bf16.gmra.mxu0 %v1685
  %v9858 = vpop.f32.mrf.mxu0
  %v9859 = vadd.f32 %v9810, %v9858
  %v9860 = vpop.f32.mrf.mxu0
  %v9861 = vadd.f32 %v9812, %v9860
  %9862 = vmatmul.bf16.gmra.mxu0 %v1710
  %v9863 = vpop.f32.mrf.mxu0
  %v9864 = vadd.f32 %v9815, %v9863
  %v9865 = vpop.f32.mrf.mxu0
  %v9866 = vadd.f32 %v9817, %v9865
  %9867 = vmatmul.bf16.gmra.mxu0 %v1735
  %v9868 = vpop.f32.mrf.mxu0
  %v9869 = vadd.f32 %v9820, %v9868
  %v9870 = vpop.f32.mrf.mxu0
  %v9871 = vadd.f32 %v9822, %v9870
  %9872 = vmatmul.bf16.gmra.mxu0 %v1760
  %v9873 = vpop.f32.mrf.mxu0
  %v9874 = vadd.f32 %v9825, %v9873
  %v9875 = vpop.f32.mrf.mxu0
  %v9876 = vadd.f32 %v9827, %v9875
  %9877 = vmatmul.bf16.gmra.mxu0 %v1785
  %v9878 = vpop.f32.mrf.mxu0
  %v9879 = vadd.f32 %v9830, %v9878
  %v9880 = vpop.f32.mrf.mxu0
  %v9881 = vadd.f32 %v9832, %v9880
  %9882 = vmatmul.bf16.gmra.mxu0 %v1810
  %v9883 = vpop.f32.mrf.mxu0
  %v9884 = vadd.f32 %v9835, %v9883
  %v9885 = vpop.f32.mrf.mxu0
  %v9886 = vadd.f32 %v9837, %v9885
  %9887 = vdwg.mxu0
  %9888 = vmatpush.bf16.msra.mxu0 %v4566
  %9889 = vmatpush.bf16.msra.mxu0 %v4562
  %9890 = vmatpush.bf16.msra.mxu0 %v4558
  %9891 = vmatpush.bf16.msra.mxu0 %v4554
  %9892 = vmatpush.bf16.msra.mxu0 %v4550
  %9893 = vmatpush.bf16.msra.mxu0 %v4546
  %9894 = vmatpush.bf16.msra.mxu0 %v4542
  %9895 = vmatpush.bf16.msra.mxu0 %v4538
  %9896 = vmatmul.bf16.gmra.mxu0 %v1636
  %v9897 = vpop.f32.mrf.mxu0
  %v9898 = vadd.f32 %v9849, %v9897
  %v9899 = vpop.f32.mrf.mxu0
  %v9900 = vadd.f32 %v9851, %v9899
  %9901 = vmatmul.bf16.gmra.mxu0 %v1661
  %v9902 = vpop.f32.mrf.mxu0
  %v9903 = vadd.f32 %v9854, %v9902
  %v9904 = vpop.f32.mrf.mxu0
  %v9905 = vadd.f32 %v9856, %v9904
  %9906 = vmatmul.bf16.gmra.mxu0 %v1686
  %v9907 = vpop.f32.mrf.mxu0
  %v9908 = vadd.f32 %v9859, %v9907
  %v9909 = vpop.f32.mrf.mxu0
  %v9910 = vadd.f32 %v9861, %v9909
  %9911 = vmatmul.bf16.gmra.mxu0 %v1711
  %v9912 = vpop.f32.mrf.mxu0
  %v9913 = vadd.f32 %v9864, %v9912
  %v9914 = vpop.f32.mrf.mxu0
  %v9915 = vadd.f32 %v9866, %v9914
  %9916 = vmatmul.bf16.gmra.mxu0 %v1736
  %v9917 = vpop.f32.mrf.mxu0
  %v9918 = vadd.f32 %v9869, %v9917
  %v9919 = vpop.f32.mrf.mxu0
  %v9920 = vadd.f32 %v9871, %v9919
  %9921 = vmatmul.bf16.gmra.mxu0 %v1761
  %v9922 = vpop.f32.mrf.mxu0
  %v9923 = vadd.f32 %v9874, %v9922
  %v9924 = vpop.f32.mrf.mxu0
  %v9925 = vadd.f32 %v9876, %v9924
  %9926 = vmatmul.bf16.gmra.mxu0 %v1786
  %v9927 = vpop.f32.mrf.mxu0
  %v9928 = vadd.f32 %v9879, %v9927
  %v9929 = vpop.f32.mrf.mxu0
  %v9930 = vadd.f32 %v9881, %v9929
  %9931 = vmatmul.bf16.gmra.mxu0 %v1811
  %v9932 = vpop.f32.mrf.mxu0
  %v9933 = vadd.f32 %v9884, %v9932
  %v9934 = vpop.f32.mrf.mxu0
  %v9935 = vadd.f32 %v9886, %v9934
  %9936 = vdwg.mxu0
  %9937 = vmatpush.bf16.msra.mxu0 %v4598
  %9938 = vmatpush.bf16.msra.mxu0 %v4594
  %9939 = vmatpush.bf16.msra.mxu0 %v4590
  %9940 = vmatpush.bf16.msra.mxu0 %v4586
  %9941 = vmatpush.bf16.msra.mxu0 %v4582
  %9942 = vmatpush.bf16.msra.mxu0 %v4578
  %9943 = vmatpush.bf16.msra.mxu0 %v4574
  %9944 = vmatpush.bf16.msra.mxu0 %v4570
  %9945 = vmatmul.bf16.gmra.mxu0 %v1637
  %v9946 = vpop.f32.mrf.mxu0
  %v9947 = vadd.f32 %v9898, %v9946
  %v9948 = vpop.f32.mrf.mxu0
  %v9949 = vadd.f32 %v9900, %v9948
  %9950 = vmatmul.bf16.gmra.mxu0 %v1662
  %v9951 = vpop.f32.mrf.mxu0
  %v9952 = vadd.f32 %v9903, %v9951
  %v9953 = vpop.f32.mrf.mxu0
  %v9954 = vadd.f32 %v9905, %v9953
  %9955 = vmatmul.bf16.gmra.mxu0 %v1687
  %v9956 = vpop.f32.mrf.mxu0
  %v9957 = vadd.f32 %v9908, %v9956
  %v9958 = vpop.f32.mrf.mxu0
  %v9959 = vadd.f32 %v9910, %v9958
  %9960 = vmatmul.bf16.gmra.mxu0 %v1712
  %v9961 = vpop.f32.mrf.mxu0
  %v9962 = vadd.f32 %v9913, %v9961
  %v9963 = vpop.f32.mrf.mxu0
  %v9964 = vadd.f32 %v9915, %v9963
  %9965 = vmatmul.bf16.gmra.mxu0 %v1737
  %v9966 = vpop.f32.mrf.mxu0
  %v9967 = vadd.f32 %v9918, %v9966
  %v9968 = vpop.f32.mrf.mxu0
  %v9969 = vadd.f32 %v9920, %v9968
  %9970 = vmatmul.bf16.gmra.mxu0 %v1762
  %v9971 = vpop.f32.mrf.mxu0
  %v9972 = vadd.f32 %v9923, %v9971
  %v9973 = vpop.f32.mrf.mxu0
  %v9974 = vadd.f32 %v9925, %v9973
  %9975 = vmatmul.bf16.gmra.mxu0 %v1787
  %v9976 = vpop.f32.mrf.mxu0
  %v9977 = vadd.f32 %v9928, %v9976
  %v9978 = vpop.f32.mrf.mxu0
  %v9979 = vadd.f32 %v9930, %v9978
  %9980 = vmatmul.bf16.gmra.mxu0 %v1812
  %v9981 = vpop.f32.mrf.mxu0
  %v9982 = vadd.f32 %v9933, %v9981
  %v9983 = vpop.f32.mrf.mxu0
  %v9984 = vadd.f32 %v9935, %v9983
  %9985 = vdwg.mxu0
  %9986 = vmatpush.bf16.msra.mxu0 %v4630
  %9987 = vmatpush.bf16.msra.mxu0 %v4626
  %9988 = vmatpush.bf16.msra.mxu0 %v4622
  %9989 = vmatpush.bf16.msra.mxu0 %v4618
  %9990 = vmatpush.bf16.msra.mxu0 %v4614
  %9991 = vmatpush.bf16.msra.mxu0 %v4610
  %9992 = vmatpush.bf16.msra.mxu0 %v4606
  %9993 = vmatpush.bf16.msra.mxu0 %v4602
  %9994 = vmatmul.bf16.gmra.mxu0 %v1638
  %v9995 = vpop.f32.mrf.mxu0
  %v9996 = vadd.f32 %v9947, %v9995
  %v9997 = vpop.f32.mrf.mxu0
  %v9998 = vadd.f32 %v9949, %v9997
  %9999 = vmatmul.bf16.gmra.mxu0 %v1663
  %v10000 = vpop.f32.mrf.mxu0
  %v10001 = vadd.f32 %v9952, %v10000
  %v10002 = vpop.f32.mrf.mxu0
  %v10003 = vadd.f32 %v9954, %v10002
  %10004 = vmatmul.bf16.gmra.mxu0 %v1688
  %v10005 = vpop.f32.mrf.mxu0
  %v10006 = vadd.f32 %v9957, %v10005
  %v10007 = vpop.f32.mrf.mxu0
  %v10008 = vadd.f32 %v9959, %v10007
  %10009 = vmatmul.bf16.gmra.mxu0 %v1713
  %v10010 = vpop.f32.mrf.mxu0
  %v10011 = vadd.f32 %v9962, %v10010
  %v10012 = vpop.f32.mrf.mxu0
  %v10013 = vadd.f32 %v9964, %v10012
  %10014 = vmatmul.bf16.gmra.mxu0 %v1738
  %v10015 = vpop.f32.mrf.mxu0
  %v10016 = vadd.f32 %v9967, %v10015
  %v10017 = vpop.f32.mrf.mxu0
  %v10018 = vadd.f32 %v9969, %v10017
  %10019 = vmatmul.bf16.gmra.mxu0 %v1763
  %v10020 = vpop.f32.mrf.mxu0
  %v10021 = vadd.f32 %v9972, %v10020
  %v10022 = vpop.f32.mrf.mxu0
  %v10023 = vadd.f32 %v9974, %v10022
  %10024 = vmatmul.bf16.gmra.mxu0 %v1788
  %v10025 = vpop.f32.mrf.mxu0
  %v10026 = vadd.f32 %v9977, %v10025
  %v10027 = vpop.f32.mrf.mxu0
  %v10028 = vadd.f32 %v9979, %v10027
  %10029 = vmatmul.bf16.gmra.mxu0 %v1813
  %v10030 = vpop.f32.mrf.mxu0
  %v10031 = vadd.f32 %v9982, %v10030
  %v10032 = vpop.f32.mrf.mxu0
  %v10033 = vadd.f32 %v9984, %v10032
  %10034 = vdwg.mxu0
  %10035 = vmatpush.bf16.msra.mxu0 %v4662
  %10036 = vmatpush.bf16.msra.mxu0 %v4658
  %10037 = vmatpush.bf16.msra.mxu0 %v4654
  %10038 = vmatpush.bf16.msra.mxu0 %v4650
  %10039 = vmatpush.bf16.msra.mxu0 %v4646
  %10040 = vmatpush.bf16.msra.mxu0 %v4642
  %10041 = vmatpush.bf16.msra.mxu0 %v4638
  %10042 = vmatpush.bf16.msra.mxu0 %v4634
  %10043 = vmatmul.bf16.gmra.mxu0 %v1639
  %v10044 = vpop.f32.mrf.mxu0
  %v10045 = vadd.f32 %v9996, %v10044
  %v10046 = vpop.f32.mrf.mxu0
  %v10047 = vadd.f32 %v9998, %v10046
  %10048 = vmatmul.bf16.gmra.mxu0 %v1664
  %v10049 = vpop.f32.mrf.mxu0
  %v10050 = vadd.f32 %v10001, %v10049
  %v10051 = vpop.f32.mrf.mxu0
  %v10052 = vadd.f32 %v10003, %v10051
  %10053 = vmatmul.bf16.gmra.mxu0 %v1689
  %v10054 = vpop.f32.mrf.mxu0
  %v10055 = vadd.f32 %v10006, %v10054
  %v10056 = vpop.f32.mrf.mxu0
  %v10057 = vadd.f32 %v10008, %v10056
  %10058 = vmatmul.bf16.gmra.mxu0 %v1714
  %v10059 = vpop.f32.mrf.mxu0
  %v10060 = vadd.f32 %v10011, %v10059
  %v10061 = vpop.f32.mrf.mxu0
  %v10062 = vadd.f32 %v10013, %v10061
  %10063 = vmatmul.bf16.gmra.mxu0 %v1739
  %v10064 = vpop.f32.mrf.mxu0
  %v10065 = vadd.f32 %v10016, %v10064
  %v10066 = vpop.f32.mrf.mxu0
  %v10067 = vadd.f32 %v10018, %v10066
  %10068 = vmatmul.bf16.gmra.mxu0 %v1764
  %v10069 = vpop.f32.mrf.mxu0
  %v10070 = vadd.f32 %v10021, %v10069
  %v10071 = vpop.f32.mrf.mxu0
  %v10072 = vadd.f32 %v10023, %v10071
  %10073 = vmatmul.bf16.gmra.mxu0 %v1789
  %v10074 = vpop.f32.mrf.mxu0
  %v10075 = vadd.f32 %v10026, %v10074
  %v10076 = vpop.f32.mrf.mxu0
  %v10077 = vadd.f32 %v10028, %v10076
  %10078 = vmatmul.bf16.gmra.mxu0 %v1814
  %v10079 = vpop.f32.mrf.mxu0
  %v10080 = vadd.f32 %v10031, %v10079
  %v10081 = vpop.f32.mrf.mxu0
  %v10082 = vadd.f32 %v10033, %v10081
  %10083 = vdwg.mxu0
  %10084 = vmatpush.bf16.msra.mxu0 %v4694
  %10085 = vmatpush.bf16.msra.mxu0 %v4690
  %10086 = vmatpush.bf16.msra.mxu0 %v4686
  %10087 = vmatpush.bf16.msra.mxu0 %v4682
  %10088 = vmatpush.bf16.msra.mxu0 %v4678
  %10089 = vmatpush.bf16.msra.mxu0 %v4674
  %10090 = vmatpush.bf16.msra.mxu0 %v4670
  %10091 = vmatpush.bf16.msra.mxu0 %v4666
  %10092 = vmatmul.bf16.gmra.mxu0 %v1640
  %v10093 = vpop.f32.mrf.mxu0
  %v10094 = vadd.f32 %v10045, %v10093
  %v10095 = vpop.f32.mrf.mxu0
  %v10096 = vadd.f32 %v10047, %v10095
  %10097 = vmatmul.bf16.gmra.mxu0 %v1665
  %v10098 = vpop.f32.mrf.mxu0
  %v10099 = vadd.f32 %v10050, %v10098
  %v10100 = vpop.f32.mrf.mxu0
  %v10101 = vadd.f32 %v10052, %v10100
  %10102 = vmatmul.bf16.gmra.mxu0 %v1690
  %v10103 = vpop.f32.mrf.mxu0
  %v10104 = vadd.f32 %v10055, %v10103
  %v10105 = vpop.f32.mrf.mxu0
  %v10106 = vadd.f32 %v10057, %v10105
  %10107 = vmatmul.bf16.gmra.mxu0 %v1715
  %v10108 = vpop.f32.mrf.mxu0
  %v10109 = vadd.f32 %v10060, %v10108
  %v10110 = vpop.f32.mrf.mxu0
  %v10111 = vadd.f32 %v10062, %v10110
  %10112 = vmatmul.bf16.gmra.mxu0 %v1740
  %v10113 = vpop.f32.mrf.mxu0
  %v10114 = vadd.f32 %v10065, %v10113
  %v10115 = vpop.f32.mrf.mxu0
  %v10116 = vadd.f32 %v10067, %v10115
  %10117 = vmatmul.bf16.gmra.mxu0 %v1765
  %v10118 = vpop.f32.mrf.mxu0
  %v10119 = vadd.f32 %v10070, %v10118
  %v10120 = vpop.f32.mrf.mxu0
  %v10121 = vadd.f32 %v10072, %v10120
  %10122 = vmatmul.bf16.gmra.mxu0 %v1790
  %v10123 = vpop.f32.mrf.mxu0
  %v10124 = vadd.f32 %v10075, %v10123
  %v10125 = vpop.f32.mrf.mxu0
  %v10126 = vadd.f32 %v10077, %v10125
  %10127 = vmatmul.bf16.gmra.mxu0 %v1815
  %v10128 = vpop.f32.mrf.mxu0
  %v10129 = vadd.f32 %v10080, %v10128
  %v10130 = vpop.f32.mrf.mxu0
  %v10131 = vadd.f32 %v10082, %v10130
  %10132 = vdwg.mxu0
  %10133 = vmatpush.bf16.msra.mxu0 %v4726
  %10134 = vmatpush.bf16.msra.mxu0 %v4722
  %10135 = vmatpush.bf16.msra.mxu0 %v4718
  %10136 = vmatpush.bf16.msra.mxu0 %v4714
  %10137 = vmatpush.bf16.msra.mxu0 %v4710
  %10138 = vmatpush.bf16.msra.mxu0 %v4706
  %10139 = vmatpush.bf16.msra.mxu0 %v4702
  %10140 = vmatpush.bf16.msra.mxu0 %v4698
  %10141 = vmatmul.bf16.gmra.mxu0 %v1641
  %v10142 = vpop.f32.mrf.mxu0
  %v10143 = vadd.f32 %v10094, %v10142
  %v10144 = vpop.f32.mrf.mxu0
  %v10145 = vadd.f32 %v10096, %v10144
  %10146 = vmatmul.bf16.gmra.mxu0 %v1666
  %v10147 = vpop.f32.mrf.mxu0
  %v10148 = vadd.f32 %v10099, %v10147
  %v10149 = vpop.f32.mrf.mxu0
  %v10150 = vadd.f32 %v10101, %v10149
  %10151 = vmatmul.bf16.gmra.mxu0 %v1691
  %v10152 = vpop.f32.mrf.mxu0
  %v10153 = vadd.f32 %v10104, %v10152
  %v10154 = vpop.f32.mrf.mxu0
  %v10155 = vadd.f32 %v10106, %v10154
  %10156 = vmatmul.bf16.gmra.mxu0 %v1716
  %v10157 = vpop.f32.mrf.mxu0
  %v10158 = vadd.f32 %v10109, %v10157
  %v10159 = vpop.f32.mrf.mxu0
  %v10160 = vadd.f32 %v10111, %v10159
  %10161 = vmatmul.bf16.gmra.mxu0 %v1741
  %v10162 = vpop.f32.mrf.mxu0
  %v10163 = vadd.f32 %v10114, %v10162
  %v10164 = vpop.f32.mrf.mxu0
  %v10165 = vadd.f32 %v10116, %v10164
  %10166 = vmatmul.bf16.gmra.mxu0 %v1766
  %v10167 = vpop.f32.mrf.mxu0
  %v10168 = vadd.f32 %v10119, %v10167
  %v10169 = vpop.f32.mrf.mxu0
  %v10170 = vadd.f32 %v10121, %v10169
  %10171 = vmatmul.bf16.gmra.mxu0 %v1791
  %v10172 = vpop.f32.mrf.mxu0
  %v10173 = vadd.f32 %v10124, %v10172
  %v10174 = vpop.f32.mrf.mxu0
  %v10175 = vadd.f32 %v10126, %v10174
  %10176 = vmatmul.bf16.gmra.mxu0 %v1816
  %v10177 = vpop.f32.mrf.mxu0
  %v10178 = vadd.f32 %v10129, %v10177
  %v10179 = vpop.f32.mrf.mxu0
  %v10180 = vadd.f32 %v10131, %v10179
  %10181 = vdwg.mxu0
  %10182 = vmatpush.bf16.msra.mxu0 %v4758
  %10183 = vmatpush.bf16.msra.mxu0 %v4754
  %10184 = vmatpush.bf16.msra.mxu0 %v4750
  %10185 = vmatpush.bf16.msra.mxu0 %v4746
  %10186 = vmatpush.bf16.msra.mxu0 %v4742
  %10187 = vmatpush.bf16.msra.mxu0 %v4738
  %10188 = vmatpush.bf16.msra.mxu0 %v4734
  %10189 = vmatpush.bf16.msra.mxu0 %v4730
  %10190 = vmatmul.bf16.gmra.mxu0 %v1642
  %v10191 = vpop.f32.mrf.mxu0
  %v10192 = vadd.f32 %v10143, %v10191
  %v10193 = vpop.f32.mrf.mxu0
  %v10194 = vadd.f32 %v10145, %v10193
  %10195 = vmatmul.bf16.gmra.mxu0 %v1667
  %v10196 = vpop.f32.mrf.mxu0
  %v10197 = vadd.f32 %v10148, %v10196
  %v10198 = vpop.f32.mrf.mxu0
  %v10199 = vadd.f32 %v10150, %v10198
  %10200 = vmatmul.bf16.gmra.mxu0 %v1692
  %v10201 = vpop.f32.mrf.mxu0
  %v10202 = vadd.f32 %v10153, %v10201
  %v10203 = vpop.f32.mrf.mxu0
  %v10204 = vadd.f32 %v10155, %v10203
  %10205 = vmatmul.bf16.gmra.mxu0 %v1717
  %v10206 = vpop.f32.mrf.mxu0
  %v10207 = vadd.f32 %v10158, %v10206
  %v10208 = vpop.f32.mrf.mxu0
  %v10209 = vadd.f32 %v10160, %v10208
  %10210 = vmatmul.bf16.gmra.mxu0 %v1742
  %v10211 = vpop.f32.mrf.mxu0
  %v10212 = vadd.f32 %v10163, %v10211
  %v10213 = vpop.f32.mrf.mxu0
  %v10214 = vadd.f32 %v10165, %v10213
  %10215 = vmatmul.bf16.gmra.mxu0 %v1767
  %v10216 = vpop.f32.mrf.mxu0
  %v10217 = vadd.f32 %v10168, %v10216
  %v10218 = vpop.f32.mrf.mxu0
  %v10219 = vadd.f32 %v10170, %v10218
  %10220 = vmatmul.bf16.gmra.mxu0 %v1792
  %v10221 = vpop.f32.mrf.mxu0
  %v10222 = vadd.f32 %v10173, %v10221
  %v10223 = vpop.f32.mrf.mxu0
  %v10224 = vadd.f32 %v10175, %v10223
  %10225 = vmatmul.bf16.gmra.mxu0 %v1817
  %v10226 = vpop.f32.mrf.mxu0
  %v10227 = vadd.f32 %v10178, %v10226
  %v10228 = vpop.f32.mrf.mxu0
  %v10229 = vadd.f32 %v10180, %v10228
  %10230 = vdwg.mxu0
  %10231 = vmatpush.bf16.msra.mxu0 %v4790
  %10232 = vmatpush.bf16.msra.mxu0 %v4786
  %10233 = vmatpush.bf16.msra.mxu0 %v4782
  %10234 = vmatpush.bf16.msra.mxu0 %v4778
  %10235 = vmatpush.bf16.msra.mxu0 %v4774
  %10236 = vmatpush.bf16.msra.mxu0 %v4770
  %10237 = vmatpush.bf16.msra.mxu0 %v4766
  %10238 = vmatpush.bf16.msra.mxu0 %v4762
  %10239 = vmatmul.bf16.gmra.mxu0 %v1643
  %v10240 = vpop.f32.mrf.mxu0
  %v10241 = vadd.f32 %v10192, %v10240
  %v10242 = vpop.f32.mrf.mxu0
  %v10243 = vadd.f32 %v10194, %v10242
  %10244 = vmatmul.bf16.gmra.mxu0 %v1668
  %v10245 = vpop.f32.mrf.mxu0
  %v10246 = vadd.f32 %v10197, %v10245
  %v10247 = vpop.f32.mrf.mxu0
  %v10248 = vadd.f32 %v10199, %v10247
  %10249 = vmatmul.bf16.gmra.mxu0 %v1693
  %v10250 = vpop.f32.mrf.mxu0
  %v10251 = vadd.f32 %v10202, %v10250
  %v10252 = vpop.f32.mrf.mxu0
  %v10253 = vadd.f32 %v10204, %v10252
  %10254 = vmatmul.bf16.gmra.mxu0 %v1718
  %v10255 = vpop.f32.mrf.mxu0
  %v10256 = vadd.f32 %v10207, %v10255
  %v10257 = vpop.f32.mrf.mxu0
  %v10258 = vadd.f32 %v10209, %v10257
  %10259 = vmatmul.bf16.gmra.mxu0 %v1743
  %v10260 = vpop.f32.mrf.mxu0
  %v10261 = vadd.f32 %v10212, %v10260
  %v10262 = vpop.f32.mrf.mxu0
  %v10263 = vadd.f32 %v10214, %v10262
  %10264 = vmatmul.bf16.gmra.mxu0 %v1768
  %v10265 = vpop.f32.mrf.mxu0
  %v10266 = vadd.f32 %v10217, %v10265
  %v10267 = vpop.f32.mrf.mxu0
  %v10268 = vadd.f32 %v10219, %v10267
  %10269 = vmatmul.bf16.gmra.mxu0 %v1793
  %v10270 = vpop.f32.mrf.mxu0
  %v10271 = vadd.f32 %v10222, %v10270
  %v10272 = vpop.f32.mrf.mxu0
  %v10273 = vadd.f32 %v10224, %v10272
  %10274 = vmatmul.bf16.gmra.mxu0 %v1818
  %v10275 = vpop.f32.mrf.mxu0
  %v10276 = vadd.f32 %v10227, %v10275
  %v10277 = vpop.f32.mrf.mxu0
  %v10278 = vadd.f32 %v10229, %v10277
  %10279 = vdwg.mxu0
  %10280 = vmatpush.bf16.msra.mxu0 %v4822
  %10281 = vmatpush.bf16.msra.mxu0 %v4818
  %10282 = vmatpush.bf16.msra.mxu0 %v4814
  %10283 = vmatpush.bf16.msra.mxu0 %v4810
  %10284 = vmatpush.bf16.msra.mxu0 %v4806
  %10285 = vmatpush.bf16.msra.mxu0 %v4802
  %10286 = vmatpush.bf16.msra.mxu0 %v4798
  %10287 = vmatpush.bf16.msra.mxu0 %v4794
  %10288 = vmatmul.bf16.gmra.mxu0 %v1644
  %v10289 = vpop.f32.mrf.mxu0
  %v10290 = vadd.f32 %v10241, %v10289
  %v10291 = vpop.f32.mrf.mxu0
  %v10292 = vadd.f32 %v10243, %v10291
  %10293 = vmatmul.bf16.gmra.mxu0 %v1669
  %v10294 = vpop.f32.mrf.mxu0
  %v10295 = vadd.f32 %v10246, %v10294
  %v10296 = vpop.f32.mrf.mxu0
  %v10297 = vadd.f32 %v10248, %v10296
  %10298 = vmatmul.bf16.gmra.mxu0 %v1694
  %v10299 = vpop.f32.mrf.mxu0
  %v10300 = vadd.f32 %v10251, %v10299
  %v10301 = vpop.f32.mrf.mxu0
  %v10302 = vadd.f32 %v10253, %v10301
  %10303 = vmatmul.bf16.gmra.mxu0 %v1719
  %v10304 = vpop.f32.mrf.mxu0
  %v10305 = vadd.f32 %v10256, %v10304
  %v10306 = vpop.f32.mrf.mxu0
  %v10307 = vadd.f32 %v10258, %v10306
  %10308 = vmatmul.bf16.gmra.mxu0 %v1744
  %v10309 = vpop.f32.mrf.mxu0
  %v10310 = vadd.f32 %v10261, %v10309
  %v10311 = vpop.f32.mrf.mxu0
  %v10312 = vadd.f32 %v10263, %v10311
  %10313 = vmatmul.bf16.gmra.mxu0 %v1769
  %v10314 = vpop.f32.mrf.mxu0
  %v10315 = vadd.f32 %v10266, %v10314
  %v10316 = vpop.f32.mrf.mxu0
  %v10317 = vadd.f32 %v10268, %v10316
  %10318 = vmatmul.bf16.gmra.mxu0 %v1794
  %v10319 = vpop.f32.mrf.mxu0
  %v10320 = vadd.f32 %v10271, %v10319
  %v10321 = vpop.f32.mrf.mxu0
  %v10322 = vadd.f32 %v10273, %v10321
  %10323 = vmatmul.bf16.gmra.mxu0 %v1819
  %v10324 = vpop.f32.mrf.mxu0
  %v10325 = vadd.f32 %v10276, %v10324
  %v10326 = vpop.f32.mrf.mxu0
  %v10327 = vadd.f32 %v10278, %v10326
  %10328 = vdwg.mxu0
  %10329 = vmatpush.bf16.msra.mxu0 %v4854
  %10330 = vmatpush.bf16.msra.mxu0 %v4850
  %10331 = vmatpush.bf16.msra.mxu0 %v4846
  %10332 = vmatpush.bf16.msra.mxu0 %v4842
  %10333 = vmatpush.bf16.msra.mxu0 %v4838
  %10334 = vmatpush.bf16.msra.mxu0 %v4834
  %10335 = vmatpush.bf16.msra.mxu0 %v4830
  %10336 = vmatpush.bf16.msra.mxu0 %v4826
  %10337 = vmatmul.bf16.gmra.mxu0 %v1645
  %v10338 = vpop.f32.mrf.mxu0
  %v10339 = vadd.f32 %v10290, %v10338
  %v10340 = vpop.f32.mrf.mxu0
  %v10341 = vadd.f32 %v10292, %v10340
  %10342 = vmatmul.bf16.gmra.mxu0 %v1670
  %v10343 = vpop.f32.mrf.mxu0
  %v10344 = vadd.f32 %v10295, %v10343
  %v10345 = vpop.f32.mrf.mxu0
  %v10346 = vadd.f32 %v10297, %v10345
  %10347 = vmatmul.bf16.gmra.mxu0 %v1695
  %v10348 = vpop.f32.mrf.mxu0
  %v10349 = vadd.f32 %v10300, %v10348
  %v10350 = vpop.f32.mrf.mxu0
  %v10351 = vadd.f32 %v10302, %v10350
  %10352 = vmatmul.bf16.gmra.mxu0 %v1720
  %v10353 = vpop.f32.mrf.mxu0
  %v10354 = vadd.f32 %v10305, %v10353
  %v10355 = vpop.f32.mrf.mxu0
  %v10356 = vadd.f32 %v10307, %v10355
  %10357 = vmatmul.bf16.gmra.mxu0 %v1745
  %v10358 = vpop.f32.mrf.mxu0
  %v10359 = vadd.f32 %v10310, %v10358
  %v10360 = vpop.f32.mrf.mxu0
  %v10361 = vadd.f32 %v10312, %v10360
  %10362 = vmatmul.bf16.gmra.mxu0 %v1770
  %v10363 = vpop.f32.mrf.mxu0
  %v10364 = vadd.f32 %v10315, %v10363
  %v10365 = vpop.f32.mrf.mxu0
  %v10366 = vadd.f32 %v10317, %v10365
  %10367 = vmatmul.bf16.gmra.mxu0 %v1795
  %v10368 = vpop.f32.mrf.mxu0
  %v10369 = vadd.f32 %v10320, %v10368
  %v10370 = vpop.f32.mrf.mxu0
  %v10371 = vadd.f32 %v10322, %v10370
  %10372 = vmatmul.bf16.gmra.mxu0 %v1820
  %v10373 = vpop.f32.mrf.mxu0
  %v10374 = vadd.f32 %v10325, %v10373
  %v10375 = vpop.f32.mrf.mxu0
  %v10376 = vadd.f32 %v10327, %v10375
  %10377 = vdwg.mxu0
  %10378 = vmatpush.bf16.msra.mxu0 %v4886
  %10379 = vmatpush.bf16.msra.mxu0 %v4882
  %10380 = vmatpush.bf16.msra.mxu0 %v4878
  %10381 = vmatpush.bf16.msra.mxu0 %v4874
  %10382 = vmatpush.bf16.msra.mxu0 %v4870
  %10383 = vmatpush.bf16.msra.mxu0 %v4866
  %10384 = vmatpush.bf16.msra.mxu0 %v4862
  %10385 = vmatpush.bf16.msra.mxu0 %v4858
  %10386 = vmatmul.bf16.gmra.mxu0 %v1646
  %v10387 = vpop.f32.mrf.mxu0
  %v10388 = vadd.f32 %v10339, %v10387
  %v10389 = vpop.f32.mrf.mxu0
  %v10390 = vadd.f32 %v10341, %v10389
  %10391 = vmatmul.bf16.gmra.mxu0 %v1671
  %v10392 = vpop.f32.mrf.mxu0
  %v10393 = vadd.f32 %v10344, %v10392
  %v10394 = vpop.f32.mrf.mxu0
  %v10395 = vadd.f32 %v10346, %v10394
  %10396 = vmatmul.bf16.gmra.mxu0 %v1696
  %v10397 = vpop.f32.mrf.mxu0
  %v10398 = vadd.f32 %v10349, %v10397
  %v10399 = vpop.f32.mrf.mxu0
  %v10400 = vadd.f32 %v10351, %v10399
  %10401 = vmatmul.bf16.gmra.mxu0 %v1721
  %v10402 = vpop.f32.mrf.mxu0
  %v10403 = vadd.f32 %v10354, %v10402
  %v10404 = vpop.f32.mrf.mxu0
  %v10405 = vadd.f32 %v10356, %v10404
  %10406 = vmatmul.bf16.gmra.mxu0 %v1746
  %v10407 = vpop.f32.mrf.mxu0
  %v10408 = vadd.f32 %v10359, %v10407
  %v10409 = vpop.f32.mrf.mxu0
  %v10410 = vadd.f32 %v10361, %v10409
  %10411 = vmatmul.bf16.gmra.mxu0 %v1771
  %v10412 = vpop.f32.mrf.mxu0
  %v10413 = vadd.f32 %v10364, %v10412
  %v10414 = vpop.f32.mrf.mxu0
  %v10415 = vadd.f32 %v10366, %v10414
  %10416 = vmatmul.bf16.gmra.mxu0 %v1796
  %v10417 = vpop.f32.mrf.mxu0
  %v10418 = vadd.f32 %v10369, %v10417
  %v10419 = vpop.f32.mrf.mxu0
  %v10420 = vadd.f32 %v10371, %v10419
  %10421 = vmatmul.bf16.gmra.mxu0 %v1821
  %v10422 = vpop.f32.mrf.mxu0
  %v10423 = vadd.f32 %v10374, %v10422
  %v10424 = vpop.f32.mrf.mxu0
  %v10425 = vadd.f32 %v10376, %v10424
  %10426 = vdwg.mxu0
  %10427 = vmatpush.bf16.msra.mxu0 %v4918
  %10428 = vmatpush.bf16.msra.mxu0 %v4914
  %10429 = vmatpush.bf16.msra.mxu0 %v4910
  %10430 = vmatpush.bf16.msra.mxu0 %v4906
  %10431 = vmatpush.bf16.msra.mxu0 %v4902
  %10432 = vmatpush.bf16.msra.mxu0 %v4898
  %10433 = vmatpush.bf16.msra.mxu0 %v4894
  %10434 = vmatpush.bf16.msra.mxu0 %v4890
  %10435 = vmatmul.bf16.gmra.mxu0 %v1647
  %v10436 = vpop.f32.mrf.mxu0
  %v10437 = vadd.f32 %v10388, %v10436
  %v10438 = vpop.f32.mrf.mxu0
  %v10439 = vadd.f32 %v10390, %v10438
  %10440 = vmatmul.bf16.gmra.mxu0 %v1672
  %v10441 = vpop.f32.mrf.mxu0
  %v10442 = vadd.f32 %v10393, %v10441
  %v10443 = vpop.f32.mrf.mxu0
  %v10444 = vadd.f32 %v10395, %v10443
  %10445 = vmatmul.bf16.gmra.mxu0 %v1697
  %v10446 = vpop.f32.mrf.mxu0
  %v10447 = vadd.f32 %v10398, %v10446
  %v10448 = vpop.f32.mrf.mxu0
  %v10449 = vadd.f32 %v10400, %v10448
  %10450 = vmatmul.bf16.gmra.mxu0 %v1722
  %v10451 = vpop.f32.mrf.mxu0
  %v10452 = vadd.f32 %v10403, %v10451
  %v10453 = vpop.f32.mrf.mxu0
  %v10454 = vadd.f32 %v10405, %v10453
  %10455 = vmatmul.bf16.gmra.mxu0 %v1747
  %v10456 = vpop.f32.mrf.mxu0
  %v10457 = vadd.f32 %v10408, %v10456
  %v10458 = vpop.f32.mrf.mxu0
  %v10459 = vadd.f32 %v10410, %v10458
  %10460 = vmatmul.bf16.gmra.mxu0 %v1772
  %v10461 = vpop.f32.mrf.mxu0
  %v10462 = vadd.f32 %v10413, %v10461
  %v10463 = vpop.f32.mrf.mxu0
  %v10464 = vadd.f32 %v10415, %v10463
  %10465 = vmatmul.bf16.gmra.mxu0 %v1797
  %v10466 = vpop.f32.mrf.mxu0
  %v10467 = vadd.f32 %v10418, %v10466
  %v10468 = vpop.f32.mrf.mxu0
  %v10469 = vadd.f32 %v10420, %v10468
  %10470 = vmatmul.bf16.gmra.mxu0 %v1822
  %v10471 = vpop.f32.mrf.mxu0
  %v10472 = vadd.f32 %v10423, %v10471
  %v10473 = vpop.f32.mrf.mxu0
  %v10474 = vadd.f32 %v10425, %v10473
  %10475 = vdwg.mxu0
  %10476 = vmatpush.bf16.msra.mxu0 %v4950
  %10477 = vmatpush.bf16.msra.mxu0 %v4946
  %10478 = vmatpush.bf16.msra.mxu0 %v4942
  %10479 = vmatpush.bf16.msra.mxu0 %v4938
  %10480 = vmatpush.bf16.msra.mxu0 %v4934
  %10481 = vmatpush.bf16.msra.mxu0 %v4930
  %10482 = vmatpush.bf16.msra.mxu0 %v4926
  %10483 = vmatpush.bf16.msra.mxu0 %v4922
  %10484 = vmatmul.bf16.gmra.mxu0 %v1648
  %v10485 = vpop.f32.mrf.mxu0
  %v10486 = vadd.f32 %v10437, %v10485
  %v10487 = vpop.f32.mrf.mxu0
  %v10488 = vadd.f32 %v10439, %v10487
  %10489 = vmatmul.bf16.gmra.mxu0 %v1673
  %v10490 = vpop.f32.mrf.mxu0
  %v10491 = vadd.f32 %v10442, %v10490
  %v10492 = vpop.f32.mrf.mxu0
  %v10493 = vadd.f32 %v10444, %v10492
  %10494 = vmatmul.bf16.gmra.mxu0 %v1698
  %v10495 = vpop.f32.mrf.mxu0
  %v10496 = vadd.f32 %v10447, %v10495
  %v10497 = vpop.f32.mrf.mxu0
  %v10498 = vadd.f32 %v10449, %v10497
  %10499 = vmatmul.bf16.gmra.mxu0 %v1723
  %v10500 = vpop.f32.mrf.mxu0
  %v10501 = vadd.f32 %v10452, %v10500
  %v10502 = vpop.f32.mrf.mxu0
  %v10503 = vadd.f32 %v10454, %v10502
  %10504 = vmatmul.bf16.gmra.mxu0 %v1748
  %v10505 = vpop.f32.mrf.mxu0
  %v10506 = vadd.f32 %v10457, %v10505
  %v10507 = vpop.f32.mrf.mxu0
  %v10508 = vadd.f32 %v10459, %v10507
  %10509 = vmatmul.bf16.gmra.mxu0 %v1773
  %v10510 = vpop.f32.mrf.mxu0
  %v10511 = vadd.f32 %v10462, %v10510
  %v10512 = vpop.f32.mrf.mxu0
  %v10513 = vadd.f32 %v10464, %v10512
  %10514 = vmatmul.bf16.gmra.mxu0 %v1798
  %v10515 = vpop.f32.mrf.mxu0
  %v10516 = vadd.f32 %v10467, %v10515
  %v10517 = vpop.f32.mrf.mxu0
  %v10518 = vadd.f32 %v10469, %v10517
  %10519 = vmatmul.bf16.gmra.mxu0 %v1823
  %v10520 = vpop.f32.mrf.mxu0
  %v10521 = vadd.f32 %v10472, %v10520
  %v10522 = vpop.f32.mrf.mxu0
  %v10523 = vadd.f32 %v10474, %v10522
  %10524 = vdwg.mxu0
  %10525 = vmatpush.bf16.msra.mxu0 %v4982
  %10526 = vmatpush.bf16.msra.mxu0 %v4978
  %10527 = vmatpush.bf16.msra.mxu0 %v4974
  %10528 = vmatpush.bf16.msra.mxu0 %v4970
  %10529 = vmatpush.bf16.msra.mxu0 %v4966
  %10530 = vmatpush.bf16.msra.mxu0 %v4962
  %10531 = vmatpush.bf16.msra.mxu0 %v4958
  %10532 = vmatpush.bf16.msra.mxu0 %v4954
  %10533 = vmatmul.bf16.gmra.mxu0 %v1649
  %v10534 = vpop.f32.mrf.mxu0
  %v10535 = vadd.f32 %v10486, %v10534
  %v10536 = vpop.f32.mrf.mxu0
  %v10537 = vadd.f32 %v10488, %v10536
  %10538 = vmatmul.bf16.gmra.mxu0 %v1674
  %v10539 = vpop.f32.mrf.mxu0
  %v10540 = vadd.f32 %v10491, %v10539
  %v10541 = vpop.f32.mrf.mxu0
  %v10542 = vadd.f32 %v10493, %v10541
  %10543 = vmatmul.bf16.gmra.mxu0 %v1699
  %v10544 = vpop.f32.mrf.mxu0
  %v10545 = vadd.f32 %v10496, %v10544
  %v10546 = vpop.f32.mrf.mxu0
  %v10547 = vadd.f32 %v10498, %v10546
  %10548 = vmatmul.bf16.gmra.mxu0 %v1724
  %v10549 = vpop.f32.mrf.mxu0
  %v10550 = vadd.f32 %v10501, %v10549
  %v10551 = vpop.f32.mrf.mxu0
  %v10552 = vadd.f32 %v10503, %v10551
  %10553 = vmatmul.bf16.gmra.mxu0 %v1749
  %v10554 = vpop.f32.mrf.mxu0
  %v10555 = vadd.f32 %v10506, %v10554
  %v10556 = vpop.f32.mrf.mxu0
  %v10557 = vadd.f32 %v10508, %v10556
  %10558 = vmatmul.bf16.gmra.mxu0 %v1774
  %v10559 = vpop.f32.mrf.mxu0
  %v10560 = vadd.f32 %v10511, %v10559
  %v10561 = vpop.f32.mrf.mxu0
  %v10562 = vadd.f32 %v10513, %v10561
  %10563 = vmatmul.bf16.gmra.mxu0 %v1799
  %v10564 = vpop.f32.mrf.mxu0
  %v10565 = vadd.f32 %v10516, %v10564
  %v10566 = vpop.f32.mrf.mxu0
  %v10567 = vadd.f32 %v10518, %v10566
  %10568 = vmatmul.bf16.gmra.mxu0 %v1824
  %v10569 = vpop.f32.mrf.mxu0
  %v10570 = vadd.f32 %v10521, %v10569
  %v10571 = vpop.f32.mrf.mxu0
  %v10572 = vadd.f32 %v10523, %v10571
  %10573 = vdwg.mxu0
  %10574 = vmatpush.bf16.msra.mxu0 %v5014
  %10575 = vmatpush.bf16.msra.mxu0 %v5010
  %10576 = vmatpush.bf16.msra.mxu0 %v5006
  %10577 = vmatpush.bf16.msra.mxu0 %v5002
  %10578 = vmatpush.bf16.msra.mxu0 %v4998
  %10579 = vmatpush.bf16.msra.mxu0 %v4994
  %10580 = vmatpush.bf16.msra.mxu0 %v4990
  %10581 = vmatpush.bf16.msra.mxu0 %v4986
  %10582 = vmatmul.bf16.gmra.mxu0 %v1650
  %v10583 = vpop.f32.mrf.mxu0
  %v10584 = vadd.f32 %v10535, %v10583
  %v10585 = vpop.f32.mrf.mxu0
  %v10586 = vadd.f32 %v10537, %v10585
  %10587 = vmatmul.bf16.gmra.mxu0 %v1675
  %v10588 = vpop.f32.mrf.mxu0
  %v10589 = vadd.f32 %v10540, %v10588
  %v10590 = vpop.f32.mrf.mxu0
  %v10591 = vadd.f32 %v10542, %v10590
  %10592 = vmatmul.bf16.gmra.mxu0 %v1700
  %v10593 = vpop.f32.mrf.mxu0
  %v10594 = vadd.f32 %v10545, %v10593
  %v10595 = vpop.f32.mrf.mxu0
  %v10596 = vadd.f32 %v10547, %v10595
  %10597 = vmatmul.bf16.gmra.mxu0 %v1725
  %v10598 = vpop.f32.mrf.mxu0
  %v10599 = vadd.f32 %v10550, %v10598
  %v10600 = vpop.f32.mrf.mxu0
  %v10601 = vadd.f32 %v10552, %v10600
  %10602 = vmatmul.bf16.gmra.mxu0 %v1750
  %v10603 = vpop.f32.mrf.mxu0
  %v10604 = vadd.f32 %v10555, %v10603
  %v10605 = vpop.f32.mrf.mxu0
  %v10606 = vadd.f32 %v10557, %v10605
  %10607 = vmatmul.bf16.gmra.mxu0 %v1775
  %v10608 = vpop.f32.mrf.mxu0
  %v10609 = vadd.f32 %v10560, %v10608
  %v10610 = vpop.f32.mrf.mxu0
  %v10611 = vadd.f32 %v10562, %v10610
  %10612 = vmatmul.bf16.gmra.mxu0 %v1800
  %v10613 = vpop.f32.mrf.mxu0
  %v10614 = vadd.f32 %v10565, %v10613
  %v10615 = vpop.f32.mrf.mxu0
  %v10616 = vadd.f32 %v10567, %v10615
  %10617 = vmatmul.bf16.gmra.mxu0 %v1825
  %v10618 = vpop.f32.mrf.mxu0
  %v10619 = vadd.f32 %v10570, %v10618
  %v10620 = vpop.f32.mrf.mxu0
  %v10621 = vadd.f32 %v10572, %v10620
  %10622 = vdwg.mxu0
  %10623 = vmatpush.bf16.msra.mxu0 %v5046
  %10624 = vmatpush.bf16.msra.mxu0 %v5042
  %10625 = vmatpush.bf16.msra.mxu0 %v5038
  %10626 = vmatpush.bf16.msra.mxu0 %v5034
  %10627 = vmatpush.bf16.msra.mxu0 %v5030
  %10628 = vmatpush.bf16.msra.mxu0 %v5026
  %10629 = vmatpush.bf16.msra.mxu0 %v5022
  %10630 = vmatpush.bf16.msra.mxu0 %v5018
  %10631 = vmatmul.bf16.gmra.mxu0 %v1651
  %v10632 = vpop.f32.mrf.mxu0
  %v10633 = vadd.f32 %v10584, %v10632
  %v10634 = vpop.f32.mrf.mxu0
  %v10635 = vadd.f32 %v10586, %v10634
  %10636 = vmatmul.bf16.gmra.mxu0 %v1676
  %v10637 = vpop.f32.mrf.mxu0
  %v10638 = vadd.f32 %v10589, %v10637
  %v10639 = vpop.f32.mrf.mxu0
  %v10640 = vadd.f32 %v10591, %v10639
  %10641 = vmatmul.bf16.gmra.mxu0 %v1701
  %v10642 = vpop.f32.mrf.mxu0
  %v10643 = vadd.f32 %v10594, %v10642
  %v10644 = vpop.f32.mrf.mxu0
  %v10645 = vadd.f32 %v10596, %v10644
  %10646 = vmatmul.bf16.gmra.mxu0 %v1726
  %v10647 = vpop.f32.mrf.mxu0
  %v10648 = vadd.f32 %v10599, %v10647
  %v10649 = vpop.f32.mrf.mxu0
  %v10650 = vadd.f32 %v10601, %v10649
  %10651 = vmatmul.bf16.gmra.mxu0 %v1751
  %v10652 = vpop.f32.mrf.mxu0
  %v10653 = vadd.f32 %v10604, %v10652
  %v10654 = vpop.f32.mrf.mxu0
  %v10655 = vadd.f32 %v10606, %v10654
  %10656 = vmatmul.bf16.gmra.mxu0 %v1776
  %v10657 = vpop.f32.mrf.mxu0
  %v10658 = vadd.f32 %v10609, %v10657
  %v10659 = vpop.f32.mrf.mxu0
  %v10660 = vadd.f32 %v10611, %v10659
  %10661 = vmatmul.bf16.gmra.mxu0 %v1801
  %v10662 = vpop.f32.mrf.mxu0
  %v10663 = vadd.f32 %v10614, %v10662
  %v10664 = vpop.f32.mrf.mxu0
  %v10665 = vadd.f32 %v10616, %v10664
  %10666 = vmatmul.bf16.gmra.mxu0 %v1826
  %v10667 = vpop.f32.mrf.mxu0
  %v10668 = vadd.f32 %v10619, %v10667
  %v10669 = vpop.f32.mrf.mxu0
  %v10670 = vadd.f32 %v10621, %v10669
  %10671 = vdwg.mxu0
  %10672 = vmatpush.bf16.msra.mxu0 %v5078
  %10673 = vmatpush.bf16.msra.mxu0 %v5074
  %10674 = vmatpush.bf16.msra.mxu0 %v5070
  %10675 = vmatpush.bf16.msra.mxu0 %v5066
  %10676 = vmatpush.bf16.msra.mxu0 %v5062
  %10677 = vmatpush.bf16.msra.mxu0 %v5058
  %10678 = vmatpush.bf16.msra.mxu0 %v5054
  %10679 = vmatpush.bf16.msra.mxu0 %v5050
  %10680 = vmatmul.bf16.gmra.mxu0 %v1652
  %v10681 = vpop.f32.mrf.mxu0
  %v10682 = vadd.f32 %v10633, %v10681
  %v10683 = vpop.f32.mrf.mxu0
  %v10684 = vadd.f32 %v10635, %v10683
  %10685 = vmatmul.bf16.gmra.mxu0 %v1677
  %v10686 = vpop.f32.mrf.mxu0
  %v10687 = vadd.f32 %v10638, %v10686
  %v10688 = vpop.f32.mrf.mxu0
  %v10689 = vadd.f32 %v10640, %v10688
  %10690 = vmatmul.bf16.gmra.mxu0 %v1702
  %v10691 = vpop.f32.mrf.mxu0
  %v10692 = vadd.f32 %v10643, %v10691
  %v10693 = vpop.f32.mrf.mxu0
  %v10694 = vadd.f32 %v10645, %v10693
  %10695 = vmatmul.bf16.gmra.mxu0 %v1727
  %v10696 = vpop.f32.mrf.mxu0
  %v10697 = vadd.f32 %v10648, %v10696
  %v10698 = vpop.f32.mrf.mxu0
  %v10699 = vadd.f32 %v10650, %v10698
  %10700 = vmatmul.bf16.gmra.mxu0 %v1752
  %v10701 = vpop.f32.mrf.mxu0
  %v10702 = vadd.f32 %v10653, %v10701
  %v10703 = vpop.f32.mrf.mxu0
  %v10704 = vadd.f32 %v10655, %v10703
  %10705 = vmatmul.bf16.gmra.mxu0 %v1777
  %v10706 = vpop.f32.mrf.mxu0
  %v10707 = vadd.f32 %v10658, %v10706
  %v10708 = vpop.f32.mrf.mxu0
  %v10709 = vadd.f32 %v10660, %v10708
  %10710 = vmatmul.bf16.gmra.mxu0 %v1802
  %v10711 = vpop.f32.mrf.mxu0
  %v10712 = vadd.f32 %v10663, %v10711
  %v10713 = vpop.f32.mrf.mxu0
  %v10714 = vadd.f32 %v10665, %v10713
  %10715 = vmatmul.bf16.gmra.mxu0 %v1827
  %v10716 = vpop.f32.mrf.mxu0
  %v10717 = vadd.f32 %v10668, %v10716
  %v10718 = vpop.f32.mrf.mxu0
  %v10719 = vadd.f32 %v10670, %v10718
  %10720 = vdwg.mxu0
  %10721 = vmatpush.bf16.msra.mxu0 %v5110
  %10722 = vmatpush.bf16.msra.mxu0 %v5106
  %10723 = vmatpush.bf16.msra.mxu0 %v5102
  %10724 = vmatpush.bf16.msra.mxu0 %v5098
  %10725 = vmatpush.bf16.msra.mxu0 %v5094
  %10726 = vmatpush.bf16.msra.mxu0 %v5090
  %10727 = vmatpush.bf16.msra.mxu0 %v5086
  %10728 = vmatpush.bf16.msra.mxu0 %v5082
  %10729 = vmatmul.bf16.gmra.mxu0 %v1653
  %v10730 = vpop.f32.mrf.mxu0
  %v10731 = vadd.f32 %v10682, %v10730
  %v10732 = vpop.f32.mrf.mxu0
  %v10733 = vadd.f32 %v10684, %v10732
  %10734 = vmatmul.bf16.gmra.mxu0 %v1678
  %v10735 = vpop.f32.mrf.mxu0
  %v10736 = vadd.f32 %v10687, %v10735
  %v10737 = vpop.f32.mrf.mxu0
  %v10738 = vadd.f32 %v10689, %v10737
  %10739 = vmatmul.bf16.gmra.mxu0 %v1703
  %v10740 = vpop.f32.mrf.mxu0
  %v10741 = vadd.f32 %v10692, %v10740
  %v10742 = vpop.f32.mrf.mxu0
  %v10743 = vadd.f32 %v10694, %v10742
  %10744 = vmatmul.bf16.gmra.mxu0 %v1728
  %v10745 = vpop.f32.mrf.mxu0
  %v10746 = vadd.f32 %v10697, %v10745
  %v10747 = vpop.f32.mrf.mxu0
  %v10748 = vadd.f32 %v10699, %v10747
  %10749 = vmatmul.bf16.gmra.mxu0 %v1753
  %v10750 = vpop.f32.mrf.mxu0
  %v10751 = vadd.f32 %v10702, %v10750
  %v10752 = vpop.f32.mrf.mxu0
  %v10753 = vadd.f32 %v10704, %v10752
  %10754 = vmatmul.bf16.gmra.mxu0 %v1778
  %v10755 = vpop.f32.mrf.mxu0
  %v10756 = vadd.f32 %v10707, %v10755
  %v10757 = vpop.f32.mrf.mxu0
  %v10758 = vadd.f32 %v10709, %v10757
  %10759 = vmatmul.bf16.gmra.mxu0 %v1803
  %v10760 = vpop.f32.mrf.mxu0
  %v10761 = vadd.f32 %v10712, %v10760
  %v10762 = vpop.f32.mrf.mxu0
  %v10763 = vadd.f32 %v10714, %v10762
  %10764 = vmatmul.bf16.gmra.mxu0 %v1828
  %v10765 = vpop.f32.mrf.mxu0
  %v10766 = vadd.f32 %v10717, %v10765
  %v10767 = vpop.f32.mrf.mxu0
  %v10768 = vadd.f32 %v10719, %v10767
  %10769 = vdwg.mxu0
  %10770 = vmatpush.bf16.msra.mxu0 %v5142
  %10771 = vmatpush.bf16.msra.mxu0 %v5138
  %10772 = vmatpush.bf16.msra.mxu0 %v5134
  %10773 = vmatpush.bf16.msra.mxu0 %v5130
  %10774 = vmatpush.bf16.msra.mxu0 %v5126
  %10775 = vmatpush.bf16.msra.mxu0 %v5122
  %10776 = vmatpush.bf16.msra.mxu0 %v5118
  %10777 = vmatpush.bf16.msra.mxu0 %v5114
  %10778 = vmatmul.bf16.gmra.mxu0 %v1654
  %v10779 = vpop.f32.mrf.mxu0
  %v10780 = vadd.f32 %v10731, %v10779
  %v10781 = vpop.f32.mrf.mxu0
  %v10782 = vadd.f32 %v10733, %v10781
  %10783 = vmatmul.bf16.gmra.mxu0 %v1679
  %v10784 = vpop.f32.mrf.mxu0
  %v10785 = vadd.f32 %v10736, %v10784
  %v10786 = vpop.f32.mrf.mxu0
  %v10787 = vadd.f32 %v10738, %v10786
  %10788 = vmatmul.bf16.gmra.mxu0 %v1704
  %v10789 = vpop.f32.mrf.mxu0
  %v10790 = vadd.f32 %v10741, %v10789
  %v10791 = vpop.f32.mrf.mxu0
  %v10792 = vadd.f32 %v10743, %v10791
  %10793 = vmatmul.bf16.gmra.mxu0 %v1729
  %v10794 = vpop.f32.mrf.mxu0
  %v10795 = vadd.f32 %v10746, %v10794
  %v10796 = vpop.f32.mrf.mxu0
  %v10797 = vadd.f32 %v10748, %v10796
  %10798 = vmatmul.bf16.gmra.mxu0 %v1754
  %v10799 = vpop.f32.mrf.mxu0
  %v10800 = vadd.f32 %v10751, %v10799
  %v10801 = vpop.f32.mrf.mxu0
  %v10802 = vadd.f32 %v10753, %v10801
  %10803 = vmatmul.bf16.gmra.mxu0 %v1779
  %v10804 = vpop.f32.mrf.mxu0
  %v10805 = vadd.f32 %v10756, %v10804
  %v10806 = vpop.f32.mrf.mxu0
  %v10807 = vadd.f32 %v10758, %v10806
  %10808 = vmatmul.bf16.gmra.mxu0 %v1804
  %v10809 = vpop.f32.mrf.mxu0
  %v10810 = vadd.f32 %v10761, %v10809
  %v10811 = vpop.f32.mrf.mxu0
  %v10812 = vadd.f32 %v10763, %v10811
  %10813 = vmatmul.bf16.gmra.mxu0 %v1829
  %v10814 = vpop.f32.mrf.mxu0
  %v10815 = vadd.f32 %v10766, %v10814
  %v10816 = vpop.f32.mrf.mxu0
  %v10817 = vadd.f32 %v10768, %v10816
  %10818 = vdwg.mxu0
  %10819 = vmatpush.bf16.msra.mxu0 0
  %10820 = vmatpush.bf16.msra.mxu0 0
  %10821 = vmatpush.bf16.msra.mxu0 0
  %10822 = vmatpush.bf16.msra.mxu0 0
  %10823 = vmatpush.bf16.msra.mxu0 %v5158
  %10824 = vmatpush.bf16.msra.mxu0 %v5154
  %10825 = vmatpush.bf16.msra.mxu0 %v5150
  %10826 = vmatpush.bf16.msra.mxu0 %v5146
  %10827 = vmatmul.bf16.gmra.mxu0 %v5945
  %v10828 = vpop.f32.mrf.mxu0
  %v10829 = vadd.f32 %v10780, %v10828
  %v10830 = vpop.f32.mrf.mxu0
  %v10831 = vadd.f32 %v10782, %v10830
  %10832 = vmatmul.bf16.gmra.mxu0 %v5948
  %v10833 = vpop.f32.mrf.mxu0
  %v10834 = vadd.f32 %v10785, %v10833
  %v10835 = vpop.f32.mrf.mxu0
  %v10836 = vadd.f32 %v10787, %v10835
  %10837 = vmatmul.bf16.gmra.mxu0 %v5951
  %v10838 = vpop.f32.mrf.mxu0
  %v10839 = vadd.f32 %v10790, %v10838
  %v10840 = vpop.f32.mrf.mxu0
  %v10841 = vadd.f32 %v10792, %v10840
  %10842 = vmatmul.bf16.gmra.mxu0 %v5954
  %v10843 = vpop.f32.mrf.mxu0
  %v10844 = vadd.f32 %v10795, %v10843
  %v10845 = vpop.f32.mrf.mxu0
  %v10846 = vadd.f32 %v10797, %v10845
  %10847 = vmatmul.bf16.gmra.mxu0 %v5957
  %v10848 = vpop.f32.mrf.mxu0
  %v10849 = vadd.f32 %v10800, %v10848
  %v10850 = vpop.f32.mrf.mxu0
  %v10851 = vadd.f32 %v10802, %v10850
  %10852 = vmatmul.bf16.gmra.mxu0 %v5960
  %v10853 = vpop.f32.mrf.mxu0
  %v10854 = vadd.f32 %v10805, %v10853
  %v10855 = vpop.f32.mrf.mxu0
  %v10856 = vadd.f32 %v10807, %v10855
  %10857 = vmatmul.bf16.gmra.mxu0 %v5963
  %v10858 = vpop.f32.mrf.mxu0
  %v10859 = vadd.f32 %v10810, %v10858
  %v10860 = vpop.f32.mrf.mxu0
  %v10861 = vadd.f32 %v10812, %v10860
  %10862 = vmatmul.bf16.gmra.mxu0 %v5966
  %v10863 = vpop.f32.mrf.mxu0
  %v10864 = vadd.f32 %v10815, %v10863
  %v10865 = vpop.f32.mrf.mxu0
  %v10866 = vadd.f32 %v10817, %v10865
  %10867 = vdwg.mxu0
  %v10868 = vmax.f32 %v7154, 0.0
  %v10869 = vmax.f32 %v8379, 0.0
  %v10870 = vmax.f32 %v9604, 0.0
  %v10871 = vmax.f32 %v10829, 0.0
  %v10872 = vmax.f32 %v7156, 0.0
  %v10873 = vmax.f32 %v8381, 0.0
  %v10874 = vmax.f32 %v9606, 0.0
  %v10875 = vmax.f32 %v10831, 0.0
  %v10876 = vmax.f32 %v7159, 0.0
  %v10877 = vmax.f32 %v8384, 0.0
  %v10878 = vmax.f32 %v9609, 0.0
  %v10879 = vmax.f32 %v10834, 0.0
  %v10880 = vmax.f32 %v7161, 0.0
  %v10881 = vmax.f32 %v8386, 0.0
  %v10882 = vmax.f32 %v9611, 0.0
  %v10883 = vmax.f32 %v10836, 0.0
  %v10884 = vmax.f32 %v7164, 0.0
  %v10885 = vmax.f32 %v8389, 0.0
  %v10886 = vmax.f32 %v9614, 0.0
  %v10887 = vmax.f32 %v10839, 0.0
  %v10888 = vmax.f32 %v7166, 0.0
  %v10889 = vmax.f32 %v8391, 0.0
  %v10890 = vmax.f32 %v9616, 0.0
  %v10891 = vmax.f32 %v10841, 0.0
  %v10892 = vmax.f32 %v7169, 0.0
  %v10893 = vmax.f32 %v8394, 0.0
  %v10894 = vmax.f32 %v9619, 0.0
  %v10895 = vmax.f32 %v10844, 0.0
  %v10896 = vmax.f32 %v7171, 0.0
  %v10897 = vmax.f32 %v8396, 0.0
  %v10898 = vmax.f32 %v9621, 0.0
  %v10899 = vmax.f32 %v10846, 0.0
  %v10900 = vmax.f32 %v7174, 0.0
  %v10901 = vmax.f32 %v8399, 0.0
  %v10902 = vmax.f32 %v9624, 0.0
  %v10903 = vmax.f32 %v10849, 0.0
  %v10904 = vmax.f32 %v7176, 0.0
  %v10905 = vmax.f32 %v8401, 0.0
  %v10906 = vmax.f32 %v9626, 0.0
  %v10907 = vmax.f32 %v10851, 0.0
  %v10908 = vmax.f32 %v7179, 0.0
  %v10909 = vmax.f32 %v8404, 0.0
  %v10910 = vmax.f32 %v9629, 0.0
  %v10911 = vmax.f32 %v10854, 0.0
  %v10912 = vmax.f32 %v7181, 0.0
  %v10913 = vmax.f32 %v8406, 0.0
  %v10914 = vmax.f32 %v9631, 0.0
  %v10915 = vmax.f32 %v10856, 0.0
  %v10916 = vmax.f32 %v7184, 0.0
  %v10917 = vmax.f32 %v8409, 0.0
  %v10918 = vmax.f32 %v9634, 0.0
  %v10919 = vmax.f32 %v10859, 0.0
  %v10920 = vmax.f32 %v7186, 0.0
  %v10921 = vmax.f32 %v8411, 0.0
  %v10922 = vmax.f32 %v9636, 0.0
  %v10923 = vmax.f32 %v10861, 0.0
  %v10924 = vmax.f32 %v7189, 0.0
  %v10925 = vmax.f32 %v8414, 0.0
  %v10926 = vmax.f32 %v9639, 0.0
  %v10927 = vmax.f32 %v10864, 0.0
  %v10928 = vmax.f32 %v7191, 0.0
  %v10929 = vmax.f32 %v8416, 0.0
  %v10930 = vmax.f32 %v9641, 0.0
  %v10931 = vmax.f32 %v10866, 0.0
  %v10932 = vpack.c.bf16 %v10872, %v10868
  %v10933 = vpack.c.bf16 %v10873, %v10869
  %v10934 = vpack.c.bf16 %v10874, %v10870
  %v10935 = vpack.c.bf16 %v10875, %v10871
  %v10936 = vpack.c.bf16 %v10880, %v10876
  %v10937 = vpack.c.bf16 %v10881, %v10877
  %v10938 = vpack.c.bf16 %v10882, %v10878
  %v10939 = vpack.c.bf16 %v10883, %v10879
  %v10940 = vpack.c.bf16 %v10888, %v10884
  %v10941 = vpack.c.bf16 %v10889, %v10885
  %v10942 = vpack.c.bf16 %v10890, %v10886
  %v10943 = vpack.c.bf16 %v10891, %v10887
  %v10944 = vpack.c.bf16 %v10896, %v10892
  %v10945 = vpack.c.bf16 %v10897, %v10893
  %v10946 = vpack.c.bf16 %v10898, %v10894
  %v10947 = vpack.c.bf16 %v10899, %v10895
  %v10948 = vpack.c.bf16 %v10904, %v10900
  %v10949 = vpack.c.bf16 %v10905, %v10901
  %v10950 = vpack.c.bf16 %v10906, %v10902
  %v10951 = vpack.c.bf16 %v10907, %v10903
  %v10952 = vpack.c.bf16 %v10912, %v10908
  %v10953 = vpack.c.bf16 %v10913, %v10909
  %v10954 = vpack.c.bf16 %v10914, %v10910
  %v10955 = vpack.c.bf16 %v10915, %v10911
  %v10956 = vpack.c.bf16 %v10920, %v10916
  %v10957 = vpack.c.bf16 %v10921, %v10917
  %v10958 = vpack.c.bf16 %v10922, %v10918
  %v10959 = vpack.c.bf16 %v10923, %v10919
  %v10960 = vpack.c.bf16 %v10928, %v10924
  %v10961 = vpack.c.bf16 %v10929, %v10925
  %v10962 = vpack.c.bf16 %v10930, %v10926
  %v10963 = vpack.c.bf16 %v10931, %v10927
  %v10964 = vld [vmem:[%s3] sm:$0xf]
  %v10965 = vld [vmem:[%s3 + $0x4] sm:$0xf]
  %v10966 = vld [vmem:[%s3 + $0x8] sm:$0xf]
  %v10967 = vld [vmem:[%s3 + $0xc] sm:$0xf]
  %v10968 = vld [vmem:[%s3 + $0x10] sm:$0xf]
  %v10969 = vld [vmem:[%s3 + $0x14] sm:$0xf]
  %v10970 = vld [vmem:[%s3 + $0x18] sm:$0xf]
  %v10971 = vld [vmem:[%s3 + $0x1c] sm:$0xf]
  %v10972 = vld [vmem:[%s3 + $0x20] sm:$0xf]
  %v10973 = vld [vmem:[%s3 + $0x24] sm:$0xf]
  %v10974 = vld [vmem:[%s3 + $0x28] sm:$0xf]
  %v10975 = vld [vmem:[%s3 + $0x2c] sm:$0xf]
  %v10976 = vld [vmem:[%s3 + $0x30] sm:$0xf]
  %v10977 = vld [vmem:[%s3 + $0x34] sm:$0xf]
  %v10978 = vld [vmem:[%s3 + $0x38] sm:$0xf]
  %v10979 = vld [vmem:[%s3 + $0x3c] sm:$0xf]
  %v10980 = vld [vmem:[%s3 + $0x40] sm:$0xf]
  %v10981 = vld [vmem:[%s3 + $0x44] sm:$0xf]
  %v10982 = vld [vmem:[%s3 + $0x48] sm:$0xf]
  %v10983 = vld [vmem:[%s3 + $0x4c] sm:$0xf]
  %v10984 = vld [vmem:[%s3 + $0x50] sm:$0xf]
  %v10985 = vld [vmem:[%s3 + $0x54] sm:$0xf]
  %v10986 = vld [vmem:[%s3 + $0x58] sm:$0xf]
  %v10987 = vld [vmem:[%s3 + $0x5c] sm:$0xf]
  %v10988 = vld [vmem:[%s3 + $0x60] sm:$0xf]
  %v10989 = vld [vmem:[%s3 + $0x64] sm:$0xf]
  %v10990 = vld [vmem:[%s3 + $0x68] sm:$0xf]
  %v10991 = vld [vmem:[%s3 + $0x6c] sm:$0xf]
  %v10992 = vld [vmem:[%s3 + $0x70] sm:$0xf]
  %v10993 = vld [vmem:[%s3 + $0x74] sm:$0xf]
  %v10994 = vld [vmem:[%s3 + $0x78] sm:$0xf]
  %v10995 = vld [vmem:[%s3 + $0x7c] sm:$0xf]
  %v10996 = vld [vmem:[%s3 + $0x80] sm:$0xf]
  %v10997 = vld [vmem:[%s3 + $0x84] sm:$0xf]
  %v10998 = vld [vmem:[%s3 + $0x88] sm:$0xf]
  %v10999 = vld [vmem:[%s3 + $0x8c] sm:$0xf]
  %v11000 = vld [vmem:[%s3 + $0x90] sm:$0xf]
  %v11001 = vld [vmem:[%s3 + $0x94] sm:$0xf]
  %v11002 = vld [vmem:[%s3 + $0x98] sm:$0xf]
  %v11003 = vld [vmem:[%s3 + $0x9c] sm:$0xf]
  %v11004 = vld [vmem:[%s3 + $0xa0] sm:$0xf]
  %v11005 = vld [vmem:[%s3 + $0xa4] sm:$0xf]
  %v11006 = vld [vmem:[%s3 + $0xa8] sm:$0xf]
  %v11007 = vld [vmem:[%s3 + $0xac] sm:$0xf]
  %v11008 = vld [vmem:[%s3 + $0xb0] sm:$0xf]
  %v11009 = vld [vmem:[%s3 + $0xb4] sm:$0xf]
  %v11010 = vld [vmem:[%s3 + $0xb8] sm:$0xf]
  %v11011 = vld [vmem:[%s3 + $0xbc] sm:$0xf]
  %v11012 = vld [vmem:[%s3 + $0xc0] sm:$0xf]
  %v11013 = vld [vmem:[%s3 + $0xc4] sm:$0xf]
  %v11014 = vld [vmem:[%s3 + $0xc8] sm:$0xf]
  %v11015 = vld [vmem:[%s3 + $0xcc] sm:$0xf]
  %v11016 = vld [vmem:[%s3 + $0xd0] sm:$0xf]
  %v11017 = vld [vmem:[%s3 + $0xd4] sm:$0xf]
  %v11018 = vld [vmem:[%s3 + $0xd8] sm:$0xf]
  %v11019 = vld [vmem:[%s3 + $0xdc] sm:$0xf]
  %v11020 = vld [vmem:[%s3 + $0xe0] sm:$0xf]
  %v11021 = vld [vmem:[%s3 + $0xe4] sm:$0xf]
  %v11022 = vld [vmem:[%s3 + $0xe8] sm:$0xf]
  %v11023 = vld [vmem:[%s3 + $0xec] sm:$0xf]
  %v11024 = vld [vmem:[%s3 + $0xf0] sm:$0xf]
  %v11025 = vld [vmem:[%s3 + $0xf4] sm:$0xf]
  %v11026 = vld [vmem:[%s3 + $0xf8] sm:$0xf]
  %v11027 = vld [vmem:[%s3 + $0xfc] sm:$0xf]
  %v11028 = vld [vmem:[%s4] sm:$0x1]
  %v11030 = vperm.slane %v11028, 0
  %v11096 = vunpack.c.l.b16 %v10964
  %v11097 = vunpack.c.l.b16 %v10965
  %v11098 = vunpack.c.l.b16 %v10966
  %v11099 = vunpack.c.l.b16 %v10967
  %v11100 = vunpack.c.l.b16 %v10968
  %v11101 = vunpack.c.l.b16 %v10969
  %v11102 = vunpack.c.l.b16 %v10970
  %v11103 = vunpack.c.l.b16 %v10971
  %v11104 = vunpack.c.l.b16 %v10972
  %v11105 = vunpack.c.l.b16 %v10973
  %v11106 = vunpack.c.l.b16 %v10974
  %v11107 = vunpack.c.l.b16 %v10975
  %v11108 = vunpack.c.l.b16 %v10976
  %v11109 = vunpack.c.l.b16 %v10977
  %v11110 = vunpack.c.l.b16 %v10978
  %v11111 = vunpack.c.l.b16 %v10979
  %v11112 = vunpack.c.l.b16 %v10980
  %v11113 = vunpack.c.l.b16 %v10981
  %v11114 = vunpack.c.l.b16 %v10982
  %v11115 = vunpack.c.l.b16 %v10983
  %v11116 = vunpack.c.l.b16 %v10984
  %v11117 = vunpack.c.l.b16 %v10985
  %v11118 = vunpack.c.l.b16 %v10986
  %v11119 = vunpack.c.l.b16 %v10987
  %v11120 = vunpack.c.l.b16 %v10988
  %v11121 = vunpack.c.l.b16 %v10989
  %v11122 = vunpack.c.l.b16 %v10990
  %v11123 = vunpack.c.l.b16 %v10991
  %v11124 = vunpack.c.l.b16 %v10992
  %v11125 = vunpack.c.l.b16 %v10993
  %v11126 = vunpack.c.l.b16 %v10994
  %v11127 = vunpack.c.l.b16 %v10995
  %v11128 = vunpack.c.l.b16 %v10996
  %v11129 = vunpack.c.l.b16 %v10997
  %v11130 = vunpack.c.l.b16 %v10998
  %v11131 = vunpack.c.l.b16 %v10999
  %v11132 = vunpack.c.l.b16 %v11000
  %v11133 = vunpack.c.l.b16 %v11001
  %v11134 = vunpack.c.l.b16 %v11002
  %v11135 = vunpack.c.l.b16 %v11003
  %v11136 = vunpack.c.l.b16 %v11004
  %v11137 = vunpack.c.l.b16 %v11005
  %v11138 = vunpack.c.l.b16 %v11006
  %v11139 = vunpack.c.l.b16 %v11007
  %v11140 = vunpack.c.l.b16 %v11008
  %v11141 = vunpack.c.l.b16 %v11009
  %v11142 = vunpack.c.l.b16 %v11010
  %v11143 = vunpack.c.l.b16 %v11011
  %v11144 = vunpack.c.l.b16 %v11012
  %v11145 = vunpack.c.l.b16 %v11013
  %v11146 = vunpack.c.l.b16 %v11014
  %v11147 = vunpack.c.l.b16 %v11015
  %v11148 = vunpack.c.l.b16 %v11016
  %v11149 = vunpack.c.l.b16 %v11017
  %v11150 = vunpack.c.l.b16 %v11018
  %v11151 = vunpack.c.l.b16 %v11019
  %v11152 = vunpack.c.l.b16 %v11020
  %v11153 = vunpack.c.l.b16 %v11021
  %v11154 = vunpack.c.l.b16 %v11022
  %v11155 = vunpack.c.l.b16 %v11023
  %v11156 = vunpack.c.l.b16 %v11024
  %v11157 = vunpack.c.l.b16 %v11025
  %v11158 = vunpack.c.l.b16 %v11026
  %v11159 = vunpack.c.l.b16 %v11027
  %v11160 = vpack.c.b16 %v11097, %v11096
  %v11161 = vpack.c.b16 %v11099, %v11098
  %v11162 = vpack.c.b16 %v11101, %v11100
  %v11163 = vpack.c.b16 %v11103, %v11102
  %v11164 = vpack.c.b16 %v11105, %v11104
  %v11165 = vpack.c.b16 %v11107, %v11106
  %v11166 = vpack.c.b16 %v11109, %v11108
  %v11167 = vpack.c.b16 %v11111, %v11110
  %v11168 = vpack.c.b16 %v11113, %v11112
  %v11169 = vpack.c.b16 %v11115, %v11114
  %v11170 = vpack.c.b16 %v11117, %v11116
  %v11171 = vpack.c.b16 %v11119, %v11118
  %v11172 = vpack.c.b16 %v11121, %v11120
  %v11173 = vpack.c.b16 %v11123, %v11122
  %v11174 = vpack.c.b16 %v11125, %v11124
  %v11175 = vpack.c.b16 %v11127, %v11126
  %v11176 = vpack.c.b16 %v11129, %v11128
  %v11177 = vpack.c.b16 %v11131, %v11130
  %v11178 = vpack.c.b16 %v11133, %v11132
  %v11179 = vpack.c.b16 %v11135, %v11134
  %v11180 = vpack.c.b16 %v11137, %v11136
  %v11181 = vpack.c.b16 %v11139, %v11138
  %v11182 = vpack.c.b16 %v11141, %v11140
  %v11183 = vpack.c.b16 %v11143, %v11142
  %v11184 = vpack.c.b16 %v11145, %v11144
  %v11185 = vpack.c.b16 %v11147, %v11146
  %v11186 = vpack.c.b16 %v11149, %v11148
  %v11187 = vpack.c.b16 %v11151, %v11150
  %v11188 = vpack.c.b16 %v11153, %v11152
  %v11189 = vpack.c.b16 %v11155, %v11154
  %v11190 = vpack.c.b16 %v11157, %v11156
  %v11191 = vpack.c.b16 %v11159, %v11158
  %11224 = vmatpush.bf16.msra.mxu0 %v11167
  %11225 = vmatpush.bf16.msra.mxu0 %v11166
  %11226 = vmatpush.bf16.msra.mxu0 %v11165
  %11227 = vmatpush.bf16.msra.mxu0 %v11164
  %11228 = vmatpush.bf16.msra.mxu0 %v11163
  %11229 = vmatpush.bf16.msra.mxu0 %v11162
  %11230 = vmatpush.bf16.msra.mxu0 %v11161
  %11231 = vmatpush.bf16.msra.mxu0 %v11160
  %11232 = vmatmul.bf16.gmra.mxu0 %v10932
  %v11233 = vpop.f32.mrf.mxu0
  %v11234 = vadd.f32 %v11030, %v11233
  %v11235 = vpop.f32.mrf.mxu0
  %v11236 = vadd.f32 %v11030, %v11235
  %11237 = vmatmul.bf16.gmra.mxu0 %v10936
  %v11238 = vpop.f32.mrf.mxu0
  %v11239 = vadd.f32 %v11030, %v11238
  %v11240 = vpop.f32.mrf.mxu0
  %v11241 = vadd.f32 %v11030, %v11240
  %11242 = vmatmul.bf16.gmra.mxu0 %v10940
  %v11243 = vpop.f32.mrf.mxu0
  %v11244 = vadd.f32 %v11030, %v11243
  %v11245 = vpop.f32.mrf.mxu0
  %v11246 = vadd.f32 %v11030, %v11245
  %11247 = vmatmul.bf16.gmra.mxu0 %v10944
  %v11248 = vpop.f32.mrf.mxu0
  %v11249 = vadd.f32 %v11030, %v11248
  %v11250 = vpop.f32.mrf.mxu0
  %v11251 = vadd.f32 %v11030, %v11250
  %11252 = vmatmul.bf16.gmra.mxu0 %v10948
  %v11253 = vpop.f32.mrf.mxu0
  %v11254 = vadd.f32 %v11030, %v11253
  %v11255 = vpop.f32.mrf.mxu0
  %v11256 = vadd.f32 %v11030, %v11255
  %11257 = vmatmul.bf16.gmra.mxu0 %v10952
  %v11258 = vpop.f32.mrf.mxu0
  %v11259 = vadd.f32 %v11030, %v11258
  %v11260 = vpop.f32.mrf.mxu0
  %v11261 = vadd.f32 %v11030, %v11260
  %11262 = vmatmul.bf16.gmra.mxu0 %v10956
  %v11263 = vpop.f32.mrf.mxu0
  %v11264 = vadd.f32 %v11030, %v11263
  %v11265 = vpop.f32.mrf.mxu0
  %v11266 = vadd.f32 %v11030, %v11265
  %11267 = vmatmul.bf16.gmra.mxu0 %v10960
  %v11268 = vpop.f32.mrf.mxu0
  %v11269 = vadd.f32 %v11030, %v11268
  %v11270 = vpop.f32.mrf.mxu0
  %v11271 = vadd.f32 %v11030, %v11270
  %11272 = vdwg.mxu0
  %11273 = vmatpush.bf16.msra.mxu0 %v11175
  %11274 = vmatpush.bf16.msra.mxu0 %v11174
  %11275 = vmatpush.bf16.msra.mxu0 %v11173
  %11276 = vmatpush.bf16.msra.mxu0 %v11172
  %11277 = vmatpush.bf16.msra.mxu0 %v11171
  %11278 = vmatpush.bf16.msra.mxu0 %v11170
  %11279 = vmatpush.bf16.msra.mxu0 %v11169
  %11280 = vmatpush.bf16.msra.mxu0 %v11168
  %11281 = vmatmul.bf16.gmra.mxu0 %v10933
  %v11282 = vpop.f32.mrf.mxu0
  %v11283 = vadd.f32 %v11234, %v11282
  %v11284 = vpop.f32.mrf.mxu0
  %v11285 = vadd.f32 %v11236, %v11284
  %11286 = vmatmul.bf16.gmra.mxu0 %v10937
  %v11287 = vpop.f32.mrf.mxu0
  %v11288 = vadd.f32 %v11239, %v11287
  %v11289 = vpop.f32.mrf.mxu0
  %v11290 = vadd.f32 %v11241, %v11289
  %11291 = vmatmul.bf16.gmra.mxu0 %v10941
  %v11292 = vpop.f32.mrf.mxu0
  %v11293 = vadd.f32 %v11244, %v11292
  %v11294 = vpop.f32.mrf.mxu0
  %v11295 = vadd.f32 %v11246, %v11294
  %11296 = vmatmul.bf16.gmra.mxu0 %v10945
  %v11297 = vpop.f32.mrf.mxu0
  %v11298 = vadd.f32 %v11249, %v11297
  %v11299 = vpop.f32.mrf.mxu0
  %v11300 = vadd.f32 %v11251, %v11299
  %11301 = vmatmul.bf16.gmra.mxu0 %v10949
  %v11302 = vpop.f32.mrf.mxu0
  %v11303 = vadd.f32 %v11254, %v11302
  %v11304 = vpop.f32.mrf.mxu0
  %v11305 = vadd.f32 %v11256, %v11304
  %11306 = vmatmul.bf16.gmra.mxu0 %v10953
  %v11307 = vpop.f32.mrf.mxu0
  %v11308 = vadd.f32 %v11259, %v11307
  %v11309 = vpop.f32.mrf.mxu0
  %v11310 = vadd.f32 %v11261, %v11309
  %11311 = vmatmul.bf16.gmra.mxu0 %v10957
  %v11312 = vpop.f32.mrf.mxu0
  %v11313 = vadd.f32 %v11264, %v11312
  %v11314 = vpop.f32.mrf.mxu0
  %v11315 = vadd.f32 %v11266, %v11314
  %11316 = vmatmul.bf16.gmra.mxu0 %v10961
  %v11317 = vpop.f32.mrf.mxu0
  %v11318 = vadd.f32 %v11269, %v11317
  %v11319 = vpop.f32.mrf.mxu0
  %v11320 = vadd.f32 %v11271, %v11319
  %11321 = vdwg.mxu0
  %11322 = vmatpush.bf16.msra.mxu0 %v11183
  %11323 = vmatpush.bf16.msra.mxu0 %v11182
  %11324 = vmatpush.bf16.msra.mxu0 %v11181
  %11325 = vmatpush.bf16.msra.mxu0 %v11180
  %11326 = vmatpush.bf16.msra.mxu0 %v11179
  %11327 = vmatpush.bf16.msra.mxu0 %v11178
  %11328 = vmatpush.bf16.msra.mxu0 %v11177
  %11329 = vmatpush.bf16.msra.mxu0 %v11176
  %11330 = vmatmul.bf16.gmra.mxu0 %v10934
  %v11331 = vpop.f32.mrf.mxu0
  %v11332 = vadd.f32 %v11283, %v11331
  %v11333 = vpop.f32.mrf.mxu0
  %v11334 = vadd.f32 %v11285, %v11333
  %11335 = vmatmul.bf16.gmra.mxu0 %v10938
  %v11336 = vpop.f32.mrf.mxu0
  %v11337 = vadd.f32 %v11288, %v11336
  %v11338 = vpop.f32.mrf.mxu0
  %v11339 = vadd.f32 %v11290, %v11338
  %11340 = vmatmul.bf16.gmra.mxu0 %v10942
  %v11341 = vpop.f32.mrf.mxu0
  %v11342 = vadd.f32 %v11293, %v11341
  %v11343 = vpop.f32.mrf.mxu0
  %v11344 = vadd.f32 %v11295, %v11343
  %11345 = vmatmul.bf16.gmra.mxu0 %v10946
  %v11346 = vpop.f32.mrf.mxu0
  %v11347 = vadd.f32 %v11298, %v11346
  %v11348 = vpop.f32.mrf.mxu0
  %v11349 = vadd.f32 %v11300, %v11348
  %11350 = vmatmul.bf16.gmra.mxu0 %v10950
  %v11351 = vpop.f32.mrf.mxu0
  %v11352 = vadd.f32 %v11303, %v11351
  %v11353 = vpop.f32.mrf.mxu0
  %v11354 = vadd.f32 %v11305, %v11353
  %11355 = vmatmul.bf16.gmra.mxu0 %v10954
  %v11356 = vpop.f32.mrf.mxu0
  %v11357 = vadd.f32 %v11308, %v11356
  %v11358 = vpop.f32.mrf.mxu0
  %v11359 = vadd.f32 %v11310, %v11358
  %11360 = vmatmul.bf16.gmra.mxu0 %v10958
  %v11361 = vpop.f32.mrf.mxu0
  %v11362 = vadd.f32 %v11313, %v11361
  %v11363 = vpop.f32.mrf.mxu0
  %v11364 = vadd.f32 %v11315, %v11363
  %11365 = vmatmul.bf16.gmra.mxu0 %v10962
  %v11366 = vpop.f32.mrf.mxu0
  %v11367 = vadd.f32 %v11318, %v11366
  %v11368 = vpop.f32.mrf.mxu0
  %v11369 = vadd.f32 %v11320, %v11368
  %11370 = vdwg.mxu0
  %11371 = vmatpush.bf16.msra.mxu0 %v11191
  %11372 = vmatpush.bf16.msra.mxu0 %v11190
  %11373 = vmatpush.bf16.msra.mxu0 %v11189
  %11374 = vmatpush.bf16.msra.mxu0 %v11188
  %11375 = vmatpush.bf16.msra.mxu0 %v11187
  %11376 = vmatpush.bf16.msra.mxu0 %v11186
  %11377 = vmatpush.bf16.msra.mxu0 %v11185
  %11378 = vmatpush.bf16.msra.mxu0 %v11184
  %11379 = vmatmul.bf16.gmra.mxu0 %v10935
  %v11380 = vpop.f32.mrf.mxu0
  %v11381 = vadd.f32 %v11332, %v11380
  %v11382 = vpop.f32.mrf.mxu0
  %v11383 = vadd.f32 %v11334, %v11382
  %11384 = vmatmul.bf16.gmra.mxu0 %v10939
  %v11385 = vpop.f32.mrf.mxu0
  %v11386 = vadd.f32 %v11337, %v11385
  %v11387 = vpop.f32.mrf.mxu0
  %v11388 = vadd.f32 %v11339, %v11387
  %11389 = vmatmul.bf16.gmra.mxu0 %v10943
  %v11390 = vpop.f32.mrf.mxu0
  %v11391 = vadd.f32 %v11342, %v11390
  %v11392 = vpop.f32.mrf.mxu0
  %v11393 = vadd.f32 %v11344, %v11392
  %11394 = vmatmul.bf16.gmra.mxu0 %v10947
  %v11395 = vpop.f32.mrf.mxu0
  %v11396 = vadd.f32 %v11347, %v11395
  %v11397 = vpop.f32.mrf.mxu0
  %v11398 = vadd.f32 %v11349, %v11397
  %11399 = vmatmul.bf16.gmra.mxu0 %v10951
  %v11400 = vpop.f32.mrf.mxu0
  %v11401 = vadd.f32 %v11352, %v11400
  %v11402 = vpop.f32.mrf.mxu0
  %v11403 = vadd.f32 %v11354, %v11402
  %11404 = vmatmul.bf16.gmra.mxu0 %v10955
  %v11405 = vpop.f32.mrf.mxu0
  %v11406 = vadd.f32 %v11357, %v11405
  %v11407 = vpop.f32.mrf.mxu0
  %v11408 = vadd.f32 %v11359, %v11407
  %11409 = vmatmul.bf16.gmra.mxu0 %v10959
  %v11410 = vpop.f32.mrf.mxu0
  %v11411 = vadd.f32 %v11362, %v11410
  %v11412 = vpop.f32.mrf.mxu0
  %v11413 = vadd.f32 %v11364, %v11412
  %11414 = vmatmul.bf16.gmra.mxu0 %v10963
  %v11415 = vpop.f32.mrf.mxu0
  %v11416 = vadd.f32 %v11367, %v11415
  %v11417 = vpop.f32.mrf.mxu0
  %v11418 = vadd.f32 %v11369, %v11417
  %11419 = vdwg.mxu0
  %11420 = vst [vmem:[%s5] sm:$0xff] %v11381
  %11421 = vst [vmem:[%s5 + $0x8] sm:$0xff] %v11383
  %11422 = vst [vmem:[%s5 + $0x10] sm:$0xff] %v11386
  %11423 = vst [vmem:[%s5 + $0x18] sm:$0xff] %v11388
  %11424 = vst [vmem:[%s5 + $0x20] sm:$0xff] %v11391
  %11425 = vst [vmem:[%s5 + $0x28] sm:$0xff] %v11393
  %11426 = vst [vmem:[%s5 + $0x30] sm:$0xff] %v11396
  %11427 = vst [vmem:[%s5 + $0x38] sm:$0xff] %v11398
  %11428 = vst [vmem:[%s5 + $0x40] sm:$0xff] %v11401
  %11429 = vst [vmem:[%s5 + $0x48] sm:$0xff] %v11403
  %11430 = vst [vmem:[%s5 + $0x50] sm:$0xff] %v11406
  %11431 = vst [vmem:[%s5 + $0x58] sm:$0xff] %v11408
  %11432 = vst [vmem:[%s5 + $0x60] sm:$0xff] %v11411
  %11433 = vst [vmem:[%s5 + $0x68] sm:$0xff] %v11413
  %11434 = vst [vmem:[%s5 + $0x70] sm:$0xff] %v11416
  %11435 = vst [vmem:[%s5 + $0x78] sm:$0xff] %v11418
  // Predicated region
  $region22: #{dqn_forward.7} parent=0 // pred_check
    _
  $region23: #{dqn_forward.7} parent=0 // pred_check_branch
    %11437 = sbr.rel (0) target = $region25
  $region24: #{dqn_forward.7} parent=0 // pred_region
    _
  $region25: #{dqn_forward.7} parent=0 // pred_fallthru
    _
  // Predicated region
  $region26: #{dqn_forward.7} parent=0 // pred_check
    _
  $region27: #{dqn_forward.7} parent=0 // pred_check_branch
    %11439 = sbr.rel (0) target = $region29
  $region28: #{dqn_forward.7} parent=0 // pred_region
    _
  $region29: #{dqn_forward.7} parent=0 // pred_fallthru
    _

</llo_original>
